<compile_context>
chip_gen: v7x
topology: tpu7x:2x2x1
jax: 0.10.0
libtpu: 0.0.40
codegen_flags: <defaults>
</compile_context>

<pallas_src>
import functools

import jax
import jax.numpy as jnp
from jax.experimental import pallas as pl
from jax.experimental.pallas import tpu as pltpu

EPS = 1e-5          # PyTorch InstanceNorm2d default
LANE = 128
SUBLANE = 8


def _round_up(x, m):
    return (x + m - 1) // m * m


def _k_tiling(K):
    """Pad K and pick the K tile so Kp % tk == 0 and tiles stay (8,128)-aligned."""
    Kp = _round_up(K, SUBLANE)
    if Kp <= 1024:
        return Kp, Kp            # whole reduction in a single K block
    tk = 512
    return _round_up(Kp, tk), tk


# ----------------------------- Pallas kernels ------------------------------ #

def _epilogue(acc, bias, m, norm, relu):
    """bias-add [+ InstanceNorm] [+ ReLU] on a f32 [Mp, Cp] slab (one image)."""
    x = acc + bias
    if norm:
        mp = x.shape[0]
        if mp == m:
            mean = jnp.mean(x, axis=0, keepdims=True)          # sublane reduce
            xc = x - mean
            var = jnp.mean(xc * xc, axis=0, keepdims=True)     # biased (PyTorch)
        else:
            rows = jax.lax.broadcasted_iota(jnp.int32, (mp, 1), 0)
            mask = rows < m
            xm = jnp.where(mask, x, 0.0)
            mean = jnp.sum(xm, axis=0, keepdims=True) * (1.0 / m)
            xc = jnp.where(mask, x - mean, 0.0)
            var = jnp.sum(xc * xc, axis=0, keepdims=True) * (1.0 / m)
        x = xc * jax.lax.rsqrt(var + EPS)
    if relu:
        x = jnp.maximum(x, 0.0)
    return x


def _conv_in_kernel(p_ref, w_ref, b_ref, o_ref, acc_ref, *, m, relu, norm):
    # grid = (N, num_K_blocks); p block: (1, Mp, tk); w: (tk, Cp); b: (1, Cp)
    k = pl.program_id(1)

    @pl.when(k == 0)
    def _init():
        acc_ref[...] = jnp.zeros_like(acc_ref)

    acc_ref[...] += jnp.dot(p_ref[0], w_ref[...],
                            preferred_element_type=jnp.float32)

    @pl.when(k == pl.num_programs(1) - 1)
    def _finalize():
        y = _epilogue(acc_ref[...], b_ref[...], m, norm, relu)
        o_ref[0] = y.astype(o_ref.dtype)


def _conv_in_res_kernel(p_ref, w_ref, b_ref, r_ref, o_ref, acc_ref, *, m):
    # ResBlock tail:  out = residual + InstanceNorm(conv(x) + b)
    k = pl.program_id(1)

    @pl.when(k == 0)
    def _init():
        acc_ref[...] = jnp.zeros_like(acc_ref)

    acc_ref[...] += jnp.dot(p_ref[0], w_ref[...],
                            preferred_element_type=jnp.float32)

    @pl.when(k == pl.num_programs(1) - 1)
    def _finalize():
        y = _epilogue(acc_ref[...], b_ref[...], m, True, False)
        o_ref[0] = (r_ref[0] + y).astype(o_ref.dtype)


def _fused_conv_call(p, w, b, residual, *, m, relu, norm, tk):
    """p: (N, Mp, Kp) bf16; w: (Kp, Cp) bf16; b: (1, Cp) f32; residual: (N, Mp, Cp) f32|None."""
    N, Mp, Kp = p.shape
    _, Cp = w.shape
    nk = Kp // tk

    in_specs = [
        pl.BlockSpec((1, Mp, tk), lambda n, k: (n, 0, k)),
        pl.BlockSpec((tk, Cp), lambda n, k: (k, 0)),
        pl.BlockSpec((1, Cp), lambda n, k: (0, 0)),
    ]
    args = [p, w, b]
    if residual is None:
        kernel = functools.partial(_conv_in_kernel, m=m, relu=relu, norm=norm)
    else:
        in_specs.append(pl.BlockSpec((1, Mp, Cp), lambda n, k: (n, 0, 0)))
        args.append(residual)
        kernel = functools.partial(_conv_in_res_kernel, m=m)

    return pl.pallas_call(
        kernel,
        out_shape=jax.ShapeDtypeStruct((N, Mp, Cp), jnp.float32),
        grid_spec=pltpu.PrefetchScalarGridSpec(
            num_scalar_prefetch=0,
            grid=(N, nk),
            in_specs=in_specs,
            out_specs=pl.BlockSpec((1, Mp, Cp), lambda n, k: (n, 0, 0)),
            scratch_shapes=[pltpu.VMEM((Mp, Cp), jnp.float32)],
        ),
        compiler_params=pltpu.CompilerParams(
            dimension_semantics=("parallel", "arbitrary")),
    )(*args)


# ------------------------------- JAX glue ----------------------------------- #

def _im2col_nhwc(xp, kh, kw, stride):
    """xp: padded input (N, Hp, Wp, C) -> patches (N, Ho*Wo, kh*kw*C)."""
    N, Hp, Wp, C = xp.shape
    Ho = (Hp - kh) // stride + 1
    Wo = (Wp - kw) // stride + 1
    cols = []
    for dy in range(kh):
        for dx in range(kw):
            cols.append(
                xp[:, dy:dy + stride * (Ho - 1) + 1:stride,
                      dx:dx + stride * (Wo - 1) + 1:stride, :])
    p = jnp.stack(cols, axis=3)                  # (N, Ho, Wo, kh*kw, C)
    p = p.reshape(N, Ho * Wo, kh * kw * C)       # K order (dy, dx, cin) matches weight prep
    return p, Ho, Wo


def conv_block(x, w_kc, b_pad, cout, kh, kw, *, stride=1, pad=0,
               pad_mode="constant", relu=False, norm=True, residual=None):
    """x: (N, H, W, Cin) f32; w_kc: (Kp, Cp) bf16; b_pad: (1, Cp) f32."""
    N, H, W, Cin = x.shape
    if pad > 0:
        x = jnp.pad(x, ((0, 0), (pad, pad), (pad, pad), (0, 0)), mode=pad_mode)
    p, Ho, Wo = _im2col_nhwc(x, kh, kw, stride)
    # TODO(synk): im2col patch matrix is still materialized by XLA in HBM
    # (kh*kw x activation blowup); a tap-wise DMA loop inside the kernel would
    # remove that traffic.
    M = Ho * Wo
    K = kh * kw * Cin
    Kp_w, Cp = w_kc.shape
    Kp, tk = _k_tiling(K)
    assert Kp == Kp_w, (Kp, Kp_w)
    Mp = _round_up(M, SUBLANE)
    p = jnp.pad(p, ((0, 0), (0, Mp - M), (0, Kp - K))).astype(jnp.bfloat16)

    res = None
    if residual is not None:
        r = residual.reshape(N, M, cout)
        res = jnp.pad(r, ((0, 0), (0, Mp - M), (0, Cp - cout)))

    out = _fused_conv_call(p, w_kc, b_pad, res, m=M, relu=relu, norm=norm, tk=tk)
    return out[:, :M, :cout].reshape(N, Ho, Wo, cout)


def deconv_block(x, w_kc, b_pad, cout, kh, kw, *, stride, padding,
                 output_padding, relu, norm):
    """PyTorch ConvTranspose2d lowered to dilate + zero-pad + stride-1 conv."""
    N, H, W, Cin = x.shape
    Hd, Wd = (H - 1) * stride + 1, (W - 1) * stride + 1
    xd = jnp.zeros((N, Hd, Wd, Cin), x.dtype).at[:, ::stride, ::stride, :].set(x)
    lo = kh - 1 - padding
    hi = kh - 1 - padding + output_padding
    xd = jnp.pad(xd, ((0, 0), (lo, hi), (lo, hi), (0, 0)))
    return conv_block(xd, w_kc, b_pad, cout, kh, kw, stride=1, pad=0,
                      relu=relu, norm=norm)


# ------------------------------ Generator ----------------------------------- #

def init_generator_params(key, in_channels=1, hidden=8, out_channels=1,
                          num_downsampling=2, num_resnet_blocks=4,
                          init_gain=0.02):
    """'normal' init (std=init_gain), zero biases; weights pre-packed for the kernel."""
    def normal(k, shape):
        return init_gain * jax.random.normal(k, shape, jnp.float32)

    def prep_conv(w, b):
        # w: (Cout, Cin, kh, kw) PyTorch Conv2d layout.
        Cout, Cin, kh, kw = w.shape
        K = kh * kw * Cin
        Kp, _ = _k_tiling(K)
        Cp = _round_up(Cout, LANE)
        wk = jnp.transpose(w, (2, 3, 1, 0)).reshape(K, Cout)        # (dy,dx,cin) x Cout
        wk = jnp.pad(wk, ((0, Kp - K), (0, Cp - Cout))).astype(jnp.bfloat16)
        bp = jnp.pad(b, (0, Cp - Cout)).reshape(1, Cp).astype(jnp.float32)
        return {"w": wk, "b": bp}

    def prep_deconv(w, b):
        # w: (Cin, Cout, kh, kw) PyTorch ConvTranspose2d layout ->
        # equivalent stride-1 conv weight (flipped taps, in/out swapped).
        Cin, Cout, kh, kw = w.shape
        w_eq = jnp.flip(w, axis=(2, 3)).transpose(2, 3, 0, 1)       # (kh, kw, Cin, Cout)
        K = kh * kw * Cin
        Kp, _ = _k_tiling(K)
        Cp = _round_up(Cout, LANE)
        wk = w_eq.reshape(K, Cout)
        wk = jnp.pad(wk, ((0, Kp - K), (0, Cp - Cout))).astype(jnp.bfloat16)
        bp = jnp.pad(b, (0, Cp - Cout)).reshape(1, Cp).astype(jnp.float32)
        return {"w": wk, "b": bp}

    keys = iter(jax.random.split(key, 64))
    params = {}
    f = 1
    params["conv0"] = prep_conv(normal(next(keys), (hidden, in_channels, 7, 7)),
                                jnp.zeros((hidden,), jnp.float32))
    for i in range(num_downsampling):
        params[f"down{i}"] = prep_conv(
            normal(next(keys), (hidden * 2 * f, hidden * f, 3, 3)),
            jnp.zeros((hidden * 2 * f,), jnp.float32))
        f *= 2
    for i in range(num_resnet_blocks):
        c = hidden * f
        params[f"res{i}_1"] = prep_conv(normal(next(keys), (c, c, 3, 3)),
                                        jnp.zeros((c,), jnp.float32))
        params[f"res{i}_2"] = prep_conv(normal(next(keys), (c, c, 3, 3)),
                                        jnp.zeros((c,), jnp.float32))
    for i in range(num_downsampling):
        params[f"up{i}"] = prep_deconv(
            normal(next(keys), (hidden * f, hidden * (f // 2), 3, 3)),
            jnp.zeros((hidden * (f // 2),), jnp.float32))
        f //= 2
    params["convF"] = prep_conv(normal(next(keys), (out_channels, hidden, 7, 7)),
                                jnp.zeros((out_channels,), jnp.float32))
    return params


def generator_forward(params, x, *, hidden=8, out_channels=1,
                      num_downsampling=2, num_resnet_blocks=4):
    # x: NCHW (PyTorch boundary) -> NHWC internally (channels on the lane axis).
    h = jnp.transpose(x, (0, 2, 3, 1))

    f = 1
    # Stem: ReflectionPad(3) -> Conv(k7,s1) -> IN -> ReLU  (one fused kernel).
    h = conv_block(h, params["conv0"]["w"], params["conv0"]["b"], hidden, 7, 7,
                   stride=1, pad=3, pad_mode="reflect", relu=True, norm=True)

    # Downsampling: Conv(k3,s2,p1) -> IN -> ReLU.
    for i in range(num_downsampling):
        cout = hidden * 2 * f
        h = conv_block(h, params[f"down{i}"]["w"], params[f"down{i}"]["b"], cout,
                       3, 3, stride=2, pad=1, pad_mode="constant",
                       relu=True, norm=True)
        f *= 2

    # ResBlocks: x + [RefPad(1)-Conv-IN-ReLU-(Dropout)-RefPad(1)-Conv-IN](x).
    c = hidden * f
    for i in range(num_resnet_blocks):
        r = conv_block(h, params[f"res{i}_1"]["w"], params[f"res{i}_1"]["b"], c,
                       3, 3, stride=1, pad=1, pad_mode="reflect",
                       relu=True, norm=True)
        # TODO(synk): nn.Dropout(0.5) is eval-mode identity here (no RNG in fwd).
        h = conv_block(r, params[f"res{i}_2"]["w"], params[f"res{i}_2"]["b"], c,
                       3, 3, stride=1, pad=1, pad_mode="reflect",
                       relu=False, norm=True, residual=h)

    # Upsampling: ConvTranspose(k3,s2,p1,op1) -> IN -> ReLU.
    for i in range(num_downsampling):
        cout = hidden * (f // 2)
        h = deconv_block(h, params[f"up{i}"]["w"], params[f"up{i}"]["b"], cout,
                         3, 3, stride=2, padding=1, output_padding=1,
                         relu=True, norm=True)
        f //= 2

    # Head: ReflectionPad(3) -> Conv(k7,s1)  (no IN / ReLU).
    h = conv_block(h, params["convF"]["w"], params["convF"]["b"], out_channels,
                   7, 7, stride=1, pad=3, pad_mode="reflect",
                   relu=False, norm=False)
    return jnp.transpose(h, (0, 3, 1, 2))


if __name__ == "__main__":
    key = jax.random.PRNGKey(0)
    kx, kp = jax.random.split(key)

    # Small, module-consistent config: Generator(in=1, hidden=8, out=1,
    # num_downsampling=2, num_resnet_blocks=4); input NCHW = (2, 1, 16, 16).
    x = jax.random.normal(kx, (2, 1, 16, 16), jnp.float32)
    params = init_generator_params(kp, in_channels=1, hidden=8, out_channels=1,
                                   num_downsampling=2, num_resnet_blocks=4)

    fwd = jax.jit(functools.partial(generator_forward, hidden=8, out_channels=1,
                                    num_downsampling=2, num_resnet_blocks=4))
    y = fwd(params, x)
    jax.block_until_ready(y)
    assert y.shape == (2, 1, 16, 16), y.shape
    assert y.dtype == jnp.float32
    print("KERNEL_OK")
</pallas_src>

<mosaic_0001>
module attributes {stable_mosaic.version = 11 : i64} {
  func.func @_conv_in_kernel(%arg0: i32, %arg1: i32, %arg2: memref<1x256x56xbf16, #tpu.memory_space<vmem>>, %arg3: memref<56x128xbf16, #tpu.memory_space<vmem>>, %arg4: memref<1x128xf32, #tpu.memory_space<vmem>>, %arg5: memref<1x256x128xf32, #tpu.memory_space<vmem>>, %arg6: memref<256x128xf32, #tpu.memory_space<vmem>>) attributes {dimension_semantics = [#tpu.dimension_semantics<parallel>, #tpu.dimension_semantics<arbitrary>], iteration_bounds = array<i64: 2, 1>, scalar_prefetch = 0 : i64, scratch_operands = 1 : i64, tpu.core_type = #tpu.core_type<tc>, window_params = [{transform_indices = @transform_0, window_bounds = array<i64: 1, 256, 56>}, {transform_indices = @transform_1, window_bounds = array<i64: 56, 128>}, {pipeline_mode = #tpu.pipeline_mode<synchronous>, transform_indices = @transform_2, window_bounds = array<i64: 1, 128>}, {transform_indices = @transform_3, window_bounds = array<i64: 1, 256, 128>}]} {
    %c0_i32 = arith.constant 0 : i32
    %0 = arith.cmpi eq, %arg1, %c0_i32 : i32
    %1 = arith.extui %0 : i1 to i32
    %c0_i32_0 = arith.constant 0 : i32
    %2 = arith.cmpi ne, %1, %c0_i32_0 : i32
    scf.if %2 {
      %cst_11 = arith.constant 0.000000e+00 : f32
      %13 = vector.broadcast %cst_11 : f32 to vector<256x128xf32>
      %c0_12 = arith.constant 0 : index
      %c0_13 = arith.constant 0 : index
      %14 = vector.load %arg6[%c0_12, %c0_13] : memref<256x128xf32, #tpu.memory_space<vmem>>, vector<256x128xf32>
      tpu.vector_store %arg6[%c0_12, %c0_13], %13 {strides = array<i32>} : memref<256x128xf32, #tpu.memory_space<vmem>>, vector<256x128xf32>,
    } else {
    }
    %c0 = arith.constant 0 : index
    %c0_1 = arith.constant 0 : index
    %3 = vector.load %arg6[%c0, %c0_1] : memref<256x128xf32, #tpu.memory_space<vmem>>, vector<256x128xf32>
    %c0_2 = arith.constant 0 : index
    %c0_3 = arith.constant 0 : index
    %c0_4 = arith.constant 0 : index
    %4 = vector.load %arg2[%c0_2, %c0_3, %c0_4] : memref<1x256x56xbf16, #tpu.memory_space<vmem>>, vector<1x256x56xbf16>
    %5 = vector.shape_cast %4 : vector<1x256x56xbf16> to vector<256x56xbf16>
    %c0_5 = arith.constant 0 : index
    %c0_6 = arith.constant 0 : index
    %6 = vector.load %arg3[%c0_5, %c0_6] : memref<56x128xbf16, #tpu.memory_space<vmem>>, vector<56x128xbf16>
    %cst = arith.constant dense<0.000000e+00> : vector<256x128xf32>
    %7 = tpu.matmul %5, %6, %cst {dimension_numbers = #tpu.dot_dimension_numbers<[1], [0], [0], [1], [0, 0, 1, 1], [], []>} : vector<256x56xbf16>, vector<56x128xbf16>, vector<256x128xf32> -> vector<256x128xf32>
    %8 = arith.addf %3, %7 : vector<256x128xf32>
    %c0_7 = arith.constant 0 : index
    %c0_8 = arith.constant 0 : index
    %9 = vector.load %arg6[%c0_7, %c0_8] : memref<256x128xf32, #tpu.memory_space<vmem>>, vector<256x128xf32>
    tpu.vector_store %arg6[%c0_7, %c0_8], %8 {strides = array<i32>} : memref<256x128xf32, #tpu.memory_space<vmem>>, vector<256x128xf32>,
    %c0_i32_9 = arith.constant 0 : i32
    %10 = arith.cmpi eq, %arg1, %c0_i32_9 : i32
    %11 = arith.extui %10 : i1 to i32
    %c0_i32_10 = arith.constant 0 : i32
    %12 = arith.cmpi ne, %11, %c0_i32_10 : i32
    scf.if %12 {
      %c0_11 = arith.constant 0 : index
      %c0_12 = arith.constant 0 : index
      %13 = vector.load %arg6[%c0_11, %c0_12] : memref<256x128xf32, #tpu.memory_space<vmem>>, vector<256x128xf32>
      %c0_13 = arith.constant 0 : index
      %c0_14 = arith.constant 0 : index
      %14 = vector.load %arg4[%c0_13, %c0_14] : memref<1x128xf32, #tpu.memory_space<vmem>>, vector<1x128xf32>
      %15 = vector.broadcast %14 : vector<1x128xf32> to vector<256x128xf32>
      %16 = arith.addf %13, %15 : vector<256x128xf32>
      %cst_15 = arith.constant dense<0.000000e+00> : vector<128xf32>
      %17 = vector.multi_reduction <add>, %16, %cst_15 [0] : vector<256x128xf32> to vector<128xf32>
      %18 = vector.shape_cast %17 : vector<128xf32> to vector<1x128xf32>
      %cst_16 = arith.constant 2.560000e+02 : f32
      %19 = vector.broadcast %cst_16 : f32 to vector<1x128xf32>
      %20 = arith.divf %18, %19 : vector<1x128xf32>
      %21 = vector.broadcast %20 : vector<1x128xf32> to vector<256x128xf32>
      %22 = arith.subf %16, %21 : vector<256x128xf32>
      %23 = arith.mulf %22, %22 : vector<256x128xf32>
      %cst_17 = arith.constant dense<0.000000e+00> : vector<128xf32>
      %24 = vector.multi_reduction <add>, %23, %cst_17 [0] : vector<256x128xf32> to vector<128xf32>
      %25 = vector.shape_cast %24 : vector<128xf32> to vector<1x128xf32>
      %cst_18 = arith.constant 2.560000e+02 : f32
      %26 = vector.broadcast %cst_18 : f32 to vector<1x128xf32>
      %27 = arith.divf %25, %26 : vector<1x128xf32>
      %cst_19 = arith.constant 9.99999974E-6 : f32
      %28 = vector.broadcast %cst_19 : f32 to vector<1x128xf32>
      %29 = arith.addf %27, %28 : vector<1x128xf32>
      %30 = math.rsqrt %29 : vector<1x128xf32>
      %31 = vector.broadcast %30 : vector<1x128xf32> to vector<256x128xf32>
      %32 = arith.mulf %22, %31 : vector<256x128xf32>
      %cst_20 = arith.constant 0.000000e+00 : f32
      %33 = vector.broadcast %cst_20 : f32 to vector<256x128xf32>
      %34 = arith.maximumf %32, %33 : vector<256x128xf32>
      %c0_21 = arith.constant 0 : index
      %c0_22 = arith.constant 0 : index
      %c0_23 = arith.constant 0 : index
      %35 = vector.load %arg5[%c0_21, %c0_22, %c0_23] : memref<1x256x128xf32, #tpu.memory_space<vmem>>, vector<1x256x128xf32>
      %36 = vector.shape_cast %35 : vector<1x256x128xf32> to vector<256x128xf32>
      %37 = vector.shape_cast %34 : vector<256x128xf32> to vector<1x256x128xf32>
      tpu.vector_store %arg5[%c0_21, %c0_22, %c0_23], %37 {strides = array<i32>} : memref<1x256x128xf32, #tpu.memory_space<vmem>>, vector<1x256x128xf32>,
    } else {
    }
    return
  }
  func.func @transform_0(%arg0: i32, %arg1: i32) -> (i32, i32, i32) {
    %c0_i32 = arith.constant 0 : i32
    %c0_i32_0 = arith.constant 0 : i32
    return %arg0, %c0_i32, %arg1 : i32, i32, i32
  }
  func.func @transform_1(%arg0: i32, %arg1: i32) -> (i32, i32) {
    %c0_i32 = arith.constant 0 : i32
    %c0_i32_0 = arith.constant 0 : i32
    return %arg1, %c0_i32 : i32, i32
  }
  func.func @transform_2(%arg0: i32, %arg1: i32) -> (i32, i32) {
    %c0_i32 = arith.constant 0 : i32
    %c0_i32_0 = arith.constant 0 : i32
    %c0_i32_1 = arith.constant 0 : i32
    return %c0_i32, %c0_i32_0 : i32, i32
  }
  func.func @transform_3(%arg0: i32, %arg1: i32) -> (i32, i32, i32) {
    %c0_i32 = arith.constant 0 : i32
    %c0_i32_0 = arith.constant 0 : i32
    %c0_i32_1 = arith.constant 0 : i32
    return %arg0, %c0_i32, %c0_i32_0 : i32, i32, i32
  }
}

module attributes {stable_mosaic.version = 11 : i64} {
  func.func @_conv_in_kernel(%arg0: i32, %arg1: i32, %arg2: memref<1x64x72xbf16, #tpu.memory_space<vmem>>, %arg3: memref<72x128xbf16, #tpu.memory_space<vmem>>, %arg4: memref<1x128xf32, #tpu.memory_space<vmem>>, %arg5: memref<1x64x128xf32, #tpu.memory_space<vmem>>, %arg6: memref<64x128xf32, #tpu.memory_space<vmem>>) attributes {dimension_semantics = [#tpu.dimension_semantics<parallel>, #tpu.dimension_semantics<arbitrary>], iteration_bounds = array<i64: 2, 1>, scalar_prefetch = 0 : i64, scratch_operands = 1 : i64, tpu.core_type = #tpu.core_type<tc>, window_params = [{transform_indices = @transform_0, window_bounds = array<i64: 1, 64, 72>}, {transform_indices = @transform_1, window_bounds = array<i64: 72, 128>}, {pipeline_mode = #tpu.pipeline_mode<synchronous>, transform_indices = @transform_2, window_bounds = array<i64: 1, 128>}, {transform_indices = @transform_3, window_bounds = array<i64: 1, 64, 128>}]} {
    %c0_i32 = arith.constant 0 : i32
    %0 = arith.cmpi eq, %arg1, %c0_i32 : i32
    %1 = arith.extui %0 : i1 to i32
    %c0_i32_0 = arith.constant 0 : i32
    %2 = arith.cmpi ne, %1, %c0_i32_0 : i32
    scf.if %2 {
      %cst_11 = arith.constant 0.000000e+00 : f32
      %13 = vector.broadcast %cst_11 : f32 to vector<64x128xf32>
      %c0_12 = arith.constant 0 : index
      %c0_13 = arith.constant 0 : index
      %14 = vector.load %arg6[%c0_12, %c0_13] : memref<64x128xf32, #tpu.memory_space<vmem>>, vector<64x128xf32>
      tpu.vector_store %arg6[%c0_12, %c0_13], %13 {strides = array<i32>} : memref<64x128xf32, #tpu.memory_space<vmem>>, vector<64x128xf32>,
    } else {
    }
    %c0 = arith.constant 0 : index
    %c0_1 = arith.constant 0 : index
    %3 = vector.load %arg6[%c0, %c0_1] : memref<64x128xf32, #tpu.memory_space<vmem>>, vector<64x128xf32>
    %c0_2 = arith.constant 0 : index
    %c0_3 = arith.constant 0 : index
    %c0_4 = arith.constant 0 : index
    %4 = vector.load %arg2[%c0_2, %c0_3, %c0_4] : memref<1x64x72xbf16, #tpu.memory_space<vmem>>, vector<1x64x72xbf16>
    %5 = vector.shape_cast %4 : vector<1x64x72xbf16> to vector<64x72xbf16>
    %c0_5 = arith.constant 0 : index
    %c0_6 = arith.constant 0 : index
    %6 = vector.load %arg3[%c0_5, %c0_6] : memref<72x128xbf16, #tpu.memory_space<vmem>>, vector<72x128xbf16>
    %cst = arith.constant dense<0.000000e+00> : vector<64x128xf32>
    %7 = tpu.matmul %5, %6, %cst {dimension_numbers = #tpu.dot_dimension_numbers<[1], [0], [0], [1], [0, 0, 1, 1], [], []>} : vector<64x72xbf16>, vector<72x128xbf16>, vector<64x128xf32> -> vector<64x128xf32>
    %8 = arith.addf %3, %7 : vector<64x128xf32>
    %c0_7 = arith.constant 0 : index
    %c0_8 = arith.constant 0 : index
    %9 = vector.load %arg6[%c0_7, %c0_8] : memref<64x128xf32, #tpu.memory_space<vmem>>, vector<64x128xf32>
    tpu.vector_store %arg6[%c0_7, %c0_8], %8 {strides = array<i32>} : memref<64x128xf32, #tpu.memory_space<vmem>>, vector<64x128xf32>,
    %c0_i32_9 = arith.constant 0 : i32
    %10 = arith.cmpi eq, %arg1, %c0_i32_9 : i32
    %11 = arith.extui %10 : i1 to i32
    %c0_i32_10 = arith.constant 0 : i32
    %12 = arith.cmpi ne, %11, %c0_i32_10 : i32
    scf.if %12 {
      %c0_11 = arith.constant 0 : index
      %c0_12 = arith.constant 0 : index
      %13 = vector.load %arg6[%c0_11, %c0_12] : memref<64x128xf32, #tpu.memory_space<vmem>>, vector<64x128xf32>
      %c0_13 = arith.constant 0 : index
      %c0_14 = arith.constant 0 : index
      %14 = vector.load %arg4[%c0_13, %c0_14] : memref<1x128xf32, #tpu.memory_space<vmem>>, vector<1x128xf32>
      %15 = vector.broadcast %14 : vector<1x128xf32> to vector<64x128xf32>
      %16 = arith.addf %13, %15 : vector<64x128xf32>
      %cst_15 = arith.constant dense<0.000000e+00> : vector<128xf32>
      %17 = vector.multi_reduction <add>, %16, %cst_15 [0] : vector<64x128xf32> to vector<128xf32>
      %18 = vector.shape_cast %17 : vector<128xf32> to vector<1x128xf32>
      %cst_16 = arith.constant 6.400000e+01 : f32
      %19 = vector.broadcast %cst_16 : f32 to vector<1x128xf32>
      %20 = arith.divf %18, %19 : vector<1x128xf32>
      %21 = vector.broadcast %20 : vector<1x128xf32> to vector<64x128xf32>
      %22 = arith.subf %16, %21 : vector<64x128xf32>
      %23 = arith.mulf %22, %22 : vector<64x128xf32>
      %cst_17 = arith.constant dense<0.000000e+00> : vector<128xf32>
      %24 = vector.multi_reduction <add>, %23, %cst_17 [0] : vector<64x128xf32> to vector<128xf32>
      %25 = vector.shape_cast %24 : vector<128xf32> to vector<1x128xf32>
      %cst_18 = arith.constant 6.400000e+01 : f32
      %26 = vector.broadcast %cst_18 : f32 to vector<1x128xf32>
      %27 = arith.divf %25, %26 : vector<1x128xf32>
      %cst_19 = arith.constant 9.99999974E-6 : f32
      %28 = vector.broadcast %cst_19 : f32 to vector<1x128xf32>
      %29 = arith.addf %27, %28 : vector<1x128xf32>
      %30 = math.rsqrt %29 : vector<1x128xf32>
      %31 = vector.broadcast %30 : vector<1x128xf32> to vector<64x128xf32>
      %32 = arith.mulf %22, %31 : vector<64x128xf32>
      %cst_20 = arith.constant 0.000000e+00 : f32
      %33 = vector.broadcast %cst_20 : f32 to vector<64x128xf32>
      %34 = arith.maximumf %32, %33 : vector<64x128xf32>
      %c0_21 = arith.constant 0 : index
      %c0_22 = arith.constant 0 : index
      %c0_23 = arith.constant 0 : index
      %35 = vector.load %arg5[%c0_21, %c0_22, %c0_23] : memref<1x64x128xf32, #tpu.memory_space<vmem>>, vector<1x64x128xf32>
      %36 = vector.shape_cast %35 : vector<1x64x128xf32> to vector<64x128xf32>
      %37 = vector.shape_cast %34 : vector<64x128xf32> to vector<1x64x128xf32>
      tpu.vector_store %arg5[%c0_21, %c0_22, %c0_23], %37 {strides = array<i32>} : memref<1x64x128xf32, #tpu.memory_space<vmem>>, vector<1x64x128xf32>,
    } else {
    }
    return
  }
  func.func @transform_0(%arg0: i32, %arg1: i32) -> (i32, i32, i32) {
    %c0_i32 = arith.constant 0 : i32
    %c0_i32_0 = arith.constant 0 : i32
    return %arg0, %c0_i32, %arg1 : i32, i32, i32
  }
  func.func @transform_1(%arg0: i32, %arg1: i32) -> (i32, i32) {
    %c0_i32 = arith.constant 0 : i32
    %c0_i32_0 = arith.constant 0 : i32
    return %arg1, %c0_i32 : i32, i32
  }
  func.func @transform_2(%arg0: i32, %arg1: i32) -> (i32, i32) {
    %c0_i32 = arith.constant 0 : i32
    %c0_i32_0 = arith.constant 0 : i32
    %c0_i32_1 = arith.constant 0 : i32
    return %c0_i32, %c0_i32_0 : i32, i32
  }
  func.func @transform_3(%arg0: i32, %arg1: i32) -> (i32, i32, i32) {
    %c0_i32 = arith.constant 0 : i32
    %c0_i32_0 = arith.constant 0 : i32
    %c0_i32_1 = arith.constant 0 : i32
    return %arg0, %c0_i32, %c0_i32_0 : i32, i32, i32
  }
}

module attributes {stable_mosaic.version = 11 : i64} {
  func.func @_conv_in_kernel(%arg0: i32, %arg1: i32, %arg2: memref<1x16x144xbf16, #tpu.memory_space<vmem>>, %arg3: memref<144x128xbf16, #tpu.memory_space<vmem>>, %arg4: memref<1x128xf32, #tpu.memory_space<vmem>>, %arg5: memref<1x16x128xf32, #tpu.memory_space<vmem>>, %arg6: memref<16x128xf32, #tpu.memory_space<vmem>>) attributes {dimension_semantics = [#tpu.dimension_semantics<parallel>, #tpu.dimension_semantics<arbitrary>], iteration_bounds = array<i64: 2, 1>, scalar_prefetch = 0 : i64, scratch_operands = 1 : i64, tpu.core_type = #tpu.core_type<tc>, window_params = [{transform_indices = @transform_0, window_bounds = array<i64: 1, 16, 144>}, {transform_indices = @transform_1, window_bounds = array<i64: 144, 128>}, {pipeline_mode = #tpu.pipeline_mode<synchronous>, transform_indices = @transform_2, window_bounds = array<i64: 1, 128>}, {transform_indices = @transform_3, window_bounds = array<i64: 1, 16, 128>}]} {
    %c0_i32 = arith.constant 0 : i32
    %0 = arith.cmpi eq, %arg1, %c0_i32 : i32
    %1 = arith.extui %0 : i1 to i32
    %c0_i32_0 = arith.constant 0 : i32
    %2 = arith.cmpi ne, %1, %c0_i32_0 : i32
    scf.if %2 {
      %cst_11 = arith.constant 0.000000e+00 : f32
      %13 = vector.broadcast %cst_11 : f32 to vector<16x128xf32>
      %c0_12 = arith.constant 0 : index
      %c0_13 = arith.constant 0 : index
      %14 = vector.load %arg6[%c0_12, %c0_13] : memref<16x128xf32, #tpu.memory_space<vmem>>, vector<16x128xf32>
      tpu.vector_store %arg6[%c0_12, %c0_13], %13 {strides = array<i32>} : memref<16x128xf32, #tpu.memory_space<vmem>>, vector<16x128xf32>,
    } else {
    }
    %c0 = arith.constant 0 : index
    %c0_1 = arith.constant 0 : index
    %3 = vector.load %arg6[%c0, %c0_1] : memref<16x128xf32, #tpu.memory_space<vmem>>, vector<16x128xf32>
    %c0_2 = arith.constant 0 : index
    %c0_3 = arith.constant 0 : index
    %c0_4 = arith.constant 0 : index
    %4 = vector.load %arg2[%c0_2, %c0_3, %c0_4] : memref<1x16x144xbf16, #tpu.memory_space<vmem>>, vector<1x16x144xbf16>
    %5 = vector.shape_cast %4 : vector<1x16x144xbf16> to vector<16x144xbf16>
    %c0_5 = arith.constant 0 : index
    %c0_6 = arith.constant 0 : index
    %6 = vector.load %arg3[%c0_5, %c0_6] : memref<144x128xbf16, #tpu.memory_space<vmem>>, vector<144x128xbf16>
    %cst = arith.constant dense<0.000000e+00> : vector<16x128xf32>
    %7 = tpu.matmul %5, %6, %cst {dimension_numbers = #tpu.dot_dimension_numbers<[1], [0], [0], [1], [0, 0, 1, 1], [], []>} : vector<16x144xbf16>, vector<144x128xbf16>, vector<16x128xf32> -> vector<16x128xf32>
    %8 = arith.addf %3, %7 : vector<16x128xf32>
    %c0_7 = arith.constant 0 : index
    %c0_8 = arith.constant 0 : index
    %9 = vector.load %arg6[%c0_7, %c0_8] : memref<16x128xf32, #tpu.memory_space<vmem>>, vector<16x128xf32>
    tpu.vector_store %arg6[%c0_7, %c0_8], %8 {strides = array<i32>} : memref<16x128xf32, #tpu.memory_space<vmem>>, vector<16x128xf32>,
    %c0_i32_9 = arith.constant 0 : i32
    %10 = arith.cmpi eq, %arg1, %c0_i32_9 : i32
    %11 = arith.extui %10 : i1 to i32
    %c0_i32_10 = arith.constant 0 : i32
    %12 = arith.cmpi ne, %11, %c0_i32_10 : i32
    scf.if %12 {
      %c0_11 = arith.constant 0 : index
      %c0_12 = arith.constant 0 : index
      %13 = vector.load %arg6[%c0_11, %c0_12] : memref<16x128xf32, #tpu.memory_space<vmem>>, vector<16x128xf32>
      %c0_13 = arith.constant 0 : index
      %c0_14 = arith.constant 0 : index
      %14 = vector.load %arg4[%c0_13, %c0_14] : memref<1x128xf32, #tpu.memory_space<vmem>>, vector<1x128xf32>
      %15 = vector.broadcast %14 : vector<1x128xf32> to vector<16x128xf32>
      %16 = arith.addf %13, %15 : vector<16x128xf32>
      %cst_15 = arith.constant dense<0.000000e+00> : vector<128xf32>
      %17 = vector.multi_reduction <add>, %16, %cst_15 [0] : vector<16x128xf32> to vector<128xf32>
      %18 = vector.shape_cast %17 : vector<128xf32> to vector<1x128xf32>
      %cst_16 = arith.constant 1.600000e+01 : f32
      %19 = vector.broadcast %cst_16 : f32 to vector<1x128xf32>
      %20 = arith.divf %18, %19 : vector<1x128xf32>
      %21 = vector.broadcast %20 : vector<1x128xf32> to vector<16x128xf32>
      %22 = arith.subf %16, %21 : vector<16x128xf32>
      %23 = arith.mulf %22, %22 : vector<16x128xf32>
      %cst_17 = arith.constant dense<0.000000e+00> : vector<128xf32>
      %24 = vector.multi_reduction <add>, %23, %cst_17 [0] : vector<16x128xf32> to vector<128xf32>
      %25 = vector.shape_cast %24 : vector<128xf32> to vector<1x128xf32>
      %cst_18 = arith.constant 1.600000e+01 : f32
      %26 = vector.broadcast %cst_18 : f32 to vector<1x128xf32>
      %27 = arith.divf %25, %26 : vector<1x128xf32>
      %cst_19 = arith.constant 9.99999974E-6 : f32
      %28 = vector.broadcast %cst_19 : f32 to vector<1x128xf32>
      %29 = arith.addf %27, %28 : vector<1x128xf32>
      %30 = math.rsqrt %29 : vector<1x128xf32>
      %31 = vector.broadcast %30 : vector<1x128xf32> to vector<16x128xf32>
      %32 = arith.mulf %22, %31 : vector<16x128xf32>
      %cst_20 = arith.constant 0.000000e+00 : f32
      %33 = vector.broadcast %cst_20 : f32 to vector<16x128xf32>
      %34 = arith.maximumf %32, %33 : vector<16x128xf32>
      %c0_21 = arith.constant 0 : index
      %c0_22 = arith.constant 0 : index
      %c0_23 = arith.constant 0 : index
      %35 = vector.load %arg5[%c0_21, %c0_22, %c0_23] : memref<1x16x128xf32, #tpu.memory_space<vmem>>, vector<1x16x128xf32>
      %36 = vector.shape_cast %35 : vector<1x16x128xf32> to vector<16x128xf32>
      %37 = vector.shape_cast %34 : vector<16x128xf32> to vector<1x16x128xf32>
      tpu.vector_store %arg5[%c0_21, %c0_22, %c0_23], %37 {strides = array<i32>} : memref<1x16x128xf32, #tpu.memory_space<vmem>>, vector<1x16x128xf32>,
    } else {
    }
    return
  }
  func.func @transform_0(%arg0: i32, %arg1: i32) -> (i32, i32, i32) {
    %c0_i32 = arith.constant 0 : i32
    %c0_i32_0 = arith.constant 0 : i32
    return %arg0, %c0_i32, %arg1 : i32, i32, i32
  }
  func.func @transform_1(%arg0: i32, %arg1: i32) -> (i32, i32) {
    %c0_i32 = arith.constant 0 : i32
    %c0_i32_0 = arith.constant 0 : i32
    return %arg1, %c0_i32 : i32, i32
  }
  func.func @transform_2(%arg0: i32, %arg1: i32) -> (i32, i32) {
    %c0_i32 = arith.constant 0 : i32
    %c0_i32_0 = arith.constant 0 : i32
    %c0_i32_1 = arith.constant 0 : i32
    return %c0_i32, %c0_i32_0 : i32, i32
  }
  func.func @transform_3(%arg0: i32, %arg1: i32) -> (i32, i32, i32) {
    %c0_i32 = arith.constant 0 : i32
    %c0_i32_0 = arith.constant 0 : i32
    %c0_i32_1 = arith.constant 0 : i32
    return %arg0, %c0_i32, %c0_i32_0 : i32, i32, i32
  }
}

module attributes {stable_mosaic.version = 11 : i64} {
  func.func @_conv_in_res_kernel(%arg0: i32, %arg1: i32, %arg2: memref<1x16x288xbf16, #tpu.memory_space<vmem>>, %arg3: memref<288x128xbf16, #tpu.memory_space<vmem>>, %arg4: memref<1x128xf32, #tpu.memory_space<vmem>>, %arg5: memref<1x16x128xf32, #tpu.memory_space<vmem>>, %arg6: memref<1x16x128xf32, #tpu.memory_space<vmem>>, %arg7: memref<16x128xf32, #tpu.memory_space<vmem>>) attributes {dimension_semantics = [#tpu.dimension_semantics<parallel>, #tpu.dimension_semantics<arbitrary>], iteration_bounds = array<i64: 2, 1>, scalar_prefetch = 0 : i64, scratch_operands = 1 : i64, tpu.core_type = #tpu.core_type<tc>, window_params = [{transform_indices = @transform_0, window_bounds = array<i64: 1, 16, 288>}, {transform_indices = @transform_1, window_bounds = array<i64: 288, 128>}, {pipeline_mode = #tpu.pipeline_mode<synchronous>, transform_indices = @transform_2, window_bounds = array<i64: 1, 128>}, {transform_indices = @transform_3, window_bounds = array<i64: 1, 16, 128>}, {transform_indices = @transform_4, window_bounds = array<i64: 1, 16, 128>}]} {
    %c0_i32 = arith.constant 0 : i32
    %0 = arith.cmpi eq, %arg1, %c0_i32 : i32
    %1 = arith.extui %0 : i1 to i32
    %c0_i32_0 = arith.constant 0 : i32
    %2 = arith.cmpi ne, %1, %c0_i32_0 : i32
    scf.if %2 {
      %cst_11 = arith.constant 0.000000e+00 : f32
      %13 = vector.broadcast %cst_11 : f32 to vector<16x128xf32>
      %c0_12 = arith.constant 0 : index
      %c0_13 = arith.constant 0 : index
      %14 = vector.load %arg7[%c0_12, %c0_13] : memref<16x128xf32, #tpu.memory_space<vmem>>, vector<16x128xf32>
      tpu.vector_store %arg7[%c0_12, %c0_13], %13 {strides = array<i32>} : memref<16x128xf32, #tpu.memory_space<vmem>>, vector<16x128xf32>,
    } else {
    }
    %c0 = arith.constant 0 : index
    %c0_1 = arith.constant 0 : index
    %3 = vector.load %arg7[%c0, %c0_1] : memref<16x128xf32, #tpu.memory_space<vmem>>, vector<16x128xf32>
    %c0_2 = arith.constant 0 : index
    %c0_3 = arith.constant 0 : index
    %c0_4 = arith.constant 0 : index
    %4 = vector.load %arg2[%c0_2, %c0_3, %c0_4] : memref<1x16x288xbf16, #tpu.memory_space<vmem>>, vector<1x16x288xbf16>
    %5 = vector.shape_cast %4 : vector<1x16x288xbf16> to vector<16x288xbf16>
    %c0_5 = arith.constant 0 : index
    %c0_6 = arith.constant 0 : index
    %6 = vector.load %arg3[%c0_5, %c0_6] : memref<288x128xbf16, #tpu.memory_space<vmem>>, vector<288x128xbf16>
    %cst = arith.constant dense<0.000000e+00> : vector<16x128xf32>
    %7 = tpu.matmul %5, %6, %cst {dimension_numbers = #tpu.dot_dimension_numbers<[1], [0], [0], [1], [0, 0, 1, 1], [], []>} : vector<16x288xbf16>, vector<288x128xbf16>, vector<16x128xf32> -> vector<16x128xf32>
    %8 = arith.addf %3, %7 : vector<16x128xf32>
    %c0_7 = arith.constant 0 : index
    %c0_8 = arith.constant 0 : index
    %9 = vector.load %arg7[%c0_7, %c0_8] : memref<16x128xf32, #tpu.memory_space<vmem>>, vector<16x128xf32>
    tpu.vector_store %arg7[%c0_7, %c0_8], %8 {strides = array<i32>} : memref<16x128xf32, #tpu.memory_space<vmem>>, vector<16x128xf32>,
    %c0_i32_9 = arith.constant 0 : i32
    %10 = arith.cmpi eq, %arg1, %c0_i32_9 : i32
    %11 = arith.extui %10 : i1 to i32
    %c0_i32_10 = arith.constant 0 : i32
    %12 = arith.cmpi ne, %11, %c0_i32_10 : i32
    scf.if %12 {
      %c0_11 = arith.constant 0 : index
      %c0_12 = arith.constant 0 : index
      %13 = vector.load %arg7[%c0_11, %c0_12] : memref<16x128xf32, #tpu.memory_space<vmem>>, vector<16x128xf32>
      %c0_13 = arith.constant 0 : index
      %c0_14 = arith.constant 0 : index
      %14 = vector.load %arg4[%c0_13, %c0_14] : memref<1x128xf32, #tpu.memory_space<vmem>>, vector<1x128xf32>
      %15 = vector.broadcast %14 : vector<1x128xf32> to vector<16x128xf32>
      %16 = arith.addf %13, %15 : vector<16x128xf32>
      %cst_15 = arith.constant dense<0.000000e+00> : vector<128xf32>
      %17 = vector.multi_reduction <add>, %16, %cst_15 [0] : vector<16x128xf32> to vector<128xf32>
      %18 = vector.shape_cast %17 : vector<128xf32> to vector<1x128xf32>
      %cst_16 = arith.constant 1.600000e+01 : f32
      %19 = vector.broadcast %cst_16 : f32 to vector<1x128xf32>
      %20 = arith.divf %18, %19 : vector<1x128xf32>
      %21 = vector.broadcast %20 : vector<1x128xf32> to vector<16x128xf32>
      %22 = arith.subf %16, %21 : vector<16x128xf32>
      %23 = arith.mulf %22, %22 : vector<16x128xf32>
      %cst_17 = arith.constant dense<0.000000e+00> : vector<128xf32>
      %24 = vector.multi_reduction <add>, %23, %cst_17 [0] : vector<16x128xf32> to vector<128xf32>
      %25 = vector.shape_cast %24 : vector<128xf32> to vector<1x128xf32>
      %cst_18 = arith.constant 1.600000e+01 : f32
      %26 = vector.broadcast %cst_18 : f32 to vector<1x128xf32>
      %27 = arith.divf %25, %26 : vector<1x128xf32>
      %cst_19 = arith.constant 9.99999974E-6 : f32
      %28 = vector.broadcast %cst_19 : f32 to vector<1x128xf32>
      %29 = arith.addf %27, %28 : vector<1x128xf32>
      %30 = math.rsqrt %29 : vector<1x128xf32>
      %31 = vector.broadcast %30 : vector<1x128xf32> to vector<16x128xf32>
      %32 = arith.mulf %22, %31 : vector<16x128xf32>
      %c0_20 = arith.constant 0 : index
      %c0_21 = arith.constant 0 : index
      %c0_22 = arith.constant 0 : index
      %33 = vector.load %arg5[%c0_20, %c0_21, %c0_22] : memref<1x16x128xf32, #tpu.memory_space<vmem>>, vector<1x16x128xf32>
      %34 = vector.shape_cast %33 : vector<1x16x128xf32> to vector<16x128xf32>
      %35 = arith.addf %34, %32 : vector<16x128xf32>
      %c0_23 = arith.constant 0 : index
      %c0_24 = arith.constant 0 : index
      %c0_25 = arith.constant 0 : index
      %36 = vector.load %arg6[%c0_23, %c0_24, %c0_25] : memref<1x16x128xf32, #tpu.memory_space<vmem>>, vector<1x16x128xf32>
      %37 = vector.shape_cast %36 : vector<1x16x128xf32> to vector<16x128xf32>
      %38 = vector.shape_cast %35 : vector<16x128xf32> to vector<1x16x128xf32>
      tpu.vector_store %arg6[%c0_23, %c0_24, %c0_25], %38 {strides = array<i32>} : memref<1x16x128xf32, #tpu.memory_space<vmem>>, vector<1x16x128xf32>,
    } else {
    }
    return
  }
  func.func @transform_0(%arg0: i32, %arg1: i32) -> (i32, i32, i32) {
    %c0_i32 = arith.constant 0 : i32
    %c0_i32_0 = arith.constant 0 : i32
    return %arg0, %c0_i32, %arg1 : i32, i32, i32
  }
  func.func @transform_1(%arg0: i32, %arg1: i32) -> (i32, i32) {
    %c0_i32 = arith.constant 0 : i32
    %c0_i32_0 = arith.constant 0 : i32
    return %arg1, %c0_i32 : i32, i32
  }
  func.func @transform_2(%arg0: i32, %arg1: i32) -> (i32, i32) {
    %c0_i32 = arith.constant 0 : i32
    %c0_i32_0 = arith.constant 0 : i32
    %c0_i32_1 = arith.constant 0 : i32
    return %c0_i32, %c0_i32_0 : i32, i32
  }
  func.func @transform_3(%arg0: i32, %arg1: i32) -> (i32, i32, i32) {
    %c0_i32 = arith.constant 0 : i32
    %c0_i32_0 = arith.constant 0 : i32
    %c0_i32_1 = arith.constant 0 : i32
    return %arg0, %c0_i32, %c0_i32_0 : i32, i32, i32
  }
  func.func @transform_4(%arg0: i32, %arg1: i32) -> (i32, i32, i32) {
    %c0_i32 = arith.constant 0 : i32
    %c0_i32_0 = arith.constant 0 : i32
    %c0_i32_1 = arith.constant 0 : i32
    return %arg0, %c0_i32, %c0_i32_0 : i32, i32, i32
  }
}

module attributes {stable_mosaic.version = 11 : i64} {
  func.func @_conv_in_kernel(%arg0: i32, %arg1: i32, %arg2: memref<1x16x288xbf16, #tpu.memory_space<vmem>>, %arg3: memref<288x128xbf16, #tpu.memory_space<vmem>>, %arg4: memref<1x128xf32, #tpu.memory_space<vmem>>, %arg5: memref<1x16x128xf32, #tpu.memory_space<vmem>>, %arg6: memref<16x128xf32, #tpu.memory_space<vmem>>) attributes {dimension_semantics = [#tpu.dimension_semantics<parallel>, #tpu.dimension_semantics<arbitrary>], iteration_bounds = array<i64: 2, 1>, scalar_prefetch = 0 : i64, scratch_operands = 1 : i64, tpu.core_type = #tpu.core_type<tc>, window_params = [{transform_indices = @transform_0, window_bounds = array<i64: 1, 16, 288>}, {transform_indices = @transform_1, window_bounds = array<i64: 288, 128>}, {pipeline_mode = #tpu.pipeline_mode<synchronous>, transform_indices = @transform_2, window_bounds = array<i64: 1, 128>}, {transform_indices = @transform_3, window_bounds = array<i64: 1, 16, 128>}]} {
    %c0_i32 = arith.constant 0 : i32
    %0 = arith.cmpi eq, %arg1, %c0_i32 : i32
    %1 = arith.extui %0 : i1 to i32
    %c0_i32_0 = arith.constant 0 : i32
    %2 = arith.cmpi ne, %1, %c0_i32_0 : i32
    scf.if %2 {
      %cst_11 = arith.constant 0.000000e+00 : f32
      %13 = vector.broadcast %cst_11 : f32 to vector<16x128xf32>
      %c0_12 = arith.constant 0 : index
      %c0_13 = arith.constant 0 : index
      %14 = vector.load %arg6[%c0_12, %c0_13] : memref<16x128xf32, #tpu.memory_space<vmem>>, vector<16x128xf32>
      tpu.vector_store %arg6[%c0_12, %c0_13], %13 {strides = array<i32>} : memref<16x128xf32, #tpu.memory_space<vmem>>, vector<16x128xf32>,
    } else {
    }
    %c0 = arith.constant 0 : index
    %c0_1 = arith.constant 0 : index
    %3 = vector.load %arg6[%c0, %c0_1] : memref<16x128xf32, #tpu.memory_space<vmem>>, vector<16x128xf32>
    %c0_2 = arith.constant 0 : index
    %c0_3 = arith.constant 0 : index
    %c0_4 = arith.constant 0 : index
    %4 = vector.load %arg2[%c0_2, %c0_3, %c0_4] : memref<1x16x288xbf16, #tpu.memory_space<vmem>>, vector<1x16x288xbf16>
    %5 = vector.shape_cast %4 : vector<1x16x288xbf16> to vector<16x288xbf16>
    %c0_5 = arith.constant 0 : index
    %c0_6 = arith.constant 0 : index
    %6 = vector.load %arg3[%c0_5, %c0_6] : memref<288x128xbf16, #tpu.memory_space<vmem>>, vector<288x128xbf16>
    %cst = arith.constant dense<0.000000e+00> : vector<16x128xf32>
    %7 = tpu.matmul %5, %6, %cst {dimension_numbers = #tpu.dot_dimension_numbers<[1], [0], [0], [1], [0, 0, 1, 1], [], []>} : vector<16x288xbf16>, vector<288x128xbf16>, vector<16x128xf32> -> vector<16x128xf32>
    %8 = arith.addf %3, %7 : vector<16x128xf32>
    %c0_7 = arith.constant 0 : index
    %c0_8 = arith.constant 0 : index
    %9 = vector.load %arg6[%c0_7, %c0_8] : memref<16x128xf32, #tpu.memory_space<vmem>>, vector<16x128xf32>
    tpu.vector_store %arg6[%c0_7, %c0_8], %8 {strides = array<i32>} : memref<16x128xf32, #tpu.memory_space<vmem>>, vector<16x128xf32>,
    %c0_i32_9 = arith.constant 0 : i32
    %10 = arith.cmpi eq, %arg1, %c0_i32_9 : i32
    %11 = arith.extui %10 : i1 to i32
    %c0_i32_10 = arith.constant 0 : i32
    %12 = arith.cmpi ne, %11, %c0_i32_10 : i32
    scf.if %12 {
      %c0_11 = arith.constant 0 : index
      %c0_12 = arith.constant 0 : index
      %13 = vector.load %arg6[%c0_11, %c0_12] : memref<16x128xf32, #tpu.memory_space<vmem>>, vector<16x128xf32>
      %c0_13 = arith.constant 0 : index
      %c0_14 = arith.constant 0 : index
      %14 = vector.load %arg4[%c0_13, %c0_14] : memref<1x128xf32, #tpu.memory_space<vmem>>, vector<1x128xf32>
      %15 = vector.broadcast %14 : vector<1x128xf32> to vector<16x128xf32>
      %16 = arith.addf %13, %15 : vector<16x128xf32>
      %cst_15 = arith.constant dense<0.000000e+00> : vector<128xf32>
      %17 = vector.multi_reduction <add>, %16, %cst_15 [0] : vector<16x128xf32> to vector<128xf32>
      %18 = vector.shape_cast %17 : vector<128xf32> to vector<1x128xf32>
      %cst_16 = arith.constant 1.600000e+01 : f32
      %19 = vector.broadcast %cst_16 : f32 to vector<1x128xf32>
      %20 = arith.divf %18, %19 : vector<1x128xf32>
      %21 = vector.broadcast %20 : vector<1x128xf32> to vector<16x128xf32>
      %22 = arith.subf %16, %21 : vector<16x128xf32>
      %23 = arith.mulf %22, %22 : vector<16x128xf32>
      %cst_17 = arith.constant dense<0.000000e+00> : vector<128xf32>
      %24 = vector.multi_reduction <add>, %23, %cst_17 [0] : vector<16x128xf32> to vector<128xf32>
      %25 = vector.shape_cast %24 : vector<128xf32> to vector<1x128xf32>
      %cst_18 = arith.constant 1.600000e+01 : f32
      %26 = vector.broadcast %cst_18 : f32 to vector<1x128xf32>
      %27 = arith.divf %25, %26 : vector<1x128xf32>
      %cst_19 = arith.constant 9.99999974E-6 : f32
      %28 = vector.broadcast %cst_19 : f32 to vector<1x128xf32>
      %29 = arith.addf %27, %28 : vector<1x128xf32>
      %30 = math.rsqrt %29 : vector<1x128xf32>
      %31 = vector.broadcast %30 : vector<1x128xf32> to vector<16x128xf32>
      %32 = arith.mulf %22, %31 : vector<16x128xf32>
      %cst_20 = arith.constant 0.000000e+00 : f32
      %33 = vector.broadcast %cst_20 : f32 to vector<16x128xf32>
      %34 = arith.maximumf %32, %33 : vector<16x128xf32>
      %c0_21 = arith.constant 0 : index
      %c0_22 = arith.constant 0 : index
      %c0_23 = arith.constant 0 : index
      %35 = vector.load %arg5[%c0_21, %c0_22, %c0_23] : memref<1x16x128xf32, #tpu.memory_space<vmem>>, vector<1x16x128xf32>
      %36 = vector.shape_cast %35 : vector<1x16x128xf32> to vector<16x128xf32>
      %37 = vector.shape_cast %34 : vector<16x128xf32> to vector<1x16x128xf32>
      tpu.vector_store %arg5[%c0_21, %c0_22, %c0_23], %37 {strides = array<i32>} : memref<1x16x128xf32, #tpu.memory_space<vmem>>, vector<1x16x128xf32>,
    } else {
    }
    return
  }
  func.func @transform_0(%arg0: i32, %arg1: i32) -> (i32, i32, i32) {
    %c0_i32 = arith.constant 0 : i32
    %c0_i32_0 = arith.constant 0 : i32
    return %arg0, %c0_i32, %arg1 : i32, i32, i32
  }
  func.func @transform_1(%arg0: i32, %arg1: i32) -> (i32, i32) {
    %c0_i32 = arith.constant 0 : i32
    %c0_i32_0 = arith.constant 0 : i32
    return %arg1, %c0_i32 : i32, i32
  }
  func.func @transform_2(%arg0: i32, %arg1: i32) -> (i32, i32) {
    %c0_i32 = arith.constant 0 : i32
    %c0_i32_0 = arith.constant 0 : i32
    %c0_i32_1 = arith.constant 0 : i32
    return %c0_i32, %c0_i32_0 : i32, i32
  }
  func.func @transform_3(%arg0: i32, %arg1: i32) -> (i32, i32, i32) {
    %c0_i32 = arith.constant 0 : i32
    %c0_i32_0 = arith.constant 0 : i32
    %c0_i32_1 = arith.constant 0 : i32
    return %arg0, %c0_i32, %c0_i32_0 : i32, i32, i32
  }
}

module attributes {stable_mosaic.version = 11 : i64} {
  func.func @_conv_in_kernel(%arg0: i32, %arg1: i32, %arg2: memref<1x64x288xbf16, #tpu.memory_space<vmem>>, %arg3: memref<288x128xbf16, #tpu.memory_space<vmem>>, %arg4: memref<1x128xf32, #tpu.memory_space<vmem>>, %arg5: memref<1x64x128xf32, #tpu.memory_space<vmem>>, %arg6: memref<64x128xf32, #tpu.memory_space<vmem>>) attributes {dimension_semantics = [#tpu.dimension_semantics<parallel>, #tpu.dimension_semantics<arbitrary>], iteration_bounds = array<i64: 2, 1>, scalar_prefetch = 0 : i64, scratch_operands = 1 : i64, tpu.core_type = #tpu.core_type<tc>, window_params = [{transform_indices = @transform_0, window_bounds = array<i64: 1, 64, 288>}, {transform_indices = @transform_1, window_bounds = array<i64: 288, 128>}, {pipeline_mode = #tpu.pipeline_mode<synchronous>, transform_indices = @transform_2, window_bounds = array<i64: 1, 128>}, {transform_indices = @transform_3, window_bounds = array<i64: 1, 64, 128>}]} {
    %c0_i32 = arith.constant 0 : i32
    %0 = arith.cmpi eq, %arg1, %c0_i32 : i32
    %1 = arith.extui %0 : i1 to i32
    %c0_i32_0 = arith.constant 0 : i32
    %2 = arith.cmpi ne, %1, %c0_i32_0 : i32
    scf.if %2 {
      %cst_11 = arith.constant 0.000000e+00 : f32
      %13 = vector.broadcast %cst_11 : f32 to vector<64x128xf32>
      %c0_12 = arith.constant 0 : index
      %c0_13 = arith.constant 0 : index
      %14 = vector.load %arg6[%c0_12, %c0_13] : memref<64x128xf32, #tpu.memory_space<vmem>>, vector<64x128xf32>
      tpu.vector_store %arg6[%c0_12, %c0_13], %13 {strides = array<i32>} : memref<64x128xf32, #tpu.memory_space<vmem>>, vector<64x128xf32>,
    } else {
    }
    %c0 = arith.constant 0 : index
    %c0_1 = arith.constant 0 : index
    %3 = vector.load %arg6[%c0, %c0_1] : memref<64x128xf32, #tpu.memory_space<vmem>>, vector<64x128xf32>
    %c0_2 = arith.constant 0 : index
    %c0_3 = arith.constant 0 : index
    %c0_4 = arith.constant 0 : index
    %4 = vector.load %arg2[%c0_2, %c0_3, %c0_4] : memref<1x64x288xbf16, #tpu.memory_space<vmem>>, vector<1x64x288xbf16>
    %5 = vector.shape_cast %4 : vector<1x64x288xbf16> to vector<64x288xbf16>
    %c0_5 = arith.constant 0 : index
    %c0_6 = arith.constant 0 : index
    %6 = vector.load %arg3[%c0_5, %c0_6] : memref<288x128xbf16, #tpu.memory_space<vmem>>, vector<288x128xbf16>
    %cst = arith.constant dense<0.000000e+00> : vector<64x128xf32>
    %7 = tpu.matmul %5, %6, %cst {dimension_numbers = #tpu.dot_dimension_numbers<[1], [0], [0], [1], [0, 0, 1, 1], [], []>} : vector<64x288xbf16>, vector<288x128xbf16>, vector<64x128xf32> -> vector<64x128xf32>
    %8 = arith.addf %3, %7 : vector<64x128xf32>
    %c0_7 = arith.constant 0 : index
    %c0_8 = arith.constant 0 : index
    %9 = vector.load %arg6[%c0_7, %c0_8] : memref<64x128xf32, #tpu.memory_space<vmem>>, vector<64x128xf32>
    tpu.vector_store %arg6[%c0_7, %c0_8], %8 {strides = array<i32>} : memref<64x128xf32, #tpu.memory_space<vmem>>, vector<64x128xf32>,
    %c0_i32_9 = arith.constant 0 : i32
    %10 = arith.cmpi eq, %arg1, %c0_i32_9 : i32
    %11 = arith.extui %10 : i1 to i32
    %c0_i32_10 = arith.constant 0 : i32
    %12 = arith.cmpi ne, %11, %c0_i32_10 : i32
    scf.if %12 {
      %c0_11 = arith.constant 0 : index
      %c0_12 = arith.constant 0 : index
      %13 = vector.load %arg6[%c0_11, %c0_12] : memref<64x128xf32, #tpu.memory_space<vmem>>, vector<64x128xf32>
      %c0_13 = arith.constant 0 : index
      %c0_14 = arith.constant 0 : index
      %14 = vector.load %arg4[%c0_13, %c0_14] : memref<1x128xf32, #tpu.memory_space<vmem>>, vector<1x128xf32>
      %15 = vector.broadcast %14 : vector<1x128xf32> to vector<64x128xf32>
      %16 = arith.addf %13, %15 : vector<64x128xf32>
      %cst_15 = arith.constant dense<0.000000e+00> : vector<128xf32>
      %17 = vector.multi_reduction <add>, %16, %cst_15 [0] : vector<64x128xf32> to vector<128xf32>
      %18 = vector.shape_cast %17 : vector<128xf32> to vector<1x128xf32>
      %cst_16 = arith.constant 6.400000e+01 : f32
      %19 = vector.broadcast %cst_16 : f32 to vector<1x128xf32>
      %20 = arith.divf %18, %19 : vector<1x128xf32>
      %21 = vector.broadcast %20 : vector<1x128xf32> to vector<64x128xf32>
      %22 = arith.subf %16, %21 : vector<64x128xf32>
      %23 = arith.mulf %22, %22 : vector<64x128xf32>
      %cst_17 = arith.constant dense<0.000000e+00> : vector<128xf32>
      %24 = vector.multi_reduction <add>, %23, %cst_17 [0] : vector<64x128xf32> to vector<128xf32>
      %25 = vector.shape_cast %24 : vector<128xf32> to vector<1x128xf32>
      %cst_18 = arith.constant 6.400000e+01 : f32
      %26 = vector.broadcast %cst_18 : f32 to vector<1x128xf32>
      %27 = arith.divf %25, %26 : vector<1x128xf32>
      %cst_19 = arith.constant 9.99999974E-6 : f32
      %28 = vector.broadcast %cst_19 : f32 to vector<1x128xf32>
      %29 = arith.addf %27, %28 : vector<1x128xf32>
      %30 = math.rsqrt %29 : vector<1x128xf32>
      %31 = vector.broadcast %30 : vector<1x128xf32> to vector<64x128xf32>
      %32 = arith.mulf %22, %31 : vector<64x128xf32>
      %cst_20 = arith.constant 0.000000e+00 : f32
      %33 = vector.broadcast %cst_20 : f32 to vector<64x128xf32>
      %34 = arith.maximumf %32, %33 : vector<64x128xf32>
      %c0_21 = arith.constant 0 : index
      %c0_22 = arith.constant 0 : index
      %c0_23 = arith.constant 0 : index
      %35 = vector.load %arg5[%c0_21, %c0_22, %c0_23] : memref<1x64x128xf32, #tpu.memory_space<vmem>>, vector<1x64x128xf32>
      %36 = vector.shape_cast %35 : vector<1x64x128xf32> to vector<64x128xf32>
      %37 = vector.shape_cast %34 : vector<64x128xf32> to vector<1x64x128xf32>
      tpu.vector_store %arg5[%c0_21, %c0_22, %c0_23], %37 {strides = array<i32>} : memref<1x64x128xf32, #tpu.memory_space<vmem>>, vector<1x64x128xf32>,
    } else {
    }
    return
  }
  func.func @transform_0(%arg0: i32, %arg1: i32) -> (i32, i32, i32) {
    %c0_i32 = arith.constant 0 : i32
    %c0_i32_0 = arith.constant 0 : i32
    return %arg0, %c0_i32, %arg1 : i32, i32, i32
  }
  func.func @transform_1(%arg0: i32, %arg1: i32) -> (i32, i32) {
    %c0_i32 = arith.constant 0 : i32
    %c0_i32_0 = arith.constant 0 : i32
    return %arg1, %c0_i32 : i32, i32
  }
  func.func @transform_2(%arg0: i32, %arg1: i32) -> (i32, i32) {
    %c0_i32 = arith.constant 0 : i32
    %c0_i32_0 = arith.constant 0 : i32
    %c0_i32_1 = arith.constant 0 : i32
    return %c0_i32, %c0_i32_0 : i32, i32
  }
  func.func @transform_3(%arg0: i32, %arg1: i32) -> (i32, i32, i32) {
    %c0_i32 = arith.constant 0 : i32
    %c0_i32_0 = arith.constant 0 : i32
    %c0_i32_1 = arith.constant 0 : i32
    return %arg0, %c0_i32, %c0_i32_0 : i32, i32, i32
  }
}

module attributes {stable_mosaic.version = 11 : i64} {
  func.func @_conv_in_kernel(%arg0: i32, %arg1: i32, %arg2: memref<1x256x144xbf16, #tpu.memory_space<vmem>>, %arg3: memref<144x128xbf16, #tpu.memory_space<vmem>>, %arg4: memref<1x128xf32, #tpu.memory_space<vmem>>, %arg5: memref<1x256x128xf32, #tpu.memory_space<vmem>>, %arg6: memref<256x128xf32, #tpu.memory_space<vmem>>) attributes {dimension_semantics = [#tpu.dimension_semantics<parallel>, #tpu.dimension_semantics<arbitrary>], iteration_bounds = array<i64: 2, 1>, scalar_prefetch = 0 : i64, scratch_operands = 1 : i64, tpu.core_type = #tpu.core_type<tc>, window_params = [{transform_indices = @transform_0, window_bounds = array<i64: 1, 256, 144>}, {transform_indices = @transform_1, window_bounds = array<i64: 144, 128>}, {pipeline_mode = #tpu.pipeline_mode<synchronous>, transform_indices = @transform_2, window_bounds = array<i64: 1, 128>}, {transform_indices = @transform_3, window_bounds = array<i64: 1, 256, 128>}]} {
    %c0_i32 = arith.constant 0 : i32
    %0 = arith.cmpi eq, %arg1, %c0_i32 : i32
    %1 = arith.extui %0 : i1 to i32
    %c0_i32_0 = arith.constant 0 : i32
    %2 = arith.cmpi ne, %1, %c0_i32_0 : i32
    scf.if %2 {
      %cst_11 = arith.constant 0.000000e+00 : f32
      %13 = vector.broadcast %cst_11 : f32 to vector<256x128xf32>
      %c0_12 = arith.constant 0 : index
      %c0_13 = arith.constant 0 : index
      %14 = vector.load %arg6[%c0_12, %c0_13] : memref<256x128xf32, #tpu.memory_space<vmem>>, vector<256x128xf32>
      tpu.vector_store %arg6[%c0_12, %c0_13], %13 {strides = array<i32>} : memref<256x128xf32, #tpu.memory_space<vmem>>, vector<256x128xf32>,
    } else {
    }
    %c0 = arith.constant 0 : index
    %c0_1 = arith.constant 0 : index
    %3 = vector.load %arg6[%c0, %c0_1] : memref<256x128xf32, #tpu.memory_space<vmem>>, vector<256x128xf32>
    %c0_2 = arith.constant 0 : index
    %c0_3 = arith.constant 0 : index
    %c0_4 = arith.constant 0 : index
    %4 = vector.load %arg2[%c0_2, %c0_3, %c0_4] : memref<1x256x144xbf16, #tpu.memory_space<vmem>>, vector<1x256x144xbf16>
    %5 = vector.shape_cast %4 : vector<1x256x144xbf16> to vector<256x144xbf16>
    %c0_5 = arith.constant 0 : index
    %c0_6 = arith.constant 0 : index
    %6 = vector.load %arg3[%c0_5, %c0_6] : memref<144x128xbf16, #tpu.memory_space<vmem>>, vector<144x128xbf16>
    %cst = arith.constant dense<0.000000e+00> : vector<256x128xf32>
    %7 = tpu.matmul %5, %6, %cst {dimension_numbers = #tpu.dot_dimension_numbers<[1], [0], [0], [1], [0, 0, 1, 1], [], []>} : vector<256x144xbf16>, vector<144x128xbf16>, vector<256x128xf32> -> vector<256x128xf32>
    %8 = arith.addf %3, %7 : vector<256x128xf32>
    %c0_7 = arith.constant 0 : index
    %c0_8 = arith.constant 0 : index
    %9 = vector.load %arg6[%c0_7, %c0_8] : memref<256x128xf32, #tpu.memory_space<vmem>>, vector<256x128xf32>
    tpu.vector_store %arg6[%c0_7, %c0_8], %8 {strides = array<i32>} : memref<256x128xf32, #tpu.memory_space<vmem>>, vector<256x128xf32>,
    %c0_i32_9 = arith.constant 0 : i32
    %10 = arith.cmpi eq, %arg1, %c0_i32_9 : i32
    %11 = arith.extui %10 : i1 to i32
    %c0_i32_10 = arith.constant 0 : i32
    %12 = arith.cmpi ne, %11, %c0_i32_10 : i32
    scf.if %12 {
      %c0_11 = arith.constant 0 : index
      %c0_12 = arith.constant 0 : index
      %13 = vector.load %arg6[%c0_11, %c0_12] : memref<256x128xf32, #tpu.memory_space<vmem>>, vector<256x128xf32>
      %c0_13 = arith.constant 0 : index
      %c0_14 = arith.constant 0 : index
      %14 = vector.load %arg4[%c0_13, %c0_14] : memref<1x128xf32, #tpu.memory_space<vmem>>, vector<1x128xf32>
      %15 = vector.broadcast %14 : vector<1x128xf32> to vector<256x128xf32>
      %16 = arith.addf %13, %15 : vector<256x128xf32>
      %cst_15 = arith.constant dense<0.000000e+00> : vector<128xf32>
      %17 = vector.multi_reduction <add>, %16, %cst_15 [0] : vector<256x128xf32> to vector<128xf32>
      %18 = vector.shape_cast %17 : vector<128xf32> to vector<1x128xf32>
      %cst_16 = arith.constant 2.560000e+02 : f32
      %19 = vector.broadcast %cst_16 : f32 to vector<1x128xf32>
      %20 = arith.divf %18, %19 : vector<1x128xf32>
      %21 = vector.broadcast %20 : vector<1x128xf32> to vector<256x128xf32>
      %22 = arith.subf %16, %21 : vector<256x128xf32>
      %23 = arith.mulf %22, %22 : vector<256x128xf32>
      %cst_17 = arith.constant dense<0.000000e+00> : vector<128xf32>
      %24 = vector.multi_reduction <add>, %23, %cst_17 [0] : vector<256x128xf32> to vector<128xf32>
      %25 = vector.shape_cast %24 : vector<128xf32> to vector<1x128xf32>
      %cst_18 = arith.constant 2.560000e+02 : f32
      %26 = vector.broadcast %cst_18 : f32 to vector<1x128xf32>
      %27 = arith.divf %25, %26 : vector<1x128xf32>
      %cst_19 = arith.constant 9.99999974E-6 : f32
      %28 = vector.broadcast %cst_19 : f32 to vector<1x128xf32>
      %29 = arith.addf %27, %28 : vector<1x128xf32>
      %30 = math.rsqrt %29 : vector<1x128xf32>
      %31 = vector.broadcast %30 : vector<1x128xf32> to vector<256x128xf32>
      %32 = arith.mulf %22, %31 : vector<256x128xf32>
      %cst_20 = arith.constant 0.000000e+00 : f32
      %33 = vector.broadcast %cst_20 : f32 to vector<256x128xf32>
      %34 = arith.maximumf %32, %33 : vector<256x128xf32>
      %c0_21 = arith.constant 0 : index
      %c0_22 = arith.constant 0 : index
      %c0_23 = arith.constant 0 : index
      %35 = vector.load %arg5[%c0_21, %c0_22, %c0_23] : memref<1x256x128xf32, #tpu.memory_space<vmem>>, vector<1x256x128xf32>
      %36 = vector.shape_cast %35 : vector<1x256x128xf32> to vector<256x128xf32>
      %37 = vector.shape_cast %34 : vector<256x128xf32> to vector<1x256x128xf32>
      tpu.vector_store %arg5[%c0_21, %c0_22, %c0_23], %37 {strides = array<i32>} : memref<1x256x128xf32, #tpu.memory_space<vmem>>, vector<1x256x128xf32>,
    } else {
    }
    return
  }
  func.func @transform_0(%arg0: i32, %arg1: i32) -> (i32, i32, i32) {
    %c0_i32 = arith.constant 0 : i32
    %c0_i32_0 = arith.constant 0 : i32
    return %arg0, %c0_i32, %arg1 : i32, i32, i32
  }
  func.func @transform_1(%arg0: i32, %arg1: i32) -> (i32, i32) {
    %c0_i32 = arith.constant 0 : i32
    %c0_i32_0 = arith.constant 0 : i32
    return %arg1, %c0_i32 : i32, i32
  }
  func.func @transform_2(%arg0: i32, %arg1: i32) -> (i32, i32) {
    %c0_i32 = arith.constant 0 : i32
    %c0_i32_0 = arith.constant 0 : i32
    %c0_i32_1 = arith.constant 0 : i32
    return %c0_i32, %c0_i32_0 : i32, i32
  }
  func.func @transform_3(%arg0: i32, %arg1: i32) -> (i32, i32, i32) {
    %c0_i32 = arith.constant 0 : i32
    %c0_i32_0 = arith.constant 0 : i32
    %c0_i32_1 = arith.constant 0 : i32
    return %arg0, %c0_i32, %c0_i32_0 : i32, i32, i32
  }
}

module attributes {stable_mosaic.version = 11 : i64} {
  func.func @_conv_in_kernel(%arg0: i32, %arg1: i32, %arg2: memref<1x256x392xbf16, #tpu.memory_space<vmem>>, %arg3: memref<392x128xbf16, #tpu.memory_space<vmem>>, %arg4: memref<1x128xf32, #tpu.memory_space<vmem>>, %arg5: memref<1x256x128xf32, #tpu.memory_space<vmem>>, %arg6: memref<256x128xf32, #tpu.memory_space<vmem>>) attributes {dimension_semantics = [#tpu.dimension_semantics<parallel>, #tpu.dimension_semantics<arbitrary>], iteration_bounds = array<i64: 2, 1>, scalar_prefetch = 0 : i64, scratch_operands = 1 : i64, tpu.core_type = #tpu.core_type<tc>, window_params = [{transform_indices = @transform_0, window_bounds = array<i64: 1, 256, 392>}, {transform_indices = @transform_1, window_bounds = array<i64: 392, 128>}, {pipeline_mode = #tpu.pipeline_mode<synchronous>, transform_indices = @transform_2, window_bounds = array<i64: 1, 128>}, {transform_indices = @transform_3, window_bounds = array<i64: 1, 256, 128>}]} {
    %c0_i32 = arith.constant 0 : i32
    %0 = arith.cmpi eq, %arg1, %c0_i32 : i32
    %1 = arith.extui %0 : i1 to i32
    %c0_i32_0 = arith.constant 0 : i32
    %2 = arith.cmpi ne, %1, %c0_i32_0 : i32
    scf.if %2 {
      %cst_11 = arith.constant 0.000000e+00 : f32
      %13 = vector.broadcast %cst_11 : f32 to vector<256x128xf32>
      %c0_12 = arith.constant 0 : index
      %c0_13 = arith.constant 0 : index
      %14 = vector.load %arg6[%c0_12, %c0_13] : memref<256x128xf32, #tpu.memory_space<vmem>>, vector<256x128xf32>
      tpu.vector_store %arg6[%c0_12, %c0_13], %13 {strides = array<i32>} : memref<256x128xf32, #tpu.memory_space<vmem>>, vector<256x128xf32>,
    } else {
    }
    %c0 = arith.constant 0 : index
    %c0_1 = arith.constant 0 : index
    %3 = vector.load %arg6[%c0, %c0_1] : memref<256x128xf32, #tpu.memory_space<vmem>>, vector<256x128xf32>
    %c0_2 = arith.constant 0 : index
    %c0_3 = arith.constant 0 : index
    %c0_4 = arith.constant 0 : index
    %4 = vector.load %arg2[%c0_2, %c0_3, %c0_4] : memref<1x256x392xbf16, #tpu.memory_space<vmem>>, vector<1x256x392xbf16>
    %5 = vector.shape_cast %4 : vector<1x256x392xbf16> to vector<256x392xbf16>
    %c0_5 = arith.constant 0 : index
    %c0_6 = arith.constant 0 : index
    %6 = vector.load %arg3[%c0_5, %c0_6] : memref<392x128xbf16, #tpu.memory_space<vmem>>, vector<392x128xbf16>
    %cst = arith.constant dense<0.000000e+00> : vector<256x128xf32>
    %7 = tpu.matmul %5, %6, %cst {dimension_numbers = #tpu.dot_dimension_numbers<[1], [0], [0], [1], [0, 0, 1, 1], [], []>} : vector<256x392xbf16>, vector<392x128xbf16>, vector<256x128xf32> -> vector<256x128xf32>
    %8 = arith.addf %3, %7 : vector<256x128xf32>
    %c0_7 = arith.constant 0 : index
    %c0_8 = arith.constant 0 : index
    %9 = vector.load %arg6[%c0_7, %c0_8] : memref<256x128xf32, #tpu.memory_space<vmem>>, vector<256x128xf32>
    tpu.vector_store %arg6[%c0_7, %c0_8], %8 {strides = array<i32>} : memref<256x128xf32, #tpu.memory_space<vmem>>, vector<256x128xf32>,
    %c0_i32_9 = arith.constant 0 : i32
    %10 = arith.cmpi eq, %arg1, %c0_i32_9 : i32
    %11 = arith.extui %10 : i1 to i32
    %c0_i32_10 = arith.constant 0 : i32
    %12 = arith.cmpi ne, %11, %c0_i32_10 : i32
    scf.if %12 {
      %c0_11 = arith.constant 0 : index
      %c0_12 = arith.constant 0 : index
      %13 = vector.load %arg6[%c0_11, %c0_12] : memref<256x128xf32, #tpu.memory_space<vmem>>, vector<256x128xf32>
      %c0_13 = arith.constant 0 : index
      %c0_14 = arith.constant 0 : index
      %14 = vector.load %arg4[%c0_13, %c0_14] : memref<1x128xf32, #tpu.memory_space<vmem>>, vector<1x128xf32>
      %15 = vector.broadcast %14 : vector<1x128xf32> to vector<256x128xf32>
      %16 = arith.addf %13, %15 : vector<256x128xf32>
      %c0_15 = arith.constant 0 : index
      %c0_16 = arith.constant 0 : index
      %c0_17 = arith.constant 0 : index
      %17 = vector.load %arg5[%c0_15, %c0_16, %c0_17] : memref<1x256x128xf32, #tpu.memory_space<vmem>>, vector<1x256x128xf32>
      %18 = vector.shape_cast %17 : vector<1x256x128xf32> to vector<256x128xf32>
      %19 = vector.shape_cast %16 : vector<256x128xf32> to vector<1x256x128xf32>
      tpu.vector_store %arg5[%c0_15, %c0_16, %c0_17], %19 {strides = array<i32>} : memref<1x256x128xf32, #tpu.memory_space<vmem>>, vector<1x256x128xf32>,
    } else {
    }
    return
  }
  func.func @transform_0(%arg0: i32, %arg1: i32) -> (i32, i32, i32) {
    %c0_i32 = arith.constant 0 : i32
    %c0_i32_0 = arith.constant 0 : i32
    return %arg0, %c0_i32, %arg1 : i32, i32, i32
  }
  func.func @transform_1(%arg0: i32, %arg1: i32) -> (i32, i32) {
    %c0_i32 = arith.constant 0 : i32
    %c0_i32_0 = arith.constant 0 : i32
    return %arg1, %c0_i32 : i32, i32
  }
  func.func @transform_2(%arg0: i32, %arg1: i32) -> (i32, i32) {
    %c0_i32 = arith.constant 0 : i32
    %c0_i32_0 = arith.constant 0 : i32
    %c0_i32_1 = arith.constant 0 : i32
    return %c0_i32, %c0_i32_0 : i32, i32
  }
  func.func @transform_3(%arg0: i32, %arg1: i32) -> (i32, i32, i32) {
    %c0_i32 = arith.constant 0 : i32
    %c0_i32_0 = arith.constant 0 : i32
    %c0_i32_1 = arith.constant 0 : i32
    return %arg0, %c0_i32, %c0_i32_0 : i32, i32, i32
  }
}

</mosaic_0001>

<llo_original>
// kernel: generator_forward.15
$region0: #{generator_forward.15}
  #allocation0 [shape = 'u32[]', space=smem, size = 0x4, offset = 0x4, fixed_abs, tag = 'smem constant byte address 0x4 - core index']
  #allocation1 [shape = 'u32[144,128]{1,0:T(1,128)}', space=vmem, size = 0x12000, scoped, tag = 'internal scratch']
  #allocation2 [shape = 'f32[64,128]{1,0:T(8,128)}', space=vmem, size = 0x8000, scoped, tag = 'scratch operand']
  %s0 = inlined_call_operand.vmem [shape: bf16[2,64,72], index: 0, kind: input, shape index: {}]
  %s1 = inlined_call_operand.vmem [shape: bf16[72,128], index: 1, kind: input, shape index: {}]
  %s2 = inlined_call_operand.vmem [shape: f32[1,128], index: 2, kind: input, shape index: {}]
  %s3 = inlined_call_operand.vmem [shape: f32[2,64,128], index: 3, kind: output, shape index: {}]
  %s4 = sld [smem:[#allocation0]]
  $region53: #{generator_forward.15} parent=0
    _
  %s6 = ssub.s32 1, %s4
  %s7 = scalar_select 0, %s6, %s4
  loop: start=0, step=1, limit=4
  $region2: #{generator_forward.15} parent=0 // loop_pre_header
    _
  $region3: #{generator_forward.15} parent=0 // loop_header
    %s9 = sphi 0, %s13
    %p10 = scmp.ge.s32.totalorder %s9, 4
    %s16 = sphi 0, %s28
    %s17 = sphi 0, %s24
    %s18 = sphi 0, %s16
    %s19 = sphi 0, %s17
    %s20 = sphi 0, %s18
    %s21 = sphi 0, %s19
    %s33 = sphi 0, %s35
    %s36 = sphi 0, %s33
    %s37 = sphi 0, %s36
    %s53 = sphi 0, %s37
    %s59 = sphi 0, %s61
    %s62 = sphi 0, %s59
    %s63 = sphi 0, %s62
    %s79 = sphi 0, %s63
    %s83 = sphi 0, %s83
    %s85 = sphi 0, %s83
    %s86 = sphi 0, %s85
    %s100 = sphi 0, %s86
    %s106 = sphi 0, %s108
    %s109 = sphi 0, %s106
    %s110 = sphi 0, %s109
    %s126 = sphi 0, %s110
  $region4: #{generator_forward.15} parent=0 // loop_header_branch
    %12 = sbr.rel (%p10) target = $region8
  $region5: #{generator_forward.15} parent=0 // loop_body
    %s14 = ssub.s32 %s9, 1
    %s15 = ssub.s32 %s9, 2
    %s22 = sadd.s32 1, %s17
    %p23 = scmp.ge.s32.totalorder %s22, 1
    %s24 = scalar_select %p23, 0, %s22
    %s25 = sadd.s32 1, %s16
    %s26 = scalar_select %p23, %s25, %s16
    %p27 = scmp.ge.s32.totalorder %s26, 2
    %s28 = scalar_select %p27, 0, %s26
    %s29 = ssub.s32 %s16, %s28
    %s30 = ssub.s32 %s17, %s24
    %s31 = sor.u32 %s29, %s30
    %p32 = scmp.eq.s32.totalorder %s31, 0
    %s34 = sadd.s32 %s33, 1
    %s35 = scalar_select %p32, %s33, %s34
    %p38 = pneg %p32
    %p39 = scmp.eq.s32.totalorder %s9, 1
    %p40 = por %p38, %p39
    %p41 = scmp.ne.s32.totalorder %s33, %s36
    %p42 = scmp.eq.s32.totalorder %s9, 0
    %p43 = por %p41, %p42
    %p44 = scmp.ne.s32.totalorder %s33, %s36
    %p45 = scmp.eq.s32.totalorder %s14, 1
    %p46 = por %p44, %p45
    %p47 = scmp.ne.s32.totalorder %s36, %s37
    %p48 = scmp.eq.s32.totalorder %s14, 0
    %p49 = por %p47, %p48
    %p50 = scmp.ne.s32.totalorder %s36, %s37
    %p51 = scmp.eq.s32.totalorder %s15, 1
    %p52 = por %p50, %p51
    %p54 = scmp.ne.s32.totalorder %s37, %s53
    %p55 = scmp.eq.s32.totalorder %s15, 0
    %p56 = por %p54, %p55
    %s57 = ssub.s32 %s17, %s24
    %p58 = scmp.eq.s32.totalorder %s57, 0
    %s60 = sadd.s32 %s59, 1
    %s61 = scalar_select %p58, %s59, %s60
    %p64 = pneg %p58
    %p65 = scmp.eq.s32.totalorder %s9, 1
    %p66 = por %p64, %p65
    %p67 = scmp.ne.s32.totalorder %s59, %s62
    %p68 = scmp.eq.s32.totalorder %s9, 0
    %p69 = por %p67, %p68
    %p70 = scmp.ne.s32.totalorder %s59, %s62
    %p71 = scmp.eq.s32.totalorder %s14, 1
    %p72 = por %p70, %p71
    %p73 = scmp.ne.s32.totalorder %s62, %s63
    %p74 = scmp.eq.s32.totalorder %s14, 0
    %p75 = por %p73, %p74
    %p76 = scmp.ne.s32.totalorder %s62, %s63
    %p77 = scmp.eq.s32.totalorder %s15, 1
    %p78 = por %p76, %p77
    %p80 = scmp.ne.s32.totalorder %s63, %s79
    %p81 = scmp.eq.s32.totalorder %s15, 0
    %p82 = por %p80, %p81
    %s84 = sadd.s32 %s83, 1
    %p87 = scmp.eq.s32.totalorder %s9, 1
    %p88 = scmp.ne.s32.totalorder %s83, %s85
    %p89 = scmp.eq.s32.totalorder %s9, 0
    %p90 = por %p88, %p89
    %p91 = scmp.ne.s32.totalorder %s83, %s85
    %p92 = scmp.eq.s32.totalorder %s14, 1
    %p93 = por %p91, %p92
    %p94 = scmp.ne.s32.totalorder %s85, %s86
    %p95 = scmp.eq.s32.totalorder %s14, 0
    %p96 = por %p94, %p95
    %p97 = scmp.ne.s32.totalorder %s85, %s86
    %p98 = scmp.eq.s32.totalorder %s15, 1
    %p99 = por %p97, %p98
    %p101 = scmp.ne.s32.totalorder %s86, %s100
    %p102 = scmp.eq.s32.totalorder %s15, 0
    %p103 = por %p101, %p102
    %s104 = ssub.s32 %s16, %s28
    %p105 = scmp.eq.s32.totalorder %s104, 0
    %s107 = sadd.s32 %s106, 1
    %s108 = scalar_select %p105, %s106, %s107
    %p111 = pneg %p105
    %p112 = scmp.eq.s32.totalorder %s9, 1
    %p113 = por %p111, %p112
    %p114 = scmp.ne.s32.totalorder %s106, %s109
    %p115 = scmp.eq.s32.totalorder %s9, 0
    %p116 = por %p114, %p115
    %p117 = scmp.ne.s32.totalorder %s106, %s109
    %p118 = scmp.eq.s32.totalorder %s14, 1
    %p119 = por %p117, %p118
    %p120 = scmp.ne.s32.totalorder %s109, %s110
    %p121 = scmp.eq.s32.totalorder %s14, 0
    %p122 = por %p120, %p121
    %p123 = scmp.ne.s32.totalorder %s109, %s110
    %p124 = scmp.eq.s32.totalorder %s15, 1
    %p125 = por %p123, %p124
    %p127 = scmp.ne.s32.totalorder %s110, %s126
    %p128 = scmp.eq.s32.totalorder %s15, 0
    %p129 = por %p127, %p128
    %p130 = scmp.le.s32.totalorder 1, %s9
    %p131 = scmp.lt.s32.totalorder %s9, 3
    %p132 = pnand %p130, %p131
    %p133 = pneg %p132
    // Predicated region
    $region9: #{generator_forward.15} parent=5 // pred_check
      _
    $region10: #{generator_forward.15} parent=5 // pred_check_branch
      %135 = sbr.rel (%p132) target = $region12
    $region11: #{generator_forward.15} parent=5 // pred_region
      %s136 = ssub.s32 %s9, 1
      // Predicated region
      $region13: #{generator_forward.15} parent=11 // pred_check
        %p137 = pneg %p75
      $region14: #{generator_forward.15} parent=11 // pred_check_branch
        %139 = sbr.rel (%p137) target = $region16
      $region15: #{generator_forward.15} parent=11 // pred_region
        %s140 = smul.u32 9, %s19
        %p141 = scmp.lt.s32.totalorder %s140, 8
        %s142 = scalar_select %p141, %s140, 8
        %s143 = smul.addr %s142, 4
        %s144 = scalar_lea.vmem %s1, %s143
        %s145 = smul.u32 9, %s19
      $region16: #{generator_forward.15} parent=11 // pred_fallthru
        _
      // Predicated region
      $region17: #{generator_forward.15} parent=11 // pred_check
        %p146 = pneg %p96
      $region18: #{generator_forward.15} parent=11 // pred_check_branch
        %148 = sbr.rel (%p146) target = $region20
      $region19: #{generator_forward.15} parent=11 // pred_region
        _
      $region20: #{generator_forward.15} parent=11 // pred_fallthru
        _
    $region12: #{generator_forward.15} parent=5 // pred_fallthru
      _
    %p149 = scmp.lt.s32.totalorder %s9, 2
    // Predicated region
    $region21: #{generator_forward.15} parent=5 // pred_check
      %p150 = pneg %p149
    $region22: #{generator_forward.15} parent=5 // pred_check_branch
      %152 = sbr.rel (%p150) target = $region24
    $region23: #{generator_forward.15} parent=5 // pred_region
      // Predicated region
      $region25: #{generator_forward.15} parent=23 // pred_check
        %p153 = pneg %p43
      $region26: #{generator_forward.15} parent=23 // pred_check_branch
        %155 = sbr.rel (%p153) target = $region28
      $region27: #{generator_forward.15} parent=23 // pred_region
        %p156 = scmp.lt.s32.totalorder %s16, 1
        %s157 = scalar_select %p156, %s16, 1
        %p158 = scmp.lt.s32.totalorder %s17, 0
        %s159 = scalar_select %p158, %s17, 0
        %s160 = smul.addr %s157, 8
        %s161 = sadd.s32 %s159, %s160
        %s162 = smul.addr %s161, 4
        %s163 = scalar_lea.vmem %s0, %s162
      $region28: #{generator_forward.15} parent=23 // pred_fallthru
        _
    $region24: #{generator_forward.15} parent=5 // pred_fallthru
      _
    %p164 = scmp.le.s32.totalorder 1, %s9
    %p165 = scmp.lt.s32.totalorder %s9, 3
    %p166 = pnand %p164, %p165
    %p167 = pneg %p166
    // Predicated region
    $region29: #{generator_forward.15} parent=5 // pred_check
      _
    $region30: #{generator_forward.15} parent=5 // pred_check_branch
      %169 = sbr.rel (%p166) target = $region32
    $region31: #{generator_forward.15} parent=5 // pred_region
      %s170 = ssub.s32 %s9, 1
      %p171 = scmp.lt.s32.totalorder %s18, 1
      %s172 = scalar_select %p171, %s18, 1
      %p173 = scmp.lt.s32.totalorder %s19, 0
      %s174 = scalar_select %p173, %s19, 0
      %s175 = smul.addr %s172, 8
      %s176 = sadd.s32 %s174, %s175
      %s177 = smul.addr %s176, 4
      %s178 = scalar_lea.vmem %s0, %s177
      %p179 = pneg %p49
      %p180 = pneg %p46
      %s181 = smul.u32 9, %s19
      %p182 = scmp.lt.s32.totalorder %s181, 8
      %s183 = scalar_select %p182, %s181, 8
      %s184 = smul.addr %s183, 4
      %s185 = scalar_lea.vmem %s1, %s184
      %p186 = pneg %p75
      %p187 = pneg %p72
      %p188 = pneg %p96
      %p189 = pneg %p93
      %p190 = pneg %p122
      %p191 = pneg %p119
      %p192 = scmp.lt.s32.totalorder %s18, 1
      %s193 = scalar_select %p192, %s18, 1
      %s194 = smul.addr %s193, 8
      %s195 = smul.addr %s194, 8
      %s196 = scalar_lea.vmem %s3, %s195
      %p197 = scmp.lt.s32.totalorder %s18, 1
      %s198 = scalar_select %p197, %s18, 1
      %p199 = scmp.lt.s32.totalorder %s19, 0
      %s200 = scalar_select %p199, %s19, 0
      %s201 = smul.addr %s198, 8
      %s202 = sadd.s32 %s200, %s201
      %s203 = smul.addr %s202, 4
      %s204 = scalar_lea.vmem %s0, %s203
      %s205 = smul.u32 9, %s19
      %p206 = scmp.lt.s32.totalorder %s205, 8
      %s207 = scalar_select %p206, %s205, 8
      %s208 = smul.addr %s207, 4
      %s209 = scalar_lea.vmem %s1, %s208
      %s210 = smul.u32 9, %s19
      %p211 = scmp.lt.s32.totalorder %s18, 1
      %s212 = scalar_select %p211, %s18, 1
      %s213 = smul.addr %s212, 8
      %s214 = smul.addr %s213, 8
      %s215 = scalar_lea.vmem %s3, %s214
      %p217 = scmp.eq.s32.totalorder %s19, 0
      // Predicated region
      $region33: #{generator_forward.15} parent=31 // pred_check
        %p218 = pneg %p217
      $region34: #{generator_forward.15} parent=31 // pred_check_branch
        %220 = sbr.rel (%p218) target = $region36
      $region35: #{generator_forward.15} parent=31 // pred_region
        %221 = vst [vmem:[#allocation2] sm:$0xff] 0.0
        %222 = vst [vmem:[#allocation2 + $0x8] sm:$0xff] 0.0
        %223 = vst [vmem:[#allocation2 + $0x10] sm:$0xff] 0.0
        %224 = vst [vmem:[#allocation2 + $0x18] sm:$0xff] 0.0
        %225 = vst [vmem:[#allocation2 + $0x20] sm:$0xff] 0.0
        %226 = vst [vmem:[#allocation2 + $0x28] sm:$0xff] 0.0
        %227 = vst [vmem:[#allocation2 + $0x30] sm:$0xff] 0.0
        %228 = vst [vmem:[#allocation2 + $0x38] sm:$0xff] 0.0
      $region36: #{generator_forward.15} parent=31 // pred_fallthru
        _
      %v229 = vld [vmem:[#allocation2] sm:$0xff]
      %v230 = vld [vmem:[#allocation2 + $0x8] sm:$0xff]
      %v231 = vld [vmem:[#allocation2 + $0x10] sm:$0xff]
      %v232 = vld [vmem:[#allocation2 + $0x18] sm:$0xff]
      %v233 = vld [vmem:[#allocation2 + $0x20] sm:$0xff]
      %v234 = vld [vmem:[#allocation2 + $0x28] sm:$0xff]
      %v235 = vld [vmem:[#allocation2 + $0x30] sm:$0xff]
      %v236 = vld [vmem:[#allocation2 + $0x38] sm:$0xff]
      %v237 = vld [vmem:[%s204] sm:$0xf]
      %v238 = vld [vmem:[%s204 + $0x4] sm:$0xf]
      %v239 = vld [vmem:[%s204 + $0x8] sm:$0xf]
      %v240 = vld [vmem:[%s204 + $0xc] sm:$0xf]
      %v241 = vld [vmem:[%s204 + $0x10] sm:$0xf]
      %v242 = vld [vmem:[%s204 + $0x14] sm:$0xf]
      %v243 = vld [vmem:[%s204 + $0x18] sm:$0xf]
      %v244 = vld [vmem:[%s204 + $0x1c] sm:$0xf]
      %v245 = vld [vmem:[%s209] sm:$0xf]
      %v246 = vld [vmem:[%s209 + $0x4] sm:$0xf]
      %v247 = vld [vmem:[%s209 + $0x8] sm:$0xf]
      %v248 = vld [vmem:[%s209 + $0xc] sm:$0xf]
      %v249 = vld [vmem:[%s209 + $0x10] sm:$0xf]
      %v250 = vld [vmem:[%s209 + $0x14] sm:$0xf]
      %v251 = vld [vmem:[%s209 + $0x18] sm:$0xf]
      %v252 = vld [vmem:[%s209 + $0x1c] sm:$0xf]
      %v253 = vld [vmem:[%s209 + $0x20] sm:$0xf]
      %v262 = vunpack.c.l.b16 %v237
      %v263 = vunpack.c.l.b16 %v238
      %v264 = vunpack.c.l.b16 %v239
      %v265 = vunpack.c.l.b16 %v240
      %v266 = vunpack.c.l.b16 %v241
      %v267 = vunpack.c.l.b16 %v242
      %v268 = vunpack.c.l.b16 %v243
      %v269 = vunpack.c.l.b16 %v244
      %v270 = vpack.c.b16 %v263, %v262
      %v271 = vpack.c.b16 %v265, %v264
      %v272 = vpack.c.b16 %v267, %v266
      %v273 = vpack.c.b16 %v269, %v268
      %v283 = vunpack.c.l.b16 %v245
      %v284 = vunpack.c.l.b16 %v246
      %v285 = vunpack.c.l.b16 %v247
      %v286 = vunpack.c.l.b16 %v248
      %v287 = vunpack.c.l.b16 %v249
      %v288 = vunpack.c.l.b16 %v250
      %v289 = vunpack.c.l.b16 %v251
      %v290 = vunpack.c.l.b16 %v252
      %v291 = vunpack.c.l.b16 %v253
      %v292 = vpack.c.b16 %v284, %v283
      %v293 = vpack.c.b16 %v286, %v285
      %v294 = vpack.c.b16 %v288, %v287
      %v295 = vpack.c.b16 %v290, %v289
      %v296 = vpack.c.b16 %v291, %v291
      %vm301 = vcmask 588800
      %v303 = vsel %vm301, %v270, 0
      %v306 = vsel %vm301, %v271, 0
      %v309 = vsel %vm301, %v272, 0
      %v312 = vsel %vm301, %v273, 0
      %vm314 = vcmask 1043456
      %v316 = vsel %vm314, %v296, 0
      %318 = vmatprep.subr.bf16.mxu0 0
      %319 = vmatpush1.bf16.msra.mxu0 %v292
      %320 = vmatprep.subr.bf16.mxu0 0
      %321 = vmatpush1.bf16.msra.mxu0 %v293
      %322 = vmatprep.subr.bf16.mxu0 0
      %323 = vmatpush1.bf16.msra.mxu0 %v294
      %324 = vmatprep.subr.bf16.mxu0 0
      %325 = vmatpush1.bf16.msra.mxu0 %v295
      %326 = vmatprep.subr.bf16.mxu0 0
      %327 = vmatpush1.bf16.msra.mxu0 %v316
      %328 = vmatprep.subr.bf16.mxu0 0
      %329 = vmatpush1.bf16.msra.mxu0 0
      %330 = vmatprep.subr.bf16.mxu0 0
      %331 = vmatpush1.bf16.msra.mxu0 0
      %332 = vmatprep.subr.bf16.mxu0 0
      %333 = vmatpush1.bf16.msra.mxu0 0
      %334 = vmatprep.subr.bf16.mxu0 0
      %335 = vmatpush1.bf16.msra.mxu0 0
      %336 = vmatprep.subr.bf16.mxu0 0
      %337 = vmatpush1.bf16.msra.mxu0 0
      %338 = vmatprep.subr.bf16.mxu0 0
      %339 = vmatpush1.bf16.msra.mxu0 0
      %340 = vmatprep.subr.bf16.mxu0 0
      %341 = vmatpush1.bf16.msra.mxu0 0
      %342 = vmatprep.subr.bf16.mxu0 0
      %343 = vmatpush1.bf16.msra.mxu0 0
      %344 = vmatprep.subr.bf16.mxu0 0
      %345 = vmatpush1.bf16.msra.mxu0 0
      %346 = vmatprep.subr.bf16.mxu0 0
      %347 = vmatpush1.bf16.msra.mxu0 0
      %348 = vmatprep.subr.bf16.mxu0 0
      %349 = vmatpush1.bf16.msra.mxu0 0
      %350 = vmatprep.mubr.bf16.mxu0 0
      %351 = vmatmul.mubr.bf16.gmra.mrb[0].mxu0 %v303
      %v352 = vpop.f32.mrb[0].mxu0
      %v353 = vadd.f32 0.0, %v352
      %v354 = vpop.f32.mrb[0].mxu0
      %v355 = vpop.f32.mrb[0].mxu0
      %v356 = vadd.f32 0.0, %v355
      %v357 = vpop.f32.mrb[0].mxu0
      %358 = vmatprep.mubr.bf16.mxu0 0
      %359 = vmatmul.mubr.bf16.gmra.mrb[0].mxu0 %v306
      %v360 = vpop.f32.mrb[0].mxu0
      %v361 = vadd.f32 0.0, %v360
      %v362 = vpop.f32.mrb[0].mxu0
      %v363 = vpop.f32.mrb[0].mxu0
      %v364 = vadd.f32 0.0, %v363
      %v365 = vpop.f32.mrb[0].mxu0
      %366 = vmatprep.mubr.bf16.mxu0 0
      %367 = vmatmul.mubr.bf16.gmra.mrb[0].mxu0 %v309
      %v368 = vpop.f32.mrb[0].mxu0
      %v369 = vadd.f32 0.0, %v368
      %v370 = vpop.f32.mrb[0].mxu0
      %v371 = vpop.f32.mrb[0].mxu0
      %v372 = vadd.f32 0.0, %v371
      %v373 = vpop.f32.mrb[0].mxu0
      %374 = vmatprep.mubr.bf16.mxu0 0
      %375 = vmatmul.mubr.bf16.gmra.mrb[0].mxu0 %v312
      %v376 = vpop.f32.mrb[0].mxu0
      %v377 = vadd.f32 0.0, %v376
      %v378 = vpop.f32.mrb[0].mxu0
      %v379 = vpop.f32.mrb[0].mxu0
      %v380 = vadd.f32 0.0, %v379
      %v381 = vpop.f32.mrb[0].mxu0
      %382 = vdwg.mxu0
      %v383 = vadd.f32 %v229, %v353
      %v384 = vadd.f32 %v230, %v356
      %v385 = vadd.f32 %v231, %v361
      %v386 = vadd.f32 %v232, %v364
      %v387 = vadd.f32 %v233, %v369
      %v388 = vadd.f32 %v234, %v372
      %v389 = vadd.f32 %v235, %v377
      %v390 = vadd.f32 %v236, %v380
      %391 = vst [vmem:[#allocation2] sm:$0xff] %v383
      %392 = vst [vmem:[#allocation2 + $0x8] sm:$0xff] %v384
      %393 = vst [vmem:[#allocation2 + $0x10] sm:$0xff] %v385
      %394 = vst [vmem:[#allocation2 + $0x18] sm:$0xff] %v386
      %395 = vst [vmem:[#allocation2 + $0x20] sm:$0xff] %v387
      %396 = vst [vmem:[#allocation2 + $0x28] sm:$0xff] %v388
      %397 = vst [vmem:[#allocation2 + $0x30] sm:$0xff] %v389
      %398 = vst [vmem:[#allocation2 + $0x38] sm:$0xff] %v390
      // Predicated region
      $region37: #{generator_forward.15} parent=31 // pred_check
        %p399 = pneg %p217
      $region38: #{generator_forward.15} parent=31 // pred_check_branch
        %401 = sbr.rel (%p399) target = $region40
      $region39: #{generator_forward.15} parent=31 // pred_region
        %v402 = vld [vmem:[#allocation2] sm:$0xff]
        %v403 = vld [vmem:[#allocation2 + $0x8] sm:$0xff]
        %v404 = vld [vmem:[#allocation2 + $0x10] sm:$0xff]
        %v405 = vld [vmem:[#allocation2 + $0x18] sm:$0xff]
        %v406 = vld [vmem:[#allocation2 + $0x20] sm:$0xff]
        %v407 = vld [vmem:[#allocation2 + $0x28] sm:$0xff]
        %v408 = vld [vmem:[#allocation2 + $0x30] sm:$0xff]
        %v409 = vld [vmem:[#allocation2 + $0x38] sm:$0xff]
        %v410 = vld [vmem:[%s2] sm:$0x1]
        %v412 = vlaneseq
        %v413 = vshrl.u32 %v412, 7
        %v414 = vsub.s32 0, %v413
        %v415 = vrot.slane %v410, %v414
        %v417 = vadd.f32 %v402, %v415
        %v418 = vadd.f32 %v403, %v415
        %v419 = vadd.f32 %v404, %v415
        %v420 = vadd.f32 %v405, %v415
        %v421 = vadd.f32 %v406, %v415
        %v422 = vadd.f32 %v407, %v415
        %v423 = vadd.f32 %v408, %v415
        %v424 = vadd.f32 %v409, %v415
        %v425 = vadd.f32 %v417, %v418
        %v426 = vadd.f32 %v425, %v419
        %v427 = vadd.f32 %v426, %v420
        %v428 = vadd.f32 %v427, %v421
        %v429 = vadd.f32 %v428, %v422
        %v430 = vadd.f32 %v429, %v423
        %v431 = vadd.f32 %v430, %v424
        %v432 = vrot.slane %v431, 4
        %v433 = vadd.f32 %v431, %v432
        %v434 = vrot.slane %v433, 2
        %v435 = vadd.f32 %v433, %v434
        %v436 = vrot.slane %v435, 1
        %v437 = vadd.f32 %v435, %v436
        %v438 = vrcp.pop 64.0
        %v439 = vmul.f32 %v437, %v438
        %v440 = vsub.f32 %v417, %v439
        %v441 = vsub.f32 %v418, %v439
        %v442 = vsub.f32 %v419, %v439
        %v443 = vsub.f32 %v420, %v439
        %v444 = vsub.f32 %v421, %v439
        %v445 = vsub.f32 %v422, %v439
        %v446 = vsub.f32 %v423, %v439
        %v447 = vsub.f32 %v424, %v439
        %v448 = vmul.f32 %v440, %v440
        %v449 = vmul.f32 %v441, %v441
        %v450 = vmul.f32 %v442, %v442
        %v451 = vmul.f32 %v443, %v443
        %v452 = vmul.f32 %v444, %v444
        %v453 = vmul.f32 %v445, %v445
        %v454 = vmul.f32 %v446, %v446
        %v455 = vmul.f32 %v447, %v447
        %v456 = vadd.f32 %v448, %v449
        %v457 = vadd.f32 %v456, %v450
        %v458 = vadd.f32 %v457, %v451
        %v459 = vadd.f32 %v458, %v452
        %v460 = vadd.f32 %v459, %v453
        %v461 = vadd.f32 %v460, %v454
        %v462 = vadd.f32 %v461, %v455
        %v463 = vrot.slane %v462, 4
        %v464 = vadd.f32 %v462, %v463
        %v465 = vrot.slane %v464, 2
        %v466 = vadd.f32 %v464, %v465
        %v467 = vrot.slane %v466, 1
        %v468 = vadd.f32 %v466, %v467
        %v469 = vmul.f32 %v468, %v438
        %v470 = vadd.f32 %v469, 1e-05
        %v471 = vrsqrt.pop %v470
        %v472 = vmul.f32 %v440, %v471
        %v473 = vmul.f32 %v441, %v471
        %v474 = vmul.f32 %v442, %v471
        %v475 = vmul.f32 %v443, %v471
        %v476 = vmul.f32 %v444, %v471
        %v477 = vmul.f32 %v445, %v471
        %v478 = vmul.f32 %v446, %v471
        %v479 = vmul.f32 %v447, %v471
        %v480 = vmax.f32 %v472, 0.0
        %v481 = vmax.f32 %v473, 0.0
        %v482 = vmax.f32 %v474, 0.0
        %v483 = vmax.f32 %v475, 0.0
        %v484 = vmax.f32 %v476, 0.0
        %v485 = vmax.f32 %v477, 0.0
        %v486 = vmax.f32 %v478, 0.0
        %v487 = vmax.f32 %v479, 0.0
        %488 = vst [vmem:[%s215] sm:$0xff] %v480
        %489 = vst [vmem:[%s215 + $0x8] sm:$0xff] %v481
        %490 = vst [vmem:[%s215 + $0x10] sm:$0xff] %v482
        %491 = vst [vmem:[%s215 + $0x18] sm:$0xff] %v483
        %492 = vst [vmem:[%s215 + $0x20] sm:$0xff] %v484
        %493 = vst [vmem:[%s215 + $0x28] sm:$0xff] %v485
        %494 = vst [vmem:[%s215 + $0x30] sm:$0xff] %v486
        %495 = vst [vmem:[%s215 + $0x38] sm:$0xff] %v487
      $region40: #{generator_forward.15} parent=31 // pred_fallthru
        _
      %p496 = scmp.lt.s32.totalorder %s18, 1
      %s497 = scalar_select %p496, %s18, 1
      %s498 = smul.addr %s497, 8
      %s499 = smul.addr %s498, 8
      %s500 = scalar_lea.vmem %s3, %s499
      // Predicated region
      $region41: #{generator_forward.15} parent=31 // pred_check
        %p501 = pneg %p119
      $region42: #{generator_forward.15} parent=31 // pred_check_branch
        %503 = sbr.rel (%p501) target = $region44
      $region43: #{generator_forward.15} parent=31 // pred_region
        _
      $region44: #{generator_forward.15} parent=31 // pred_fallthru
        _
    $region32: #{generator_forward.15} parent=5 // pred_fallthru
      _
    %p504 = scmp.le.s32.totalorder 2, %s9
    // Predicated region
    $region45: #{generator_forward.15} parent=5 // pred_check
      %p505 = pneg %p504
    $region46: #{generator_forward.15} parent=5 // pred_check_branch
      %507 = sbr.rel (%p505) target = $region48
    $region47: #{generator_forward.15} parent=5 // pred_region
      %s508 = ssub.s32 %s9, 2
      // Predicated region
      $region49: #{generator_forward.15} parent=47 // pred_check
        %p509 = pneg %p125
      $region50: #{generator_forward.15} parent=47 // pred_check_branch
        %511 = sbr.rel (%p509) target = $region52
      $region51: #{generator_forward.15} parent=47 // pred_region
        %p512 = scmp.lt.s32.totalorder %s20, 1
        %s513 = scalar_select %p512, %s20, 1
        %s514 = smul.addr %s513, 8
        %s515 = smul.addr %s514, 8
        %s516 = scalar_lea.vmem %s3, %s515
      $region52: #{generator_forward.15} parent=47 // pred_fallthru
        _
    $region48: #{generator_forward.15} parent=5 // pred_fallthru
      _
  $region6: #{generator_forward.15} parent=0 // loop_footer
    %s13 = sadd.s32 1, %s9
  $region7: #{generator_forward.15} parent=0 // loop_footer_branch
    %8 = sbr.rel target = $region3
  $region8: #{generator_forward.15} parent=0 // loop_exit
    _

// kernel: generator_forward.14
$region0: #{generator_forward.14}
  #allocation0 [shape = 'u32[]', space=smem, size = 0x4, offset = 0x4, fixed_abs, tag = 'smem constant byte address 0x4 - core index']
  #allocation1 [shape = 'u32[144,128]{1,0:T(1,128)}', space=vmem, size = 0x12000, scoped, tag = 'internal scratch']
  #allocation2 [shape = 'f32[256,128]{1,0:T(8,128)}', space=vmem, size = 0x20000, scoped, tag = 'scratch operand']
  %s0 = inlined_call_operand.vmem [shape: bf16[2,256,56], index: 0, kind: input, shape index: {}]
  %s1 = inlined_call_operand.hbm [shape: bf16[56,128], index: 1, kind: input, shape index: {}]
  %s2 = inlined_call_operand.hbm [shape: f32[1,128], index: 2, kind: input, shape index: {}]
  %s3 = inlined_call_operand.vmem [shape: f32[2,256,128], index: 3, kind: output, shape index: {}]
  %s4 = sld [smem:[#allocation0]]
  $region61: #{generator_forward.14} parent=0
    _
  %s6 = ssub.s32 1, %s4
  %s7 = scalar_select 0, %s6, %s4
  $region1: #{generator_forward.14} parent=0
    #allocation3 [shape = 'u8[14336]{0}', space=vmem, size = 0x3800, scoped, tag = 'input window, operand 1, single buffered']
    #allocation4 [shape = 's32[2]{0}', space=sflag, size = 0x8, scoped, tag = 'scoped memory for generator_forward.14']
    #allocation5 [shape = 'u8[512]{0}', space=vmem, size = 0x400, scoped, tag = 'input window, operand 2, single buffered']
    #allocation6 [shape = 's32[1]{0}', space=sflag, size = 0x4, scoped, tag = 'scoped memory for generator_forward.14']
    %8 = vsyncpa [#allocation4], 0
    %9 = vsyncpa [#allocation6], 0
    loop: start=0, step=1, limit=4
    $region2: #{generator_forward.14} parent=1 // loop_pre_header
      _
    $region3: #{generator_forward.14} parent=1 // loop_header
      %s11 = sphi 0, %s15
      %p12 = scmp.ge.s32.totalorder %s11, 4
      %s18 = sphi 0, %s30
      %s19 = sphi 0, %s26
      %s20 = sphi 0, %s18
      %s21 = sphi 0, %s19
      %s22 = sphi 0, %s20
      %s23 = sphi 0, %s21
      %s35 = sphi 0, %s37
      %s38 = sphi 0, %s35
      %s39 = sphi 0, %s38
      %s55 = sphi 0, %s39
      %s61 = sphi 0, %s63
      %s64 = sphi 0, %s61
      %s65 = sphi 0, %s64
      %s81 = sphi 0, %s65
      %s85 = sphi 0, %s85
      %s87 = sphi 0, %s85
      %s88 = sphi 0, %s87
      %s102 = sphi 0, %s88
      %s108 = sphi 0, %s110
      %s111 = sphi 0, %s108
      %s112 = sphi 0, %s111
      %s128 = sphi 0, %s112
    $region4: #{generator_forward.14} parent=1 // loop_header_branch
      %14 = sbr.rel (%p12) target = $region8
    $region5: #{generator_forward.14} parent=1 // loop_body
      %s16 = ssub.s32 %s11, 1
      %s17 = ssub.s32 %s11, 2
      %s24 = sadd.s32 1, %s19
      %p25 = scmp.ge.s32.totalorder %s24, 1
      %s26 = scalar_select %p25, 0, %s24
      %s27 = sadd.s32 1, %s18
      %s28 = scalar_select %p25, %s27, %s18
      %p29 = scmp.ge.s32.totalorder %s28, 2
      %s30 = scalar_select %p29, 0, %s28
      %s31 = ssub.s32 %s18, %s30
      %s32 = ssub.s32 %s19, %s26
      %s33 = sor.u32 %s31, %s32
      %p34 = scmp.eq.s32.totalorder %s33, 0
      %s36 = sadd.s32 %s35, 1
      %s37 = scalar_select %p34, %s35, %s36
      %p40 = pneg %p34
      %p41 = scmp.eq.s32.totalorder %s11, 1
      %p42 = por %p40, %p41
      %p43 = scmp.ne.s32.totalorder %s35, %s38
      %p44 = scmp.eq.s32.totalorder %s11, 0
      %p45 = por %p43, %p44
      %p46 = scmp.ne.s32.totalorder %s35, %s38
      %p47 = scmp.eq.s32.totalorder %s16, 1
      %p48 = por %p46, %p47
      %p49 = scmp.ne.s32.totalorder %s38, %s39
      %p50 = scmp.eq.s32.totalorder %s16, 0
      %p51 = por %p49, %p50
      %p52 = scmp.ne.s32.totalorder %s38, %s39
      %p53 = scmp.eq.s32.totalorder %s17, 1
      %p54 = por %p52, %p53
      %p56 = scmp.ne.s32.totalorder %s39, %s55
      %p57 = scmp.eq.s32.totalorder %s17, 0
      %p58 = por %p56, %p57
      %s59 = ssub.s32 %s19, %s26
      %p60 = scmp.eq.s32.totalorder %s59, 0
      %s62 = sadd.s32 %s61, 1
      %s63 = scalar_select %p60, %s61, %s62
      %p66 = pneg %p60
      %p67 = scmp.eq.s32.totalorder %s11, 1
      %p68 = por %p66, %p67
      %p69 = scmp.ne.s32.totalorder %s61, %s64
      %p70 = scmp.eq.s32.totalorder %s11, 0
      %p71 = por %p69, %p70
      %p72 = scmp.ne.s32.totalorder %s61, %s64
      %p73 = scmp.eq.s32.totalorder %s16, 1
      %p74 = por %p72, %p73
      %p75 = scmp.ne.s32.totalorder %s64, %s65
      %p76 = scmp.eq.s32.totalorder %s16, 0
      %p77 = por %p75, %p76
      %p78 = scmp.ne.s32.totalorder %s64, %s65
      %p79 = scmp.eq.s32.totalorder %s17, 1
      %p80 = por %p78, %p79
      %p82 = scmp.ne.s32.totalorder %s65, %s81
      %p83 = scmp.eq.s32.totalorder %s17, 0
      %p84 = por %p82, %p83
      %s86 = sadd.s32 %s85, 1
      %p89 = scmp.eq.s32.totalorder %s11, 1
      %p90 = scmp.ne.s32.totalorder %s85, %s87
      %p91 = scmp.eq.s32.totalorder %s11, 0
      %p92 = por %p90, %p91
      %p93 = scmp.ne.s32.totalorder %s85, %s87
      %p94 = scmp.eq.s32.totalorder %s16, 1
      %p95 = por %p93, %p94
      %p96 = scmp.ne.s32.totalorder %s87, %s88
      %p97 = scmp.eq.s32.totalorder %s16, 0
      %p98 = por %p96, %p97
      %p99 = scmp.ne.s32.totalorder %s87, %s88
      %p100 = scmp.eq.s32.totalorder %s17, 1
      %p101 = por %p99, %p100
      %p103 = scmp.ne.s32.totalorder %s88, %s102
      %p104 = scmp.eq.s32.totalorder %s17, 0
      %p105 = por %p103, %p104
      %s106 = ssub.s32 %s18, %s30
      %p107 = scmp.eq.s32.totalorder %s106, 0
      %s109 = sadd.s32 %s108, 1
      %s110 = scalar_select %p107, %s108, %s109
      %p113 = pneg %p107
      %p114 = scmp.eq.s32.totalorder %s11, 1
      %p115 = por %p113, %p114
      %p116 = scmp.ne.s32.totalorder %s108, %s111
      %p117 = scmp.eq.s32.totalorder %s11, 0
      %p118 = por %p116, %p117
      %p119 = scmp.ne.s32.totalorder %s108, %s111
      %p120 = scmp.eq.s32.totalorder %s16, 1
      %p121 = por %p119, %p120
      %p122 = scmp.ne.s32.totalorder %s111, %s112
      %p123 = scmp.eq.s32.totalorder %s16, 0
      %p124 = por %p122, %p123
      %p125 = scmp.ne.s32.totalorder %s111, %s112
      %p126 = scmp.eq.s32.totalorder %s17, 1
      %p127 = por %p125, %p126
      %p129 = scmp.ne.s32.totalorder %s112, %s128
      %p130 = scmp.eq.s32.totalorder %s17, 0
      %p131 = por %p129, %p130
      %p132 = scmp.le.s32.totalorder 1, %s11
      %p133 = scmp.lt.s32.totalorder %s11, 3
      %p134 = pnand %p132, %p133
      %p135 = pneg %p134
      // Predicated region
      $region9: #{generator_forward.14} parent=5 // pred_check
        _
      $region10: #{generator_forward.14} parent=5 // pred_check_branch
        %137 = sbr.rel (%p134) target = $region12
      $region11: #{generator_forward.14} parent=5 // pred_region
        %s138 = ssub.s32 %s11, 1
        // Predicated region
        $region13: #{generator_forward.14} parent=11 // pred_check
          %p139 = pneg %p77
        $region14: #{generator_forward.14} parent=11 // pred_check_branch
          %141 = sbr.rel (%p139) target = $region16
        $region15: #{generator_forward.14} parent=11 // pred_region
          %s142 = smul.u32 7, %s21
          %s144 = ssub.s32 448, 448
          %145 = vsyncadd [#allocation4], %s144
          %s146 = smul.addr %s142, 64
          %s147 = scalar_lea.hbm %s1, %s146
          %s148 = sshll.u32 [#allocation3], 4
          %s149 = int_to_ptr.vmem [resolvable:$true] %s148
          %154 = dma.hbm_to_vmem [thread:$0]  %s147, 448, %s149, [#allocation4], 64, 64, 4
        $region16: #{generator_forward.14} parent=11 // pred_fallthru
          _
        // Predicated region
        $region17: #{generator_forward.14} parent=11 // pred_check
          %p155 = pneg %p98
        $region18: #{generator_forward.14} parent=11 // pred_check_branch
          %157 = sbr.rel (%p155) target = $region20
        $region19: #{generator_forward.14} parent=11 // pred_region
          %s159 = ssub.s32 16, 16
          %160 = vsyncadd [#allocation6], %s159
          %s162 = sshll.u32 [#allocation5], 4
          %s163 = int_to_ptr.vmem [resolvable:$true] %s162
          %165 = dma.hbm_to_vmem [thread:$0]  %s2, 16, %s163, [#allocation6]
        $region20: #{generator_forward.14} parent=11 // pred_fallthru
          _
      $region12: #{generator_forward.14} parent=5 // pred_fallthru
        _
      %p166 = scmp.lt.s32.totalorder %s11, 2
      // Predicated region
      $region21: #{generator_forward.14} parent=5 // pred_check
        %p167 = pneg %p166
      $region22: #{generator_forward.14} parent=5 // pred_check_branch
        %169 = sbr.rel (%p167) target = $region24
      $region23: #{generator_forward.14} parent=5 // pred_region
        // Predicated region
        $region25: #{generator_forward.14} parent=23 // pred_check
          %p170 = pneg %p45
        $region26: #{generator_forward.14} parent=23 // pred_check_branch
          %172 = sbr.rel (%p170) target = $region28
        $region27: #{generator_forward.14} parent=23 // pred_region
          %p173 = scmp.lt.s32.totalorder %s18, 1
          %s174 = scalar_select %p173, %s18, 1
          %p175 = scmp.lt.s32.totalorder %s19, 0
          %s176 = scalar_select %p175, %s19, 0
          %s177 = smul.addr %s174, 32
          %s178 = sadd.s32 %s176, %s177
          %s179 = smul.addr %s178, 4
          %s180 = scalar_lea.vmem %s0, %s179
        $region28: #{generator_forward.14} parent=23 // pred_fallthru
          _
      $region24: #{generator_forward.14} parent=5 // pred_fallthru
        _
      %p181 = scmp.le.s32.totalorder 1, %s11
      %p182 = scmp.lt.s32.totalorder %s11, 3
      %p183 = pnand %p181, %p182
      %p184 = pneg %p183
      // Predicated region
      $region29: #{generator_forward.14} parent=5 // pred_check
        _
      $region30: #{generator_forward.14} parent=5 // pred_check_branch
        %186 = sbr.rel (%p183) target = $region32
      $region31: #{generator_forward.14} parent=5 // pred_region
        %s187 = ssub.s32 %s11, 1
        // Predicated region
        $region33: #{generator_forward.14} parent=31 // pred_check
          %p188 = pneg %p77
        $region34: #{generator_forward.14} parent=31 // pred_check_branch
          %190 = sbr.rel (%p188) target = $region36
        $region35: #{generator_forward.14} parent=31 // pred_region
          %191 = dma.done [#allocation4], 448
        $region36: #{generator_forward.14} parent=31 // pred_fallthru
          _
        // Predicated region
        $region37: #{generator_forward.14} parent=31 // pred_check
          %p192 = pneg %p98
        $region38: #{generator_forward.14} parent=31 // pred_check_branch
          %194 = sbr.rel (%p192) target = $region40
        $region39: #{generator_forward.14} parent=31 // pred_region
          %195 = dma.done [#allocation6], 16
        $region40: #{generator_forward.14} parent=31 // pred_fallthru
          _
        %p196 = scmp.lt.s32.totalorder %s20, 1
        %s197 = scalar_select %p196, %s20, 1
        %p198 = scmp.lt.s32.totalorder %s21, 0
        %s199 = scalar_select %p198, %s21, 0
        %s200 = smul.addr %s197, 32
        %s201 = sadd.s32 %s199, %s200
        %s202 = smul.addr %s201, 4
        %s203 = scalar_lea.vmem %s0, %s202
        %p204 = pneg %p51
        %p205 = pneg %p48
        %p206 = pneg %p77
        %p207 = pneg %p74
        %p208 = pneg %p98
        %p209 = pneg %p95
        %p210 = pneg %p124
        %p211 = pneg %p121
        %p212 = scmp.lt.s32.totalorder %s20, 1
        %s213 = scalar_select %p212, %s20, 1
        %s214 = smul.addr %s213, 32
        %s215 = smul.addr %s214, 8
        %s216 = scalar_lea.vmem %s3, %s215
        %p217 = scmp.lt.s32.totalorder %s20, 1
        %s218 = scalar_select %p217, %s20, 1
        %p219 = scmp.lt.s32.totalorder %s21, 0
        %s220 = scalar_select %p219, %s21, 0
        %s221 = smul.addr %s218, 32
        %s222 = sadd.s32 %s220, %s221
        %s223 = smul.addr %s222, 4
        %s224 = scalar_lea.vmem %s0, %s223
        %s225 = smul.u32 7, %s21
        %p226 = scmp.lt.s32.totalorder %s20, 1
        %s227 = scalar_select %p226, %s20, 1
        %s228 = smul.addr %s227, 32
        %s229 = smul.addr %s228, 8
        %s230 = scalar_lea.vmem %s3, %s229
        %p232 = scmp.eq.s32.totalorder %s21, 0
        // Predicated region
        $region41: #{generator_forward.14} parent=31 // pred_check
          %p233 = pneg %p232
        $region42: #{generator_forward.14} parent=31 // pred_check_branch
          %235 = sbr.rel (%p233) target = $region44
        $region43: #{generator_forward.14} parent=31 // pred_region
          %236 = vst [vmem:[#allocation2] sm:$0xff] 0.0
          %237 = vst [vmem:[#allocation2 + $0x8] sm:$0xff] 0.0
          %238 = vst [vmem:[#allocation2 + $0x10] sm:$0xff] 0.0
          %239 = vst [vmem:[#allocation2 + $0x18] sm:$0xff] 0.0
          %240 = vst [vmem:[#allocation2 + $0x20] sm:$0xff] 0.0
          %241 = vst [vmem:[#allocation2 + $0x28] sm:$0xff] 0.0
          %242 = vst [vmem:[#allocation2 + $0x30] sm:$0xff] 0.0
          %243 = vst [vmem:[#allocation2 + $0x38] sm:$0xff] 0.0
          %244 = vst [vmem:[#allocation2 + $0x40] sm:$0xff] 0.0
          %245 = vst [vmem:[#allocation2 + $0x48] sm:$0xff] 0.0
          %246 = vst [vmem:[#allocation2 + $0x50] sm:$0xff] 0.0
          %247 = vst [vmem:[#allocation2 + $0x58] sm:$0xff] 0.0
          %248 = vst [vmem:[#allocation2 + $0x60] sm:$0xff] 0.0
          %249 = vst [vmem:[#allocation2 + $0x68] sm:$0xff] 0.0
          %250 = vst [vmem:[#allocation2 + $0x70] sm:$0xff] 0.0
          %251 = vst [vmem:[#allocation2 + $0x78] sm:$0xff] 0.0
          %252 = vst [vmem:[#allocation2 + $0x80] sm:$0xff] 0.0
          %253 = vst [vmem:[#allocation2 + $0x88] sm:$0xff] 0.0
          %254 = vst [vmem:[#allocation2 + $0x90] sm:$0xff] 0.0
          %255 = vst [vmem:[#allocation2 + $0x98] sm:$0xff] 0.0
          %256 = vst [vmem:[#allocation2 + $0xa0] sm:$0xff] 0.0
          %257 = vst [vmem:[#allocation2 + $0xa8] sm:$0xff] 0.0
          %258 = vst [vmem:[#allocation2 + $0xb0] sm:$0xff] 0.0
          %259 = vst [vmem:[#allocation2 + $0xb8] sm:$0xff] 0.0
          %260 = vst [vmem:[#allocation2 + $0xc0] sm:$0xff] 0.0
          %261 = vst [vmem:[#allocation2 + $0xc8] sm:$0xff] 0.0
          %262 = vst [vmem:[#allocation2 + $0xd0] sm:$0xff] 0.0
          %263 = vst [vmem:[#allocation2 + $0xd8] sm:$0xff] 0.0
          %264 = vst [vmem:[#allocation2 + $0xe0] sm:$0xff] 0.0
          %265 = vst [vmem:[#allocation2 + $0xe8] sm:$0xff] 0.0
          %266 = vst [vmem:[#allocation2 + $0xf0] sm:$0xff] 0.0
          %267 = vst [vmem:[#allocation2 + $0xf8] sm:$0xff] 0.0
        $region44: #{generator_forward.14} parent=31 // pred_fallthru
          _
        %v268 = vld [vmem:[#allocation2] sm:$0xff]
        %v269 = vld [vmem:[#allocation2 + $0x8] sm:$0xff]
        %v270 = vld [vmem:[#allocation2 + $0x10] sm:$0xff]
        %v271 = vld [vmem:[#allocation2 + $0x18] sm:$0xff]
        %v272 = vld [vmem:[#allocation2 + $0x20] sm:$0xff]
        %v273 = vld [vmem:[#allocation2 + $0x28] sm:$0xff]
        %v274 = vld [vmem:[#allocation2 + $0x30] sm:$0xff]
        %v275 = vld [vmem:[#allocation2 + $0x38] sm:$0xff]
        %v276 = vld [vmem:[#allocation2 + $0x40] sm:$0xff]
        %v277 = vld [vmem:[#allocation2 + $0x48] sm:$0xff]
        %v278 = vld [vmem:[#allocation2 + $0x50] sm:$0xff]
        %v279 = vld [vmem:[#allocation2 + $0x58] sm:$0xff]
        %v280 = vld [vmem:[#allocation2 + $0x60] sm:$0xff]
        %v281 = vld [vmem:[#allocation2 + $0x68] sm:$0xff]
        %v282 = vld [vmem:[#allocation2 + $0x70] sm:$0xff]
        %v283 = vld [vmem:[#allocation2 + $0x78] sm:$0xff]
        %v284 = vld [vmem:[#allocation2 + $0x80] sm:$0xff]
        %v285 = vld [vmem:[#allocation2 + $0x88] sm:$0xff]
        %v286 = vld [vmem:[#allocation2 + $0x90] sm:$0xff]
        %v287 = vld [vmem:[#allocation2 + $0x98] sm:$0xff]
        %v288 = vld [vmem:[#allocation2 + $0xa0] sm:$0xff]
        %v289 = vld [vmem:[#allocation2 + $0xa8] sm:$0xff]
        %v290 = vld [vmem:[#allocation2 + $0xb0] sm:$0xff]
        %v291 = vld [vmem:[#allocation2 + $0xb8] sm:$0xff]
        %v292 = vld [vmem:[#allocation2 + $0xc0] sm:$0xff]
        %v293 = vld [vmem:[#allocation2 + $0xc8] sm:$0xff]
        %v294 = vld [vmem:[#allocation2 + $0xd0] sm:$0xff]
        %v295 = vld [vmem:[#allocation2 + $0xd8] sm:$0xff]
        %v296 = vld [vmem:[#allocation2 + $0xe0] sm:$0xff]
        %v297 = vld [vmem:[#allocation2 + $0xe8] sm:$0xff]
        %v298 = vld [vmem:[#allocation2 + $0xf0] sm:$0xff]
        %v299 = vld [vmem:[#allocation2 + $0xf8] sm:$0xff]
        %v300 = vld [vmem:[%s224] sm:$0xf]
        %v301 = vld [vmem:[%s224 + $0x4] sm:$0xf]
        %v302 = vld [vmem:[%s224 + $0x8] sm:$0xf]
        %v303 = vld [vmem:[%s224 + $0xc] sm:$0xf]
        %v304 = vld [vmem:[%s224 + $0x10] sm:$0xf]
        %v305 = vld [vmem:[%s224 + $0x14] sm:$0xf]
        %v306 = vld [vmem:[%s224 + $0x18] sm:$0xf]
        %v307 = vld [vmem:[%s224 + $0x1c] sm:$0xf]
        %v308 = vld [vmem:[%s224 + $0x20] sm:$0xf]
        %v309 = vld [vmem:[%s224 + $0x24] sm:$0xf]
        %v310 = vld [vmem:[%s224 + $0x28] sm:$0xf]
        %v311 = vld [vmem:[%s224 + $0x2c] sm:$0xf]
        %v312 = vld [vmem:[%s224 + $0x30] sm:$0xf]
        %v313 = vld [vmem:[%s224 + $0x34] sm:$0xf]
        %v314 = vld [vmem:[%s224 + $0x38] sm:$0xf]
        %v315 = vld [vmem:[%s224 + $0x3c] sm:$0xf]
        %v316 = vld [vmem:[%s224 + $0x40] sm:$0xf]
        %v317 = vld [vmem:[%s224 + $0x44] sm:$0xf]
        %v318 = vld [vmem:[%s224 + $0x48] sm:$0xf]
        %v319 = vld [vmem:[%s224 + $0x4c] sm:$0xf]
        %v320 = vld [vmem:[%s224 + $0x50] sm:$0xf]
        %v321 = vld [vmem:[%s224 + $0x54] sm:$0xf]
        %v322 = vld [vmem:[%s224 + $0x58] sm:$0xf]
        %v323 = vld [vmem:[%s224 + $0x5c] sm:$0xf]
        %v324 = vld [vmem:[%s224 + $0x60] sm:$0xf]
        %v325 = vld [vmem:[%s224 + $0x64] sm:$0xf]
        %v326 = vld [vmem:[%s224 + $0x68] sm:$0xf]
        %v327 = vld [vmem:[%s224 + $0x6c] sm:$0xf]
        %v328 = vld [vmem:[%s224 + $0x70] sm:$0xf]
        %v329 = vld [vmem:[%s224 + $0x74] sm:$0xf]
        %v330 = vld [vmem:[%s224 + $0x78] sm:$0xf]
        %v331 = vld [vmem:[%s224 + $0x7c] sm:$0xf]
        %v332 = vld [vmem:[#allocation3] sm:$0xf]
        %v333 = vld [vmem:[#allocation3 + $0x4] sm:$0xf]
        %v334 = vld [vmem:[#allocation3 + $0x8] sm:$0xf]
        %v335 = vld [vmem:[#allocation3 + $0xc] sm:$0xf]
        %v336 = vld [vmem:[#allocation3 + $0x10] sm:$0xf]
        %v337 = vld [vmem:[#allocation3 + $0x14] sm:$0xf]
        %v338 = vld [vmem:[#allocation3 + $0x18] sm:$0xf]
        %v371 = vunpack.c.l.b16 %v300
        %v372 = vunpack.c.l.b16 %v301
        %v373 = vunpack.c.l.b16 %v302
        %v374 = vunpack.c.l.b16 %v303
        %v375 = vunpack.c.l.b16 %v304
        %v376 = vunpack.c.l.b16 %v305
        %v377 = vunpack.c.l.b16 %v306
        %v378 = vunpack.c.l.b16 %v307
        %v379 = vunpack.c.l.b16 %v308
        %v380 = vunpack.c.l.b16 %v309
        %v381 = vunpack.c.l.b16 %v310
        %v382 = vunpack.c.l.b16 %v311
        %v383 = vunpack.c.l.b16 %v312
        %v384 = vunpack.c.l.b16 %v313
        %v385 = vunpack.c.l.b16 %v314
        %v386 = vunpack.c.l.b16 %v315
        %v387 = vunpack.c.l.b16 %v316
        %v388 = vunpack.c.l.b16 %v317
        %v389 = vunpack.c.l.b16 %v318
        %v390 = vunpack.c.l.b16 %v319
        %v391 = vunpack.c.l.b16 %v320
        %v392 = vunpack.c.l.b16 %v321
        %v393 = vunpack.c.l.b16 %v322
        %v394 = vunpack.c.l.b16 %v323
        %v395 = vunpack.c.l.b16 %v324
        %v396 = vunpack.c.l.b16 %v325
        %v397 = vunpack.c.l.b16 %v326
        %v398 = vunpack.c.l.b16 %v327
        %v399 = vunpack.c.l.b16 %v328
        %v400 = vunpack.c.l.b16 %v329
        %v401 = vunpack.c.l.b16 %v330
        %v402 = vunpack.c.l.b16 %v331
        %v403 = vpack.c.b16 %v372, %v371
        %v404 = vpack.c.b16 %v374, %v373
        %v405 = vpack.c.b16 %v376, %v375
        %v406 = vpack.c.b16 %v378, %v377
        %v407 = vpack.c.b16 %v380, %v379
        %v408 = vpack.c.b16 %v382, %v381
        %v409 = vpack.c.b16 %v384, %v383
        %v410 = vpack.c.b16 %v386, %v385
        %v411 = vpack.c.b16 %v388, %v387
        %v412 = vpack.c.b16 %v390, %v389
        %v413 = vpack.c.b16 %v392, %v391
        %v414 = vpack.c.b16 %v394, %v393
        %v415 = vpack.c.b16 %v396, %v395
        %v416 = vpack.c.b16 %v398, %v397
        %v417 = vpack.c.b16 %v400, %v399
        %v418 = vpack.c.b16 %v402, %v401
        %v426 = vunpack.c.l.b16 %v332
        %v427 = vunpack.c.l.b16 %v333
        %v428 = vunpack.c.l.b16 %v334
        %v429 = vunpack.c.l.b16 %v335
        %v430 = vunpack.c.l.b16 %v336
        %v431 = vunpack.c.l.b16 %v337
        %v432 = vunpack.c.l.b16 %v338
        %v433 = vpack.c.b16 %v427, %v426
        %v434 = vpack.c.b16 %v429, %v428
        %v435 = vpack.c.b16 %v431, %v430
        %v436 = vpack.c.b16 %v432, %v432
        %vm440 = vcmask 457728
        %v442 = vsel %vm440, %v403, 0
        %v445 = vsel %vm440, %v404, 0
        %v448 = vsel %vm440, %v405, 0
        %v451 = vsel %vm440, %v406, 0
        %v454 = vsel %vm440, %v407, 0
        %v457 = vsel %vm440, %v408, 0
        %v460 = vsel %vm440, %v409, 0
        %v463 = vsel %vm440, %v410, 0
        %v466 = vsel %vm440, %v411, 0
        %v469 = vsel %vm440, %v412, 0
        %v472 = vsel %vm440, %v413, 0
        %v475 = vsel %vm440, %v414, 0
        %v478 = vsel %vm440, %v415, 0
        %v481 = vsel %vm440, %v416, 0
        %v484 = vsel %vm440, %v417, 0
        %v487 = vsel %vm440, %v418, 0
        %vm489 = vcmask 1043456
        %v491 = vsel %vm489, %v436, 0
        %493 = vmatprep.subr.bf16.mxu0 0
        %494 = vmatpush1.bf16.msra.mxu0 %v433
        %495 = vmatprep.subr.bf16.mxu0 0
        %496 = vmatpush1.bf16.msra.mxu0 %v434
        %497 = vmatprep.subr.bf16.mxu0 0
        %498 = vmatpush1.bf16.msra.mxu0 %v435
        %499 = vmatprep.subr.bf16.mxu0 0
        %500 = vmatpush1.bf16.msra.mxu0 %v491
        %501 = vmatprep.subr.bf16.mxu0 0
        %502 = vmatpush1.bf16.msra.mxu0 0
        %503 = vmatprep.subr.bf16.mxu0 0
        %504 = vmatpush1.bf16.msra.mxu0 0
        %505 = vmatprep.subr.bf16.mxu0 0
        %506 = vmatpush1.bf16.msra.mxu0 0
        %507 = vmatprep.subr.bf16.mxu0 0
        %508 = vmatpush1.bf16.msra.mxu0 0
        %509 = vmatprep.subr.bf16.mxu0 0
        %510 = vmatpush1.bf16.msra.mxu0 0
        %511 = vmatprep.subr.bf16.mxu0 0
        %512 = vmatpush1.bf16.msra.mxu0 0
        %513 = vmatprep.subr.bf16.mxu0 0
        %514 = vmatpush1.bf16.msra.mxu0 0
        %515 = vmatprep.subr.bf16.mxu0 0
        %516 = vmatpush1.bf16.msra.mxu0 0
        %517 = vmatprep.subr.bf16.mxu0 0
        %518 = vmatpush1.bf16.msra.mxu0 0
        %519 = vmatprep.subr.bf16.mxu0 0
        %520 = vmatpush1.bf16.msra.mxu0 0
        %521 = vmatprep.subr.bf16.mxu0 0
        %522 = vmatpush1.bf16.msra.mxu0 0
        %523 = vmatprep.subr.bf16.mxu0 0
        %524 = vmatpush1.bf16.msra.mxu0 0
        %525 = vmatprep.mubr.bf16.mxu0 0
        %526 = vmatmul.mubr.bf16.gmra.mrb[0].mxu0 %v442
        %v527 = vpop.f32.mrb[0].mxu0
        %v528 = vadd.f32 0.0, %v527
        %v529 = vpop.f32.mrb[0].mxu0
        %v530 = vpop.f32.mrb[0].mxu0
        %v531 = vadd.f32 0.0, %v530
        %v532 = vpop.f32.mrb[0].mxu0
        %533 = vmatprep.mubr.bf16.mxu0 0
        %534 = vmatmul.mubr.bf16.gmra.mrb[0].mxu0 %v445
        %v535 = vpop.f32.mrb[0].mxu0
        %v536 = vadd.f32 0.0, %v535
        %v537 = vpop.f32.mrb[0].mxu0
        %v538 = vpop.f32.mrb[0].mxu0
        %v539 = vadd.f32 0.0, %v538
        %v540 = vpop.f32.mrb[0].mxu0
        %541 = vmatprep.mubr.bf16.mxu0 0
        %542 = vmatmul.mubr.bf16.gmra.mrb[0].mxu0 %v448
        %v543 = vpop.f32.mrb[0].mxu0
        %v544 = vadd.f32 0.0, %v543
        %v545 = vpop.f32.mrb[0].mxu0
        %v546 = vpop.f32.mrb[0].mxu0
        %v547 = vadd.f32 0.0, %v546
        %v548 = vpop.f32.mrb[0].mxu0
        %549 = vmatprep.mubr.bf16.mxu0 0
        %550 = vmatmul.mubr.bf16.gmra.mrb[0].mxu0 %v451
        %v551 = vpop.f32.mrb[0].mxu0
        %v552 = vadd.f32 0.0, %v551
        %v553 = vpop.f32.mrb[0].mxu0
        %v554 = vpop.f32.mrb[0].mxu0
        %v555 = vadd.f32 0.0, %v554
        %v556 = vpop.f32.mrb[0].mxu0
        %557 = vmatprep.mubr.bf16.mxu0 0
        %558 = vmatmul.mubr.bf16.gmra.mrb[0].mxu0 %v454
        %v559 = vpop.f32.mrb[0].mxu0
        %v560 = vadd.f32 0.0, %v559
        %v561 = vpop.f32.mrb[0].mxu0
        %v562 = vpop.f32.mrb[0].mxu0
        %v563 = vadd.f32 0.0, %v562
        %v564 = vpop.f32.mrb[0].mxu0
        %565 = vmatprep.mubr.bf16.mxu0 0
        %566 = vmatmul.mubr.bf16.gmra.mrb[0].mxu0 %v457
        %v567 = vpop.f32.mrb[0].mxu0
        %v568 = vadd.f32 0.0, %v567
        %v569 = vpop.f32.mrb[0].mxu0
        %v570 = vpop.f32.mrb[0].mxu0
        %v571 = vadd.f32 0.0, %v570
        %v572 = vpop.f32.mrb[0].mxu0
        %573 = vmatprep.mubr.bf16.mxu0 0
        %574 = vmatmul.mubr.bf16.gmra.mrb[0].mxu0 %v460
        %v575 = vpop.f32.mrb[0].mxu0
        %v576 = vadd.f32 0.0, %v575
        %v577 = vpop.f32.mrb[0].mxu0
        %v578 = vpop.f32.mrb[0].mxu0
        %v579 = vadd.f32 0.0, %v578
        %v580 = vpop.f32.mrb[0].mxu0
        %581 = vmatprep.mubr.bf16.mxu0 0
        %582 = vmatmul.mubr.bf16.gmra.mrb[0].mxu0 %v463
        %v583 = vpop.f32.mrb[0].mxu0
        %v584 = vadd.f32 0.0, %v583
        %v585 = vpop.f32.mrb[0].mxu0
        %v586 = vpop.f32.mrb[0].mxu0
        %v587 = vadd.f32 0.0, %v586
        %v588 = vpop.f32.mrb[0].mxu0
        %589 = vmatprep.mubr.bf16.mxu0 0
        %590 = vmatmul.mubr.bf16.gmra.mrb[0].mxu0 %v466
        %v591 = vpop.f32.mrb[0].mxu0
        %v592 = vadd.f32 0.0, %v591
        %v593 = vpop.f32.mrb[0].mxu0
        %v594 = vpop.f32.mrb[0].mxu0
        %v595 = vadd.f32 0.0, %v594
        %v596 = vpop.f32.mrb[0].mxu0
        %597 = vmatprep.mubr.bf16.mxu0 0
        %598 = vmatmul.mubr.bf16.gmra.mrb[0].mxu0 %v469
        %v599 = vpop.f32.mrb[0].mxu0
        %v600 = vadd.f32 0.0, %v599
        %v601 = vpop.f32.mrb[0].mxu0
        %v602 = vpop.f32.mrb[0].mxu0
        %v603 = vadd.f32 0.0, %v602
        %v604 = vpop.f32.mrb[0].mxu0
        %605 = vmatprep.mubr.bf16.mxu0 0
        %606 = vmatmul.mubr.bf16.gmra.mrb[0].mxu0 %v472
        %v607 = vpop.f32.mrb[0].mxu0
        %v608 = vadd.f32 0.0, %v607
        %v609 = vpop.f32.mrb[0].mxu0
        %v610 = vpop.f32.mrb[0].mxu0
        %v611 = vadd.f32 0.0, %v610
        %v612 = vpop.f32.mrb[0].mxu0
        %613 = vmatprep.mubr.bf16.mxu0 0
        %614 = vmatmul.mubr.bf16.gmra.mrb[0].mxu0 %v475
        %v615 = vpop.f32.mrb[0].mxu0
        %v616 = vadd.f32 0.0, %v615
        %v617 = vpop.f32.mrb[0].mxu0
        %v618 = vpop.f32.mrb[0].mxu0
        %v619 = vadd.f32 0.0, %v618
        %v620 = vpop.f32.mrb[0].mxu0
        %621 = vmatprep.mubr.bf16.mxu0 0
        %622 = vmatmul.mubr.bf16.gmra.mrb[0].mxu0 %v478
        %v623 = vpop.f32.mrb[0].mxu0
        %v624 = vadd.f32 0.0, %v623
        %v625 = vpop.f32.mrb[0].mxu0
        %v626 = vpop.f32.mrb[0].mxu0
        %v627 = vadd.f32 0.0, %v626
        %v628 = vpop.f32.mrb[0].mxu0
        %629 = vmatprep.mubr.bf16.mxu0 0
        %630 = vmatmul.mubr.bf16.gmra.mrb[0].mxu0 %v481
        %v631 = vpop.f32.mrb[0].mxu0
        %v632 = vadd.f32 0.0, %v631
        %v633 = vpop.f32.mrb[0].mxu0
        %v634 = vpop.f32.mrb[0].mxu0
        %v635 = vadd.f32 0.0, %v634
        %v636 = vpop.f32.mrb[0].mxu0
        %637 = vmatprep.mubr.bf16.mxu0 0
        %638 = vmatmul.mubr.bf16.gmra.mrb[0].mxu0 %v484
        %v639 = vpop.f32.mrb[0].mxu0
        %v640 = vadd.f32 0.0, %v639
        %v641 = vpop.f32.mrb[0].mxu0
        %v642 = vpop.f32.mrb[0].mxu0
        %v643 = vadd.f32 0.0, %v642
        %v644 = vpop.f32.mrb[0].mxu0
        %645 = vmatprep.mubr.bf16.mxu0 0
        %646 = vmatmul.mubr.bf16.gmra.mrb[0].mxu0 %v487
        %v647 = vpop.f32.mrb[0].mxu0
        %v648 = vadd.f32 0.0, %v647
        %v649 = vpop.f32.mrb[0].mxu0
        %v650 = vpop.f32.mrb[0].mxu0
        %v651 = vadd.f32 0.0, %v650
        %v652 = vpop.f32.mrb[0].mxu0
        %653 = vdwg.mxu0
        %v654 = vadd.f32 %v268, %v528
        %v655 = vadd.f32 %v269, %v531
        %v656 = vadd.f32 %v270, %v536
        %v657 = vadd.f32 %v271, %v539
        %v658 = vadd.f32 %v272, %v544
        %v659 = vadd.f32 %v273, %v547
        %v660 = vadd.f32 %v274, %v552
        %v661 = vadd.f32 %v275, %v555
        %v662 = vadd.f32 %v276, %v560
        %v663 = vadd.f32 %v277, %v563
        %v664 = vadd.f32 %v278, %v568
        %v665 = vadd.f32 %v279, %v571
        %v666 = vadd.f32 %v280, %v576
        %v667 = vadd.f32 %v281, %v579
        %v668 = vadd.f32 %v282, %v584
        %v669 = vadd.f32 %v283, %v587
        %v670 = vadd.f32 %v284, %v592
        %v671 = vadd.f32 %v285, %v595
        %v672 = vadd.f32 %v286, %v600
        %v673 = vadd.f32 %v287, %v603
        %v674 = vadd.f32 %v288, %v608
        %v675 = vadd.f32 %v289, %v611
        %v676 = vadd.f32 %v290, %v616
        %v677 = vadd.f32 %v291, %v619
        %v678 = vadd.f32 %v292, %v624
        %v679 = vadd.f32 %v293, %v627
        %v680 = vadd.f32 %v294, %v632
        %v681 = vadd.f32 %v295, %v635
        %v682 = vadd.f32 %v296, %v640
        %v683 = vadd.f32 %v297, %v643
        %v684 = vadd.f32 %v298, %v648
        %v685 = vadd.f32 %v299, %v651
        %686 = vst [vmem:[#allocation2] sm:$0xff] %v654
        %687 = vst [vmem:[#allocation2 + $0x8] sm:$0xff] %v655
        %688 = vst [vmem:[#allocation2 + $0x10] sm:$0xff] %v656
        %689 = vst [vmem:[#allocation2 + $0x18] sm:$0xff] %v657
        %690 = vst [vmem:[#allocation2 + $0x20] sm:$0xff] %v658
        %691 = vst [vmem:[#allocation2 + $0x28] sm:$0xff] %v659
        %692 = vst [vmem:[#allocation2 + $0x30] sm:$0xff] %v660
        %693 = vst [vmem:[#allocation2 + $0x38] sm:$0xff] %v661
        %694 = vst [vmem:[#allocation2 + $0x40] sm:$0xff] %v662
        %695 = vst [vmem:[#allocation2 + $0x48] sm:$0xff] %v663
        %696 = vst [vmem:[#allocation2 + $0x50] sm:$0xff] %v664
        %697 = vst [vmem:[#allocation2 + $0x58] sm:$0xff] %v665
        %698 = vst [vmem:[#allocation2 + $0x60] sm:$0xff] %v666
        %699 = vst [vmem:[#allocation2 + $0x68] sm:$0xff] %v667
        %700 = vst [vmem:[#allocation2 + $0x70] sm:$0xff] %v668
        %701 = vst [vmem:[#allocation2 + $0x78] sm:$0xff] %v669
        %702 = vst [vmem:[#allocation2 + $0x80] sm:$0xff] %v670
        %703 = vst [vmem:[#allocation2 + $0x88] sm:$0xff] %v671
        %704 = vst [vmem:[#allocation2 + $0x90] sm:$0xff] %v672
        %705 = vst [vmem:[#allocation2 + $0x98] sm:$0xff] %v673
        %706 = vst [vmem:[#allocation2 + $0xa0] sm:$0xff] %v674
        %707 = vst [vmem:[#allocation2 + $0xa8] sm:$0xff] %v675
        %708 = vst [vmem:[#allocation2 + $0xb0] sm:$0xff] %v676
        %709 = vst [vmem:[#allocation2 + $0xb8] sm:$0xff] %v677
        %710 = vst [vmem:[#allocation2 + $0xc0] sm:$0xff] %v678
        %711 = vst [vmem:[#allocation2 + $0xc8] sm:$0xff] %v679
        %712 = vst [vmem:[#allocation2 + $0xd0] sm:$0xff] %v680
        %713 = vst [vmem:[#allocation2 + $0xd8] sm:$0xff] %v681
        %714 = vst [vmem:[#allocation2 + $0xe0] sm:$0xff] %v682
        %715 = vst [vmem:[#allocation2 + $0xe8] sm:$0xff] %v683
        %716 = vst [vmem:[#allocation2 + $0xf0] sm:$0xff] %v684
        %717 = vst [vmem:[#allocation2 + $0xf8] sm:$0xff] %v685
        // Predicated region
        $region45: #{generator_forward.14} parent=31 // pred_check
          %p718 = pneg %p232
        $region46: #{generator_forward.14} parent=31 // pred_check_branch
          %720 = sbr.rel (%p718) target = $region48
        $region47: #{generator_forward.14} parent=31 // pred_region
          %v721 = vld [vmem:[#allocation2] sm:$0xff]
          %v722 = vld [vmem:[#allocation2 + $0x8] sm:$0xff]
          %v723 = vld [vmem:[#allocation2 + $0x10] sm:$0xff]
          %v724 = vld [vmem:[#allocation2 + $0x18] sm:$0xff]
          %v725 = vld [vmem:[#allocation2 + $0x20] sm:$0xff]
          %v726 = vld [vmem:[#allocation2 + $0x28] sm:$0xff]
          %v727 = vld [vmem:[#allocation2 + $0x30] sm:$0xff]
          %v728 = vld [vmem:[#allocation2 + $0x38] sm:$0xff]
          %v729 = vld [vmem:[#allocation2 + $0x40] sm:$0xff]
          %v730 = vld [vmem:[#allocation2 + $0x48] sm:$0xff]
          %v731 = vld [vmem:[#allocation2 + $0x50] sm:$0xff]
          %v732 = vld [vmem:[#allocation2 + $0x58] sm:$0xff]
          %v733 = vld [vmem:[#allocation2 + $0x60] sm:$0xff]
          %v734 = vld [vmem:[#allocation2 + $0x68] sm:$0xff]
          %v735 = vld [vmem:[#allocation2 + $0x70] sm:$0xff]
          %v736 = vld [vmem:[#allocation2 + $0x78] sm:$0xff]
          %v737 = vld [vmem:[#allocation2 + $0x80] sm:$0xff]
          %v738 = vld [vmem:[#allocation2 + $0x88] sm:$0xff]
          %v739 = vld [vmem:[#allocation2 + $0x90] sm:$0xff]
          %v740 = vld [vmem:[#allocation2 + $0x98] sm:$0xff]
          %v741 = vld [vmem:[#allocation2 + $0xa0] sm:$0xff]
          %v742 = vld [vmem:[#allocation2 + $0xa8] sm:$0xff]
          %v743 = vld [vmem:[#allocation2 + $0xb0] sm:$0xff]
          %v744 = vld [vmem:[#allocation2 + $0xb8] sm:$0xff]
          %v745 = vld [vmem:[#allocation2 + $0xc0] sm:$0xff]
          %v746 = vld [vmem:[#allocation2 + $0xc8] sm:$0xff]
          %v747 = vld [vmem:[#allocation2 + $0xd0] sm:$0xff]
          %v748 = vld [vmem:[#allocation2 + $0xd8] sm:$0xff]
          %v749 = vld [vmem:[#allocation2 + $0xe0] sm:$0xff]
          %v750 = vld [vmem:[#allocation2 + $0xe8] sm:$0xff]
          %v751 = vld [vmem:[#allocation2 + $0xf0] sm:$0xff]
          %v752 = vld [vmem:[#allocation2 + $0xf8] sm:$0xff]
          %v753 = vld [vmem:[#allocation5] sm:$0x1]
          %v755 = vlaneseq
          %v756 = vshrl.u32 %v755, 7
          %v757 = vsub.s32 0, %v756
          %v758 = vrot.slane %v753, %v757
          %v760 = vadd.f32 %v721, %v758
          %v761 = vadd.f32 %v722, %v758
          %v762 = vadd.f32 %v723, %v758
          %v763 = vadd.f32 %v724, %v758
          %v764 = vadd.f32 %v725, %v758
          %v765 = vadd.f32 %v726, %v758
          %v766 = vadd.f32 %v727, %v758
          %v767 = vadd.f32 %v728, %v758
          %v768 = vadd.f32 %v729, %v758
          %v769 = vadd.f32 %v730, %v758
          %v770 = vadd.f32 %v731, %v758
          %v771 = vadd.f32 %v732, %v758
          %v772 = vadd.f32 %v733, %v758
          %v773 = vadd.f32 %v734, %v758
          %v774 = vadd.f32 %v735, %v758
          %v775 = vadd.f32 %v736, %v758
          %v776 = vadd.f32 %v737, %v758
          %v777 = vadd.f32 %v738, %v758
          %v778 = vadd.f32 %v739, %v758
          %v779 = vadd.f32 %v740, %v758
          %v780 = vadd.f32 %v741, %v758
          %v781 = vadd.f32 %v742, %v758
          %v782 = vadd.f32 %v743, %v758
          %v783 = vadd.f32 %v744, %v758
          %v784 = vadd.f32 %v745, %v758
          %v785 = vadd.f32 %v746, %v758
          %v786 = vadd.f32 %v747, %v758
          %v787 = vadd.f32 %v748, %v758
          %v788 = vadd.f32 %v749, %v758
          %v789 = vadd.f32 %v750, %v758
          %v790 = vadd.f32 %v751, %v758
          %v791 = vadd.f32 %v752, %v758
          %v792 = vadd.f32 %v760, %v761
          %v793 = vadd.f32 %v792, %v762
          %v794 = vadd.f32 %v793, %v763
          %v795 = vadd.f32 %v794, %v764
          %v796 = vadd.f32 %v795, %v765
          %v797 = vadd.f32 %v796, %v766
          %v798 = vadd.f32 %v797, %v767
          %v799 = vadd.f32 %v798, %v768
          %v800 = vadd.f32 %v799, %v769
          %v801 = vadd.f32 %v800, %v770
          %v802 = vadd.f32 %v801, %v771
          %v803 = vadd.f32 %v802, %v772
          %v804 = vadd.f32 %v803, %v773
          %v805 = vadd.f32 %v804, %v774
          %v806 = vadd.f32 %v805, %v775
          %v807 = vadd.f32 %v806, %v776
          %v808 = vadd.f32 %v807, %v777
          %v809 = vadd.f32 %v808, %v778
          %v810 = vadd.f32 %v809, %v779
          %v811 = vadd.f32 %v810, %v780
          %v812 = vadd.f32 %v811, %v781
          %v813 = vadd.f32 %v812, %v782
          %v814 = vadd.f32 %v813, %v783
          %v815 = vadd.f32 %v814, %v784
          %v816 = vadd.f32 %v815, %v785
          %v817 = vadd.f32 %v816, %v786
          %v818 = vadd.f32 %v817, %v787
          %v819 = vadd.f32 %v818, %v788
          %v820 = vadd.f32 %v819, %v789
          %v821 = vadd.f32 %v820, %v790
          %v822 = vadd.f32 %v821, %v791
          %v823 = vrot.slane %v822, 4
          %v824 = vadd.f32 %v822, %v823
          %v825 = vrot.slane %v824, 2
          %v826 = vadd.f32 %v824, %v825
          %v827 = vrot.slane %v826, 1
          %v828 = vadd.f32 %v826, %v827
          %v829 = vrcp.pop 256.0
          %v830 = vmul.f32 %v828, %v829
          %v831 = vsub.f32 %v760, %v830
          %v832 = vsub.f32 %v761, %v830
          %v833 = vsub.f32 %v762, %v830
          %v834 = vsub.f32 %v763, %v830
          %v835 = vsub.f32 %v764, %v830
          %v836 = vsub.f32 %v765, %v830
          %v837 = vsub.f32 %v766, %v830
          %v838 = vsub.f32 %v767, %v830
          %v839 = vsub.f32 %v768, %v830
          %v840 = vsub.f32 %v769, %v830
          %v841 = vsub.f32 %v770, %v830
          %v842 = vsub.f32 %v771, %v830
          %v843 = vsub.f32 %v772, %v830
          %v844 = vsub.f32 %v773, %v830
          %v845 = vsub.f32 %v774, %v830
          %v846 = vsub.f32 %v775, %v830
          %v847 = vsub.f32 %v776, %v830
          %v848 = vsub.f32 %v777, %v830
          %v849 = vsub.f32 %v778, %v830
          %v850 = vsub.f32 %v779, %v830
          %v851 = vsub.f32 %v780, %v830
          %v852 = vsub.f32 %v781, %v830
          %v853 = vsub.f32 %v782, %v830
          %v854 = vsub.f32 %v783, %v830
          %v855 = vsub.f32 %v784, %v830
          %v856 = vsub.f32 %v785, %v830
          %v857 = vsub.f32 %v786, %v830
          %v858 = vsub.f32 %v787, %v830
          %v859 = vsub.f32 %v788, %v830
          %v860 = vsub.f32 %v789, %v830
          %v861 = vsub.f32 %v790, %v830
          %v862 = vsub.f32 %v791, %v830
          %v863 = vmul.f32 %v831, %v831
          %v864 = vmul.f32 %v832, %v832
          %v865 = vmul.f32 %v833, %v833
          %v866 = vmul.f32 %v834, %v834
          %v867 = vmul.f32 %v835, %v835
          %v868 = vmul.f32 %v836, %v836
          %v869 = vmul.f32 %v837, %v837
          %v870 = vmul.f32 %v838, %v838
          %v871 = vmul.f32 %v839, %v839
          %v872 = vmul.f32 %v840, %v840
          %v873 = vmul.f32 %v841, %v841
          %v874 = vmul.f32 %v842, %v842
          %v875 = vmul.f32 %v843, %v843
          %v876 = vmul.f32 %v844, %v844
          %v877 = vmul.f32 %v845, %v845
          %v878 = vmul.f32 %v846, %v846
          %v879 = vmul.f32 %v847, %v847
          %v880 = vmul.f32 %v848, %v848
          %v881 = vmul.f32 %v849, %v849
          %v882 = vmul.f32 %v850, %v850
          %v883 = vmul.f32 %v851, %v851
          %v884 = vmul.f32 %v852, %v852
          %v885 = vmul.f32 %v853, %v853
          %v886 = vmul.f32 %v854, %v854
          %v887 = vmul.f32 %v855, %v855
          %v888 = vmul.f32 %v856, %v856
          %v889 = vmul.f32 %v857, %v857
          %v890 = vmul.f32 %v858, %v858
          %v891 = vmul.f32 %v859, %v859
          %v892 = vmul.f32 %v860, %v860
          %v893 = vmul.f32 %v861, %v861
          %v894 = vmul.f32 %v862, %v862
          %v895 = vadd.f32 %v863, %v864
          %v896 = vadd.f32 %v895, %v865
          %v897 = vadd.f32 %v896, %v866
          %v898 = vadd.f32 %v897, %v867
          %v899 = vadd.f32 %v898, %v868
          %v900 = vadd.f32 %v899, %v869
          %v901 = vadd.f32 %v900, %v870
          %v902 = vadd.f32 %v901, %v871
          %v903 = vadd.f32 %v902, %v872
          %v904 = vadd.f32 %v903, %v873
          %v905 = vadd.f32 %v904, %v874
          %v906 = vadd.f32 %v905, %v875
          %v907 = vadd.f32 %v906, %v876
          %v908 = vadd.f32 %v907, %v877
          %v909 = vadd.f32 %v908, %v878
          %v910 = vadd.f32 %v909, %v879
          %v911 = vadd.f32 %v910, %v880
          %v912 = vadd.f32 %v911, %v881
          %v913 = vadd.f32 %v912, %v882
          %v914 = vadd.f32 %v913, %v883
          %v915 = vadd.f32 %v914, %v884
          %v916 = vadd.f32 %v915, %v885
          %v917 = vadd.f32 %v916, %v886
          %v918 = vadd.f32 %v917, %v887
          %v919 = vadd.f32 %v918, %v888
          %v920 = vadd.f32 %v919, %v889
          %v921 = vadd.f32 %v920, %v890
          %v922 = vadd.f32 %v921, %v891
          %v923 = vadd.f32 %v922, %v892
          %v924 = vadd.f32 %v923, %v893
          %v925 = vadd.f32 %v924, %v894
          %v926 = vrot.slane %v925, 4
          %v927 = vadd.f32 %v925, %v926
          %v928 = vrot.slane %v927, 2
          %v929 = vadd.f32 %v927, %v928
          %v930 = vrot.slane %v929, 1
          %v931 = vadd.f32 %v929, %v930
          %v932 = vmul.f32 %v931, %v829
          %v933 = vadd.f32 %v932, 1e-05
          %v934 = vrsqrt.pop %v933
          %v935 = vmul.f32 %v831, %v934
          %v936 = vmul.f32 %v832, %v934
          %v937 = vmul.f32 %v833, %v934
          %v938 = vmul.f32 %v834, %v934
          %v939 = vmul.f32 %v835, %v934
          %v940 = vmul.f32 %v836, %v934
          %v941 = vmul.f32 %v837, %v934
          %v942 = vmul.f32 %v838, %v934
          %v943 = vmul.f32 %v839, %v934
          %v944 = vmul.f32 %v840, %v934
          %v945 = vmul.f32 %v841, %v934
          %v946 = vmul.f32 %v842, %v934
          %v947 = vmul.f32 %v843, %v934
          %v948 = vmul.f32 %v844, %v934
          %v949 = vmul.f32 %v845, %v934
          %v950 = vmul.f32 %v846, %v934
          %v951 = vmul.f32 %v847, %v934
          %v952 = vmul.f32 %v848, %v934
          %v953 = vmul.f32 %v849, %v934
          %v954 = vmul.f32 %v850, %v934
          %v955 = vmul.f32 %v851, %v934
          %v956 = vmul.f32 %v852, %v934
          %v957 = vmul.f32 %v853, %v934
          %v958 = vmul.f32 %v854, %v934
          %v959 = vmul.f32 %v855, %v934
          %v960 = vmul.f32 %v856, %v934
          %v961 = vmul.f32 %v857, %v934
          %v962 = vmul.f32 %v858, %v934
          %v963 = vmul.f32 %v859, %v934
          %v964 = vmul.f32 %v860, %v934
          %v965 = vmul.f32 %v861, %v934
          %v966 = vmul.f32 %v862, %v934
          %v967 = vmax.f32 %v935, 0.0
          %v968 = vmax.f32 %v936, 0.0
          %v969 = vmax.f32 %v937, 0.0
          %v970 = vmax.f32 %v938, 0.0
          %v971 = vmax.f32 %v939, 0.0
          %v972 = vmax.f32 %v940, 0.0
          %v973 = vmax.f32 %v941, 0.0
          %v974 = vmax.f32 %v942, 0.0
          %v975 = vmax.f32 %v943, 0.0
          %v976 = vmax.f32 %v944, 0.0
          %v977 = vmax.f32 %v945, 0.0
          %v978 = vmax.f32 %v946, 0.0
          %v979 = vmax.f32 %v947, 0.0
          %v980 = vmax.f32 %v948, 0.0
          %v981 = vmax.f32 %v949, 0.0
          %v982 = vmax.f32 %v950, 0.0
          %v983 = vmax.f32 %v951, 0.0
          %v984 = vmax.f32 %v952, 0.0
          %v985 = vmax.f32 %v953, 0.0
          %v986 = vmax.f32 %v954, 0.0
          %v987 = vmax.f32 %v955, 0.0
          %v988 = vmax.f32 %v956, 0.0
          %v989 = vmax.f32 %v957, 0.0
          %v990 = vmax.f32 %v958, 0.0
          %v991 = vmax.f32 %v959, 0.0
          %v992 = vmax.f32 %v960, 0.0
          %v993 = vmax.f32 %v961, 0.0
          %v994 = vmax.f32 %v962, 0.0
          %v995 = vmax.f32 %v963, 0.0
          %v996 = vmax.f32 %v964, 0.0
          %v997 = vmax.f32 %v965, 0.0
          %v998 = vmax.f32 %v966, 0.0
          %999 = vst [vmem:[%s230] sm:$0xff] %v967
          %1000 = vst [vmem:[%s230 + $0x8] sm:$0xff] %v968
          %1001 = vst [vmem:[%s230 + $0x10] sm:$0xff] %v969
          %1002 = vst [vmem:[%s230 + $0x18] sm:$0xff] %v970
          %1003 = vst [vmem:[%s230 + $0x20] sm:$0xff] %v971
          %1004 = vst [vmem:[%s230 + $0x28] sm:$0xff] %v972
          %1005 = vst [vmem:[%s230 + $0x30] sm:$0xff] %v973
          %1006 = vst [vmem:[%s230 + $0x38] sm:$0xff] %v974
          %1007 = vst [vmem:[%s230 + $0x40] sm:$0xff] %v975
          %1008 = vst [vmem:[%s230 + $0x48] sm:$0xff] %v976
          %1009 = vst [vmem:[%s230 + $0x50] sm:$0xff] %v977
          %1010 = vst [vmem:[%s230 + $0x58] sm:$0xff] %v978
          %1011 = vst [vmem:[%s230 + $0x60] sm:$0xff] %v979
          %1012 = vst [vmem:[%s230 + $0x68] sm:$0xff] %v980
          %1013 = vst [vmem:[%s230 + $0x70] sm:$0xff] %v981
          %1014 = vst [vmem:[%s230 + $0x78] sm:$0xff] %v982
          %1015 = vst [vmem:[%s230 + $0x80] sm:$0xff] %v983
          %1016 = vst [vmem:[%s230 + $0x88] sm:$0xff] %v984
          %1017 = vst [vmem:[%s230 + $0x90] sm:$0xff] %v985
          %1018 = vst [vmem:[%s230 + $0x98] sm:$0xff] %v986
          %1019 = vst [vmem:[%s230 + $0xa0] sm:$0xff] %v987
          %1020 = vst [vmem:[%s230 + $0xa8] sm:$0xff] %v988
          %1021 = vst [vmem:[%s230 + $0xb0] sm:$0xff] %v989
          %1022 = vst [vmem:[%s230 + $0xb8] sm:$0xff] %v990
          %1023 = vst [vmem:[%s230 + $0xc0] sm:$0xff] %v991
          %1024 = vst [vmem:[%s230 + $0xc8] sm:$0xff] %v992
          %1025 = vst [vmem:[%s230 + $0xd0] sm:$0xff] %v993
          %1026 = vst [vmem:[%s230 + $0xd8] sm:$0xff] %v994
          %1027 = vst [vmem:[%s230 + $0xe0] sm:$0xff] %v995
          %1028 = vst [vmem:[%s230 + $0xe8] sm:$0xff] %v996
          %1029 = vst [vmem:[%s230 + $0xf0] sm:$0xff] %v997
          %1030 = vst [vmem:[%s230 + $0xf8] sm:$0xff] %v998
        $region48: #{generator_forward.14} parent=31 // pred_fallthru
          _
        %p1031 = scmp.lt.s32.totalorder %s20, 1
        %s1032 = scalar_select %p1031, %s20, 1
        %s1033 = smul.addr %s1032, 32
        %s1034 = smul.addr %s1033, 8
        %s1035 = scalar_lea.vmem %s3, %s1034
        // Predicated region
        $region49: #{generator_forward.14} parent=31 // pred_check
          %p1036 = pneg %p121
        $region50: #{generator_forward.14} parent=31 // pred_check_branch
          %1038 = sbr.rel (%p1036) target = $region52
        $region51: #{generator_forward.14} parent=31 // pred_region
          _
        $region52: #{generator_forward.14} parent=31 // pred_fallthru
          _
      $region32: #{generator_forward.14} parent=5 // pred_fallthru
        _
      %p1039 = scmp.le.s32.totalorder 2, %s11
      // Predicated region
      $region53: #{generator_forward.14} parent=5 // pred_check
        %p1040 = pneg %p1039
      $region54: #{generator_forward.14} parent=5 // pred_check_branch
        %1042 = sbr.rel (%p1040) target = $region56
      $region55: #{generator_forward.14} parent=5 // pred_region
        %s1043 = ssub.s32 %s11, 2
        // Predicated region
        $region57: #{generator_forward.14} parent=55 // pred_check
          %p1044 = pneg %p127
        $region58: #{generator_forward.14} parent=55 // pred_check_branch
          %1046 = sbr.rel (%p1044) target = $region60
        $region59: #{generator_forward.14} parent=55 // pred_region
          %p1047 = scmp.lt.s32.totalorder %s22, 1
          %s1048 = scalar_select %p1047, %s22, 1
          %s1049 = smul.addr %s1048, 32
          %s1050 = smul.addr %s1049, 8
          %s1051 = scalar_lea.vmem %s3, %s1050
        $region60: #{generator_forward.14} parent=55 // pred_fallthru
          _
      $region56: #{generator_forward.14} parent=5 // pred_fallthru
        _
    $region6: #{generator_forward.14} parent=1 // loop_footer
      %s15 = sadd.s32 1, %s11
    $region7: #{generator_forward.14} parent=1 // loop_footer_branch
      %10 = sbr.rel target = $region3
    $region8: #{generator_forward.14} parent=1 // loop_exit
      _
    %1052 = vsyncpa [#allocation4], 1
    %s1053 = scalar_lea.sflag [#allocation4], 1
    %1054 = vsyncpa %s1053, 1
    %1055 = vsyncpa [#allocation6], 1

// kernel: generator_forward.16
$region0: #{generator_forward.16}
  #allocation0 [shape = 'u32[]', space=smem, size = 0x4, offset = 0x4, fixed_abs, tag = 'smem constant byte address 0x4 - core index']
  #allocation1 [shape = 'u32[144,128]{1,0:T(1,128)}', space=vmem, size = 0x12000, scoped, tag = 'internal scratch']
  #allocation2 [shape = 'f32[16,128]{1,0:T(8,128)}', space=vmem, size = 0x2000, scoped, tag = 'scratch operand']
  %s0 = inlined_call_operand.vmem [shape: bf16[2,16,144], index: 0, kind: input, shape index: {}]
  %s1 = inlined_call_operand.vmem [shape: bf16[144,128], index: 1, kind: input, shape index: {}]
  %s2 = inlined_call_operand.vmem [shape: f32[1,128], index: 2, kind: input, shape index: {}]
  %s3 = inlined_call_operand.vmem [shape: f32[2,16,128], index: 3, kind: output, shape index: {}]
  %s4 = sld [smem:[#allocation0]]
  $region53: #{generator_forward.16} parent=0
    _
  %s6 = ssub.s32 1, %s4
  %s7 = scalar_select 0, %s6, %s4
  loop: start=0, step=1, limit=4
  $region2: #{generator_forward.16} parent=0 // loop_pre_header
    _
  $region3: #{generator_forward.16} parent=0 // loop_header
    %s9 = sphi 0, %s13
    %p10 = scmp.ge.s32.totalorder %s9, 4
    %s16 = sphi 0, %s28
    %s17 = sphi 0, %s24
    %s18 = sphi 0, %s16
    %s19 = sphi 0, %s17
    %s20 = sphi 0, %s18
    %s21 = sphi 0, %s19
    %s33 = sphi 0, %s35
    %s36 = sphi 0, %s33
    %s37 = sphi 0, %s36
    %s53 = sphi 0, %s37
    %s59 = sphi 0, %s61
    %s62 = sphi 0, %s59
    %s63 = sphi 0, %s62
    %s79 = sphi 0, %s63
    %s83 = sphi 0, %s83
    %s85 = sphi 0, %s83
    %s86 = sphi 0, %s85
    %s100 = sphi 0, %s86
    %s106 = sphi 0, %s108
    %s109 = sphi 0, %s106
    %s110 = sphi 0, %s109
    %s126 = sphi 0, %s110
  $region4: #{generator_forward.16} parent=0 // loop_header_branch
    %12 = sbr.rel (%p10) target = $region8
  $region5: #{generator_forward.16} parent=0 // loop_body
    %s14 = ssub.s32 %s9, 1
    %s15 = ssub.s32 %s9, 2
    %s22 = sadd.s32 1, %s17
    %p23 = scmp.ge.s32.totalorder %s22, 1
    %s24 = scalar_select %p23, 0, %s22
    %s25 = sadd.s32 1, %s16
    %s26 = scalar_select %p23, %s25, %s16
    %p27 = scmp.ge.s32.totalorder %s26, 2
    %s28 = scalar_select %p27, 0, %s26
    %s29 = ssub.s32 %s16, %s28
    %s30 = ssub.s32 %s17, %s24
    %s31 = sor.u32 %s29, %s30
    %p32 = scmp.eq.s32.totalorder %s31, 0
    %s34 = sadd.s32 %s33, 1
    %s35 = scalar_select %p32, %s33, %s34
    %p38 = pneg %p32
    %p39 = scmp.eq.s32.totalorder %s9, 1
    %p40 = por %p38, %p39
    %p41 = scmp.ne.s32.totalorder %s33, %s36
    %p42 = scmp.eq.s32.totalorder %s9, 0
    %p43 = por %p41, %p42
    %p44 = scmp.ne.s32.totalorder %s33, %s36
    %p45 = scmp.eq.s32.totalorder %s14, 1
    %p46 = por %p44, %p45
    %p47 = scmp.ne.s32.totalorder %s36, %s37
    %p48 = scmp.eq.s32.totalorder %s14, 0
    %p49 = por %p47, %p48
    %p50 = scmp.ne.s32.totalorder %s36, %s37
    %p51 = scmp.eq.s32.totalorder %s15, 1
    %p52 = por %p50, %p51
    %p54 = scmp.ne.s32.totalorder %s37, %s53
    %p55 = scmp.eq.s32.totalorder %s15, 0
    %p56 = por %p54, %p55
    %s57 = ssub.s32 %s17, %s24
    %p58 = scmp.eq.s32.totalorder %s57, 0
    %s60 = sadd.s32 %s59, 1
    %s61 = scalar_select %p58, %s59, %s60
    %p64 = pneg %p58
    %p65 = scmp.eq.s32.totalorder %s9, 1
    %p66 = por %p64, %p65
    %p67 = scmp.ne.s32.totalorder %s59, %s62
    %p68 = scmp.eq.s32.totalorder %s9, 0
    %p69 = por %p67, %p68
    %p70 = scmp.ne.s32.totalorder %s59, %s62
    %p71 = scmp.eq.s32.totalorder %s14, 1
    %p72 = por %p70, %p71
    %p73 = scmp.ne.s32.totalorder %s62, %s63
    %p74 = scmp.eq.s32.totalorder %s14, 0
    %p75 = por %p73, %p74
    %p76 = scmp.ne.s32.totalorder %s62, %s63
    %p77 = scmp.eq.s32.totalorder %s15, 1
    %p78 = por %p76, %p77
    %p80 = scmp.ne.s32.totalorder %s63, %s79
    %p81 = scmp.eq.s32.totalorder %s15, 0
    %p82 = por %p80, %p81
    %s84 = sadd.s32 %s83, 1
    %p87 = scmp.eq.s32.totalorder %s9, 1
    %p88 = scmp.ne.s32.totalorder %s83, %s85
    %p89 = scmp.eq.s32.totalorder %s9, 0
    %p90 = por %p88, %p89
    %p91 = scmp.ne.s32.totalorder %s83, %s85
    %p92 = scmp.eq.s32.totalorder %s14, 1
    %p93 = por %p91, %p92
    %p94 = scmp.ne.s32.totalorder %s85, %s86
    %p95 = scmp.eq.s32.totalorder %s14, 0
    %p96 = por %p94, %p95
    %p97 = scmp.ne.s32.totalorder %s85, %s86
    %p98 = scmp.eq.s32.totalorder %s15, 1
    %p99 = por %p97, %p98
    %p101 = scmp.ne.s32.totalorder %s86, %s100
    %p102 = scmp.eq.s32.totalorder %s15, 0
    %p103 = por %p101, %p102
    %s104 = ssub.s32 %s16, %s28
    %p105 = scmp.eq.s32.totalorder %s104, 0
    %s107 = sadd.s32 %s106, 1
    %s108 = scalar_select %p105, %s106, %s107
    %p111 = pneg %p105
    %p112 = scmp.eq.s32.totalorder %s9, 1
    %p113 = por %p111, %p112
    %p114 = scmp.ne.s32.totalorder %s106, %s109
    %p115 = scmp.eq.s32.totalorder %s9, 0
    %p116 = por %p114, %p115
    %p117 = scmp.ne.s32.totalorder %s106, %s109
    %p118 = scmp.eq.s32.totalorder %s14, 1
    %p119 = por %p117, %p118
    %p120 = scmp.ne.s32.totalorder %s109, %s110
    %p121 = scmp.eq.s32.totalorder %s14, 0
    %p122 = por %p120, %p121
    %p123 = scmp.ne.s32.totalorder %s109, %s110
    %p124 = scmp.eq.s32.totalorder %s15, 1
    %p125 = por %p123, %p124
    %p127 = scmp.ne.s32.totalorder %s110, %s126
    %p128 = scmp.eq.s32.totalorder %s15, 0
    %p129 = por %p127, %p128
    %p130 = scmp.le.s32.totalorder 1, %s9
    %p131 = scmp.lt.s32.totalorder %s9, 3
    %p132 = pnand %p130, %p131
    %p133 = pneg %p132
    // Predicated region
    $region9: #{generator_forward.16} parent=5 // pred_check
      _
    $region10: #{generator_forward.16} parent=5 // pred_check_branch
      %135 = sbr.rel (%p132) target = $region12
    $region11: #{generator_forward.16} parent=5 // pred_region
      %s136 = ssub.s32 %s9, 1
      // Predicated region
      $region13: #{generator_forward.16} parent=11 // pred_check
        %p137 = pneg %p75
      $region14: #{generator_forward.16} parent=11 // pred_check_branch
        %139 = sbr.rel (%p137) target = $region16
      $region15: #{generator_forward.16} parent=11 // pred_region
        %s140 = smul.u32 18, %s19
        %p141 = scmp.lt.s32.totalorder %s140, 17
        %s142 = scalar_select %p141, %s140, 17
        %s143 = smul.addr %s142, 4
        %s144 = scalar_lea.vmem %s1, %s143
        %s145 = smul.u32 18, %s19
      $region16: #{generator_forward.16} parent=11 // pred_fallthru
        _
      // Predicated region
      $region17: #{generator_forward.16} parent=11 // pred_check
        %p146 = pneg %p96
      $region18: #{generator_forward.16} parent=11 // pred_check_branch
        %148 = sbr.rel (%p146) target = $region20
      $region19: #{generator_forward.16} parent=11 // pred_region
        _
      $region20: #{generator_forward.16} parent=11 // pred_fallthru
        _
    $region12: #{generator_forward.16} parent=5 // pred_fallthru
      _
    %p149 = scmp.lt.s32.totalorder %s9, 2
    // Predicated region
    $region21: #{generator_forward.16} parent=5 // pred_check
      %p150 = pneg %p149
    $region22: #{generator_forward.16} parent=5 // pred_check_branch
      %152 = sbr.rel (%p150) target = $region24
    $region23: #{generator_forward.16} parent=5 // pred_region
      // Predicated region
      $region25: #{generator_forward.16} parent=23 // pred_check
        %p153 = pneg %p43
      $region26: #{generator_forward.16} parent=23 // pred_check_branch
        %155 = sbr.rel (%p153) target = $region28
      $region27: #{generator_forward.16} parent=23 // pred_region
        %s156 = smul.u32 2, %s17
        %p157 = scmp.lt.s32.totalorder %s16, 1
        %s158 = scalar_select %p157, %s16, 1
        %p159 = scmp.lt.s32.totalorder %s156, 1
        %s160 = scalar_select %p159, %s156, 1
        %s161 = smul.addr %s158, 4
        %s162 = sadd.s32 %s160, %s161
        %s163 = smul.addr %s162, 4
        %s164 = scalar_lea.vmem %s0, %s163
        %s165 = smul.u32 2, %s17
      $region28: #{generator_forward.16} parent=23 // pred_fallthru
        _
    $region24: #{generator_forward.16} parent=5 // pred_fallthru
      _
    %p166 = scmp.le.s32.totalorder 1, %s9
    %p167 = scmp.lt.s32.totalorder %s9, 3
    %p168 = pnand %p166, %p167
    %p169 = pneg %p168
    // Predicated region
    $region29: #{generator_forward.16} parent=5 // pred_check
      _
    $region30: #{generator_forward.16} parent=5 // pred_check_branch
      %171 = sbr.rel (%p168) target = $region32
    $region31: #{generator_forward.16} parent=5 // pred_region
      %s172 = ssub.s32 %s9, 1
      %s173 = smul.u32 2, %s19
      %p174 = scmp.lt.s32.totalorder %s18, 1
      %s175 = scalar_select %p174, %s18, 1
      %p176 = scmp.lt.s32.totalorder %s173, 1
      %s177 = scalar_select %p176, %s173, 1
      %s178 = smul.addr %s175, 4
      %s179 = sadd.s32 %s177, %s178
      %s180 = smul.addr %s179, 4
      %s181 = scalar_lea.vmem %s0, %s180
      %p182 = pneg %p49
      %p183 = pneg %p46
      %s184 = smul.u32 18, %s19
      %p185 = scmp.lt.s32.totalorder %s184, 17
      %s186 = scalar_select %p185, %s184, 17
      %s187 = smul.addr %s186, 4
      %s188 = scalar_lea.vmem %s1, %s187
      %p189 = pneg %p75
      %p190 = pneg %p72
      %p191 = pneg %p96
      %p192 = pneg %p93
      %p193 = pneg %p122
      %p194 = pneg %p119
      %p195 = scmp.lt.s32.totalorder %s18, 1
      %s196 = scalar_select %p195, %s18, 1
      %s197 = smul.addr %s196, 2
      %s198 = smul.addr %s197, 8
      %s199 = scalar_lea.vmem %s3, %s198
      %s200 = smul.u32 2, %s19
      %p201 = scmp.lt.s32.totalorder %s18, 1
      %s202 = scalar_select %p201, %s18, 1
      %p203 = scmp.lt.s32.totalorder %s200, 1
      %s204 = scalar_select %p203, %s200, 1
      %s205 = smul.addr %s202, 4
      %s206 = sadd.s32 %s204, %s205
      %s207 = smul.addr %s206, 4
      %s208 = scalar_lea.vmem %s0, %s207
      %s209 = smul.u32 2, %s19
      %s210 = smul.u32 18, %s19
      %p211 = scmp.lt.s32.totalorder %s210, 17
      %s212 = scalar_select %p211, %s210, 17
      %s213 = smul.addr %s212, 4
      %s214 = scalar_lea.vmem %s1, %s213
      %s215 = smul.u32 18, %s19
      %p216 = scmp.lt.s32.totalorder %s18, 1
      %s217 = scalar_select %p216, %s18, 1
      %s218 = smul.addr %s217, 2
      %s219 = smul.addr %s218, 8
      %s220 = scalar_lea.vmem %s3, %s219
      %p222 = scmp.eq.s32.totalorder %s19, 0
      // Predicated region
      $region33: #{generator_forward.16} parent=31 // pred_check
        %p223 = pneg %p222
      $region34: #{generator_forward.16} parent=31 // pred_check_branch
        %225 = sbr.rel (%p223) target = $region36
      $region35: #{generator_forward.16} parent=31 // pred_region
        %226 = vst [vmem:[#allocation2] sm:$0xff] 0.0
        %227 = vst [vmem:[#allocation2 + $0x8] sm:$0xff] 0.0
      $region36: #{generator_forward.16} parent=31 // pred_fallthru
        _
      %v228 = vld [vmem:[#allocation2] sm:$0xff]
      %v229 = vld [vmem:[#allocation2 + $0x8] sm:$0xff]
      %v230 = vld [vmem:[%s208] sm:$0xff]
      %v231 = vld [vmem:[%s208 + $0x8] sm:$0xff]
      %v232 = vld [vmem:[%s214] sm:$0xf]
      %v233 = vld [vmem:[%s214 + $0x4] sm:$0xf]
      %v234 = vld [vmem:[%s214 + $0x8] sm:$0xf]
      %v235 = vld [vmem:[%s214 + $0xc] sm:$0xf]
      %v236 = vld [vmem:[%s214 + $0x10] sm:$0xf]
      %v237 = vld [vmem:[%s214 + $0x14] sm:$0xf]
      %v238 = vld [vmem:[%s214 + $0x18] sm:$0xf]
      %v239 = vld [vmem:[%s214 + $0x1c] sm:$0xf]
      %v240 = vld [vmem:[%s214 + $0x20] sm:$0xf]
      %v241 = vld [vmem:[%s214 + $0x24] sm:$0xf]
      %v242 = vld [vmem:[%s214 + $0x28] sm:$0xf]
      %v243 = vld [vmem:[%s214 + $0x2c] sm:$0xf]
      %v244 = vld [vmem:[%s214 + $0x30] sm:$0xf]
      %v245 = vld [vmem:[%s214 + $0x34] sm:$0xf]
      %v246 = vld [vmem:[%s214 + $0x38] sm:$0xf]
      %v247 = vld [vmem:[%s214 + $0x3c] sm:$0xf]
      %v248 = vld [vmem:[%s214 + $0x40] sm:$0xf]
      %v249 = vld [vmem:[%s214 + $0x44] sm:$0xf]
      %v252 = vunpack.c.l.b16 %v230
      %v253 = vunpack.c.h.b16 %v230
      %v254 = vunpack.c.l.b16 %v231
      %v255 = vunpack.c.h.b16 %v231
      %v256 = vpack.c.b16 %v254, %v252
      %v257 = vpack.c.b16 %v255, %v253
      %v277 = vunpack.c.l.b16 %v232
      %v278 = vunpack.c.l.b16 %v233
      %v279 = vunpack.c.l.b16 %v234
      %v280 = vunpack.c.l.b16 %v235
      %v281 = vunpack.c.l.b16 %v236
      %v282 = vunpack.c.l.b16 %v237
      %v283 = vunpack.c.l.b16 %v238
      %v284 = vunpack.c.l.b16 %v239
      %v285 = vunpack.c.l.b16 %v240
      %v286 = vunpack.c.l.b16 %v241
      %v287 = vunpack.c.l.b16 %v242
      %v288 = vunpack.c.l.b16 %v243
      %v289 = vunpack.c.l.b16 %v244
      %v290 = vunpack.c.l.b16 %v245
      %v291 = vunpack.c.l.b16 %v246
      %v292 = vunpack.c.l.b16 %v247
      %v293 = vunpack.c.l.b16 %v248
      %v294 = vunpack.c.l.b16 %v249
      %v295 = vpack.c.b16 %v278, %v277
      %v296 = vpack.c.b16 %v280, %v279
      %v297 = vpack.c.b16 %v282, %v281
      %v298 = vpack.c.b16 %v284, %v283
      %v299 = vpack.c.b16 %v286, %v285
      %v300 = vpack.c.b16 %v288, %v287
      %v301 = vpack.c.b16 %v290, %v289
      %v302 = vpack.c.b16 %v292, %v291
      %v303 = vpack.c.b16 %v294, %v293
      %vm313 = vcmask 130048
      %v315 = vsel %vm313, %v257, 0
      %317 = vmatprep.subr.bf16.mxu0 0
      %318 = vmatpush1.bf16.msra.mxu0 %v295
      %319 = vmatprep.subr.bf16.mxu0 0
      %320 = vmatpush1.bf16.msra.mxu0 %v296
      %321 = vmatprep.subr.bf16.mxu0 0
      %322 = vmatpush1.bf16.msra.mxu0 %v297
      %323 = vmatprep.subr.bf16.mxu0 0
      %324 = vmatpush1.bf16.msra.mxu0 %v298
      %325 = vmatprep.subr.bf16.mxu0 0
      %326 = vmatpush1.bf16.msra.mxu0 %v299
      %327 = vmatprep.subr.bf16.mxu0 0
      %328 = vmatpush1.bf16.msra.mxu0 %v300
      %329 = vmatprep.subr.bf16.mxu0 0
      %330 = vmatpush1.bf16.msra.mxu0 %v301
      %331 = vmatprep.subr.bf16.mxu0 0
      %332 = vmatpush1.bf16.msra.mxu0 %v302
      %333 = vmatprep.subr.bf16.mxu0 0
      %334 = vmatpush1.bf16.msra.mxu0 %v303
      %335 = vmatprep.subr.bf16.mxu0 0
      %336 = vmatpush1.bf16.msra.mxu0 0
      %337 = vmatprep.subr.bf16.mxu0 0
      %338 = vmatpush1.bf16.msra.mxu0 0
      %339 = vmatprep.subr.bf16.mxu0 0
      %340 = vmatpush1.bf16.msra.mxu0 0
      %341 = vmatprep.subr.bf16.mxu0 0
      %342 = vmatpush1.bf16.msra.mxu0 0
      %343 = vmatprep.subr.bf16.mxu0 0
      %344 = vmatpush1.bf16.msra.mxu0 0
      %345 = vmatprep.subr.bf16.mxu0 0
      %346 = vmatpush1.bf16.msra.mxu0 0
      %347 = vmatprep.subr.bf16.mxu0 0
      %348 = vmatpush1.bf16.msra.mxu0 0
      %349 = vmatprep.mubr.bf16.mxu0 %v315
      %350 = vmatmul.mubr.bf16.gmra.mrb[0].mxu0 %v256
      %v351 = vpop.f32.mrb[0].mxu0
      %v352 = vadd.f32 0.0, %v351
      %v353 = vpop.f32.mrb[0].mxu0
      %v354 = vpop.f32.mrb[0].mxu0
      %v355 = vadd.f32 0.0, %v354
      %v356 = vpop.f32.mrb[0].mxu0
      %357 = vdwg.mxu0
      %v358 = vadd.f32 %v228, %v352
      %v359 = vadd.f32 %v229, %v355
      %360 = vst [vmem:[#allocation2] sm:$0xff] %v358
      %361 = vst [vmem:[#allocation2 + $0x8] sm:$0xff] %v359
      // Predicated region
      $region37: #{generator_forward.16} parent=31 // pred_check
        %p362 = pneg %p222
      $region38: #{generator_forward.16} parent=31 // pred_check_branch
        %364 = sbr.rel (%p362) target = $region40
      $region39: #{generator_forward.16} parent=31 // pred_region
        %v365 = vld [vmem:[#allocation2] sm:$0xff]
        %v366 = vld [vmem:[#allocation2 + $0x8] sm:$0xff]
        %v367 = vld [vmem:[%s2] sm:$0x1]
        %v369 = vlaneseq
        %v370 = vshrl.u32 %v369, 7
        %v371 = vsub.s32 0, %v370
        %v372 = vrot.slane %v367, %v371
        %v374 = vadd.f32 %v365, %v372
        %v375 = vadd.f32 %v366, %v372
        %v376 = vadd.f32 %v374, %v375
        %v377 = vrot.slane %v376, 4
        %v378 = vadd.f32 %v376, %v377
        %v379 = vrot.slane %v378, 2
        %v380 = vadd.f32 %v378, %v379
        %v381 = vrot.slane %v380, 1
        %v382 = vadd.f32 %v380, %v381
        %v383 = vrcp.pop 16.0
        %v384 = vmul.f32 %v382, %v383
        %v385 = vsub.f32 %v374, %v384
        %v386 = vsub.f32 %v375, %v384
        %v387 = vmul.f32 %v385, %v385
        %v388 = vmul.f32 %v386, %v386
        %v389 = vadd.f32 %v387, %v388
        %v390 = vrot.slane %v389, 4
        %v391 = vadd.f32 %v389, %v390
        %v392 = vrot.slane %v391, 2
        %v393 = vadd.f32 %v391, %v392
        %v394 = vrot.slane %v393, 1
        %v395 = vadd.f32 %v393, %v394
        %v396 = vmul.f32 %v395, %v383
        %v397 = vadd.f32 %v396, 1e-05
        %v398 = vrsqrt.pop %v397
        %v399 = vmul.f32 %v385, %v398
        %v400 = vmul.f32 %v386, %v398
        %v401 = vmax.f32 %v399, 0.0
        %v402 = vmax.f32 %v400, 0.0
        %403 = vst [vmem:[%s220] sm:$0xff] %v401
        %404 = vst [vmem:[%s220 + $0x8] sm:$0xff] %v402
      $region40: #{generator_forward.16} parent=31 // pred_fallthru
        _
      %p405 = scmp.lt.s32.totalorder %s18, 1
      %s406 = scalar_select %p405, %s18, 1
      %s407 = smul.addr %s406, 2
      %s408 = smul.addr %s407, 8
      %s409 = scalar_lea.vmem %s3, %s408
      // Predicated region
      $region41: #{generator_forward.16} parent=31 // pred_check
        %p410 = pneg %p119
      $region42: #{generator_forward.16} parent=31 // pred_check_branch
        %412 = sbr.rel (%p410) target = $region44
      $region43: #{generator_forward.16} parent=31 // pred_region
        _
      $region44: #{generator_forward.16} parent=31 // pred_fallthru
        _
    $region32: #{generator_forward.16} parent=5 // pred_fallthru
      _
    %p413 = scmp.le.s32.totalorder 2, %s9
    // Predicated region
    $region45: #{generator_forward.16} parent=5 // pred_check
      %p414 = pneg %p413
    $region46: #{generator_forward.16} parent=5 // pred_check_branch
      %416 = sbr.rel (%p414) target = $region48
    $region47: #{generator_forward.16} parent=5 // pred_region
      %s417 = ssub.s32 %s9, 2
      // Predicated region
      $region49: #{generator_forward.16} parent=47 // pred_check
        %p418 = pneg %p125
      $region50: #{generator_forward.16} parent=47 // pred_check_branch
        %420 = sbr.rel (%p418) target = $region52
      $region51: #{generator_forward.16} parent=47 // pred_region
        %p421 = scmp.lt.s32.totalorder %s20, 1
        %s422 = scalar_select %p421, %s20, 1
        %s423 = smul.addr %s422, 2
        %s424 = smul.addr %s423, 8
        %s425 = scalar_lea.vmem %s3, %s424
      $region52: #{generator_forward.16} parent=47 // pred_fallthru
        _
    $region48: #{generator_forward.16} parent=5 // pred_fallthru
      _
  $region6: #{generator_forward.16} parent=0 // loop_footer
    %s13 = sadd.s32 1, %s9
  $region7: #{generator_forward.16} parent=0 // loop_footer_branch
    %8 = sbr.rel target = $region3
  $region8: #{generator_forward.16} parent=0 // loop_exit
    _

// kernel: generator_forward.18
$region0: #{generator_forward.18}
  #allocation0 [shape = 'u32[]', space=smem, size = 0x4, offset = 0x4, fixed_abs, tag = 'smem constant byte address 0x4 - core index']
  #allocation1 [shape = 'u32[144,128]{1,0:T(1,128)}', space=vmem, size = 0x12000, scoped, tag = 'internal scratch']
  #allocation2 [shape = 'f32[16,128]{1,0:T(8,128)}', space=vmem, size = 0x2000, scoped, tag = 'scratch operand']
  %s0 = inlined_call_operand.vmem [shape: bf16[2,16,288], index: 0, kind: input, shape index: {}]
  %s1 = inlined_call_operand.vmem [shape: bf16[288,128], index: 1, kind: input, shape index: {}]
  %s2 = inlined_call_operand.vmem [shape: f32[1,128], index: 2, kind: input, shape index: {}]
  %s3 = inlined_call_operand.vmem [shape: f32[2,16,128], index: 3, kind: input, shape index: {}]
  %s4 = inlined_call_operand.vmem [shape: f32[2,16,128], index: 4, kind: output, shape index: {}]
  %s5 = sld [smem:[#allocation0]]
  $region57: #{generator_forward.18} parent=0
    _
  %s7 = ssub.s32 1, %s5
  %s8 = scalar_select 0, %s7, %s5
  loop: start=0, step=1, limit=4
  $region2: #{generator_forward.18} parent=0 // loop_pre_header
    _
  $region3: #{generator_forward.18} parent=0 // loop_header
    %s10 = sphi 0, %s14
    %p11 = scmp.ge.s32.totalorder %s10, 4
    %s17 = sphi 0, %s29
    %s18 = sphi 0, %s25
    %s19 = sphi 0, %s17
    %s20 = sphi 0, %s18
    %s21 = sphi 0, %s19
    %s22 = sphi 0, %s20
    %s34 = sphi 0, %s36
    %s37 = sphi 0, %s34
    %s38 = sphi 0, %s37
    %s54 = sphi 0, %s38
    %s60 = sphi 0, %s62
    %s63 = sphi 0, %s60
    %s64 = sphi 0, %s63
    %s80 = sphi 0, %s64
    %s84 = sphi 0, %s84
    %s86 = sphi 0, %s84
    %s87 = sphi 0, %s86
    %s101 = sphi 0, %s87
    %s107 = sphi 0, %s109
    %s110 = sphi 0, %s107
    %s111 = sphi 0, %s110
    %s127 = sphi 0, %s111
    %s133 = sphi 0, %s135
    %s136 = sphi 0, %s133
    %s137 = sphi 0, %s136
    %s153 = sphi 0, %s137
  $region4: #{generator_forward.18} parent=0 // loop_header_branch
    %13 = sbr.rel (%p11) target = $region8
  $region5: #{generator_forward.18} parent=0 // loop_body
    %s15 = ssub.s32 %s10, 1
    %s16 = ssub.s32 %s10, 2
    %s23 = sadd.s32 1, %s18
    %p24 = scmp.ge.s32.totalorder %s23, 1
    %s25 = scalar_select %p24, 0, %s23
    %s26 = sadd.s32 1, %s17
    %s27 = scalar_select %p24, %s26, %s17
    %p28 = scmp.ge.s32.totalorder %s27, 2
    %s29 = scalar_select %p28, 0, %s27
    %s30 = ssub.s32 %s17, %s29
    %s31 = ssub.s32 %s18, %s25
    %s32 = sor.u32 %s30, %s31
    %p33 = scmp.eq.s32.totalorder %s32, 0
    %s35 = sadd.s32 %s34, 1
    %s36 = scalar_select %p33, %s34, %s35
    %p39 = pneg %p33
    %p40 = scmp.eq.s32.totalorder %s10, 1
    %p41 = por %p39, %p40
    %p42 = scmp.ne.s32.totalorder %s34, %s37
    %p43 = scmp.eq.s32.totalorder %s10, 0
    %p44 = por %p42, %p43
    %p45 = scmp.ne.s32.totalorder %s34, %s37
    %p46 = scmp.eq.s32.totalorder %s15, 1
    %p47 = por %p45, %p46
    %p48 = scmp.ne.s32.totalorder %s37, %s38
    %p49 = scmp.eq.s32.totalorder %s15, 0
    %p50 = por %p48, %p49
    %p51 = scmp.ne.s32.totalorder %s37, %s38
    %p52 = scmp.eq.s32.totalorder %s16, 1
    %p53 = por %p51, %p52
    %p55 = scmp.ne.s32.totalorder %s38, %s54
    %p56 = scmp.eq.s32.totalorder %s16, 0
    %p57 = por %p55, %p56
    %s58 = ssub.s32 %s18, %s25
    %p59 = scmp.eq.s32.totalorder %s58, 0
    %s61 = sadd.s32 %s60, 1
    %s62 = scalar_select %p59, %s60, %s61
    %p65 = pneg %p59
    %p66 = scmp.eq.s32.totalorder %s10, 1
    %p67 = por %p65, %p66
    %p68 = scmp.ne.s32.totalorder %s60, %s63
    %p69 = scmp.eq.s32.totalorder %s10, 0
    %p70 = por %p68, %p69
    %p71 = scmp.ne.s32.totalorder %s60, %s63
    %p72 = scmp.eq.s32.totalorder %s15, 1
    %p73 = por %p71, %p72
    %p74 = scmp.ne.s32.totalorder %s63, %s64
    %p75 = scmp.eq.s32.totalorder %s15, 0
    %p76 = por %p74, %p75
    %p77 = scmp.ne.s32.totalorder %s63, %s64
    %p78 = scmp.eq.s32.totalorder %s16, 1
    %p79 = por %p77, %p78
    %p81 = scmp.ne.s32.totalorder %s64, %s80
    %p82 = scmp.eq.s32.totalorder %s16, 0
    %p83 = por %p81, %p82
    %s85 = sadd.s32 %s84, 1
    %p88 = scmp.eq.s32.totalorder %s10, 1
    %p89 = scmp.ne.s32.totalorder %s84, %s86
    %p90 = scmp.eq.s32.totalorder %s10, 0
    %p91 = por %p89, %p90
    %p92 = scmp.ne.s32.totalorder %s84, %s86
    %p93 = scmp.eq.s32.totalorder %s15, 1
    %p94 = por %p92, %p93
    %p95 = scmp.ne.s32.totalorder %s86, %s87
    %p96 = scmp.eq.s32.totalorder %s15, 0
    %p97 = por %p95, %p96
    %p98 = scmp.ne.s32.totalorder %s86, %s87
    %p99 = scmp.eq.s32.totalorder %s16, 1
    %p100 = por %p98, %p99
    %p102 = scmp.ne.s32.totalorder %s87, %s101
    %p103 = scmp.eq.s32.totalorder %s16, 0
    %p104 = por %p102, %p103
    %s105 = ssub.s32 %s17, %s29
    %p106 = scmp.eq.s32.totalorder %s105, 0
    %s108 = sadd.s32 %s107, 1
    %s109 = scalar_select %p106, %s107, %s108
    %p112 = pneg %p106
    %p113 = scmp.eq.s32.totalorder %s10, 1
    %p114 = por %p112, %p113
    %p115 = scmp.ne.s32.totalorder %s107, %s110
    %p116 = scmp.eq.s32.totalorder %s10, 0
    %p117 = por %p115, %p116
    %p118 = scmp.ne.s32.totalorder %s107, %s110
    %p119 = scmp.eq.s32.totalorder %s15, 1
    %p120 = por %p118, %p119
    %p121 = scmp.ne.s32.totalorder %s110, %s111
    %p122 = scmp.eq.s32.totalorder %s15, 0
    %p123 = por %p121, %p122
    %p124 = scmp.ne.s32.totalorder %s110, %s111
    %p125 = scmp.eq.s32.totalorder %s16, 1
    %p126 = por %p124, %p125
    %p128 = scmp.ne.s32.totalorder %s111, %s127
    %p129 = scmp.eq.s32.totalorder %s16, 0
    %p130 = por %p128, %p129
    %s131 = ssub.s32 %s17, %s29
    %p132 = scmp.eq.s32.totalorder %s131, 0
    %s134 = sadd.s32 %s133, 1
    %s135 = scalar_select %p132, %s133, %s134
    %p138 = pneg %p132
    %p139 = scmp.eq.s32.totalorder %s10, 1
    %p140 = por %p138, %p139
    %p141 = scmp.ne.s32.totalorder %s133, %s136
    %p142 = scmp.eq.s32.totalorder %s10, 0
    %p143 = por %p141, %p142
    %p144 = scmp.ne.s32.totalorder %s133, %s136
    %p145 = scmp.eq.s32.totalorder %s15, 1
    %p146 = por %p144, %p145
    %p147 = scmp.ne.s32.totalorder %s136, %s137
    %p148 = scmp.eq.s32.totalorder %s15, 0
    %p149 = por %p147, %p148
    %p150 = scmp.ne.s32.totalorder %s136, %s137
    %p151 = scmp.eq.s32.totalorder %s16, 1
    %p152 = por %p150, %p151
    %p154 = scmp.ne.s32.totalorder %s137, %s153
    %p155 = scmp.eq.s32.totalorder %s16, 0
    %p156 = por %p154, %p155
    %p157 = scmp.le.s32.totalorder 1, %s10
    %p158 = scmp.lt.s32.totalorder %s10, 3
    %p159 = pnand %p157, %p158
    %p160 = pneg %p159
    // Predicated region
    $region9: #{generator_forward.18} parent=5 // pred_check
      _
    $region10: #{generator_forward.18} parent=5 // pred_check_branch
      %162 = sbr.rel (%p159) target = $region12
    $region11: #{generator_forward.18} parent=5 // pred_region
      %s163 = ssub.s32 %s10, 1
      // Predicated region
      $region13: #{generator_forward.18} parent=11 // pred_check
        %p164 = pneg %p76
      $region14: #{generator_forward.18} parent=11 // pred_check_branch
        %166 = sbr.rel (%p164) target = $region16
      $region15: #{generator_forward.18} parent=11 // pred_region
        %s167 = smul.u32 36, %s20
        %p168 = scmp.lt.s32.totalorder %s167, 35
        %s169 = scalar_select %p168, %s167, 35
        %s170 = smul.addr %s169, 4
        %s171 = scalar_lea.vmem %s1, %s170
        %s172 = smul.u32 36, %s20
      $region16: #{generator_forward.18} parent=11 // pred_fallthru
        _
      // Predicated region
      $region17: #{generator_forward.18} parent=11 // pred_check
        %p173 = pneg %p97
      $region18: #{generator_forward.18} parent=11 // pred_check_branch
        %175 = sbr.rel (%p173) target = $region20
      $region19: #{generator_forward.18} parent=11 // pred_region
        _
      $region20: #{generator_forward.18} parent=11 // pred_fallthru
        _
    $region12: #{generator_forward.18} parent=5 // pred_fallthru
      _
    %p176 = scmp.lt.s32.totalorder %s10, 2
    // Predicated region
    $region21: #{generator_forward.18} parent=5 // pred_check
      %p177 = pneg %p176
    $region22: #{generator_forward.18} parent=5 // pred_check_branch
      %179 = sbr.rel (%p177) target = $region24
    $region23: #{generator_forward.18} parent=5 // pred_region
      // Predicated region
      $region25: #{generator_forward.18} parent=23 // pred_check
        %p180 = pneg %p44
      $region26: #{generator_forward.18} parent=23 // pred_check_branch
        %182 = sbr.rel (%p180) target = $region28
      $region27: #{generator_forward.18} parent=23 // pred_region
        %s183 = smul.u32 3, %s18
        %p184 = scmp.lt.s32.totalorder %s17, 1
        %s185 = scalar_select %p184, %s17, 1
        %p186 = scmp.lt.s32.totalorder %s183, 2
        %s187 = scalar_select %p186, %s183, 2
        %s188 = smul.addr %s185, 6
        %s189 = sadd.s32 %s187, %s188
        %s190 = smul.addr %s189, 4
        %s191 = scalar_lea.vmem %s0, %s190
        %s192 = smul.u32 3, %s18
      $region28: #{generator_forward.18} parent=23 // pred_fallthru
        _
      // Predicated region
      $region29: #{generator_forward.18} parent=23 // pred_check
        %p193 = pneg %p117
      $region30: #{generator_forward.18} parent=23 // pred_check_branch
        %195 = sbr.rel (%p193) target = $region32
      $region31: #{generator_forward.18} parent=23 // pred_region
        %p196 = scmp.lt.s32.totalorder %s17, 1
        %s197 = scalar_select %p196, %s17, 1
        %s198 = smul.addr %s197, 2
        %s199 = smul.addr %s198, 8
        %s200 = scalar_lea.vmem %s3, %s199
      $region32: #{generator_forward.18} parent=23 // pred_fallthru
        _
    $region24: #{generator_forward.18} parent=5 // pred_fallthru
      _
    %p201 = scmp.le.s32.totalorder 1, %s10
    %p202 = scmp.lt.s32.totalorder %s10, 3
    %p203 = pnand %p201, %p202
    %p204 = pneg %p203
    // Predicated region
    $region33: #{generator_forward.18} parent=5 // pred_check
      _
    $region34: #{generator_forward.18} parent=5 // pred_check_branch
      %206 = sbr.rel (%p203) target = $region36
    $region35: #{generator_forward.18} parent=5 // pred_region
      %s207 = ssub.s32 %s10, 1
      %s208 = smul.u32 3, %s20
      %p209 = scmp.lt.s32.totalorder %s19, 1
      %s210 = scalar_select %p209, %s19, 1
      %p211 = scmp.lt.s32.totalorder %s208, 2
      %s212 = scalar_select %p211, %s208, 2
      %s213 = smul.addr %s210, 6
      %s214 = sadd.s32 %s212, %s213
      %s215 = smul.addr %s214, 4
      %s216 = scalar_lea.vmem %s0, %s215
      %p217 = pneg %p50
      %p218 = pneg %p47
      %s219 = smul.u32 36, %s20
      %p220 = scmp.lt.s32.totalorder %s219, 35
      %s221 = scalar_select %p220, %s219, 35
      %s222 = smul.addr %s221, 4
      %s223 = scalar_lea.vmem %s1, %s222
      %p224 = pneg %p76
      %p225 = pneg %p73
      %p226 = pneg %p97
      %p227 = pneg %p94
      %p228 = scmp.lt.s32.totalorder %s19, 1
      %s229 = scalar_select %p228, %s19, 1
      %s230 = smul.addr %s229, 2
      %s231 = smul.addr %s230, 8
      %s232 = scalar_lea.vmem %s3, %s231
      %p233 = pneg %p123
      %p234 = pneg %p120
      %p235 = pneg %p149
      %p236 = pneg %p146
      %p237 = scmp.lt.s32.totalorder %s19, 1
      %s238 = scalar_select %p237, %s19, 1
      %s239 = smul.addr %s238, 2
      %s240 = smul.addr %s239, 8
      %s241 = scalar_lea.vmem %s4, %s240
      %s242 = smul.u32 3, %s20
      %p243 = scmp.lt.s32.totalorder %s19, 1
      %s244 = scalar_select %p243, %s19, 1
      %p245 = scmp.lt.s32.totalorder %s242, 2
      %s246 = scalar_select %p245, %s242, 2
      %s247 = smul.addr %s244, 6
      %s248 = sadd.s32 %s246, %s247
      %s249 = smul.addr %s248, 4
      %s250 = scalar_lea.vmem %s0, %s249
      %s251 = smul.u32 3, %s20
      %s252 = smul.u32 36, %s20
      %p253 = scmp.lt.s32.totalorder %s252, 35
      %s254 = scalar_select %p253, %s252, 35
      %s255 = smul.addr %s254, 4
      %s256 = scalar_lea.vmem %s1, %s255
      %s257 = smul.u32 36, %s20
      %p258 = scmp.lt.s32.totalorder %s19, 1
      %s259 = scalar_select %p258, %s19, 1
      %s260 = smul.addr %s259, 2
      %s261 = smul.addr %s260, 8
      %s262 = scalar_lea.vmem %s3, %s261
      %p263 = scmp.lt.s32.totalorder %s19, 1
      %s264 = scalar_select %p263, %s19, 1
      %s265 = smul.addr %s264, 2
      %s266 = smul.addr %s265, 8
      %s267 = scalar_lea.vmem %s4, %s266
      %p269 = scmp.eq.s32.totalorder %s20, 0
      // Predicated region
      $region37: #{generator_forward.18} parent=35 // pred_check
        %p270 = pneg %p269
      $region38: #{generator_forward.18} parent=35 // pred_check_branch
        %272 = sbr.rel (%p270) target = $region40
      $region39: #{generator_forward.18} parent=35 // pred_region
        %273 = vst [vmem:[#allocation2] sm:$0xff] 0.0
        %274 = vst [vmem:[#allocation2 + $0x8] sm:$0xff] 0.0
      $region40: #{generator_forward.18} parent=35 // pred_fallthru
        _
      %v275 = vld [vmem:[#allocation2] sm:$0xff]
      %v276 = vld [vmem:[#allocation2 + $0x8] sm:$0xff]
      %v277 = vld [vmem:[%s250] sm:$0xff]
      %v278 = vld [vmem:[%s250 + $0x8] sm:$0xf]
      %v279 = vld [vmem:[%s250 + $0xc] sm:$0xff]
      %v280 = vld [vmem:[%s250 + $0x14] sm:$0xf]
      %v281 = vld [vmem:[%s256] sm:$0xf]
      %v282 = vld [vmem:[%s256 + $0x4] sm:$0xf]
      %v283 = vld [vmem:[%s256 + $0x8] sm:$0xf]
      %v284 = vld [vmem:[%s256 + $0xc] sm:$0xf]
      %v285 = vld [vmem:[%s256 + $0x10] sm:$0xf]
      %v286 = vld [vmem:[%s256 + $0x14] sm:$0xf]
      %v287 = vld [vmem:[%s256 + $0x18] sm:$0xf]
      %v288 = vld [vmem:[%s256 + $0x1c] sm:$0xf]
      %v289 = vld [vmem:[%s256 + $0x20] sm:$0xf]
      %v290 = vld [vmem:[%s256 + $0x24] sm:$0xf]
      %v291 = vld [vmem:[%s256 + $0x28] sm:$0xf]
      %v292 = vld [vmem:[%s256 + $0x2c] sm:$0xf]
      %v293 = vld [vmem:[%s256 + $0x30] sm:$0xf]
      %v294 = vld [vmem:[%s256 + $0x34] sm:$0xf]
      %v295 = vld [vmem:[%s256 + $0x38] sm:$0xf]
      %v296 = vld [vmem:[%s256 + $0x3c] sm:$0xf]
      %v297 = vld [vmem:[%s256 + $0x40] sm:$0xf]
      %v298 = vld [vmem:[%s256 + $0x44] sm:$0xf]
      %v299 = vld [vmem:[%s256 + $0x48] sm:$0xf]
      %v300 = vld [vmem:[%s256 + $0x4c] sm:$0xf]
      %v301 = vld [vmem:[%s256 + $0x50] sm:$0xf]
      %v302 = vld [vmem:[%s256 + $0x54] sm:$0xf]
      %v303 = vld [vmem:[%s256 + $0x58] sm:$0xf]
      %v304 = vld [vmem:[%s256 + $0x5c] sm:$0xf]
      %v305 = vld [vmem:[%s256 + $0x60] sm:$0xf]
      %v306 = vld [vmem:[%s256 + $0x64] sm:$0xf]
      %v307 = vld [vmem:[%s256 + $0x68] sm:$0xf]
      %v308 = vld [vmem:[%s256 + $0x6c] sm:$0xf]
      %v309 = vld [vmem:[%s256 + $0x70] sm:$0xf]
      %v310 = vld [vmem:[%s256 + $0x74] sm:$0xf]
      %v311 = vld [vmem:[%s256 + $0x78] sm:$0xf]
      %v312 = vld [vmem:[%s256 + $0x7c] sm:$0xf]
      %v313 = vld [vmem:[%s256 + $0x80] sm:$0xf]
      %v314 = vld [vmem:[%s256 + $0x84] sm:$0xf]
      %v315 = vld [vmem:[%s256 + $0x88] sm:$0xf]
      %v316 = vld [vmem:[%s256 + $0x8c] sm:$0xf]
      %v321 = vunpack.c.l.b16 %v277
      %v322 = vunpack.c.h.b16 %v277
      %v323 = vunpack.c.l.b16 %v278
      %v324 = vunpack.c.l.b16 %v279
      %v325 = vunpack.c.h.b16 %v279
      %v326 = vunpack.c.l.b16 %v280
      %v327 = vpack.c.b16 %v324, %v321
      %v328 = vpack.c.b16 %v325, %v322
      %v329 = vpack.c.b16 %v326, %v323
      %v368 = vunpack.c.l.b16 %v281
      %v369 = vunpack.c.l.b16 %v282
      %v370 = vunpack.c.l.b16 %v283
      %v371 = vunpack.c.l.b16 %v284
      %v372 = vunpack.c.l.b16 %v285
      %v373 = vunpack.c.l.b16 %v286
      %v374 = vunpack.c.l.b16 %v287
      %v375 = vunpack.c.l.b16 %v288
      %v376 = vunpack.c.l.b16 %v289
      %v377 = vunpack.c.l.b16 %v290
      %v378 = vunpack.c.l.b16 %v291
      %v379 = vunpack.c.l.b16 %v292
      %v380 = vunpack.c.l.b16 %v293
      %v381 = vunpack.c.l.b16 %v294
      %v382 = vunpack.c.l.b16 %v295
      %v383 = vunpack.c.l.b16 %v296
      %v384 = vunpack.c.l.b16 %v297
      %v385 = vunpack.c.l.b16 %v298
      %v386 = vunpack.c.l.b16 %v299
      %v387 = vunpack.c.l.b16 %v300
      %v388 = vunpack.c.l.b16 %v301
      %v389 = vunpack.c.l.b16 %v302
      %v390 = vunpack.c.l.b16 %v303
      %v391 = vunpack.c.l.b16 %v304
      %v392 = vunpack.c.l.b16 %v305
      %v393 = vunpack.c.l.b16 %v306
      %v394 = vunpack.c.l.b16 %v307
      %v395 = vunpack.c.l.b16 %v308
      %v396 = vunpack.c.l.b16 %v309
      %v397 = vunpack.c.l.b16 %v310
      %v398 = vunpack.c.l.b16 %v311
      %v399 = vunpack.c.l.b16 %v312
      %v400 = vunpack.c.l.b16 %v313
      %v401 = vunpack.c.l.b16 %v314
      %v402 = vunpack.c.l.b16 %v315
      %v403 = vunpack.c.l.b16 %v316
      %v404 = vpack.c.b16 %v369, %v368
      %v405 = vpack.c.b16 %v371, %v370
      %v406 = vpack.c.b16 %v373, %v372
      %v407 = vpack.c.b16 %v375, %v374
      %v408 = vpack.c.b16 %v377, %v376
      %v409 = vpack.c.b16 %v379, %v378
      %v410 = vpack.c.b16 %v381, %v380
      %v411 = vpack.c.b16 %v383, %v382
      %v412 = vpack.c.b16 %v385, %v384
      %v413 = vpack.c.b16 %v387, %v386
      %v414 = vpack.c.b16 %v389, %v388
      %v415 = vpack.c.b16 %v391, %v390
      %v416 = vpack.c.b16 %v393, %v392
      %v417 = vpack.c.b16 %v395, %v394
      %v418 = vpack.c.b16 %v397, %v396
      %v419 = vpack.c.b16 %v399, %v398
      %v420 = vpack.c.b16 %v401, %v400
      %v421 = vpack.c.b16 %v403, %v402
      %vm440 = vcmask 261120
      %v442 = vsel %vm440, %v329, 0
      %444 = vmatprep.subr.bf16.mxu0 0
      %445 = vmatpush1.bf16.msra.mxu0 %v404
      %446 = vmatprep.subr.bf16.mxu0 0
      %447 = vmatpush1.bf16.msra.mxu0 %v405
      %448 = vmatprep.subr.bf16.mxu0 0
      %449 = vmatpush1.bf16.msra.mxu0 %v406
      %450 = vmatprep.subr.bf16.mxu0 0
      %451 = vmatpush1.bf16.msra.mxu0 %v407
      %452 = vmatprep.subr.bf16.mxu0 0
      %453 = vmatpush1.bf16.msra.mxu0 %v408
      %454 = vmatprep.subr.bf16.mxu0 0
      %455 = vmatpush1.bf16.msra.mxu0 %v409
      %456 = vmatprep.subr.bf16.mxu0 0
      %457 = vmatpush1.bf16.msra.mxu0 %v410
      %458 = vmatprep.subr.bf16.mxu0 0
      %459 = vmatpush1.bf16.msra.mxu0 %v411
      %460 = vmatprep.subr.bf16.mxu0 0
      %461 = vmatpush1.bf16.msra.mxu0 %v412
      %462 = vmatprep.subr.bf16.mxu0 0
      %463 = vmatpush1.bf16.msra.mxu0 %v413
      %464 = vmatprep.subr.bf16.mxu0 0
      %465 = vmatpush1.bf16.msra.mxu0 %v414
      %466 = vmatprep.subr.bf16.mxu0 0
      %467 = vmatpush1.bf16.msra.mxu0 %v415
      %468 = vmatprep.subr.bf16.mxu0 0
      %469 = vmatpush1.bf16.msra.mxu0 %v416
      %470 = vmatprep.subr.bf16.mxu0 0
      %471 = vmatpush1.bf16.msra.mxu0 %v417
      %472 = vmatprep.subr.bf16.mxu0 0
      %473 = vmatpush1.bf16.msra.mxu0 %v418
      %474 = vmatprep.subr.bf16.mxu0 0
      %475 = vmatpush1.bf16.msra.mxu0 %v419
      %476 = vmatprep.mubr.bf16.mxu0 %v328
      %477 = vmatmul.mubr.bf16.gmra.mrb[0].mxu0 %v327
      %v478 = vpop.f32.mrb[0].mxu0
      %v479 = vadd.f32 0.0, %v478
      %v480 = vpop.f32.mrb[0].mxu0
      %v481 = vpop.f32.mrb[0].mxu0
      %v482 = vadd.f32 0.0, %v481
      %v483 = vpop.f32.mrb[0].mxu0
      %484 = vdwg.mxu0
      %485 = vmatprep.subr.bf16.mxu0 0
      %486 = vmatpush1.bf16.msra.mxu0 %v420
      %487 = vmatprep.subr.bf16.mxu0 0
      %488 = vmatpush1.bf16.msra.mxu0 %v421
      %489 = vmatprep.subr.bf16.mxu0 0
      %490 = vmatpush1.bf16.msra.mxu0 0
      %491 = vmatprep.subr.bf16.mxu0 0
      %492 = vmatpush1.bf16.msra.mxu0 0
      %493 = vmatprep.subr.bf16.mxu0 0
      %494 = vmatpush1.bf16.msra.mxu0 0
      %495 = vmatprep.subr.bf16.mxu0 0
      %496 = vmatpush1.bf16.msra.mxu0 0
      %497 = vmatprep.subr.bf16.mxu0 0
      %498 = vmatpush1.bf16.msra.mxu0 0
      %499 = vmatprep.subr.bf16.mxu0 0
      %500 = vmatpush1.bf16.msra.mxu0 0
      %501 = vmatprep.subr.bf16.mxu0 0
      %502 = vmatpush1.bf16.msra.mxu0 0
      %503 = vmatprep.subr.bf16.mxu0 0
      %504 = vmatpush1.bf16.msra.mxu0 0
      %505 = vmatprep.subr.bf16.mxu0 0
      %506 = vmatpush1.bf16.msra.mxu0 0
      %507 = vmatprep.subr.bf16.mxu0 0
      %508 = vmatpush1.bf16.msra.mxu0 0
      %509 = vmatprep.subr.bf16.mxu0 0
      %510 = vmatpush1.bf16.msra.mxu0 0
      %511 = vmatprep.subr.bf16.mxu0 0
      %512 = vmatpush1.bf16.msra.mxu0 0
      %513 = vmatprep.subr.bf16.mxu0 0
      %514 = vmatpush1.bf16.msra.mxu0 0
      %515 = vmatprep.subr.bf16.mxu0 0
      %516 = vmatpush1.bf16.msra.mxu0 0
      %517 = vmatprep.mubr.bf16.mxu0 0
      %518 = vmatmul.mubr.bf16.gmra.mrb[0].mxu0 %v442
      %v519 = vpop.f32.mrb[0].mxu0
      %v520 = vadd.f32 %v479, %v519
      %v521 = vpop.f32.mrb[0].mxu0
      %v522 = vpop.f32.mrb[0].mxu0
      %v523 = vadd.f32 %v482, %v522
      %v524 = vpop.f32.mrb[0].mxu0
      %525 = vdwg.mxu0
      %v526 = vadd.f32 %v275, %v520
      %v527 = vadd.f32 %v276, %v523
      %528 = vst [vmem:[#allocation2] sm:$0xff] %v526
      %529 = vst [vmem:[#allocation2 + $0x8] sm:$0xff] %v527
      // Predicated region
      $region41: #{generator_forward.18} parent=35 // pred_check
        %p530 = pneg %p269
      $region42: #{generator_forward.18} parent=35 // pred_check_branch
        %532 = sbr.rel (%p530) target = $region44
      $region43: #{generator_forward.18} parent=35 // pred_region
        %v533 = vld [vmem:[#allocation2] sm:$0xff]
        %v534 = vld [vmem:[#allocation2 + $0x8] sm:$0xff]
        %v535 = vld [vmem:[%s2] sm:$0x1]
        %v537 = vlaneseq
        %v538 = vshrl.u32 %v537, 7
        %v539 = vsub.s32 0, %v538
        %v540 = vrot.slane %v535, %v539
        %v542 = vadd.f32 %v533, %v540
        %v543 = vadd.f32 %v534, %v540
        %v544 = vadd.f32 %v542, %v543
        %v545 = vrot.slane %v544, 4
        %v546 = vadd.f32 %v544, %v545
        %v547 = vrot.slane %v546, 2
        %v548 = vadd.f32 %v546, %v547
        %v549 = vrot.slane %v548, 1
        %v550 = vadd.f32 %v548, %v549
        %v551 = vrcp.pop 16.0
        %v552 = vmul.f32 %v550, %v551
        %v553 = vsub.f32 %v542, %v552
        %v554 = vsub.f32 %v543, %v552
        %v555 = vmul.f32 %v553, %v553
        %v556 = vmul.f32 %v554, %v554
        %v557 = vadd.f32 %v555, %v556
        %v558 = vrot.slane %v557, 4
        %v559 = vadd.f32 %v557, %v558
        %v560 = vrot.slane %v559, 2
        %v561 = vadd.f32 %v559, %v560
        %v562 = vrot.slane %v561, 1
        %v563 = vadd.f32 %v561, %v562
        %v564 = vmul.f32 %v563, %v551
        %v565 = vadd.f32 %v564, 1e-05
        %v566 = vrsqrt.pop %v565
        %v567 = vmul.f32 %v553, %v566
        %v568 = vmul.f32 %v554, %v566
        %v569 = vld [vmem:[%s262] sm:$0xff]
        %v570 = vld [vmem:[%s262 + $0x8] sm:$0xff]
        %v571 = vadd.f32 %v569, %v567
        %v572 = vadd.f32 %v570, %v568
        %573 = vst [vmem:[%s267] sm:$0xff] %v571
        %574 = vst [vmem:[%s267 + $0x8] sm:$0xff] %v572
      $region44: #{generator_forward.18} parent=35 // pred_fallthru
        _
      %p575 = scmp.lt.s32.totalorder %s19, 1
      %s576 = scalar_select %p575, %s19, 1
      %s577 = smul.addr %s576, 2
      %s578 = smul.addr %s577, 8
      %s579 = scalar_lea.vmem %s4, %s578
      // Predicated region
      $region45: #{generator_forward.18} parent=35 // pred_check
        %p580 = pneg %p146
      $region46: #{generator_forward.18} parent=35 // pred_check_branch
        %582 = sbr.rel (%p580) target = $region48
      $region47: #{generator_forward.18} parent=35 // pred_region
        _
      $region48: #{generator_forward.18} parent=35 // pred_fallthru
        _
    $region36: #{generator_forward.18} parent=5 // pred_fallthru
      _
    %p583 = scmp.le.s32.totalorder 2, %s10
    // Predicated region
    $region49: #{generator_forward.18} parent=5 // pred_check
      %p584 = pneg %p583
    $region50: #{generator_forward.18} parent=5 // pred_check_branch
      %586 = sbr.rel (%p584) target = $region52
    $region51: #{generator_forward.18} parent=5 // pred_region
      %s587 = ssub.s32 %s10, 2
      // Predicated region
      $region53: #{generator_forward.18} parent=51 // pred_check
        %p588 = pneg %p152
      $region54: #{generator_forward.18} parent=51 // pred_check_branch
        %590 = sbr.rel (%p588) target = $region56
      $region55: #{generator_forward.18} parent=51 // pred_region
        %p591 = scmp.lt.s32.totalorder %s21, 1
        %s592 = scalar_select %p591, %s21, 1
        %s593 = smul.addr %s592, 2
        %s594 = smul.addr %s593, 8
        %s595 = scalar_lea.vmem %s4, %s594
      $region56: #{generator_forward.18} parent=51 // pred_fallthru
        _
    $region52: #{generator_forward.18} parent=5 // pred_fallthru
      _
  $region6: #{generator_forward.18} parent=0 // loop_footer
    %s14 = sadd.s32 1, %s10
  $region7: #{generator_forward.18} parent=0 // loop_footer_branch
    %9 = sbr.rel target = $region3
  $region8: #{generator_forward.18} parent=0 // loop_exit
    _

// kernel: generator_forward.17
$region0: #{generator_forward.17}
  #allocation0 [shape = 'u32[]', space=smem, size = 0x4, offset = 0x4, fixed_abs, tag = 'smem constant byte address 0x4 - core index']
  #allocation1 [shape = 'u32[144,128]{1,0:T(1,128)}', space=vmem, size = 0x12000, scoped, tag = 'internal scratch']
  #allocation2 [shape = 'f32[16,128]{1,0:T(8,128)}', space=vmem, size = 0x2000, scoped, tag = 'scratch operand']
  %s0 = inlined_call_operand.vmem [shape: bf16[2,16,288], index: 0, kind: input, shape index: {}]
  %s1 = inlined_call_operand.vmem [shape: bf16[288,128], index: 1, kind: input, shape index: {}]
  %s2 = inlined_call_operand.vmem [shape: f32[1,128], index: 2, kind: input, shape index: {}]
  %s3 = inlined_call_operand.vmem [shape: f32[2,16,128], index: 3, kind: output, shape index: {}]
  %s4 = sld [smem:[#allocation0]]
  $region53: #{generator_forward.17} parent=0
    _
  %s6 = ssub.s32 1, %s4
  %s7 = scalar_select 0, %s6, %s4
  loop: start=0, step=1, limit=4
  $region2: #{generator_forward.17} parent=0 // loop_pre_header
    _
  $region3: #{generator_forward.17} parent=0 // loop_header
    %s9 = sphi 0, %s13
    %p10 = scmp.ge.s32.totalorder %s9, 4
    %s16 = sphi 0, %s28
    %s17 = sphi 0, %s24
    %s18 = sphi 0, %s16
    %s19 = sphi 0, %s17
    %s20 = sphi 0, %s18
    %s21 = sphi 0, %s19
    %s33 = sphi 0, %s35
    %s36 = sphi 0, %s33
    %s37 = sphi 0, %s36
    %s53 = sphi 0, %s37
    %s59 = sphi 0, %s61
    %s62 = sphi 0, %s59
    %s63 = sphi 0, %s62
    %s79 = sphi 0, %s63
    %s83 = sphi 0, %s83
    %s85 = sphi 0, %s83
    %s86 = sphi 0, %s85
    %s100 = sphi 0, %s86
    %s106 = sphi 0, %s108
    %s109 = sphi 0, %s106
    %s110 = sphi 0, %s109
    %s126 = sphi 0, %s110
  $region4: #{generator_forward.17} parent=0 // loop_header_branch
    %12 = sbr.rel (%p10) target = $region8
  $region5: #{generator_forward.17} parent=0 // loop_body
    %s14 = ssub.s32 %s9, 1
    %s15 = ssub.s32 %s9, 2
    %s22 = sadd.s32 1, %s17
    %p23 = scmp.ge.s32.totalorder %s22, 1
    %s24 = scalar_select %p23, 0, %s22
    %s25 = sadd.s32 1, %s16
    %s26 = scalar_select %p23, %s25, %s16
    %p27 = scmp.ge.s32.totalorder %s26, 2
    %s28 = scalar_select %p27, 0, %s26
    %s29 = ssub.s32 %s16, %s28
    %s30 = ssub.s32 %s17, %s24
    %s31 = sor.u32 %s29, %s30
    %p32 = scmp.eq.s32.totalorder %s31, 0
    %s34 = sadd.s32 %s33, 1
    %s35 = scalar_select %p32, %s33, %s34
    %p38 = pneg %p32
    %p39 = scmp.eq.s32.totalorder %s9, 1
    %p40 = por %p38, %p39
    %p41 = scmp.ne.s32.totalorder %s33, %s36
    %p42 = scmp.eq.s32.totalorder %s9, 0
    %p43 = por %p41, %p42
    %p44 = scmp.ne.s32.totalorder %s33, %s36
    %p45 = scmp.eq.s32.totalorder %s14, 1
    %p46 = por %p44, %p45
    %p47 = scmp.ne.s32.totalorder %s36, %s37
    %p48 = scmp.eq.s32.totalorder %s14, 0
    %p49 = por %p47, %p48
    %p50 = scmp.ne.s32.totalorder %s36, %s37
    %p51 = scmp.eq.s32.totalorder %s15, 1
    %p52 = por %p50, %p51
    %p54 = scmp.ne.s32.totalorder %s37, %s53
    %p55 = scmp.eq.s32.totalorder %s15, 0
    %p56 = por %p54, %p55
    %s57 = ssub.s32 %s17, %s24
    %p58 = scmp.eq.s32.totalorder %s57, 0
    %s60 = sadd.s32 %s59, 1
    %s61 = scalar_select %p58, %s59, %s60
    %p64 = pneg %p58
    %p65 = scmp.eq.s32.totalorder %s9, 1
    %p66 = por %p64, %p65
    %p67 = scmp.ne.s32.totalorder %s59, %s62
    %p68 = scmp.eq.s32.totalorder %s9, 0
    %p69 = por %p67, %p68
    %p70 = scmp.ne.s32.totalorder %s59, %s62
    %p71 = scmp.eq.s32.totalorder %s14, 1
    %p72 = por %p70, %p71
    %p73 = scmp.ne.s32.totalorder %s62, %s63
    %p74 = scmp.eq.s32.totalorder %s14, 0
    %p75 = por %p73, %p74
    %p76 = scmp.ne.s32.totalorder %s62, %s63
    %p77 = scmp.eq.s32.totalorder %s15, 1
    %p78 = por %p76, %p77
    %p80 = scmp.ne.s32.totalorder %s63, %s79
    %p81 = scmp.eq.s32.totalorder %s15, 0
    %p82 = por %p80, %p81
    %s84 = sadd.s32 %s83, 1
    %p87 = scmp.eq.s32.totalorder %s9, 1
    %p88 = scmp.ne.s32.totalorder %s83, %s85
    %p89 = scmp.eq.s32.totalorder %s9, 0
    %p90 = por %p88, %p89
    %p91 = scmp.ne.s32.totalorder %s83, %s85
    %p92 = scmp.eq.s32.totalorder %s14, 1
    %p93 = por %p91, %p92
    %p94 = scmp.ne.s32.totalorder %s85, %s86
    %p95 = scmp.eq.s32.totalorder %s14, 0
    %p96 = por %p94, %p95
    %p97 = scmp.ne.s32.totalorder %s85, %s86
    %p98 = scmp.eq.s32.totalorder %s15, 1
    %p99 = por %p97, %p98
    %p101 = scmp.ne.s32.totalorder %s86, %s100
    %p102 = scmp.eq.s32.totalorder %s15, 0
    %p103 = por %p101, %p102
    %s104 = ssub.s32 %s16, %s28
    %p105 = scmp.eq.s32.totalorder %s104, 0
    %s107 = sadd.s32 %s106, 1
    %s108 = scalar_select %p105, %s106, %s107
    %p111 = pneg %p105
    %p112 = scmp.eq.s32.totalorder %s9, 1
    %p113 = por %p111, %p112
    %p114 = scmp.ne.s32.totalorder %s106, %s109
    %p115 = scmp.eq.s32.totalorder %s9, 0
    %p116 = por %p114, %p115
    %p117 = scmp.ne.s32.totalorder %s106, %s109
    %p118 = scmp.eq.s32.totalorder %s14, 1
    %p119 = por %p117, %p118
    %p120 = scmp.ne.s32.totalorder %s109, %s110
    %p121 = scmp.eq.s32.totalorder %s14, 0
    %p122 = por %p120, %p121
    %p123 = scmp.ne.s32.totalorder %s109, %s110
    %p124 = scmp.eq.s32.totalorder %s15, 1
    %p125 = por %p123, %p124
    %p127 = scmp.ne.s32.totalorder %s110, %s126
    %p128 = scmp.eq.s32.totalorder %s15, 0
    %p129 = por %p127, %p128
    %p130 = scmp.le.s32.totalorder 1, %s9
    %p131 = scmp.lt.s32.totalorder %s9, 3
    %p132 = pnand %p130, %p131
    %p133 = pneg %p132
    // Predicated region
    $region9: #{generator_forward.17} parent=5 // pred_check
      _
    $region10: #{generator_forward.17} parent=5 // pred_check_branch
      %135 = sbr.rel (%p132) target = $region12
    $region11: #{generator_forward.17} parent=5 // pred_region
      %s136 = ssub.s32 %s9, 1
      // Predicated region
      $region13: #{generator_forward.17} parent=11 // pred_check
        %p137 = pneg %p75
      $region14: #{generator_forward.17} parent=11 // pred_check_branch
        %139 = sbr.rel (%p137) target = $region16
      $region15: #{generator_forward.17} parent=11 // pred_region
        %s140 = smul.u32 36, %s19
        %p141 = scmp.lt.s32.totalorder %s140, 35
        %s142 = scalar_select %p141, %s140, 35
        %s143 = smul.addr %s142, 4
        %s144 = scalar_lea.vmem %s1, %s143
        %s145 = smul.u32 36, %s19
      $region16: #{generator_forward.17} parent=11 // pred_fallthru
        _
      // Predicated region
      $region17: #{generator_forward.17} parent=11 // pred_check
        %p146 = pneg %p96
      $region18: #{generator_forward.17} parent=11 // pred_check_branch
        %148 = sbr.rel (%p146) target = $region20
      $region19: #{generator_forward.17} parent=11 // pred_region
        _
      $region20: #{generator_forward.17} parent=11 // pred_fallthru
        _
    $region12: #{generator_forward.17} parent=5 // pred_fallthru
      _
    %p149 = scmp.lt.s32.totalorder %s9, 2
    // Predicated region
    $region21: #{generator_forward.17} parent=5 // pred_check
      %p150 = pneg %p149
    $region22: #{generator_forward.17} parent=5 // pred_check_branch
      %152 = sbr.rel (%p150) target = $region24
    $region23: #{generator_forward.17} parent=5 // pred_region
      // Predicated region
      $region25: #{generator_forward.17} parent=23 // pred_check
        %p153 = pneg %p43
      $region26: #{generator_forward.17} parent=23 // pred_check_branch
        %155 = sbr.rel (%p153) target = $region28
      $region27: #{generator_forward.17} parent=23 // pred_region
        %s156 = smul.u32 3, %s17
        %p157 = scmp.lt.s32.totalorder %s16, 1
        %s158 = scalar_select %p157, %s16, 1
        %p159 = scmp.lt.s32.totalorder %s156, 2
        %s160 = scalar_select %p159, %s156, 2
        %s161 = smul.addr %s158, 6
        %s162 = sadd.s32 %s160, %s161
        %s163 = smul.addr %s162, 4
        %s164 = scalar_lea.vmem %s0, %s163
        %s165 = smul.u32 3, %s17
      $region28: #{generator_forward.17} parent=23 // pred_fallthru
        _
    $region24: #{generator_forward.17} parent=5 // pred_fallthru
      _
    %p166 = scmp.le.s32.totalorder 1, %s9
    %p167 = scmp.lt.s32.totalorder %s9, 3
    %p168 = pnand %p166, %p167
    %p169 = pneg %p168
    // Predicated region
    $region29: #{generator_forward.17} parent=5 // pred_check
      _
    $region30: #{generator_forward.17} parent=5 // pred_check_branch
      %171 = sbr.rel (%p168) target = $region32
    $region31: #{generator_forward.17} parent=5 // pred_region
      %s172 = ssub.s32 %s9, 1
      %s173 = smul.u32 3, %s19
      %p174 = scmp.lt.s32.totalorder %s18, 1
      %s175 = scalar_select %p174, %s18, 1
      %p176 = scmp.lt.s32.totalorder %s173, 2
      %s177 = scalar_select %p176, %s173, 2
      %s178 = smul.addr %s175, 6
      %s179 = sadd.s32 %s177, %s178
      %s180 = smul.addr %s179, 4
      %s181 = scalar_lea.vmem %s0, %s180
      %p182 = pneg %p49
      %p183 = pneg %p46
      %s184 = smul.u32 36, %s19
      %p185 = scmp.lt.s32.totalorder %s184, 35
      %s186 = scalar_select %p185, %s184, 35
      %s187 = smul.addr %s186, 4
      %s188 = scalar_lea.vmem %s1, %s187
      %p189 = pneg %p75
      %p190 = pneg %p72
      %p191 = pneg %p96
      %p192 = pneg %p93
      %p193 = pneg %p122
      %p194 = pneg %p119
      %p195 = scmp.lt.s32.totalorder %s18, 1
      %s196 = scalar_select %p195, %s18, 1
      %s197 = smul.addr %s196, 2
      %s198 = smul.addr %s197, 8
      %s199 = scalar_lea.vmem %s3, %s198
      %s200 = smul.u32 3, %s19
      %p201 = scmp.lt.s32.totalorder %s18, 1
      %s202 = scalar_select %p201, %s18, 1
      %p203 = scmp.lt.s32.totalorder %s200, 2
      %s204 = scalar_select %p203, %s200, 2
      %s205 = smul.addr %s202, 6
      %s206 = sadd.s32 %s204, %s205
      %s207 = smul.addr %s206, 4
      %s208 = scalar_lea.vmem %s0, %s207
      %s209 = smul.u32 3, %s19
      %s210 = smul.u32 36, %s19
      %p211 = scmp.lt.s32.totalorder %s210, 35
      %s212 = scalar_select %p211, %s210, 35
      %s213 = smul.addr %s212, 4
      %s214 = scalar_lea.vmem %s1, %s213
      %s215 = smul.u32 36, %s19
      %p216 = scmp.lt.s32.totalorder %s18, 1
      %s217 = scalar_select %p216, %s18, 1
      %s218 = smul.addr %s217, 2
      %s219 = smul.addr %s218, 8
      %s220 = scalar_lea.vmem %s3, %s219
      %p222 = scmp.eq.s32.totalorder %s19, 0
      // Predicated region
      $region33: #{generator_forward.17} parent=31 // pred_check
        %p223 = pneg %p222
      $region34: #{generator_forward.17} parent=31 // pred_check_branch
        %225 = sbr.rel (%p223) target = $region36
      $region35: #{generator_forward.17} parent=31 // pred_region
        %226 = vst [vmem:[#allocation2] sm:$0xff] 0.0
        %227 = vst [vmem:[#allocation2 + $0x8] sm:$0xff] 0.0
      $region36: #{generator_forward.17} parent=31 // pred_fallthru
        _
      %v228 = vld [vmem:[#allocation2] sm:$0xff]
      %v229 = vld [vmem:[#allocation2 + $0x8] sm:$0xff]
      %v230 = vld [vmem:[%s208] sm:$0xff]
      %v231 = vld [vmem:[%s208 + $0x8] sm:$0xf]
      %v232 = vld [vmem:[%s208 + $0xc] sm:$0xff]
      %v233 = vld [vmem:[%s208 + $0x14] sm:$0xf]
      %v234 = vld [vmem:[%s214] sm:$0xf]
      %v235 = vld [vmem:[%s214 + $0x4] sm:$0xf]
      %v236 = vld [vmem:[%s214 + $0x8] sm:$0xf]
      %v237 = vld [vmem:[%s214 + $0xc] sm:$0xf]
      %v238 = vld [vmem:[%s214 + $0x10] sm:$0xf]
      %v239 = vld [vmem:[%s214 + $0x14] sm:$0xf]
      %v240 = vld [vmem:[%s214 + $0x18] sm:$0xf]
      %v241 = vld [vmem:[%s214 + $0x1c] sm:$0xf]
      %v242 = vld [vmem:[%s214 + $0x20] sm:$0xf]
      %v243 = vld [vmem:[%s214 + $0x24] sm:$0xf]
      %v244 = vld [vmem:[%s214 + $0x28] sm:$0xf]
      %v245 = vld [vmem:[%s214 + $0x2c] sm:$0xf]
      %v246 = vld [vmem:[%s214 + $0x30] sm:$0xf]
      %v247 = vld [vmem:[%s214 + $0x34] sm:$0xf]
      %v248 = vld [vmem:[%s214 + $0x38] sm:$0xf]
      %v249 = vld [vmem:[%s214 + $0x3c] sm:$0xf]
      %v250 = vld [vmem:[%s214 + $0x40] sm:$0xf]
      %v251 = vld [vmem:[%s214 + $0x44] sm:$0xf]
      %v252 = vld [vmem:[%s214 + $0x48] sm:$0xf]
      %v253 = vld [vmem:[%s214 + $0x4c] sm:$0xf]
      %v254 = vld [vmem:[%s214 + $0x50] sm:$0xf]
      %v255 = vld [vmem:[%s214 + $0x54] sm:$0xf]
      %v256 = vld [vmem:[%s214 + $0x58] sm:$0xf]
      %v257 = vld [vmem:[%s214 + $0x5c] sm:$0xf]
      %v258 = vld [vmem:[%s214 + $0x60] sm:$0xf]
      %v259 = vld [vmem:[%s214 + $0x64] sm:$0xf]
      %v260 = vld [vmem:[%s214 + $0x68] sm:$0xf]
      %v261 = vld [vmem:[%s214 + $0x6c] sm:$0xf]
      %v262 = vld [vmem:[%s214 + $0x70] sm:$0xf]
      %v263 = vld [vmem:[%s214 + $0x74] sm:$0xf]
      %v264 = vld [vmem:[%s214 + $0x78] sm:$0xf]
      %v265 = vld [vmem:[%s214 + $0x7c] sm:$0xf]
      %v266 = vld [vmem:[%s214 + $0x80] sm:$0xf]
      %v267 = vld [vmem:[%s214 + $0x84] sm:$0xf]
      %v268 = vld [vmem:[%s214 + $0x88] sm:$0xf]
      %v269 = vld [vmem:[%s214 + $0x8c] sm:$0xf]
      %v274 = vunpack.c.l.b16 %v230
      %v275 = vunpack.c.h.b16 %v230
      %v276 = vunpack.c.l.b16 %v231
      %v277 = vunpack.c.l.b16 %v232
      %v278 = vunpack.c.h.b16 %v232
      %v279 = vunpack.c.l.b16 %v233
      %v280 = vpack.c.b16 %v277, %v274
      %v281 = vpack.c.b16 %v278, %v275
      %v282 = vpack.c.b16 %v279, %v276
      %v321 = vunpack.c.l.b16 %v234
      %v322 = vunpack.c.l.b16 %v235
      %v323 = vunpack.c.l.b16 %v236
      %v324 = vunpack.c.l.b16 %v237
      %v325 = vunpack.c.l.b16 %v238
      %v326 = vunpack.c.l.b16 %v239
      %v327 = vunpack.c.l.b16 %v240
      %v328 = vunpack.c.l.b16 %v241
      %v329 = vunpack.c.l.b16 %v242
      %v330 = vunpack.c.l.b16 %v243
      %v331 = vunpack.c.l.b16 %v244
      %v332 = vunpack.c.l.b16 %v245
      %v333 = vunpack.c.l.b16 %v246
      %v334 = vunpack.c.l.b16 %v247
      %v335 = vunpack.c.l.b16 %v248
      %v336 = vunpack.c.l.b16 %v249
      %v337 = vunpack.c.l.b16 %v250
      %v338 = vunpack.c.l.b16 %v251
      %v339 = vunpack.c.l.b16 %v252
      %v340 = vunpack.c.l.b16 %v253
      %v341 = vunpack.c.l.b16 %v254
      %v342 = vunpack.c.l.b16 %v255
      %v343 = vunpack.c.l.b16 %v256
      %v344 = vunpack.c.l.b16 %v257
      %v345 = vunpack.c.l.b16 %v258
      %v346 = vunpack.c.l.b16 %v259
      %v347 = vunpack.c.l.b16 %v260
      %v348 = vunpack.c.l.b16 %v261
      %v349 = vunpack.c.l.b16 %v262
      %v350 = vunpack.c.l.b16 %v263
      %v351 = vunpack.c.l.b16 %v264
      %v352 = vunpack.c.l.b16 %v265
      %v353 = vunpack.c.l.b16 %v266
      %v354 = vunpack.c.l.b16 %v267
      %v355 = vunpack.c.l.b16 %v268
      %v356 = vunpack.c.l.b16 %v269
      %v357 = vpack.c.b16 %v322, %v321
      %v358 = vpack.c.b16 %v324, %v323
      %v359 = vpack.c.b16 %v326, %v325
      %v360 = vpack.c.b16 %v328, %v327
      %v361 = vpack.c.b16 %v330, %v329
      %v362 = vpack.c.b16 %v332, %v331
      %v363 = vpack.c.b16 %v334, %v333
      %v364 = vpack.c.b16 %v336, %v335
      %v365 = vpack.c.b16 %v338, %v337
      %v366 = vpack.c.b16 %v340, %v339
      %v367 = vpack.c.b16 %v342, %v341
      %v368 = vpack.c.b16 %v344, %v343
      %v369 = vpack.c.b16 %v346, %v345
      %v370 = vpack.c.b16 %v348, %v347
      %v371 = vpack.c.b16 %v350, %v349
      %v372 = vpack.c.b16 %v352, %v351
      %v373 = vpack.c.b16 %v354, %v353
      %v374 = vpack.c.b16 %v356, %v355
      %vm393 = vcmask 261120
      %v395 = vsel %vm393, %v282, 0
      %397 = vmatprep.subr.bf16.mxu0 0
      %398 = vmatpush1.bf16.msra.mxu0 %v357
      %399 = vmatprep.subr.bf16.mxu0 0
      %400 = vmatpush1.bf16.msra.mxu0 %v358
      %401 = vmatprep.subr.bf16.mxu0 0
      %402 = vmatpush1.bf16.msra.mxu0 %v359
      %403 = vmatprep.subr.bf16.mxu0 0
      %404 = vmatpush1.bf16.msra.mxu0 %v360
      %405 = vmatprep.subr.bf16.mxu0 0
      %406 = vmatpush1.bf16.msra.mxu0 %v361
      %407 = vmatprep.subr.bf16.mxu0 0
      %408 = vmatpush1.bf16.msra.mxu0 %v362
      %409 = vmatprep.subr.bf16.mxu0 0
      %410 = vmatpush1.bf16.msra.mxu0 %v363
      %411 = vmatprep.subr.bf16.mxu0 0
      %412 = vmatpush1.bf16.msra.mxu0 %v364
      %413 = vmatprep.subr.bf16.mxu0 0
      %414 = vmatpush1.bf16.msra.mxu0 %v365
      %415 = vmatprep.subr.bf16.mxu0 0
      %416 = vmatpush1.bf16.msra.mxu0 %v366
      %417 = vmatprep.subr.bf16.mxu0 0
      %418 = vmatpush1.bf16.msra.mxu0 %v367
      %419 = vmatprep.subr.bf16.mxu0 0
      %420 = vmatpush1.bf16.msra.mxu0 %v368
      %421 = vmatprep.subr.bf16.mxu0 0
      %422 = vmatpush1.bf16.msra.mxu0 %v369
      %423 = vmatprep.subr.bf16.mxu0 0
      %424 = vmatpush1.bf16.msra.mxu0 %v370
      %425 = vmatprep.subr.bf16.mxu0 0
      %426 = vmatpush1.bf16.msra.mxu0 %v371
      %427 = vmatprep.subr.bf16.mxu0 0
      %428 = vmatpush1.bf16.msra.mxu0 %v372
      %429 = vmatprep.mubr.bf16.mxu0 %v281
      %430 = vmatmul.mubr.bf16.gmra.mrb[0].mxu0 %v280
      %v431 = vpop.f32.mrb[0].mxu0
      %v432 = vadd.f32 0.0, %v431
      %v433 = vpop.f32.mrb[0].mxu0
      %v434 = vpop.f32.mrb[0].mxu0
      %v435 = vadd.f32 0.0, %v434
      %v436 = vpop.f32.mrb[0].mxu0
      %437 = vdwg.mxu0
      %438 = vmatprep.subr.bf16.mxu0 0
      %439 = vmatpush1.bf16.msra.mxu0 %v373
      %440 = vmatprep.subr.bf16.mxu0 0
      %441 = vmatpush1.bf16.msra.mxu0 %v374
      %442 = vmatprep.subr.bf16.mxu0 0
      %443 = vmatpush1.bf16.msra.mxu0 0
      %444 = vmatprep.subr.bf16.mxu0 0
      %445 = vmatpush1.bf16.msra.mxu0 0
      %446 = vmatprep.subr.bf16.mxu0 0
      %447 = vmatpush1.bf16.msra.mxu0 0
      %448 = vmatprep.subr.bf16.mxu0 0
      %449 = vmatpush1.bf16.msra.mxu0 0
      %450 = vmatprep.subr.bf16.mxu0 0
      %451 = vmatpush1.bf16.msra.mxu0 0
      %452 = vmatprep.subr.bf16.mxu0 0
      %453 = vmatpush1.bf16.msra.mxu0 0
      %454 = vmatprep.subr.bf16.mxu0 0
      %455 = vmatpush1.bf16.msra.mxu0 0
      %456 = vmatprep.subr.bf16.mxu0 0
      %457 = vmatpush1.bf16.msra.mxu0 0
      %458 = vmatprep.subr.bf16.mxu0 0
      %459 = vmatpush1.bf16.msra.mxu0 0
      %460 = vmatprep.subr.bf16.mxu0 0
      %461 = vmatpush1.bf16.msra.mxu0 0
      %462 = vmatprep.subr.bf16.mxu0 0
      %463 = vmatpush1.bf16.msra.mxu0 0
      %464 = vmatprep.subr.bf16.mxu0 0
      %465 = vmatpush1.bf16.msra.mxu0 0
      %466 = vmatprep.subr.bf16.mxu0 0
      %467 = vmatpush1.bf16.msra.mxu0 0
      %468 = vmatprep.subr.bf16.mxu0 0
      %469 = vmatpush1.bf16.msra.mxu0 0
      %470 = vmatprep.mubr.bf16.mxu0 0
      %471 = vmatmul.mubr.bf16.gmra.mrb[0].mxu0 %v395
      %v472 = vpop.f32.mrb[0].mxu0
      %v473 = vadd.f32 %v432, %v472
      %v474 = vpop.f32.mrb[0].mxu0
      %v475 = vpop.f32.mrb[0].mxu0
      %v476 = vadd.f32 %v435, %v475
      %v477 = vpop.f32.mrb[0].mxu0
      %478 = vdwg.mxu0
      %v479 = vadd.f32 %v228, %v473
      %v480 = vadd.f32 %v229, %v476
      %481 = vst [vmem:[#allocation2] sm:$0xff] %v479
      %482 = vst [vmem:[#allocation2 + $0x8] sm:$0xff] %v480
      // Predicated region
      $region37: #{generator_forward.17} parent=31 // pred_check
        %p483 = pneg %p222
      $region38: #{generator_forward.17} parent=31 // pred_check_branch
        %485 = sbr.rel (%p483) target = $region40
      $region39: #{generator_forward.17} parent=31 // pred_region
        %v486 = vld [vmem:[#allocation2] sm:$0xff]
        %v487 = vld [vmem:[#allocation2 + $0x8] sm:$0xff]
        %v488 = vld [vmem:[%s2] sm:$0x1]
        %v490 = vlaneseq
        %v491 = vshrl.u32 %v490, 7
        %v492 = vsub.s32 0, %v491
        %v493 = vrot.slane %v488, %v492
        %v495 = vadd.f32 %v486, %v493
        %v496 = vadd.f32 %v487, %v493
        %v497 = vadd.f32 %v495, %v496
        %v498 = vrot.slane %v497, 4
        %v499 = vadd.f32 %v497, %v498
        %v500 = vrot.slane %v499, 2
        %v501 = vadd.f32 %v499, %v500
        %v502 = vrot.slane %v501, 1
        %v503 = vadd.f32 %v501, %v502
        %v504 = vrcp.pop 16.0
        %v505 = vmul.f32 %v503, %v504
        %v506 = vsub.f32 %v495, %v505
        %v507 = vsub.f32 %v496, %v505
        %v508 = vmul.f32 %v506, %v506
        %v509 = vmul.f32 %v507, %v507
        %v510 = vadd.f32 %v508, %v509
        %v511 = vrot.slane %v510, 4
        %v512 = vadd.f32 %v510, %v511
        %v513 = vrot.slane %v512, 2
        %v514 = vadd.f32 %v512, %v513
        %v515 = vrot.slane %v514, 1
        %v516 = vadd.f32 %v514, %v515
        %v517 = vmul.f32 %v516, %v504
        %v518 = vadd.f32 %v517, 1e-05
        %v519 = vrsqrt.pop %v518
        %v520 = vmul.f32 %v506, %v519
        %v521 = vmul.f32 %v507, %v519
        %v522 = vmax.f32 %v520, 0.0
        %v523 = vmax.f32 %v521, 0.0
        %524 = vst [vmem:[%s220] sm:$0xff] %v522
        %525 = vst [vmem:[%s220 + $0x8] sm:$0xff] %v523
      $region40: #{generator_forward.17} parent=31 // pred_fallthru
        _
      %p526 = scmp.lt.s32.totalorder %s18, 1
      %s527 = scalar_select %p526, %s18, 1
      %s528 = smul.addr %s527, 2
      %s529 = smul.addr %s528, 8
      %s530 = scalar_lea.vmem %s3, %s529
      // Predicated region
      $region41: #{generator_forward.17} parent=31 // pred_check
        %p531 = pneg %p119
      $region42: #{generator_forward.17} parent=31 // pred_check_branch
        %533 = sbr.rel (%p531) target = $region44
      $region43: #{generator_forward.17} parent=31 // pred_region
        _
      $region44: #{generator_forward.17} parent=31 // pred_fallthru
        _
    $region32: #{generator_forward.17} parent=5 // pred_fallthru
      _
    %p534 = scmp.le.s32.totalorder 2, %s9
    // Predicated region
    $region45: #{generator_forward.17} parent=5 // pred_check
      %p535 = pneg %p534
    $region46: #{generator_forward.17} parent=5 // pred_check_branch
      %537 = sbr.rel (%p535) target = $region48
    $region47: #{generator_forward.17} parent=5 // pred_region
      %s538 = ssub.s32 %s9, 2
      // Predicated region
      $region49: #{generator_forward.17} parent=47 // pred_check
        %p539 = pneg %p125
      $region50: #{generator_forward.17} parent=47 // pred_check_branch
        %541 = sbr.rel (%p539) target = $region52
      $region51: #{generator_forward.17} parent=47 // pred_region
        %p542 = scmp.lt.s32.totalorder %s20, 1
        %s543 = scalar_select %p542, %s20, 1
        %s544 = smul.addr %s543, 2
        %s545 = smul.addr %s544, 8
        %s546 = scalar_lea.vmem %s3, %s545
      $region52: #{generator_forward.17} parent=47 // pred_fallthru
        _
    $region48: #{generator_forward.17} parent=5 // pred_fallthru
      _
  $region6: #{generator_forward.17} parent=0 // loop_footer
    %s13 = sadd.s32 1, %s9
  $region7: #{generator_forward.17} parent=0 // loop_footer_branch
    %8 = sbr.rel target = $region3
  $region8: #{generator_forward.17} parent=0 // loop_exit
    _

// kernel: generator_forward.25
$region0: #{generator_forward.25}
  #allocation0 [shape = 'u32[]', space=smem, size = 0x4, offset = 0x4, fixed_abs, tag = 'smem constant byte address 0x4 - core index']
  #allocation1 [shape = 'u32[144,128]{1,0:T(1,128)}', space=vmem, size = 0x12000, scoped, tag = 'internal scratch']
  #allocation2 [shape = 'f32[64,128]{1,0:T(8,128)}', space=vmem, size = 0x8000, scoped, tag = 'scratch operand']
  %s0 = inlined_call_operand.vmem [shape: bf16[2,64,288], index: 0, kind: input, shape index: {}]
  %s1 = inlined_call_operand.vmem [shape: bf16[288,128], index: 1, kind: input, shape index: {}]
  %s2 = inlined_call_operand.vmem [shape: f32[1,128], index: 2, kind: input, shape index: {}]
  %s3 = inlined_call_operand.vmem [shape: f32[2,64,128], index: 3, kind: output, shape index: {}]
  %s4 = sld [smem:[#allocation0]]
  $region53: #{generator_forward.25} parent=0
    _
  %s6 = ssub.s32 1, %s4
  %s7 = scalar_select 0, %s6, %s4
  loop: start=0, step=1, limit=4
  $region2: #{generator_forward.25} parent=0 // loop_pre_header
    _
  $region3: #{generator_forward.25} parent=0 // loop_header
    %s9 = sphi 0, %s13
    %p10 = scmp.ge.s32.totalorder %s9, 4
    %s16 = sphi 0, %s28
    %s17 = sphi 0, %s24
    %s18 = sphi 0, %s16
    %s19 = sphi 0, %s17
    %s20 = sphi 0, %s18
    %s21 = sphi 0, %s19
    %s33 = sphi 0, %s35
    %s36 = sphi 0, %s33
    %s37 = sphi 0, %s36
    %s53 = sphi 0, %s37
    %s59 = sphi 0, %s61
    %s62 = sphi 0, %s59
    %s63 = sphi 0, %s62
    %s79 = sphi 0, %s63
    %s83 = sphi 0, %s83
    %s85 = sphi 0, %s83
    %s86 = sphi 0, %s85
    %s100 = sphi 0, %s86
    %s106 = sphi 0, %s108
    %s109 = sphi 0, %s106
    %s110 = sphi 0, %s109
    %s126 = sphi 0, %s110
  $region4: #{generator_forward.25} parent=0 // loop_header_branch
    %12 = sbr.rel (%p10) target = $region8
  $region5: #{generator_forward.25} parent=0 // loop_body
    %s14 = ssub.s32 %s9, 1
    %s15 = ssub.s32 %s9, 2
    %s22 = sadd.s32 1, %s17
    %p23 = scmp.ge.s32.totalorder %s22, 1
    %s24 = scalar_select %p23, 0, %s22
    %s25 = sadd.s32 1, %s16
    %s26 = scalar_select %p23, %s25, %s16
    %p27 = scmp.ge.s32.totalorder %s26, 2
    %s28 = scalar_select %p27, 0, %s26
    %s29 = ssub.s32 %s16, %s28
    %s30 = ssub.s32 %s17, %s24
    %s31 = sor.u32 %s29, %s30
    %p32 = scmp.eq.s32.totalorder %s31, 0
    %s34 = sadd.s32 %s33, 1
    %s35 = scalar_select %p32, %s33, %s34
    %p38 = pneg %p32
    %p39 = scmp.eq.s32.totalorder %s9, 1
    %p40 = por %p38, %p39
    %p41 = scmp.ne.s32.totalorder %s33, %s36
    %p42 = scmp.eq.s32.totalorder %s9, 0
    %p43 = por %p41, %p42
    %p44 = scmp.ne.s32.totalorder %s33, %s36
    %p45 = scmp.eq.s32.totalorder %s14, 1
    %p46 = por %p44, %p45
    %p47 = scmp.ne.s32.totalorder %s36, %s37
    %p48 = scmp.eq.s32.totalorder %s14, 0
    %p49 = por %p47, %p48
    %p50 = scmp.ne.s32.totalorder %s36, %s37
    %p51 = scmp.eq.s32.totalorder %s15, 1
    %p52 = por %p50, %p51
    %p54 = scmp.ne.s32.totalorder %s37, %s53
    %p55 = scmp.eq.s32.totalorder %s15, 0
    %p56 = por %p54, %p55
    %s57 = ssub.s32 %s17, %s24
    %p58 = scmp.eq.s32.totalorder %s57, 0
    %s60 = sadd.s32 %s59, 1
    %s61 = scalar_select %p58, %s59, %s60
    %p64 = pneg %p58
    %p65 = scmp.eq.s32.totalorder %s9, 1
    %p66 = por %p64, %p65
    %p67 = scmp.ne.s32.totalorder %s59, %s62
    %p68 = scmp.eq.s32.totalorder %s9, 0
    %p69 = por %p67, %p68
    %p70 = scmp.ne.s32.totalorder %s59, %s62
    %p71 = scmp.eq.s32.totalorder %s14, 1
    %p72 = por %p70, %p71
    %p73 = scmp.ne.s32.totalorder %s62, %s63
    %p74 = scmp.eq.s32.totalorder %s14, 0
    %p75 = por %p73, %p74
    %p76 = scmp.ne.s32.totalorder %s62, %s63
    %p77 = scmp.eq.s32.totalorder %s15, 1
    %p78 = por %p76, %p77
    %p80 = scmp.ne.s32.totalorder %s63, %s79
    %p81 = scmp.eq.s32.totalorder %s15, 0
    %p82 = por %p80, %p81
    %s84 = sadd.s32 %s83, 1
    %p87 = scmp.eq.s32.totalorder %s9, 1
    %p88 = scmp.ne.s32.totalorder %s83, %s85
    %p89 = scmp.eq.s32.totalorder %s9, 0
    %p90 = por %p88, %p89
    %p91 = scmp.ne.s32.totalorder %s83, %s85
    %p92 = scmp.eq.s32.totalorder %s14, 1
    %p93 = por %p91, %p92
    %p94 = scmp.ne.s32.totalorder %s85, %s86
    %p95 = scmp.eq.s32.totalorder %s14, 0
    %p96 = por %p94, %p95
    %p97 = scmp.ne.s32.totalorder %s85, %s86
    %p98 = scmp.eq.s32.totalorder %s15, 1
    %p99 = por %p97, %p98
    %p101 = scmp.ne.s32.totalorder %s86, %s100
    %p102 = scmp.eq.s32.totalorder %s15, 0
    %p103 = por %p101, %p102
    %s104 = ssub.s32 %s16, %s28
    %p105 = scmp.eq.s32.totalorder %s104, 0
    %s107 = sadd.s32 %s106, 1
    %s108 = scalar_select %p105, %s106, %s107
    %p111 = pneg %p105
    %p112 = scmp.eq.s32.totalorder %s9, 1
    %p113 = por %p111, %p112
    %p114 = scmp.ne.s32.totalorder %s106, %s109
    %p115 = scmp.eq.s32.totalorder %s9, 0
    %p116 = por %p114, %p115
    %p117 = scmp.ne.s32.totalorder %s106, %s109
    %p118 = scmp.eq.s32.totalorder %s14, 1
    %p119 = por %p117, %p118
    %p120 = scmp.ne.s32.totalorder %s109, %s110
    %p121 = scmp.eq.s32.totalorder %s14, 0
    %p122 = por %p120, %p121
    %p123 = scmp.ne.s32.totalorder %s109, %s110
    %p124 = scmp.eq.s32.totalorder %s15, 1
    %p125 = por %p123, %p124
    %p127 = scmp.ne.s32.totalorder %s110, %s126
    %p128 = scmp.eq.s32.totalorder %s15, 0
    %p129 = por %p127, %p128
    %p130 = scmp.le.s32.totalorder 1, %s9
    %p131 = scmp.lt.s32.totalorder %s9, 3
    %p132 = pnand %p130, %p131
    %p133 = pneg %p132
    // Predicated region
    $region9: #{generator_forward.25} parent=5 // pred_check
      _
    $region10: #{generator_forward.25} parent=5 // pred_check_branch
      %135 = sbr.rel (%p132) target = $region12
    $region11: #{generator_forward.25} parent=5 // pred_region
      %s136 = ssub.s32 %s9, 1
      // Predicated region
      $region13: #{generator_forward.25} parent=11 // pred_check
        %p137 = pneg %p75
      $region14: #{generator_forward.25} parent=11 // pred_check_branch
        %139 = sbr.rel (%p137) target = $region16
      $region15: #{generator_forward.25} parent=11 // pred_region
        %s140 = smul.u32 36, %s19
        %p141 = scmp.lt.s32.totalorder %s140, 35
        %s142 = scalar_select %p141, %s140, 35
        %s143 = smul.addr %s142, 4
        %s144 = scalar_lea.vmem %s1, %s143
        %s145 = smul.u32 36, %s19
      $region16: #{generator_forward.25} parent=11 // pred_fallthru
        _
      // Predicated region
      $region17: #{generator_forward.25} parent=11 // pred_check
        %p146 = pneg %p96
      $region18: #{generator_forward.25} parent=11 // pred_check_branch
        %148 = sbr.rel (%p146) target = $region20
      $region19: #{generator_forward.25} parent=11 // pred_region
        _
      $region20: #{generator_forward.25} parent=11 // pred_fallthru
        _
    $region12: #{generator_forward.25} parent=5 // pred_fallthru
      _
    %p149 = scmp.lt.s32.totalorder %s9, 2
    // Predicated region
    $region21: #{generator_forward.25} parent=5 // pred_check
      %p150 = pneg %p149
    $region22: #{generator_forward.25} parent=5 // pred_check_branch
      %152 = sbr.rel (%p150) target = $region24
    $region23: #{generator_forward.25} parent=5 // pred_region
      // Predicated region
      $region25: #{generator_forward.25} parent=23 // pred_check
        %p153 = pneg %p43
      $region26: #{generator_forward.25} parent=23 // pred_check_branch
        %155 = sbr.rel (%p153) target = $region28
      $region27: #{generator_forward.25} parent=23 // pred_region
        %s156 = smul.u32 3, %s17
        %p157 = scmp.lt.s32.totalorder %s16, 1
        %s158 = scalar_select %p157, %s16, 1
        %p159 = scmp.lt.s32.totalorder %s156, 2
        %s160 = scalar_select %p159, %s156, 2
        %s161 = smul.addr %s158, 24
        %s162 = sadd.s32 %s160, %s161
        %s163 = smul.addr %s162, 4
        %s164 = scalar_lea.vmem %s0, %s163
        %s165 = smul.u32 3, %s17
      $region28: #{generator_forward.25} parent=23 // pred_fallthru
        _
    $region24: #{generator_forward.25} parent=5 // pred_fallthru
      _
    %p166 = scmp.le.s32.totalorder 1, %s9
    %p167 = scmp.lt.s32.totalorder %s9, 3
    %p168 = pnand %p166, %p167
    %p169 = pneg %p168
    // Predicated region
    $region29: #{generator_forward.25} parent=5 // pred_check
      _
    $region30: #{generator_forward.25} parent=5 // pred_check_branch
      %171 = sbr.rel (%p168) target = $region32
    $region31: #{generator_forward.25} parent=5 // pred_region
      %s172 = ssub.s32 %s9, 1
      %s173 = smul.u32 3, %s19
      %p174 = scmp.lt.s32.totalorder %s18, 1
      %s175 = scalar_select %p174, %s18, 1
      %p176 = scmp.lt.s32.totalorder %s173, 2
      %s177 = scalar_select %p176, %s173, 2
      %s178 = smul.addr %s175, 24
      %s179 = sadd.s32 %s177, %s178
      %s180 = smul.addr %s179, 4
      %s181 = scalar_lea.vmem %s0, %s180
      %p182 = pneg %p49
      %p183 = pneg %p46
      %s184 = smul.u32 36, %s19
      %p185 = scmp.lt.s32.totalorder %s184, 35
      %s186 = scalar_select %p185, %s184, 35
      %s187 = smul.addr %s186, 4
      %s188 = scalar_lea.vmem %s1, %s187
      %p189 = pneg %p75
      %p190 = pneg %p72
      %p191 = pneg %p96
      %p192 = pneg %p93
      %p193 = pneg %p122
      %p194 = pneg %p119
      %p195 = scmp.lt.s32.totalorder %s18, 1
      %s196 = scalar_select %p195, %s18, 1
      %s197 = smul.addr %s196, 8
      %s198 = smul.addr %s197, 8
      %s199 = scalar_lea.vmem %s3, %s198
      %s200 = smul.u32 3, %s19
      %p201 = scmp.lt.s32.totalorder %s18, 1
      %s202 = scalar_select %p201, %s18, 1
      %p203 = scmp.lt.s32.totalorder %s200, 2
      %s204 = scalar_select %p203, %s200, 2
      %s205 = smul.addr %s202, 24
      %s206 = sadd.s32 %s204, %s205
      %s207 = smul.addr %s206, 4
      %s208 = scalar_lea.vmem %s0, %s207
      %s209 = smul.u32 3, %s19
      %s210 = smul.u32 36, %s19
      %p211 = scmp.lt.s32.totalorder %s210, 35
      %s212 = scalar_select %p211, %s210, 35
      %s213 = smul.addr %s212, 4
      %s214 = scalar_lea.vmem %s1, %s213
      %s215 = smul.u32 36, %s19
      %p216 = scmp.lt.s32.totalorder %s18, 1
      %s217 = scalar_select %p216, %s18, 1
      %s218 = smul.addr %s217, 8
      %s219 = smul.addr %s218, 8
      %s220 = scalar_lea.vmem %s3, %s219
      %p222 = scmp.eq.s32.totalorder %s19, 0
      // Predicated region
      $region33: #{generator_forward.25} parent=31 // pred_check
        %p223 = pneg %p222
      $region34: #{generator_forward.25} parent=31 // pred_check_branch
        %225 = sbr.rel (%p223) target = $region36
      $region35: #{generator_forward.25} parent=31 // pred_region
        %226 = vst [vmem:[#allocation2] sm:$0xff] 0.0
        %227 = vst [vmem:[#allocation2 + $0x8] sm:$0xff] 0.0
        %228 = vst [vmem:[#allocation2 + $0x10] sm:$0xff] 0.0
        %229 = vst [vmem:[#allocation2 + $0x18] sm:$0xff] 0.0
        %230 = vst [vmem:[#allocation2 + $0x20] sm:$0xff] 0.0
        %231 = vst [vmem:[#allocation2 + $0x28] sm:$0xff] 0.0
        %232 = vst [vmem:[#allocation2 + $0x30] sm:$0xff] 0.0
        %233 = vst [vmem:[#allocation2 + $0x38] sm:$0xff] 0.0
      $region36: #{generator_forward.25} parent=31 // pred_fallthru
        _
      %v234 = vld [vmem:[#allocation2] sm:$0xff]
      %v235 = vld [vmem:[#allocation2 + $0x8] sm:$0xff]
      %v236 = vld [vmem:[#allocation2 + $0x10] sm:$0xff]
      %v237 = vld [vmem:[#allocation2 + $0x18] sm:$0xff]
      %v238 = vld [vmem:[#allocation2 + $0x20] sm:$0xff]
      %v239 = vld [vmem:[#allocation2 + $0x28] sm:$0xff]
      %v240 = vld [vmem:[#allocation2 + $0x30] sm:$0xff]
      %v241 = vld [vmem:[#allocation2 + $0x38] sm:$0xff]
      %v242 = vld [vmem:[%s208] sm:$0xff]
      %v243 = vld [vmem:[%s208 + $0x8] sm:$0xf]
      %v244 = vld [vmem:[%s208 + $0xc] sm:$0xff]
      %v245 = vld [vmem:[%s208 + $0x14] sm:$0xf]
      %v246 = vld [vmem:[%s208 + $0x18] sm:$0xff]
      %v247 = vld [vmem:[%s208 + $0x20] sm:$0xf]
      %v248 = vld [vmem:[%s208 + $0x24] sm:$0xff]
      %v249 = vld [vmem:[%s208 + $0x2c] sm:$0xf]
      %v250 = vld [vmem:[%s208 + $0x30] sm:$0xff]
      %v251 = vld [vmem:[%s208 + $0x38] sm:$0xf]
      %v252 = vld [vmem:[%s208 + $0x3c] sm:$0xff]
      %v253 = vld [vmem:[%s208 + $0x44] sm:$0xf]
      %v254 = vld [vmem:[%s208 + $0x48] sm:$0xff]
      %v255 = vld [vmem:[%s208 + $0x50] sm:$0xf]
      %v256 = vld [vmem:[%s208 + $0x54] sm:$0xff]
      %v257 = vld [vmem:[%s208 + $0x5c] sm:$0xf]
      %v258 = vld [vmem:[%s214] sm:$0xf]
      %v259 = vld [vmem:[%s214 + $0x4] sm:$0xf]
      %v260 = vld [vmem:[%s214 + $0x8] sm:$0xf]
      %v261 = vld [vmem:[%s214 + $0xc] sm:$0xf]
      %v262 = vld [vmem:[%s214 + $0x10] sm:$0xf]
      %v263 = vld [vmem:[%s214 + $0x14] sm:$0xf]
      %v264 = vld [vmem:[%s214 + $0x18] sm:$0xf]
      %v265 = vld [vmem:[%s214 + $0x1c] sm:$0xf]
      %v266 = vld [vmem:[%s214 + $0x20] sm:$0xf]
      %v267 = vld [vmem:[%s214 + $0x24] sm:$0xf]
      %v268 = vld [vmem:[%s214 + $0x28] sm:$0xf]
      %v269 = vld [vmem:[%s214 + $0x2c] sm:$0xf]
      %v270 = vld [vmem:[%s214 + $0x30] sm:$0xf]
      %v271 = vld [vmem:[%s214 + $0x34] sm:$0xf]
      %v272 = vld [vmem:[%s214 + $0x38] sm:$0xf]
      %v273 = vld [vmem:[%s214 + $0x3c] sm:$0xf]
      %v274 = vld [vmem:[%s214 + $0x40] sm:$0xf]
      %v275 = vld [vmem:[%s214 + $0x44] sm:$0xf]
      %v276 = vld [vmem:[%s214 + $0x48] sm:$0xf]
      %v277 = vld [vmem:[%s214 + $0x4c] sm:$0xf]
      %v278 = vld [vmem:[%s214 + $0x50] sm:$0xf]
      %v279 = vld [vmem:[%s214 + $0x54] sm:$0xf]
      %v280 = vld [vmem:[%s214 + $0x58] sm:$0xf]
      %v281 = vld [vmem:[%s214 + $0x5c] sm:$0xf]
      %v282 = vld [vmem:[%s214 + $0x60] sm:$0xf]
      %v283 = vld [vmem:[%s214 + $0x64] sm:$0xf]
      %v284 = vld [vmem:[%s214 + $0x68] sm:$0xf]
      %v285 = vld [vmem:[%s214 + $0x6c] sm:$0xf]
      %v286 = vld [vmem:[%s214 + $0x70] sm:$0xf]
      %v287 = vld [vmem:[%s214 + $0x74] sm:$0xf]
      %v288 = vld [vmem:[%s214 + $0x78] sm:$0xf]
      %v289 = vld [vmem:[%s214 + $0x7c] sm:$0xf]
      %v290 = vld [vmem:[%s214 + $0x80] sm:$0xf]
      %v291 = vld [vmem:[%s214 + $0x84] sm:$0xf]
      %v292 = vld [vmem:[%s214 + $0x88] sm:$0xf]
      %v293 = vld [vmem:[%s214 + $0x8c] sm:$0xf]
      %v310 = vunpack.c.l.b16 %v242
      %v311 = vunpack.c.h.b16 %v242
      %v312 = vunpack.c.l.b16 %v243
      %v313 = vunpack.c.l.b16 %v244
      %v314 = vunpack.c.h.b16 %v244
      %v315 = vunpack.c.l.b16 %v245
      %v316 = vunpack.c.l.b16 %v246
      %v317 = vunpack.c.h.b16 %v246
      %v318 = vunpack.c.l.b16 %v247
      %v319 = vunpack.c.l.b16 %v248
      %v320 = vunpack.c.h.b16 %v248
      %v321 = vunpack.c.l.b16 %v249
      %v322 = vunpack.c.l.b16 %v250
      %v323 = vunpack.c.h.b16 %v250
      %v324 = vunpack.c.l.b16 %v251
      %v325 = vunpack.c.l.b16 %v252
      %v326 = vunpack.c.h.b16 %v252
      %v327 = vunpack.c.l.b16 %v253
      %v328 = vunpack.c.l.b16 %v254
      %v329 = vunpack.c.h.b16 %v254
      %v330 = vunpack.c.l.b16 %v255
      %v331 = vunpack.c.l.b16 %v256
      %v332 = vunpack.c.h.b16 %v256
      %v333 = vunpack.c.l.b16 %v257
      %v334 = vpack.c.b16 %v313, %v310
      %v335 = vpack.c.b16 %v314, %v311
      %v336 = vpack.c.b16 %v315, %v312
      %v337 = vpack.c.b16 %v319, %v316
      %v338 = vpack.c.b16 %v320, %v317
      %v339 = vpack.c.b16 %v321, %v318
      %v340 = vpack.c.b16 %v325, %v322
      %v341 = vpack.c.b16 %v326, %v323
      %v342 = vpack.c.b16 %v327, %v324
      %v343 = vpack.c.b16 %v331, %v328
      %v344 = vpack.c.b16 %v332, %v329
      %v345 = vpack.c.b16 %v333, %v330
      %v390 = vunpack.c.l.b16 %v258
      %v391 = vunpack.c.l.b16 %v259
      %v392 = vunpack.c.l.b16 %v260
      %v393 = vunpack.c.l.b16 %v261
      %v394 = vunpack.c.l.b16 %v262
      %v395 = vunpack.c.l.b16 %v263
      %v396 = vunpack.c.l.b16 %v264
      %v397 = vunpack.c.l.b16 %v265
      %v398 = vunpack.c.l.b16 %v266
      %v399 = vunpack.c.l.b16 %v267
      %v400 = vunpack.c.l.b16 %v268
      %v401 = vunpack.c.l.b16 %v269
      %v402 = vunpack.c.l.b16 %v270
      %v403 = vunpack.c.l.b16 %v271
      %v404 = vunpack.c.l.b16 %v272
      %v405 = vunpack.c.l.b16 %v273
      %v406 = vunpack.c.l.b16 %v274
      %v407 = vunpack.c.l.b16 %v275
      %v408 = vunpack.c.l.b16 %v276
      %v409 = vunpack.c.l.b16 %v277
      %v410 = vunpack.c.l.b16 %v278
      %v411 = vunpack.c.l.b16 %v279
      %v412 = vunpack.c.l.b16 %v280
      %v413 = vunpack.c.l.b16 %v281
      %v414 = vunpack.c.l.b16 %v282
      %v415 = vunpack.c.l.b16 %v283
      %v416 = vunpack.c.l.b16 %v284
      %v417 = vunpack.c.l.b16 %v285
      %v418 = vunpack.c.l.b16 %v286
      %v419 = vunpack.c.l.b16 %v287
      %v420 = vunpack.c.l.b16 %v288
      %v421 = vunpack.c.l.b16 %v289
      %v422 = vunpack.c.l.b16 %v290
      %v423 = vunpack.c.l.b16 %v291
      %v424 = vunpack.c.l.b16 %v292
      %v425 = vunpack.c.l.b16 %v293
      %v426 = vpack.c.b16 %v391, %v390
      %v427 = vpack.c.b16 %v393, %v392
      %v428 = vpack.c.b16 %v395, %v394
      %v429 = vpack.c.b16 %v397, %v396
      %v430 = vpack.c.b16 %v399, %v398
      %v431 = vpack.c.b16 %v401, %v400
      %v432 = vpack.c.b16 %v403, %v402
      %v433 = vpack.c.b16 %v405, %v404
      %v434 = vpack.c.b16 %v407, %v406
      %v435 = vpack.c.b16 %v409, %v408
      %v436 = vpack.c.b16 %v411, %v410
      %v437 = vpack.c.b16 %v413, %v412
      %v438 = vpack.c.b16 %v415, %v414
      %v439 = vpack.c.b16 %v417, %v416
      %v440 = vpack.c.b16 %v419, %v418
      %v441 = vpack.c.b16 %v421, %v420
      %v442 = vpack.c.b16 %v423, %v422
      %v443 = vpack.c.b16 %v425, %v424
      %vm462 = vcmask 261120
      %v464 = vsel %vm462, %v336, 0
      %v467 = vsel %vm462, %v339, 0
      %v470 = vsel %vm462, %v342, 0
      %v473 = vsel %vm462, %v345, 0
      %475 = vmatprep.subr.bf16.mxu0 0
      %476 = vmatpush1.bf16.msra.mxu0 %v426
      %477 = vmatprep.subr.bf16.mxu0 0
      %478 = vmatpush1.bf16.msra.mxu0 %v427
      %479 = vmatprep.subr.bf16.mxu0 0
      %480 = vmatpush1.bf16.msra.mxu0 %v428
      %481 = vmatprep.subr.bf16.mxu0 0
      %482 = vmatpush1.bf16.msra.mxu0 %v429
      %483 = vmatprep.subr.bf16.mxu0 0
      %484 = vmatpush1.bf16.msra.mxu0 %v430
      %485 = vmatprep.subr.bf16.mxu0 0
      %486 = vmatpush1.bf16.msra.mxu0 %v431
      %487 = vmatprep.subr.bf16.mxu0 0
      %488 = vmatpush1.bf16.msra.mxu0 %v432
      %489 = vmatprep.subr.bf16.mxu0 0
      %490 = vmatpush1.bf16.msra.mxu0 %v433
      %491 = vmatprep.subr.bf16.mxu0 0
      %492 = vmatpush1.bf16.msra.mxu0 %v434
      %493 = vmatprep.subr.bf16.mxu0 0
      %494 = vmatpush1.bf16.msra.mxu0 %v435
      %495 = vmatprep.subr.bf16.mxu0 0
      %496 = vmatpush1.bf16.msra.mxu0 %v436
      %497 = vmatprep.subr.bf16.mxu0 0
      %498 = vmatpush1.bf16.msra.mxu0 %v437
      %499 = vmatprep.subr.bf16.mxu0 0
      %500 = vmatpush1.bf16.msra.mxu0 %v438
      %501 = vmatprep.subr.bf16.mxu0 0
      %502 = vmatpush1.bf16.msra.mxu0 %v439
      %503 = vmatprep.subr.bf16.mxu0 0
      %504 = vmatpush1.bf16.msra.mxu0 %v440
      %505 = vmatprep.subr.bf16.mxu0 0
      %506 = vmatpush1.bf16.msra.mxu0 %v441
      %507 = vmatprep.mubr.bf16.mxu0 %v335
      %508 = vmatmul.mubr.bf16.gmra.mrb[0].mxu0 %v334
      %v509 = vpop.f32.mrb[0].mxu0
      %v510 = vadd.f32 0.0, %v509
      %v511 = vpop.f32.mrb[0].mxu0
      %v512 = vpop.f32.mrb[0].mxu0
      %v513 = vadd.f32 0.0, %v512
      %v514 = vpop.f32.mrb[0].mxu0
      %515 = vmatprep.mubr.bf16.mxu0 %v338
      %516 = vmatmul.mubr.bf16.gmra.mrb[0].mxu0 %v337
      %v517 = vpop.f32.mrb[0].mxu0
      %v518 = vadd.f32 0.0, %v517
      %v519 = vpop.f32.mrb[0].mxu0
      %v520 = vpop.f32.mrb[0].mxu0
      %v521 = vadd.f32 0.0, %v520
      %v522 = vpop.f32.mrb[0].mxu0
      %523 = vmatprep.mubr.bf16.mxu0 %v341
      %524 = vmatmul.mubr.bf16.gmra.mrb[0].mxu0 %v340
      %v525 = vpop.f32.mrb[0].mxu0
      %v526 = vadd.f32 0.0, %v525
      %v527 = vpop.f32.mrb[0].mxu0
      %v528 = vpop.f32.mrb[0].mxu0
      %v529 = vadd.f32 0.0, %v528
      %v530 = vpop.f32.mrb[0].mxu0
      %531 = vmatprep.mubr.bf16.mxu0 %v344
      %532 = vmatmul.mubr.bf16.gmra.mrb[0].mxu0 %v343
      %v533 = vpop.f32.mrb[0].mxu0
      %v534 = vadd.f32 0.0, %v533
      %v535 = vpop.f32.mrb[0].mxu0
      %v536 = vpop.f32.mrb[0].mxu0
      %v537 = vadd.f32 0.0, %v536
      %v538 = vpop.f32.mrb[0].mxu0
      %539 = vdwg.mxu0
      %540 = vmatprep.subr.bf16.mxu0 0
      %541 = vmatpush1.bf16.msra.mxu0 %v442
      %542 = vmatprep.subr.bf16.mxu0 0
      %543 = vmatpush1.bf16.msra.mxu0 %v443
      %544 = vmatprep.subr.bf16.mxu0 0
      %545 = vmatpush1.bf16.msra.mxu0 0
      %546 = vmatprep.subr.bf16.mxu0 0
      %547 = vmatpush1.bf16.msra.mxu0 0
      %548 = vmatprep.subr.bf16.mxu0 0
      %549 = vmatpush1.bf16.msra.mxu0 0
      %550 = vmatprep.subr.bf16.mxu0 0
      %551 = vmatpush1.bf16.msra.mxu0 0
      %552 = vmatprep.subr.bf16.mxu0 0
      %553 = vmatpush1.bf16.msra.mxu0 0
      %554 = vmatprep.subr.bf16.mxu0 0
      %555 = vmatpush1.bf16.msra.mxu0 0
      %556 = vmatprep.subr.bf16.mxu0 0
      %557 = vmatpush1.bf16.msra.mxu0 0
      %558 = vmatprep.subr.bf16.mxu0 0
      %559 = vmatpush1.bf16.msra.mxu0 0
      %560 = vmatprep.subr.bf16.mxu0 0
      %561 = vmatpush1.bf16.msra.mxu0 0
      %562 = vmatprep.subr.bf16.mxu0 0
      %563 = vmatpush1.bf16.msra.mxu0 0
      %564 = vmatprep.subr.bf16.mxu0 0
      %565 = vmatpush1.bf16.msra.mxu0 0
      %566 = vmatprep.subr.bf16.mxu0 0
      %567 = vmatpush1.bf16.msra.mxu0 0
      %568 = vmatprep.subr.bf16.mxu0 0
      %569 = vmatpush1.bf16.msra.mxu0 0
      %570 = vmatprep.subr.bf16.mxu0 0
      %571 = vmatpush1.bf16.msra.mxu0 0
      %572 = vmatprep.mubr.bf16.mxu0 0
      %573 = vmatmul.mubr.bf16.gmra.mrb[0].mxu0 %v464
      %v574 = vpop.f32.mrb[0].mxu0
      %v575 = vadd.f32 %v510, %v574
      %v576 = vpop.f32.mrb[0].mxu0
      %v577 = vpop.f32.mrb[0].mxu0
      %v578 = vadd.f32 %v513, %v577
      %v579 = vpop.f32.mrb[0].mxu0
      %580 = vmatprep.mubr.bf16.mxu0 0
      %581 = vmatmul.mubr.bf16.gmra.mrb[0].mxu0 %v467
      %v582 = vpop.f32.mrb[0].mxu0
      %v583 = vadd.f32 %v518, %v582
      %v584 = vpop.f32.mrb[0].mxu0
      %v585 = vpop.f32.mrb[0].mxu0
      %v586 = vadd.f32 %v521, %v585
      %v587 = vpop.f32.mrb[0].mxu0
      %588 = vmatprep.mubr.bf16.mxu0 0
      %589 = vmatmul.mubr.bf16.gmra.mrb[0].mxu0 %v470
      %v590 = vpop.f32.mrb[0].mxu0
      %v591 = vadd.f32 %v526, %v590
      %v592 = vpop.f32.mrb[0].mxu0
      %v593 = vpop.f32.mrb[0].mxu0
      %v594 = vadd.f32 %v529, %v593
      %v595 = vpop.f32.mrb[0].mxu0
      %596 = vmatprep.mubr.bf16.mxu0 0
      %597 = vmatmul.mubr.bf16.gmra.mrb[0].mxu0 %v473
      %v598 = vpop.f32.mrb[0].mxu0
      %v599 = vadd.f32 %v534, %v598
      %v600 = vpop.f32.mrb[0].mxu0
      %v601 = vpop.f32.mrb[0].mxu0
      %v602 = vadd.f32 %v537, %v601
      %v603 = vpop.f32.mrb[0].mxu0
      %604 = vdwg.mxu0
      %v605 = vadd.f32 %v234, %v575
      %v606 = vadd.f32 %v235, %v578
      %v607 = vadd.f32 %v236, %v583
      %v608 = vadd.f32 %v237, %v586
      %v609 = vadd.f32 %v238, %v591
      %v610 = vadd.f32 %v239, %v594
      %v611 = vadd.f32 %v240, %v599
      %v612 = vadd.f32 %v241, %v602
      %613 = vst [vmem:[#allocation2] sm:$0xff] %v605
      %614 = vst [vmem:[#allocation2 + $0x8] sm:$0xff] %v606
      %615 = vst [vmem:[#allocation2 + $0x10] sm:$0xff] %v607
      %616 = vst [vmem:[#allocation2 + $0x18] sm:$0xff] %v608
      %617 = vst [vmem:[#allocation2 + $0x20] sm:$0xff] %v609
      %618 = vst [vmem:[#allocation2 + $0x28] sm:$0xff] %v610
      %619 = vst [vmem:[#allocation2 + $0x30] sm:$0xff] %v611
      %620 = vst [vmem:[#allocation2 + $0x38] sm:$0xff] %v612
      // Predicated region
      $region37: #{generator_forward.25} parent=31 // pred_check
        %p621 = pneg %p222
      $region38: #{generator_forward.25} parent=31 // pred_check_branch
        %623 = sbr.rel (%p621) target = $region40
      $region39: #{generator_forward.25} parent=31 // pred_region
        %v624 = vld [vmem:[#allocation2] sm:$0xff]
        %v625 = vld [vmem:[#allocation2 + $0x8] sm:$0xff]
        %v626 = vld [vmem:[#allocation2 + $0x10] sm:$0xff]
        %v627 = vld [vmem:[#allocation2 + $0x18] sm:$0xff]
        %v628 = vld [vmem:[#allocation2 + $0x20] sm:$0xff]
        %v629 = vld [vmem:[#allocation2 + $0x28] sm:$0xff]
        %v630 = vld [vmem:[#allocation2 + $0x30] sm:$0xff]
        %v631 = vld [vmem:[#allocation2 + $0x38] sm:$0xff]
        %v632 = vld [vmem:[%s2] sm:$0x1]
        %v634 = vlaneseq
        %v635 = vshrl.u32 %v634, 7
        %v636 = vsub.s32 0, %v635
        %v637 = vrot.slane %v632, %v636
        %v639 = vadd.f32 %v624, %v637
        %v640 = vadd.f32 %v625, %v637
        %v641 = vadd.f32 %v626, %v637
        %v642 = vadd.f32 %v627, %v637
        %v643 = vadd.f32 %v628, %v637
        %v644 = vadd.f32 %v629, %v637
        %v645 = vadd.f32 %v630, %v637
        %v646 = vadd.f32 %v631, %v637
        %v647 = vadd.f32 %v639, %v640
        %v648 = vadd.f32 %v647, %v641
        %v649 = vadd.f32 %v648, %v642
        %v650 = vadd.f32 %v649, %v643
        %v651 = vadd.f32 %v650, %v644
        %v652 = vadd.f32 %v651, %v645
        %v653 = vadd.f32 %v652, %v646
        %v654 = vrot.slane %v653, 4
        %v655 = vadd.f32 %v653, %v654
        %v656 = vrot.slane %v655, 2
        %v657 = vadd.f32 %v655, %v656
        %v658 = vrot.slane %v657, 1
        %v659 = vadd.f32 %v657, %v658
        %v660 = vrcp.pop 64.0
        %v661 = vmul.f32 %v659, %v660
        %v662 = vsub.f32 %v639, %v661
        %v663 = vsub.f32 %v640, %v661
        %v664 = vsub.f32 %v641, %v661
        %v665 = vsub.f32 %v642, %v661
        %v666 = vsub.f32 %v643, %v661
        %v667 = vsub.f32 %v644, %v661
        %v668 = vsub.f32 %v645, %v661
        %v669 = vsub.f32 %v646, %v661
        %v670 = vmul.f32 %v662, %v662
        %v671 = vmul.f32 %v663, %v663
        %v672 = vmul.f32 %v664, %v664
        %v673 = vmul.f32 %v665, %v665
        %v674 = vmul.f32 %v666, %v666
        %v675 = vmul.f32 %v667, %v667
        %v676 = vmul.f32 %v668, %v668
        %v677 = vmul.f32 %v669, %v669
        %v678 = vadd.f32 %v670, %v671
        %v679 = vadd.f32 %v678, %v672
        %v680 = vadd.f32 %v679, %v673
        %v681 = vadd.f32 %v680, %v674
        %v682 = vadd.f32 %v681, %v675
        %v683 = vadd.f32 %v682, %v676
        %v684 = vadd.f32 %v683, %v677
        %v685 = vrot.slane %v684, 4
        %v686 = vadd.f32 %v684, %v685
        %v687 = vrot.slane %v686, 2
        %v688 = vadd.f32 %v686, %v687
        %v689 = vrot.slane %v688, 1
        %v690 = vadd.f32 %v688, %v689
        %v691 = vmul.f32 %v690, %v660
        %v692 = vadd.f32 %v691, 1e-05
        %v693 = vrsqrt.pop %v692
        %v694 = vmul.f32 %v662, %v693
        %v695 = vmul.f32 %v663, %v693
        %v696 = vmul.f32 %v664, %v693
        %v697 = vmul.f32 %v665, %v693
        %v698 = vmul.f32 %v666, %v693
        %v699 = vmul.f32 %v667, %v693
        %v700 = vmul.f32 %v668, %v693
        %v701 = vmul.f32 %v669, %v693
        %v702 = vmax.f32 %v694, 0.0
        %v703 = vmax.f32 %v695, 0.0
        %v704 = vmax.f32 %v696, 0.0
        %v705 = vmax.f32 %v697, 0.0
        %v706 = vmax.f32 %v698, 0.0
        %v707 = vmax.f32 %v699, 0.0
        %v708 = vmax.f32 %v700, 0.0
        %v709 = vmax.f32 %v701, 0.0
        %710 = vst [vmem:[%s220] sm:$0xff] %v702
        %711 = vst [vmem:[%s220 + $0x8] sm:$0xff] %v703
        %712 = vst [vmem:[%s220 + $0x10] sm:$0xff] %v704
        %713 = vst [vmem:[%s220 + $0x18] sm:$0xff] %v705
        %714 = vst [vmem:[%s220 + $0x20] sm:$0xff] %v706
        %715 = vst [vmem:[%s220 + $0x28] sm:$0xff] %v707
        %716 = vst [vmem:[%s220 + $0x30] sm:$0xff] %v708
        %717 = vst [vmem:[%s220 + $0x38] sm:$0xff] %v709
      $region40: #{generator_forward.25} parent=31 // pred_fallthru
        _
      %p718 = scmp.lt.s32.totalorder %s18, 1
      %s719 = scalar_select %p718, %s18, 1
      %s720 = smul.addr %s719, 8
      %s721 = smul.addr %s720, 8
      %s722 = scalar_lea.vmem %s3, %s721
      // Predicated region
      $region41: #{generator_forward.25} parent=31 // pred_check
        %p723 = pneg %p119
      $region42: #{generator_forward.25} parent=31 // pred_check_branch
        %725 = sbr.rel (%p723) target = $region44
      $region43: #{generator_forward.25} parent=31 // pred_region
        _
      $region44: #{generator_forward.25} parent=31 // pred_fallthru
        _
    $region32: #{generator_forward.25} parent=5 // pred_fallthru
      _
    %p726 = scmp.le.s32.totalorder 2, %s9
    // Predicated region
    $region45: #{generator_forward.25} parent=5 // pred_check
      %p727 = pneg %p726
    $region46: #{generator_forward.25} parent=5 // pred_check_branch
      %729 = sbr.rel (%p727) target = $region48
    $region47: #{generator_forward.25} parent=5 // pred_region
      %s730 = ssub.s32 %s9, 2
      // Predicated region
      $region49: #{generator_forward.25} parent=47 // pred_check
        %p731 = pneg %p125
      $region50: #{generator_forward.25} parent=47 // pred_check_branch
        %733 = sbr.rel (%p731) target = $region52
      $region51: #{generator_forward.25} parent=47 // pred_region
        %p734 = scmp.lt.s32.totalorder %s20, 1
        %s735 = scalar_select %p734, %s20, 1
        %s736 = smul.addr %s735, 8
        %s737 = smul.addr %s736, 8
        %s738 = scalar_lea.vmem %s3, %s737
      $region52: #{generator_forward.25} parent=47 // pred_fallthru
        _
    $region48: #{generator_forward.25} parent=5 // pred_fallthru
      _
  $region6: #{generator_forward.25} parent=0 // loop_footer
    %s13 = sadd.s32 1, %s9
  $region7: #{generator_forward.25} parent=0 // loop_footer_branch
    %8 = sbr.rel target = $region3
  $region8: #{generator_forward.25} parent=0 // loop_exit
    _

// kernel: generator_forward.26
$region0: #{generator_forward.26}
  #allocation0 [shape = 'u32[]', space=smem, size = 0x4, offset = 0x4, fixed_abs, tag = 'smem constant byte address 0x4 - core index']
  #allocation1 [shape = 'u32[144,128]{1,0:T(1,128)}', space=vmem, size = 0x12000, scoped, tag = 'internal scratch']
  #allocation2 [shape = 'f32[256,128]{1,0:T(8,128)}', space=vmem, size = 0x20000, scoped, tag = 'scratch operand']
  %s0 = inlined_call_operand.vmem [shape: bf16[2,256,144], index: 0, kind: input, shape index: {}]
  %s1 = inlined_call_operand.vmem [shape: bf16[144,128], index: 1, kind: input, shape index: {}]
  %s2 = inlined_call_operand.vmem [shape: f32[1,128], index: 2, kind: input, shape index: {}]
  %s3 = inlined_call_operand.vmem [shape: f32[2,256,128], index: 3, kind: output, shape index: {}]
  %s4 = sld [smem:[#allocation0]]
  $region53: #{generator_forward.26} parent=0
    _
  %s6 = ssub.s32 1, %s4
  %s7 = scalar_select 0, %s6, %s4
  loop: start=0, step=1, limit=4
  $region2: #{generator_forward.26} parent=0 // loop_pre_header
    _
  $region3: #{generator_forward.26} parent=0 // loop_header
    %s9 = sphi 0, %s13
    %p10 = scmp.ge.s32.totalorder %s9, 4
    %s16 = sphi 0, %s28
    %s17 = sphi 0, %s24
    %s18 = sphi 0, %s16
    %s19 = sphi 0, %s17
    %s20 = sphi 0, %s18
    %s21 = sphi 0, %s19
    %s33 = sphi 0, %s35
    %s36 = sphi 0, %s33
    %s37 = sphi 0, %s36
    %s53 = sphi 0, %s37
    %s59 = sphi 0, %s61
    %s62 = sphi 0, %s59
    %s63 = sphi 0, %s62
    %s79 = sphi 0, %s63
    %s83 = sphi 0, %s83
    %s85 = sphi 0, %s83
    %s86 = sphi 0, %s85
    %s100 = sphi 0, %s86
    %s106 = sphi 0, %s108
    %s109 = sphi 0, %s106
    %s110 = sphi 0, %s109
    %s126 = sphi 0, %s110
  $region4: #{generator_forward.26} parent=0 // loop_header_branch
    %12 = sbr.rel (%p10) target = $region8
  $region5: #{generator_forward.26} parent=0 // loop_body
    %s14 = ssub.s32 %s9, 1
    %s15 = ssub.s32 %s9, 2
    %s22 = sadd.s32 1, %s17
    %p23 = scmp.ge.s32.totalorder %s22, 1
    %s24 = scalar_select %p23, 0, %s22
    %s25 = sadd.s32 1, %s16
    %s26 = scalar_select %p23, %s25, %s16
    %p27 = scmp.ge.s32.totalorder %s26, 2
    %s28 = scalar_select %p27, 0, %s26
    %s29 = ssub.s32 %s16, %s28
    %s30 = ssub.s32 %s17, %s24
    %s31 = sor.u32 %s29, %s30
    %p32 = scmp.eq.s32.totalorder %s31, 0
    %s34 = sadd.s32 %s33, 1
    %s35 = scalar_select %p32, %s33, %s34
    %p38 = pneg %p32
    %p39 = scmp.eq.s32.totalorder %s9, 1
    %p40 = por %p38, %p39
    %p41 = scmp.ne.s32.totalorder %s33, %s36
    %p42 = scmp.eq.s32.totalorder %s9, 0
    %p43 = por %p41, %p42
    %p44 = scmp.ne.s32.totalorder %s33, %s36
    %p45 = scmp.eq.s32.totalorder %s14, 1
    %p46 = por %p44, %p45
    %p47 = scmp.ne.s32.totalorder %s36, %s37
    %p48 = scmp.eq.s32.totalorder %s14, 0
    %p49 = por %p47, %p48
    %p50 = scmp.ne.s32.totalorder %s36, %s37
    %p51 = scmp.eq.s32.totalorder %s15, 1
    %p52 = por %p50, %p51
    %p54 = scmp.ne.s32.totalorder %s37, %s53
    %p55 = scmp.eq.s32.totalorder %s15, 0
    %p56 = por %p54, %p55
    %s57 = ssub.s32 %s17, %s24
    %p58 = scmp.eq.s32.totalorder %s57, 0
    %s60 = sadd.s32 %s59, 1
    %s61 = scalar_select %p58, %s59, %s60
    %p64 = pneg %p58
    %p65 = scmp.eq.s32.totalorder %s9, 1
    %p66 = por %p64, %p65
    %p67 = scmp.ne.s32.totalorder %s59, %s62
    %p68 = scmp.eq.s32.totalorder %s9, 0
    %p69 = por %p67, %p68
    %p70 = scmp.ne.s32.totalorder %s59, %s62
    %p71 = scmp.eq.s32.totalorder %s14, 1
    %p72 = por %p70, %p71
    %p73 = scmp.ne.s32.totalorder %s62, %s63
    %p74 = scmp.eq.s32.totalorder %s14, 0
    %p75 = por %p73, %p74
    %p76 = scmp.ne.s32.totalorder %s62, %s63
    %p77 = scmp.eq.s32.totalorder %s15, 1
    %p78 = por %p76, %p77
    %p80 = scmp.ne.s32.totalorder %s63, %s79
    %p81 = scmp.eq.s32.totalorder %s15, 0
    %p82 = por %p80, %p81
    %s84 = sadd.s32 %s83, 1
    %p87 = scmp.eq.s32.totalorder %s9, 1
    %p88 = scmp.ne.s32.totalorder %s83, %s85
    %p89 = scmp.eq.s32.totalorder %s9, 0
    %p90 = por %p88, %p89
    %p91 = scmp.ne.s32.totalorder %s83, %s85
    %p92 = scmp.eq.s32.totalorder %s14, 1
    %p93 = por %p91, %p92
    %p94 = scmp.ne.s32.totalorder %s85, %s86
    %p95 = scmp.eq.s32.totalorder %s14, 0
    %p96 = por %p94, %p95
    %p97 = scmp.ne.s32.totalorder %s85, %s86
    %p98 = scmp.eq.s32.totalorder %s15, 1
    %p99 = por %p97, %p98
    %p101 = scmp.ne.s32.totalorder %s86, %s100
    %p102 = scmp.eq.s32.totalorder %s15, 0
    %p103 = por %p101, %p102
    %s104 = ssub.s32 %s16, %s28
    %p105 = scmp.eq.s32.totalorder %s104, 0
    %s107 = sadd.s32 %s106, 1
    %s108 = scalar_select %p105, %s106, %s107
    %p111 = pneg %p105
    %p112 = scmp.eq.s32.totalorder %s9, 1
    %p113 = por %p111, %p112
    %p114 = scmp.ne.s32.totalorder %s106, %s109
    %p115 = scmp.eq.s32.totalorder %s9, 0
    %p116 = por %p114, %p115
    %p117 = scmp.ne.s32.totalorder %s106, %s109
    %p118 = scmp.eq.s32.totalorder %s14, 1
    %p119 = por %p117, %p118
    %p120 = scmp.ne.s32.totalorder %s109, %s110
    %p121 = scmp.eq.s32.totalorder %s14, 0
    %p122 = por %p120, %p121
    %p123 = scmp.ne.s32.totalorder %s109, %s110
    %p124 = scmp.eq.s32.totalorder %s15, 1
    %p125 = por %p123, %p124
    %p127 = scmp.ne.s32.totalorder %s110, %s126
    %p128 = scmp.eq.s32.totalorder %s15, 0
    %p129 = por %p127, %p128
    %p130 = scmp.le.s32.totalorder 1, %s9
    %p131 = scmp.lt.s32.totalorder %s9, 3
    %p132 = pnand %p130, %p131
    %p133 = pneg %p132
    // Predicated region
    $region9: #{generator_forward.26} parent=5 // pred_check
      _
    $region10: #{generator_forward.26} parent=5 // pred_check_branch
      %135 = sbr.rel (%p132) target = $region12
    $region11: #{generator_forward.26} parent=5 // pred_region
      %s136 = ssub.s32 %s9, 1
      // Predicated region
      $region13: #{generator_forward.26} parent=11 // pred_check
        %p137 = pneg %p75
      $region14: #{generator_forward.26} parent=11 // pred_check_branch
        %139 = sbr.rel (%p137) target = $region16
      $region15: #{generator_forward.26} parent=11 // pred_region
        %s140 = smul.u32 18, %s19
        %p141 = scmp.lt.s32.totalorder %s140, 17
        %s142 = scalar_select %p141, %s140, 17
        %s143 = smul.addr %s142, 4
        %s144 = scalar_lea.vmem %s1, %s143
        %s145 = smul.u32 18, %s19
      $region16: #{generator_forward.26} parent=11 // pred_fallthru
        _
      // Predicated region
      $region17: #{generator_forward.26} parent=11 // pred_check
        %p146 = pneg %p96
      $region18: #{generator_forward.26} parent=11 // pred_check_branch
        %148 = sbr.rel (%p146) target = $region20
      $region19: #{generator_forward.26} parent=11 // pred_region
        _
      $region20: #{generator_forward.26} parent=11 // pred_fallthru
        _
    $region12: #{generator_forward.26} parent=5 // pred_fallthru
      _
    %p149 = scmp.lt.s32.totalorder %s9, 2
    // Predicated region
    $region21: #{generator_forward.26} parent=5 // pred_check
      %p150 = pneg %p149
    $region22: #{generator_forward.26} parent=5 // pred_check_branch
      %152 = sbr.rel (%p150) target = $region24
    $region23: #{generator_forward.26} parent=5 // pred_region
      // Predicated region
      $region25: #{generator_forward.26} parent=23 // pred_check
        %p153 = pneg %p43
      $region26: #{generator_forward.26} parent=23 // pred_check_branch
        %155 = sbr.rel (%p153) target = $region28
      $region27: #{generator_forward.26} parent=23 // pred_region
        %s156 = smul.u32 2, %s17
        %p157 = scmp.lt.s32.totalorder %s16, 1
        %s158 = scalar_select %p157, %s16, 1
        %p159 = scmp.lt.s32.totalorder %s156, 1
        %s160 = scalar_select %p159, %s156, 1
        %s161 = smul.addr %s158, 64
        %s162 = sadd.s32 %s160, %s161
        %s163 = smul.addr %s162, 4
        %s164 = scalar_lea.vmem %s0, %s163
        %s165 = smul.u32 2, %s17
      $region28: #{generator_forward.26} parent=23 // pred_fallthru
        _
    $region24: #{generator_forward.26} parent=5 // pred_fallthru
      _
    %p166 = scmp.le.s32.totalorder 1, %s9
    %p167 = scmp.lt.s32.totalorder %s9, 3
    %p168 = pnand %p166, %p167
    %p169 = pneg %p168
    // Predicated region
    $region29: #{generator_forward.26} parent=5 // pred_check
      _
    $region30: #{generator_forward.26} parent=5 // pred_check_branch
      %171 = sbr.rel (%p168) target = $region32
    $region31: #{generator_forward.26} parent=5 // pred_region
      %s172 = ssub.s32 %s9, 1
      %s173 = smul.u32 2, %s19
      %p174 = scmp.lt.s32.totalorder %s18, 1
      %s175 = scalar_select %p174, %s18, 1
      %p176 = scmp.lt.s32.totalorder %s173, 1
      %s177 = scalar_select %p176, %s173, 1
      %s178 = smul.addr %s175, 64
      %s179 = sadd.s32 %s177, %s178
      %s180 = smul.addr %s179, 4
      %s181 = scalar_lea.vmem %s0, %s180
      %p182 = pneg %p49
      %p183 = pneg %p46
      %s184 = smul.u32 18, %s19
      %p185 = scmp.lt.s32.totalorder %s184, 17
      %s186 = scalar_select %p185, %s184, 17
      %s187 = smul.addr %s186, 4
      %s188 = scalar_lea.vmem %s1, %s187
      %p189 = pneg %p75
      %p190 = pneg %p72
      %p191 = pneg %p96
      %p192 = pneg %p93
      %p193 = pneg %p122
      %p194 = pneg %p119
      %p195 = scmp.lt.s32.totalorder %s18, 1
      %s196 = scalar_select %p195, %s18, 1
      %s197 = smul.addr %s196, 32
      %s198 = smul.addr %s197, 8
      %s199 = scalar_lea.vmem %s3, %s198
      %s200 = smul.u32 2, %s19
      %p201 = scmp.lt.s32.totalorder %s18, 1
      %s202 = scalar_select %p201, %s18, 1
      %p203 = scmp.lt.s32.totalorder %s200, 1
      %s204 = scalar_select %p203, %s200, 1
      %s205 = smul.addr %s202, 64
      %s206 = sadd.s32 %s204, %s205
      %s207 = smul.addr %s206, 4
      %s208 = scalar_lea.vmem %s0, %s207
      %s209 = smul.u32 2, %s19
      %s210 = smul.u32 18, %s19
      %p211 = scmp.lt.s32.totalorder %s210, 17
      %s212 = scalar_select %p211, %s210, 17
      %s213 = smul.addr %s212, 4
      %s214 = scalar_lea.vmem %s1, %s213
      %s215 = smul.u32 18, %s19
      %p216 = scmp.lt.s32.totalorder %s18, 1
      %s217 = scalar_select %p216, %s18, 1
      %s218 = smul.addr %s217, 32
      %s219 = smul.addr %s218, 8
      %s220 = scalar_lea.vmem %s3, %s219
      %p222 = scmp.eq.s32.totalorder %s19, 0
      // Predicated region
      $region33: #{generator_forward.26} parent=31 // pred_check
        %p223 = pneg %p222
      $region34: #{generator_forward.26} parent=31 // pred_check_branch
        %225 = sbr.rel (%p223) target = $region36
      $region35: #{generator_forward.26} parent=31 // pred_region
        %226 = vst [vmem:[#allocation2] sm:$0xff] 0.0
        %227 = vst [vmem:[#allocation2 + $0x8] sm:$0xff] 0.0
        %228 = vst [vmem:[#allocation2 + $0x10] sm:$0xff] 0.0
        %229 = vst [vmem:[#allocation2 + $0x18] sm:$0xff] 0.0
        %230 = vst [vmem:[#allocation2 + $0x20] sm:$0xff] 0.0
        %231 = vst [vmem:[#allocation2 + $0x28] sm:$0xff] 0.0
        %232 = vst [vmem:[#allocation2 + $0x30] sm:$0xff] 0.0
        %233 = vst [vmem:[#allocation2 + $0x38] sm:$0xff] 0.0
        %234 = vst [vmem:[#allocation2 + $0x40] sm:$0xff] 0.0
        %235 = vst [vmem:[#allocation2 + $0x48] sm:$0xff] 0.0
        %236 = vst [vmem:[#allocation2 + $0x50] sm:$0xff] 0.0
        %237 = vst [vmem:[#allocation2 + $0x58] sm:$0xff] 0.0
        %238 = vst [vmem:[#allocation2 + $0x60] sm:$0xff] 0.0
        %239 = vst [vmem:[#allocation2 + $0x68] sm:$0xff] 0.0
        %240 = vst [vmem:[#allocation2 + $0x70] sm:$0xff] 0.0
        %241 = vst [vmem:[#allocation2 + $0x78] sm:$0xff] 0.0
        %242 = vst [vmem:[#allocation2 + $0x80] sm:$0xff] 0.0
        %243 = vst [vmem:[#allocation2 + $0x88] sm:$0xff] 0.0
        %244 = vst [vmem:[#allocation2 + $0x90] sm:$0xff] 0.0
        %245 = vst [vmem:[#allocation2 + $0x98] sm:$0xff] 0.0
        %246 = vst [vmem:[#allocation2 + $0xa0] sm:$0xff] 0.0
        %247 = vst [vmem:[#allocation2 + $0xa8] sm:$0xff] 0.0
        %248 = vst [vmem:[#allocation2 + $0xb0] sm:$0xff] 0.0
        %249 = vst [vmem:[#allocation2 + $0xb8] sm:$0xff] 0.0
        %250 = vst [vmem:[#allocation2 + $0xc0] sm:$0xff] 0.0
        %251 = vst [vmem:[#allocation2 + $0xc8] sm:$0xff] 0.0
        %252 = vst [vmem:[#allocation2 + $0xd0] sm:$0xff] 0.0
        %253 = vst [vmem:[#allocation2 + $0xd8] sm:$0xff] 0.0
        %254 = vst [vmem:[#allocation2 + $0xe0] sm:$0xff] 0.0
        %255 = vst [vmem:[#allocation2 + $0xe8] sm:$0xff] 0.0
        %256 = vst [vmem:[#allocation2 + $0xf0] sm:$0xff] 0.0
        %257 = vst [vmem:[#allocation2 + $0xf8] sm:$0xff] 0.0
      $region36: #{generator_forward.26} parent=31 // pred_fallthru
        _
      %v258 = vld [vmem:[#allocation2] sm:$0xff]
      %v259 = vld [vmem:[#allocation2 + $0x8] sm:$0xff]
      %v260 = vld [vmem:[#allocation2 + $0x10] sm:$0xff]
      %v261 = vld [vmem:[#allocation2 + $0x18] sm:$0xff]
      %v262 = vld [vmem:[#allocation2 + $0x20] sm:$0xff]
      %v263 = vld [vmem:[#allocation2 + $0x28] sm:$0xff]
      %v264 = vld [vmem:[#allocation2 + $0x30] sm:$0xff]
      %v265 = vld [vmem:[#allocation2 + $0x38] sm:$0xff]
      %v266 = vld [vmem:[#allocation2 + $0x40] sm:$0xff]
      %v267 = vld [vmem:[#allocation2 + $0x48] sm:$0xff]
      %v268 = vld [vmem:[#allocation2 + $0x50] sm:$0xff]
      %v269 = vld [vmem:[#allocation2 + $0x58] sm:$0xff]
      %v270 = vld [vmem:[#allocation2 + $0x60] sm:$0xff]
      %v271 = vld [vmem:[#allocation2 + $0x68] sm:$0xff]
      %v272 = vld [vmem:[#allocation2 + $0x70] sm:$0xff]
      %v273 = vld [vmem:[#allocation2 + $0x78] sm:$0xff]
      %v274 = vld [vmem:[#allocation2 + $0x80] sm:$0xff]
      %v275 = vld [vmem:[#allocation2 + $0x88] sm:$0xff]
      %v276 = vld [vmem:[#allocation2 + $0x90] sm:$0xff]
      %v277 = vld [vmem:[#allocation2 + $0x98] sm:$0xff]
      %v278 = vld [vmem:[#allocation2 + $0xa0] sm:$0xff]
      %v279 = vld [vmem:[#allocation2 + $0xa8] sm:$0xff]
      %v280 = vld [vmem:[#allocation2 + $0xb0] sm:$0xff]
      %v281 = vld [vmem:[#allocation2 + $0xb8] sm:$0xff]
      %v282 = vld [vmem:[#allocation2 + $0xc0] sm:$0xff]
      %v283 = vld [vmem:[#allocation2 + $0xc8] sm:$0xff]
      %v284 = vld [vmem:[#allocation2 + $0xd0] sm:$0xff]
      %v285 = vld [vmem:[#allocation2 + $0xd8] sm:$0xff]
      %v286 = vld [vmem:[#allocation2 + $0xe0] sm:$0xff]
      %v287 = vld [vmem:[#allocation2 + $0xe8] sm:$0xff]
      %v288 = vld [vmem:[#allocation2 + $0xf0] sm:$0xff]
      %v289 = vld [vmem:[#allocation2 + $0xf8] sm:$0xff]
      %v290 = vld [vmem:[%s208] sm:$0xff]
      %v291 = vld [vmem:[%s208 + $0x8] sm:$0xff]
      %v292 = vld [vmem:[%s208 + $0x10] sm:$0xff]
      %v293 = vld [vmem:[%s208 + $0x18] sm:$0xff]
      %v294 = vld [vmem:[%s208 + $0x20] sm:$0xff]
      %v295 = vld [vmem:[%s208 + $0x28] sm:$0xff]
      %v296 = vld [vmem:[%s208 + $0x30] sm:$0xff]
      %v297 = vld [vmem:[%s208 + $0x38] sm:$0xff]
      %v298 = vld [vmem:[%s208 + $0x40] sm:$0xff]
      %v299 = vld [vmem:[%s208 + $0x48] sm:$0xff]
      %v300 = vld [vmem:[%s208 + $0x50] sm:$0xff]
      %v301 = vld [vmem:[%s208 + $0x58] sm:$0xff]
      %v302 = vld [vmem:[%s208 + $0x60] sm:$0xff]
      %v303 = vld [vmem:[%s208 + $0x68] sm:$0xff]
      %v304 = vld [vmem:[%s208 + $0x70] sm:$0xff]
      %v305 = vld [vmem:[%s208 + $0x78] sm:$0xff]
      %v306 = vld [vmem:[%s208 + $0x80] sm:$0xff]
      %v307 = vld [vmem:[%s208 + $0x88] sm:$0xff]
      %v308 = vld [vmem:[%s208 + $0x90] sm:$0xff]
      %v309 = vld [vmem:[%s208 + $0x98] sm:$0xff]
      %v310 = vld [vmem:[%s208 + $0xa0] sm:$0xff]
      %v311 = vld [vmem:[%s208 + $0xa8] sm:$0xff]
      %v312 = vld [vmem:[%s208 + $0xb0] sm:$0xff]
      %v313 = vld [vmem:[%s208 + $0xb8] sm:$0xff]
      %v314 = vld [vmem:[%s208 + $0xc0] sm:$0xff]
      %v315 = vld [vmem:[%s208 + $0xc8] sm:$0xff]
      %v316 = vld [vmem:[%s208 + $0xd0] sm:$0xff]
      %v317 = vld [vmem:[%s208 + $0xd8] sm:$0xff]
      %v318 = vld [vmem:[%s208 + $0xe0] sm:$0xff]
      %v319 = vld [vmem:[%s208 + $0xe8] sm:$0xff]
      %v320 = vld [vmem:[%s208 + $0xf0] sm:$0xff]
      %v321 = vld [vmem:[%s208 + $0xf8] sm:$0xff]
      %v322 = vld [vmem:[%s214] sm:$0xf]
      %v323 = vld [vmem:[%s214 + $0x4] sm:$0xf]
      %v324 = vld [vmem:[%s214 + $0x8] sm:$0xf]
      %v325 = vld [vmem:[%s214 + $0xc] sm:$0xf]
      %v326 = vld [vmem:[%s214 + $0x10] sm:$0xf]
      %v327 = vld [vmem:[%s214 + $0x14] sm:$0xf]
      %v328 = vld [vmem:[%s214 + $0x18] sm:$0xf]
      %v329 = vld [vmem:[%s214 + $0x1c] sm:$0xf]
      %v330 = vld [vmem:[%s214 + $0x20] sm:$0xf]
      %v331 = vld [vmem:[%s214 + $0x24] sm:$0xf]
      %v332 = vld [vmem:[%s214 + $0x28] sm:$0xf]
      %v333 = vld [vmem:[%s214 + $0x2c] sm:$0xf]
      %v334 = vld [vmem:[%s214 + $0x30] sm:$0xf]
      %v335 = vld [vmem:[%s214 + $0x34] sm:$0xf]
      %v336 = vld [vmem:[%s214 + $0x38] sm:$0xf]
      %v337 = vld [vmem:[%s214 + $0x3c] sm:$0xf]
      %v338 = vld [vmem:[%s214 + $0x40] sm:$0xf]
      %v339 = vld [vmem:[%s214 + $0x44] sm:$0xf]
      %v372 = vunpack.c.l.b16 %v290
      %v373 = vunpack.c.h.b16 %v290
      %v374 = vunpack.c.l.b16 %v291
      %v375 = vunpack.c.h.b16 %v291
      %v376 = vunpack.c.l.b16 %v292
      %v377 = vunpack.c.h.b16 %v292
      %v378 = vunpack.c.l.b16 %v293
      %v379 = vunpack.c.h.b16 %v293
      %v380 = vunpack.c.l.b16 %v294
      %v381 = vunpack.c.h.b16 %v294
      %v382 = vunpack.c.l.b16 %v295
      %v383 = vunpack.c.h.b16 %v295
      %v384 = vunpack.c.l.b16 %v296
      %v385 = vunpack.c.h.b16 %v296
      %v386 = vunpack.c.l.b16 %v297
      %v387 = vunpack.c.h.b16 %v297
      %v388 = vunpack.c.l.b16 %v298
      %v389 = vunpack.c.h.b16 %v298
      %v390 = vunpack.c.l.b16 %v299
      %v391 = vunpack.c.h.b16 %v299
      %v392 = vunpack.c.l.b16 %v300
      %v393 = vunpack.c.h.b16 %v300
      %v394 = vunpack.c.l.b16 %v301
      %v395 = vunpack.c.h.b16 %v301
      %v396 = vunpack.c.l.b16 %v302
      %v397 = vunpack.c.h.b16 %v302
      %v398 = vunpack.c.l.b16 %v303
      %v399 = vunpack.c.h.b16 %v303
      %v400 = vunpack.c.l.b16 %v304
      %v401 = vunpack.c.h.b16 %v304
      %v402 = vunpack.c.l.b16 %v305
      %v403 = vunpack.c.h.b16 %v305
      %v404 = vunpack.c.l.b16 %v306
      %v405 = vunpack.c.h.b16 %v306
      %v406 = vunpack.c.l.b16 %v307
      %v407 = vunpack.c.h.b16 %v307
      %v408 = vunpack.c.l.b16 %v308
      %v409 = vunpack.c.h.b16 %v308
      %v410 = vunpack.c.l.b16 %v309
      %v411 = vunpack.c.h.b16 %v309
      %v412 = vunpack.c.l.b16 %v310
      %v413 = vunpack.c.h.b16 %v310
      %v414 = vunpack.c.l.b16 %v311
      %v415 = vunpack.c.h.b16 %v311
      %v416 = vunpack.c.l.b16 %v312
      %v417 = vunpack.c.h.b16 %v312
      %v418 = vunpack.c.l.b16 %v313
      %v419 = vunpack.c.h.b16 %v313
      %v420 = vunpack.c.l.b16 %v314
      %v421 = vunpack.c.h.b16 %v314
      %v422 = vunpack.c.l.b16 %v315
      %v423 = vunpack.c.h.b16 %v315
      %v424 = vunpack.c.l.b16 %v316
      %v425 = vunpack.c.h.b16 %v316
      %v426 = vunpack.c.l.b16 %v317
      %v427 = vunpack.c.h.b16 %v317
      %v428 = vunpack.c.l.b16 %v318
      %v429 = vunpack.c.h.b16 %v318
      %v430 = vunpack.c.l.b16 %v319
      %v431 = vunpack.c.h.b16 %v319
      %v432 = vunpack.c.l.b16 %v320
      %v433 = vunpack.c.h.b16 %v320
      %v434 = vunpack.c.l.b16 %v321
      %v435 = vunpack.c.h.b16 %v321
      %v436 = vpack.c.b16 %v374, %v372
      %v437 = vpack.c.b16 %v375, %v373
      %v438 = vpack.c.b16 %v378, %v376
      %v439 = vpack.c.b16 %v379, %v377
      %v440 = vpack.c.b16 %v382, %v380
      %v441 = vpack.c.b16 %v383, %v381
      %v442 = vpack.c.b16 %v386, %v384
      %v443 = vpack.c.b16 %v387, %v385
      %v444 = vpack.c.b16 %v390, %v388
      %v445 = vpack.c.b16 %v391, %v389
      %v446 = vpack.c.b16 %v394, %v392
      %v447 = vpack.c.b16 %v395, %v393
      %v448 = vpack.c.b16 %v398, %v396
      %v449 = vpack.c.b16 %v399, %v397
      %v450 = vpack.c.b16 %v402, %v400
      %v451 = vpack.c.b16 %v403, %v401
      %v452 = vpack.c.b16 %v406, %v404
      %v453 = vpack.c.b16 %v407, %v405
      %v454 = vpack.c.b16 %v410, %v408
      %v455 = vpack.c.b16 %v411, %v409
      %v456 = vpack.c.b16 %v414, %v412
      %v457 = vpack.c.b16 %v415, %v413
      %v458 = vpack.c.b16 %v418, %v416
      %v459 = vpack.c.b16 %v419, %v417
      %v460 = vpack.c.b16 %v422, %v420
      %v461 = vpack.c.b16 %v423, %v421
      %v462 = vpack.c.b16 %v426, %v424
      %v463 = vpack.c.b16 %v427, %v425
      %v464 = vpack.c.b16 %v430, %v428
      %v465 = vpack.c.b16 %v431, %v429
      %v466 = vpack.c.b16 %v434, %v432
      %v467 = vpack.c.b16 %v435, %v433
      %v502 = vunpack.c.l.b16 %v322
      %v503 = vunpack.c.l.b16 %v323
      %v504 = vunpack.c.l.b16 %v324
      %v505 = vunpack.c.l.b16 %v325
      %v506 = vunpack.c.l.b16 %v326
      %v507 = vunpack.c.l.b16 %v327
      %v508 = vunpack.c.l.b16 %v328
      %v509 = vunpack.c.l.b16 %v329
      %v510 = vunpack.c.l.b16 %v330
      %v511 = vunpack.c.l.b16 %v331
      %v512 = vunpack.c.l.b16 %v332
      %v513 = vunpack.c.l.b16 %v333
      %v514 = vunpack.c.l.b16 %v334
      %v515 = vunpack.c.l.b16 %v335
      %v516 = vunpack.c.l.b16 %v336
      %v517 = vunpack.c.l.b16 %v337
      %v518 = vunpack.c.l.b16 %v338
      %v519 = vunpack.c.l.b16 %v339
      %v520 = vpack.c.b16 %v503, %v502
      %v521 = vpack.c.b16 %v505, %v504
      %v522 = vpack.c.b16 %v507, %v506
      %v523 = vpack.c.b16 %v509, %v508
      %v524 = vpack.c.b16 %v511, %v510
      %v525 = vpack.c.b16 %v513, %v512
      %v526 = vpack.c.b16 %v515, %v514
      %v527 = vpack.c.b16 %v517, %v516
      %v528 = vpack.c.b16 %v519, %v518
      %vm538 = vcmask 130048
      %v540 = vsel %vm538, %v437, 0
      %v543 = vsel %vm538, %v439, 0
      %v546 = vsel %vm538, %v441, 0
      %v549 = vsel %vm538, %v443, 0
      %v552 = vsel %vm538, %v445, 0
      %v555 = vsel %vm538, %v447, 0
      %v558 = vsel %vm538, %v449, 0
      %v561 = vsel %vm538, %v451, 0
      %v564 = vsel %vm538, %v453, 0
      %v567 = vsel %vm538, %v455, 0
      %v570 = vsel %vm538, %v457, 0
      %v573 = vsel %vm538, %v459, 0
      %v576 = vsel %vm538, %v461, 0
      %v579 = vsel %vm538, %v463, 0
      %v582 = vsel %vm538, %v465, 0
      %v585 = vsel %vm538, %v467, 0
      %587 = vmatprep.subr.bf16.mxu0 0
      %588 = vmatpush1.bf16.msra.mxu0 %v520
      %589 = vmatprep.subr.bf16.mxu0 0
      %590 = vmatpush1.bf16.msra.mxu0 %v521
      %591 = vmatprep.subr.bf16.mxu0 0
      %592 = vmatpush1.bf16.msra.mxu0 %v522
      %593 = vmatprep.subr.bf16.mxu0 0
      %594 = vmatpush1.bf16.msra.mxu0 %v523
      %595 = vmatprep.subr.bf16.mxu0 0
      %596 = vmatpush1.bf16.msra.mxu0 %v524
      %597 = vmatprep.subr.bf16.mxu0 0
      %598 = vmatpush1.bf16.msra.mxu0 %v525
      %599 = vmatprep.subr.bf16.mxu0 0
      %600 = vmatpush1.bf16.msra.mxu0 %v526
      %601 = vmatprep.subr.bf16.mxu0 0
      %602 = vmatpush1.bf16.msra.mxu0 %v527
      %603 = vmatprep.subr.bf16.mxu0 0
      %604 = vmatpush1.bf16.msra.mxu0 %v528
      %605 = vmatprep.subr.bf16.mxu0 0
      %606 = vmatpush1.bf16.msra.mxu0 0
      %607 = vmatprep.subr.bf16.mxu0 0
      %608 = vmatpush1.bf16.msra.mxu0 0
      %609 = vmatprep.subr.bf16.mxu0 0
      %610 = vmatpush1.bf16.msra.mxu0 0
      %611 = vmatprep.subr.bf16.mxu0 0
      %612 = vmatpush1.bf16.msra.mxu0 0
      %613 = vmatprep.subr.bf16.mxu0 0
      %614 = vmatpush1.bf16.msra.mxu0 0
      %615 = vmatprep.subr.bf16.mxu0 0
      %616 = vmatpush1.bf16.msra.mxu0 0
      %617 = vmatprep.subr.bf16.mxu0 0
      %618 = vmatpush1.bf16.msra.mxu0 0
      %619 = vmatprep.mubr.bf16.mxu0 %v540
      %620 = vmatmul.mubr.bf16.gmra.mrb[0].mxu0 %v436
      %v621 = vpop.f32.mrb[0].mxu0
      %v622 = vadd.f32 0.0, %v621
      %v623 = vpop.f32.mrb[0].mxu0
      %v624 = vpop.f32.mrb[0].mxu0
      %v625 = vadd.f32 0.0, %v624
      %v626 = vpop.f32.mrb[0].mxu0
      %627 = vmatprep.mubr.bf16.mxu0 %v543
      %628 = vmatmul.mubr.bf16.gmra.mrb[0].mxu0 %v438
      %v629 = vpop.f32.mrb[0].mxu0
      %v630 = vadd.f32 0.0, %v629
      %v631 = vpop.f32.mrb[0].mxu0
      %v632 = vpop.f32.mrb[0].mxu0
      %v633 = vadd.f32 0.0, %v632
      %v634 = vpop.f32.mrb[0].mxu0
      %635 = vmatprep.mubr.bf16.mxu0 %v546
      %636 = vmatmul.mubr.bf16.gmra.mrb[0].mxu0 %v440
      %v637 = vpop.f32.mrb[0].mxu0
      %v638 = vadd.f32 0.0, %v637
      %v639 = vpop.f32.mrb[0].mxu0
      %v640 = vpop.f32.mrb[0].mxu0
      %v641 = vadd.f32 0.0, %v640
      %v642 = vpop.f32.mrb[0].mxu0
      %643 = vmatprep.mubr.bf16.mxu0 %v549
      %644 = vmatmul.mubr.bf16.gmra.mrb[0].mxu0 %v442
      %v645 = vpop.f32.mrb[0].mxu0
      %v646 = vadd.f32 0.0, %v645
      %v647 = vpop.f32.mrb[0].mxu0
      %v648 = vpop.f32.mrb[0].mxu0
      %v649 = vadd.f32 0.0, %v648
      %v650 = vpop.f32.mrb[0].mxu0
      %651 = vmatprep.mubr.bf16.mxu0 %v552
      %652 = vmatmul.mubr.bf16.gmra.mrb[0].mxu0 %v444
      %v653 = vpop.f32.mrb[0].mxu0
      %v654 = vadd.f32 0.0, %v653
      %v655 = vpop.f32.mrb[0].mxu0
      %v656 = vpop.f32.mrb[0].mxu0
      %v657 = vadd.f32 0.0, %v656
      %v658 = vpop.f32.mrb[0].mxu0
      %659 = vmatprep.mubr.bf16.mxu0 %v555
      %660 = vmatmul.mubr.bf16.gmra.mrb[0].mxu0 %v446
      %v661 = vpop.f32.mrb[0].mxu0
      %v662 = vadd.f32 0.0, %v661
      %v663 = vpop.f32.mrb[0].mxu0
      %v664 = vpop.f32.mrb[0].mxu0
      %v665 = vadd.f32 0.0, %v664
      %v666 = vpop.f32.mrb[0].mxu0
      %667 = vmatprep.mubr.bf16.mxu0 %v558
      %668 = vmatmul.mubr.bf16.gmra.mrb[0].mxu0 %v448
      %v669 = vpop.f32.mrb[0].mxu0
      %v670 = vadd.f32 0.0, %v669
      %v671 = vpop.f32.mrb[0].mxu0
      %v672 = vpop.f32.mrb[0].mxu0
      %v673 = vadd.f32 0.0, %v672
      %v674 = vpop.f32.mrb[0].mxu0
      %675 = vmatprep.mubr.bf16.mxu0 %v561
      %676 = vmatmul.mubr.bf16.gmra.mrb[0].mxu0 %v450
      %v677 = vpop.f32.mrb[0].mxu0
      %v678 = vadd.f32 0.0, %v677
      %v679 = vpop.f32.mrb[0].mxu0
      %v680 = vpop.f32.mrb[0].mxu0
      %v681 = vadd.f32 0.0, %v680
      %v682 = vpop.f32.mrb[0].mxu0
      %683 = vmatprep.mubr.bf16.mxu0 %v564
      %684 = vmatmul.mubr.bf16.gmra.mrb[0].mxu0 %v452
      %v685 = vpop.f32.mrb[0].mxu0
      %v686 = vadd.f32 0.0, %v685
      %v687 = vpop.f32.mrb[0].mxu0
      %v688 = vpop.f32.mrb[0].mxu0
      %v689 = vadd.f32 0.0, %v688
      %v690 = vpop.f32.mrb[0].mxu0
      %691 = vmatprep.mubr.bf16.mxu0 %v567
      %692 = vmatmul.mubr.bf16.gmra.mrb[0].mxu0 %v454
      %v693 = vpop.f32.mrb[0].mxu0
      %v694 = vadd.f32 0.0, %v693
      %v695 = vpop.f32.mrb[0].mxu0
      %v696 = vpop.f32.mrb[0].mxu0
      %v697 = vadd.f32 0.0, %v696
      %v698 = vpop.f32.mrb[0].mxu0
      %699 = vmatprep.mubr.bf16.mxu0 %v570
      %700 = vmatmul.mubr.bf16.gmra.mrb[0].mxu0 %v456
      %v701 = vpop.f32.mrb[0].mxu0
      %v702 = vadd.f32 0.0, %v701
      %v703 = vpop.f32.mrb[0].mxu0
      %v704 = vpop.f32.mrb[0].mxu0
      %v705 = vadd.f32 0.0, %v704
      %v706 = vpop.f32.mrb[0].mxu0
      %707 = vmatprep.mubr.bf16.mxu0 %v573
      %708 = vmatmul.mubr.bf16.gmra.mrb[0].mxu0 %v458
      %v709 = vpop.f32.mrb[0].mxu0
      %v710 = vadd.f32 0.0, %v709
      %v711 = vpop.f32.mrb[0].mxu0
      %v712 = vpop.f32.mrb[0].mxu0
      %v713 = vadd.f32 0.0, %v712
      %v714 = vpop.f32.mrb[0].mxu0
      %715 = vmatprep.mubr.bf16.mxu0 %v576
      %716 = vmatmul.mubr.bf16.gmra.mrb[0].mxu0 %v460
      %v717 = vpop.f32.mrb[0].mxu0
      %v718 = vadd.f32 0.0, %v717
      %v719 = vpop.f32.mrb[0].mxu0
      %v720 = vpop.f32.mrb[0].mxu0
      %v721 = vadd.f32 0.0, %v720
      %v722 = vpop.f32.mrb[0].mxu0
      %723 = vmatprep.mubr.bf16.mxu0 %v579
      %724 = vmatmul.mubr.bf16.gmra.mrb[0].mxu0 %v462
      %v725 = vpop.f32.mrb[0].mxu0
      %v726 = vadd.f32 0.0, %v725
      %v727 = vpop.f32.mrb[0].mxu0
      %v728 = vpop.f32.mrb[0].mxu0
      %v729 = vadd.f32 0.0, %v728
      %v730 = vpop.f32.mrb[0].mxu0
      %731 = vmatprep.mubr.bf16.mxu0 %v582
      %732 = vmatmul.mubr.bf16.gmra.mrb[0].mxu0 %v464
      %v733 = vpop.f32.mrb[0].mxu0
      %v734 = vadd.f32 0.0, %v733
      %v735 = vpop.f32.mrb[0].mxu0
      %v736 = vpop.f32.mrb[0].mxu0
      %v737 = vadd.f32 0.0, %v736
      %v738 = vpop.f32.mrb[0].mxu0
      %739 = vmatprep.mubr.bf16.mxu0 %v585
      %740 = vmatmul.mubr.bf16.gmra.mrb[0].mxu0 %v466
      %v741 = vpop.f32.mrb[0].mxu0
      %v742 = vadd.f32 0.0, %v741
      %v743 = vpop.f32.mrb[0].mxu0
      %v744 = vpop.f32.mrb[0].mxu0
      %v745 = vadd.f32 0.0, %v744
      %v746 = vpop.f32.mrb[0].mxu0
      %747 = vdwg.mxu0
      %v748 = vadd.f32 %v258, %v622
      %v749 = vadd.f32 %v259, %v625
      %v750 = vadd.f32 %v260, %v630
      %v751 = vadd.f32 %v261, %v633
      %v752 = vadd.f32 %v262, %v638
      %v753 = vadd.f32 %v263, %v641
      %v754 = vadd.f32 %v264, %v646
      %v755 = vadd.f32 %v265, %v649
      %v756 = vadd.f32 %v266, %v654
      %v757 = vadd.f32 %v267, %v657
      %v758 = vadd.f32 %v268, %v662
      %v759 = vadd.f32 %v269, %v665
      %v760 = vadd.f32 %v270, %v670
      %v761 = vadd.f32 %v271, %v673
      %v762 = vadd.f32 %v272, %v678
      %v763 = vadd.f32 %v273, %v681
      %v764 = vadd.f32 %v274, %v686
      %v765 = vadd.f32 %v275, %v689
      %v766 = vadd.f32 %v276, %v694
      %v767 = vadd.f32 %v277, %v697
      %v768 = vadd.f32 %v278, %v702
      %v769 = vadd.f32 %v279, %v705
      %v770 = vadd.f32 %v280, %v710
      %v771 = vadd.f32 %v281, %v713
      %v772 = vadd.f32 %v282, %v718
      %v773 = vadd.f32 %v283, %v721
      %v774 = vadd.f32 %v284, %v726
      %v775 = vadd.f32 %v285, %v729
      %v776 = vadd.f32 %v286, %v734
      %v777 = vadd.f32 %v287, %v737
      %v778 = vadd.f32 %v288, %v742
      %v779 = vadd.f32 %v289, %v745
      %780 = vst [vmem:[#allocation2] sm:$0xff] %v748
      %781 = vst [vmem:[#allocation2 + $0x8] sm:$0xff] %v749
      %782 = vst [vmem:[#allocation2 + $0x10] sm:$0xff] %v750
      %783 = vst [vmem:[#allocation2 + $0x18] sm:$0xff] %v751
      %784 = vst [vmem:[#allocation2 + $0x20] sm:$0xff] %v752
      %785 = vst [vmem:[#allocation2 + $0x28] sm:$0xff] %v753
      %786 = vst [vmem:[#allocation2 + $0x30] sm:$0xff] %v754
      %787 = vst [vmem:[#allocation2 + $0x38] sm:$0xff] %v755
      %788 = vst [vmem:[#allocation2 + $0x40] sm:$0xff] %v756
      %789 = vst [vmem:[#allocation2 + $0x48] sm:$0xff] %v757
      %790 = vst [vmem:[#allocation2 + $0x50] sm:$0xff] %v758
      %791 = vst [vmem:[#allocation2 + $0x58] sm:$0xff] %v759
      %792 = vst [vmem:[#allocation2 + $0x60] sm:$0xff] %v760
      %793 = vst [vmem:[#allocation2 + $0x68] sm:$0xff] %v761
      %794 = vst [vmem:[#allocation2 + $0x70] sm:$0xff] %v762
      %795 = vst [vmem:[#allocation2 + $0x78] sm:$0xff] %v763
      %796 = vst [vmem:[#allocation2 + $0x80] sm:$0xff] %v764
      %797 = vst [vmem:[#allocation2 + $0x88] sm:$0xff] %v765
      %798 = vst [vmem:[#allocation2 + $0x90] sm:$0xff] %v766
      %799 = vst [vmem:[#allocation2 + $0x98] sm:$0xff] %v767
      %800 = vst [vmem:[#allocation2 + $0xa0] sm:$0xff] %v768
      %801 = vst [vmem:[#allocation2 + $0xa8] sm:$0xff] %v769
      %802 = vst [vmem:[#allocation2 + $0xb0] sm:$0xff] %v770
      %803 = vst [vmem:[#allocation2 + $0xb8] sm:$0xff] %v771
      %804 = vst [vmem:[#allocation2 + $0xc0] sm:$0xff] %v772
      %805 = vst [vmem:[#allocation2 + $0xc8] sm:$0xff] %v773
      %806 = vst [vmem:[#allocation2 + $0xd0] sm:$0xff] %v774
      %807 = vst [vmem:[#allocation2 + $0xd8] sm:$0xff] %v775
      %808 = vst [vmem:[#allocation2 + $0xe0] sm:$0xff] %v776
      %809 = vst [vmem:[#allocation2 + $0xe8] sm:$0xff] %v777
      %810 = vst [vmem:[#allocation2 + $0xf0] sm:$0xff] %v778
      %811 = vst [vmem:[#allocation2 + $0xf8] sm:$0xff] %v779
      // Predicated region
      $region37: #{generator_forward.26} parent=31 // pred_check
        %p812 = pneg %p222
      $region38: #{generator_forward.26} parent=31 // pred_check_branch
        %814 = sbr.rel (%p812) target = $region40
      $region39: #{generator_forward.26} parent=31 // pred_region
        %v815 = vld [vmem:[#allocation2] sm:$0xff]
        %v816 = vld [vmem:[#allocation2 + $0x8] sm:$0xff]
        %v817 = vld [vmem:[#allocation2 + $0x10] sm:$0xff]
        %v818 = vld [vmem:[#allocation2 + $0x18] sm:$0xff]
        %v819 = vld [vmem:[#allocation2 + $0x20] sm:$0xff]
        %v820 = vld [vmem:[#allocation2 + $0x28] sm:$0xff]
        %v821 = vld [vmem:[#allocation2 + $0x30] sm:$0xff]
        %v822 = vld [vmem:[#allocation2 + $0x38] sm:$0xff]
        %v823 = vld [vmem:[#allocation2 + $0x40] sm:$0xff]
        %v824 = vld [vmem:[#allocation2 + $0x48] sm:$0xff]
        %v825 = vld [vmem:[#allocation2 + $0x50] sm:$0xff]
        %v826 = vld [vmem:[#allocation2 + $0x58] sm:$0xff]
        %v827 = vld [vmem:[#allocation2 + $0x60] sm:$0xff]
        %v828 = vld [vmem:[#allocation2 + $0x68] sm:$0xff]
        %v829 = vld [vmem:[#allocation2 + $0x70] sm:$0xff]
        %v830 = vld [vmem:[#allocation2 + $0x78] sm:$0xff]
        %v831 = vld [vmem:[#allocation2 + $0x80] sm:$0xff]
        %v832 = vld [vmem:[#allocation2 + $0x88] sm:$0xff]
        %v833 = vld [vmem:[#allocation2 + $0x90] sm:$0xff]
        %v834 = vld [vmem:[#allocation2 + $0x98] sm:$0xff]
        %v835 = vld [vmem:[#allocation2 + $0xa0] sm:$0xff]
        %v836 = vld [vmem:[#allocation2 + $0xa8] sm:$0xff]
        %v837 = vld [vmem:[#allocation2 + $0xb0] sm:$0xff]
        %v838 = vld [vmem:[#allocation2 + $0xb8] sm:$0xff]
        %v839 = vld [vmem:[#allocation2 + $0xc0] sm:$0xff]
        %v840 = vld [vmem:[#allocation2 + $0xc8] sm:$0xff]
        %v841 = vld [vmem:[#allocation2 + $0xd0] sm:$0xff]
        %v842 = vld [vmem:[#allocation2 + $0xd8] sm:$0xff]
        %v843 = vld [vmem:[#allocation2 + $0xe0] sm:$0xff]
        %v844 = vld [vmem:[#allocation2 + $0xe8] sm:$0xff]
        %v845 = vld [vmem:[#allocation2 + $0xf0] sm:$0xff]
        %v846 = vld [vmem:[#allocation2 + $0xf8] sm:$0xff]
        %v847 = vld [vmem:[%s2] sm:$0x1]
        %v849 = vlaneseq
        %v850 = vshrl.u32 %v849, 7
        %v851 = vsub.s32 0, %v850
        %v852 = vrot.slane %v847, %v851
        %v854 = vadd.f32 %v815, %v852
        %v855 = vadd.f32 %v816, %v852
        %v856 = vadd.f32 %v817, %v852
        %v857 = vadd.f32 %v818, %v852
        %v858 = vadd.f32 %v819, %v852
        %v859 = vadd.f32 %v820, %v852
        %v860 = vadd.f32 %v821, %v852
        %v861 = vadd.f32 %v822, %v852
        %v862 = vadd.f32 %v823, %v852
        %v863 = vadd.f32 %v824, %v852
        %v864 = vadd.f32 %v825, %v852
        %v865 = vadd.f32 %v826, %v852
        %v866 = vadd.f32 %v827, %v852
        %v867 = vadd.f32 %v828, %v852
        %v868 = vadd.f32 %v829, %v852
        %v869 = vadd.f32 %v830, %v852
        %v870 = vadd.f32 %v831, %v852
        %v871 = vadd.f32 %v832, %v852
        %v872 = vadd.f32 %v833, %v852
        %v873 = vadd.f32 %v834, %v852
        %v874 = vadd.f32 %v835, %v852
        %v875 = vadd.f32 %v836, %v852
        %v876 = vadd.f32 %v837, %v852
        %v877 = vadd.f32 %v838, %v852
        %v878 = vadd.f32 %v839, %v852
        %v879 = vadd.f32 %v840, %v852
        %v880 = vadd.f32 %v841, %v852
        %v881 = vadd.f32 %v842, %v852
        %v882 = vadd.f32 %v843, %v852
        %v883 = vadd.f32 %v844, %v852
        %v884 = vadd.f32 %v845, %v852
        %v885 = vadd.f32 %v846, %v852
        %v886 = vadd.f32 %v854, %v855
        %v887 = vadd.f32 %v886, %v856
        %v888 = vadd.f32 %v887, %v857
        %v889 = vadd.f32 %v888, %v858
        %v890 = vadd.f32 %v889, %v859
        %v891 = vadd.f32 %v890, %v860
        %v892 = vadd.f32 %v891, %v861
        %v893 = vadd.f32 %v892, %v862
        %v894 = vadd.f32 %v893, %v863
        %v895 = vadd.f32 %v894, %v864
        %v896 = vadd.f32 %v895, %v865
        %v897 = vadd.f32 %v896, %v866
        %v898 = vadd.f32 %v897, %v867
        %v899 = vadd.f32 %v898, %v868
        %v900 = vadd.f32 %v899, %v869
        %v901 = vadd.f32 %v900, %v870
        %v902 = vadd.f32 %v901, %v871
        %v903 = vadd.f32 %v902, %v872
        %v904 = vadd.f32 %v903, %v873
        %v905 = vadd.f32 %v904, %v874
        %v906 = vadd.f32 %v905, %v875
        %v907 = vadd.f32 %v906, %v876
        %v908 = vadd.f32 %v907, %v877
        %v909 = vadd.f32 %v908, %v878
        %v910 = vadd.f32 %v909, %v879
        %v911 = vadd.f32 %v910, %v880
        %v912 = vadd.f32 %v911, %v881
        %v913 = vadd.f32 %v912, %v882
        %v914 = vadd.f32 %v913, %v883
        %v915 = vadd.f32 %v914, %v884
        %v916 = vadd.f32 %v915, %v885
        %v917 = vrot.slane %v916, 4
        %v918 = vadd.f32 %v916, %v917
        %v919 = vrot.slane %v918, 2
        %v920 = vadd.f32 %v918, %v919
        %v921 = vrot.slane %v920, 1
        %v922 = vadd.f32 %v920, %v921
        %v923 = vrcp.pop 256.0
        %v924 = vmul.f32 %v922, %v923
        %v925 = vsub.f32 %v854, %v924
        %v926 = vsub.f32 %v855, %v924
        %v927 = vsub.f32 %v856, %v924
        %v928 = vsub.f32 %v857, %v924
        %v929 = vsub.f32 %v858, %v924
        %v930 = vsub.f32 %v859, %v924
        %v931 = vsub.f32 %v860, %v924
        %v932 = vsub.f32 %v861, %v924
        %v933 = vsub.f32 %v862, %v924
        %v934 = vsub.f32 %v863, %v924
        %v935 = vsub.f32 %v864, %v924
        %v936 = vsub.f32 %v865, %v924
        %v937 = vsub.f32 %v866, %v924
        %v938 = vsub.f32 %v867, %v924
        %v939 = vsub.f32 %v868, %v924
        %v940 = vsub.f32 %v869, %v924
        %v941 = vsub.f32 %v870, %v924
        %v942 = vsub.f32 %v871, %v924
        %v943 = vsub.f32 %v872, %v924
        %v944 = vsub.f32 %v873, %v924
        %v945 = vsub.f32 %v874, %v924
        %v946 = vsub.f32 %v875, %v924
        %v947 = vsub.f32 %v876, %v924
        %v948 = vsub.f32 %v877, %v924
        %v949 = vsub.f32 %v878, %v924
        %v950 = vsub.f32 %v879, %v924
        %v951 = vsub.f32 %v880, %v924
        %v952 = vsub.f32 %v881, %v924
        %v953 = vsub.f32 %v882, %v924
        %v954 = vsub.f32 %v883, %v924
        %v955 = vsub.f32 %v884, %v924
        %v956 = vsub.f32 %v885, %v924
        %v957 = vmul.f32 %v925, %v925
        %v958 = vmul.f32 %v926, %v926
        %v959 = vmul.f32 %v927, %v927
        %v960 = vmul.f32 %v928, %v928
        %v961 = vmul.f32 %v929, %v929
        %v962 = vmul.f32 %v930, %v930
        %v963 = vmul.f32 %v931, %v931
        %v964 = vmul.f32 %v932, %v932
        %v965 = vmul.f32 %v933, %v933
        %v966 = vmul.f32 %v934, %v934
        %v967 = vmul.f32 %v935, %v935
        %v968 = vmul.f32 %v936, %v936
        %v969 = vmul.f32 %v937, %v937
        %v970 = vmul.f32 %v938, %v938
        %v971 = vmul.f32 %v939, %v939
        %v972 = vmul.f32 %v940, %v940
        %v973 = vmul.f32 %v941, %v941
        %v974 = vmul.f32 %v942, %v942
        %v975 = vmul.f32 %v943, %v943
        %v976 = vmul.f32 %v944, %v944
        %v977 = vmul.f32 %v945, %v945
        %v978 = vmul.f32 %v946, %v946
        %v979 = vmul.f32 %v947, %v947
        %v980 = vmul.f32 %v948, %v948
        %v981 = vmul.f32 %v949, %v949
        %v982 = vmul.f32 %v950, %v950
        %v983 = vmul.f32 %v951, %v951
        %v984 = vmul.f32 %v952, %v952
        %v985 = vmul.f32 %v953, %v953
        %v986 = vmul.f32 %v954, %v954
        %v987 = vmul.f32 %v955, %v955
        %v988 = vmul.f32 %v956, %v956
        %v989 = vadd.f32 %v957, %v958
        %v990 = vadd.f32 %v989, %v959
        %v991 = vadd.f32 %v990, %v960
        %v992 = vadd.f32 %v991, %v961
        %v993 = vadd.f32 %v992, %v962
        %v994 = vadd.f32 %v993, %v963
        %v995 = vadd.f32 %v994, %v964
        %v996 = vadd.f32 %v995, %v965
        %v997 = vadd.f32 %v996, %v966
        %v998 = vadd.f32 %v997, %v967
        %v999 = vadd.f32 %v998, %v968
        %v1000 = vadd.f32 %v999, %v969
        %v1001 = vadd.f32 %v1000, %v970
        %v1002 = vadd.f32 %v1001, %v971
        %v1003 = vadd.f32 %v1002, %v972
        %v1004 = vadd.f32 %v1003, %v973
        %v1005 = vadd.f32 %v1004, %v974
        %v1006 = vadd.f32 %v1005, %v975
        %v1007 = vadd.f32 %v1006, %v976
        %v1008 = vadd.f32 %v1007, %v977
        %v1009 = vadd.f32 %v1008, %v978
        %v1010 = vadd.f32 %v1009, %v979
        %v1011 = vadd.f32 %v1010, %v980
        %v1012 = vadd.f32 %v1011, %v981
        %v1013 = vadd.f32 %v1012, %v982
        %v1014 = vadd.f32 %v1013, %v983
        %v1015 = vadd.f32 %v1014, %v984
        %v1016 = vadd.f32 %v1015, %v985
        %v1017 = vadd.f32 %v1016, %v986
        %v1018 = vadd.f32 %v1017, %v987
        %v1019 = vadd.f32 %v1018, %v988
        %v1020 = vrot.slane %v1019, 4
        %v1021 = vadd.f32 %v1019, %v1020
        %v1022 = vrot.slane %v1021, 2
        %v1023 = vadd.f32 %v1021, %v1022
        %v1024 = vrot.slane %v1023, 1
        %v1025 = vadd.f32 %v1023, %v1024
        %v1026 = vmul.f32 %v1025, %v923
        %v1027 = vadd.f32 %v1026, 1e-05
        %v1028 = vrsqrt.pop %v1027
        %v1029 = vmul.f32 %v925, %v1028
        %v1030 = vmul.f32 %v926, %v1028
        %v1031 = vmul.f32 %v927, %v1028
        %v1032 = vmul.f32 %v928, %v1028
        %v1033 = vmul.f32 %v929, %v1028
        %v1034 = vmul.f32 %v930, %v1028
        %v1035 = vmul.f32 %v931, %v1028
        %v1036 = vmul.f32 %v932, %v1028
        %v1037 = vmul.f32 %v933, %v1028
        %v1038 = vmul.f32 %v934, %v1028
        %v1039 = vmul.f32 %v935, %v1028
        %v1040 = vmul.f32 %v936, %v1028
        %v1041 = vmul.f32 %v937, %v1028
        %v1042 = vmul.f32 %v938, %v1028
        %v1043 = vmul.f32 %v939, %v1028
        %v1044 = vmul.f32 %v940, %v1028
        %v1045 = vmul.f32 %v941, %v1028
        %v1046 = vmul.f32 %v942, %v1028
        %v1047 = vmul.f32 %v943, %v1028
        %v1048 = vmul.f32 %v944, %v1028
        %v1049 = vmul.f32 %v945, %v1028
        %v1050 = vmul.f32 %v946, %v1028
        %v1051 = vmul.f32 %v947, %v1028
        %v1052 = vmul.f32 %v948, %v1028
        %v1053 = vmul.f32 %v949, %v1028
        %v1054 = vmul.f32 %v950, %v1028
        %v1055 = vmul.f32 %v951, %v1028
        %v1056 = vmul.f32 %v952, %v1028
        %v1057 = vmul.f32 %v953, %v1028
        %v1058 = vmul.f32 %v954, %v1028
        %v1059 = vmul.f32 %v955, %v1028
        %v1060 = vmul.f32 %v956, %v1028
        %v1061 = vmax.f32 %v1029, 0.0
        %v1062 = vmax.f32 %v1030, 0.0
        %v1063 = vmax.f32 %v1031, 0.0
        %v1064 = vmax.f32 %v1032, 0.0
        %v1065 = vmax.f32 %v1033, 0.0
        %v1066 = vmax.f32 %v1034, 0.0
        %v1067 = vmax.f32 %v1035, 0.0
        %v1068 = vmax.f32 %v1036, 0.0
        %v1069 = vmax.f32 %v1037, 0.0
        %v1070 = vmax.f32 %v1038, 0.0
        %v1071 = vmax.f32 %v1039, 0.0
        %v1072 = vmax.f32 %v1040, 0.0
        %v1073 = vmax.f32 %v1041, 0.0
        %v1074 = vmax.f32 %v1042, 0.0
        %v1075 = vmax.f32 %v1043, 0.0
        %v1076 = vmax.f32 %v1044, 0.0
        %v1077 = vmax.f32 %v1045, 0.0
        %v1078 = vmax.f32 %v1046, 0.0
        %v1079 = vmax.f32 %v1047, 0.0
        %v1080 = vmax.f32 %v1048, 0.0
        %v1081 = vmax.f32 %v1049, 0.0
        %v1082 = vmax.f32 %v1050, 0.0
        %v1083 = vmax.f32 %v1051, 0.0
        %v1084 = vmax.f32 %v1052, 0.0
        %v1085 = vmax.f32 %v1053, 0.0
        %v1086 = vmax.f32 %v1054, 0.0
        %v1087 = vmax.f32 %v1055, 0.0
        %v1088 = vmax.f32 %v1056, 0.0
        %v1089 = vmax.f32 %v1057, 0.0
        %v1090 = vmax.f32 %v1058, 0.0
        %v1091 = vmax.f32 %v1059, 0.0
        %v1092 = vmax.f32 %v1060, 0.0
        %1093 = vst [vmem:[%s220] sm:$0xff] %v1061
        %1094 = vst [vmem:[%s220 + $0x8] sm:$0xff] %v1062
        %1095 = vst [vmem:[%s220 + $0x10] sm:$0xff] %v1063
        %1096 = vst [vmem:[%s220 + $0x18] sm:$0xff] %v1064
        %1097 = vst [vmem:[%s220 + $0x20] sm:$0xff] %v1065
        %1098 = vst [vmem:[%s220 + $0x28] sm:$0xff] %v1066
        %1099 = vst [vmem:[%s220 + $0x30] sm:$0xff] %v1067
        %1100 = vst [vmem:[%s220 + $0x38] sm:$0xff] %v1068
        %1101 = vst [vmem:[%s220 + $0x40] sm:$0xff] %v1069
        %1102 = vst [vmem:[%s220 + $0x48] sm:$0xff] %v1070
        %1103 = vst [vmem:[%s220 + $0x50] sm:$0xff] %v1071
        %1104 = vst [vmem:[%s220 + $0x58] sm:$0xff] %v1072
        %1105 = vst [vmem:[%s220 + $0x60] sm:$0xff] %v1073
        %1106 = vst [vmem:[%s220 + $0x68] sm:$0xff] %v1074
        %1107 = vst [vmem:[%s220 + $0x70] sm:$0xff] %v1075
        %1108 = vst [vmem:[%s220 + $0x78] sm:$0xff] %v1076
        %1109 = vst [vmem:[%s220 + $0x80] sm:$0xff] %v1077
        %1110 = vst [vmem:[%s220 + $0x88] sm:$0xff] %v1078
        %1111 = vst [vmem:[%s220 + $0x90] sm:$0xff] %v1079
        %1112 = vst [vmem:[%s220 + $0x98] sm:$0xff] %v1080
        %1113 = vst [vmem:[%s220 + $0xa0] sm:$0xff] %v1081
        %1114 = vst [vmem:[%s220 + $0xa8] sm:$0xff] %v1082
        %1115 = vst [vmem:[%s220 + $0xb0] sm:$0xff] %v1083
        %1116 = vst [vmem:[%s220 + $0xb8] sm:$0xff] %v1084
        %1117 = vst [vmem:[%s220 + $0xc0] sm:$0xff] %v1085
        %1118 = vst [vmem:[%s220 + $0xc8] sm:$0xff] %v1086
        %1119 = vst [vmem:[%s220 + $0xd0] sm:$0xff] %v1087
        %1120 = vst [vmem:[%s220 + $0xd8] sm:$0xff] %v1088
        %1121 = vst [vmem:[%s220 + $0xe0] sm:$0xff] %v1089
        %1122 = vst [vmem:[%s220 + $0xe8] sm:$0xff] %v1090
        %1123 = vst [vmem:[%s220 + $0xf0] sm:$0xff] %v1091
        %1124 = vst [vmem:[%s220 + $0xf8] sm:$0xff] %v1092
      $region40: #{generator_forward.26} parent=31 // pred_fallthru
        _
      %p1125 = scmp.lt.s32.totalorder %s18, 1
      %s1126 = scalar_select %p1125, %s18, 1
      %s1127 = smul.addr %s1126, 32
      %s1128 = smul.addr %s1127, 8
      %s1129 = scalar_lea.vmem %s3, %s1128
      // Predicated region
      $region41: #{generator_forward.26} parent=31 // pred_check
        %p1130 = pneg %p119
      $region42: #{generator_forward.26} parent=31 // pred_check_branch
        %1132 = sbr.rel (%p1130) target = $region44
      $region43: #{generator_forward.26} parent=31 // pred_region
        _
      $region44: #{generator_forward.26} parent=31 // pred_fallthru
        _
    $region32: #{generator_forward.26} parent=5 // pred_fallthru
      _
    %p1133 = scmp.le.s32.totalorder 2, %s9
    // Predicated region
    $region45: #{generator_forward.26} parent=5 // pred_check
      %p1134 = pneg %p1133
    $region46: #{generator_forward.26} parent=5 // pred_check_branch
      %1136 = sbr.rel (%p1134) target = $region48
    $region47: #{generator_forward.26} parent=5 // pred_region
      %s1137 = ssub.s32 %s9, 2
      // Predicated region
      $region49: #{generator_forward.26} parent=47 // pred_check
        %p1138 = pneg %p125
      $region50: #{generator_forward.26} parent=47 // pred_check_branch
        %1140 = sbr.rel (%p1138) target = $region52
      $region51: #{generator_forward.26} parent=47 // pred_region
        %p1141 = scmp.lt.s32.totalorder %s20, 1
        %s1142 = scalar_select %p1141, %s20, 1
        %s1143 = smul.addr %s1142, 32
        %s1144 = smul.addr %s1143, 8
        %s1145 = scalar_lea.vmem %s3, %s1144
      $region52: #{generator_forward.26} parent=47 // pred_fallthru
        _
    $region48: #{generator_forward.26} parent=5 // pred_fallthru
      _
  $region6: #{generator_forward.26} parent=0 // loop_footer
    %s13 = sadd.s32 1, %s9
  $region7: #{generator_forward.26} parent=0 // loop_footer_branch
    %8 = sbr.rel target = $region3
  $region8: #{generator_forward.26} parent=0 // loop_exit
    _

// kernel: generator_forward.27
$region0: #{generator_forward.27}
  #allocation0 [shape = 'u32[]', space=smem, size = 0x4, offset = 0x4, fixed_abs, tag = 'smem constant byte address 0x4 - core index']
  #allocation1 [shape = 'u32[144,128]{1,0:T(1,128)}', space=vmem, size = 0x12000, scoped, tag = 'internal scratch']
  #allocation2 [shape = 'f32[256,128]{1,0:T(8,128)}', space=vmem, size = 0x20000, scoped, tag = 'scratch operand']
  %s0 = inlined_call_operand.vmem [shape: bf16[2,256,392], index: 0, kind: input, shape index: {}]
  %s1 = inlined_call_operand.vmem [shape: bf16[392,128], index: 1, kind: input, shape index: {}]
  %s2 = inlined_call_operand.vmem [shape: f32[1,128], index: 2, kind: input, shape index: {}]
  %s3 = inlined_call_operand.vmem [shape: f32[2,256,128], index: 3, kind: output, shape index: {}]
  %s4 = sld [smem:[#allocation0]]
  $region53: #{generator_forward.27} parent=0
    _
  %s6 = ssub.s32 1, %s4
  %s7 = scalar_select 0, %s6, %s4
  loop: start=0, step=1, limit=4
  $region2: #{generator_forward.27} parent=0 // loop_pre_header
    _
  $region3: #{generator_forward.27} parent=0 // loop_header
    %s9 = sphi 0, %s13
    %p10 = scmp.ge.s32.totalorder %s9, 4
    %s16 = sphi 0, %s28
    %s17 = sphi 0, %s24
    %s18 = sphi 0, %s16
    %s19 = sphi 0, %s17
    %s20 = sphi 0, %s18
    %s21 = sphi 0, %s19
    %s33 = sphi 0, %s35
    %s36 = sphi 0, %s33
    %s37 = sphi 0, %s36
    %s53 = sphi 0, %s37
    %s59 = sphi 0, %s61
    %s62 = sphi 0, %s59
    %s63 = sphi 0, %s62
    %s79 = sphi 0, %s63
    %s83 = sphi 0, %s83
    %s85 = sphi 0, %s83
    %s86 = sphi 0, %s85
    %s100 = sphi 0, %s86
    %s106 = sphi 0, %s108
    %s109 = sphi 0, %s106
    %s110 = sphi 0, %s109
    %s126 = sphi 0, %s110
  $region4: #{generator_forward.27} parent=0 // loop_header_branch
    %12 = sbr.rel (%p10) target = $region8
  $region5: #{generator_forward.27} parent=0 // loop_body
    %s14 = ssub.s32 %s9, 1
    %s15 = ssub.s32 %s9, 2
    %s22 = sadd.s32 1, %s17
    %p23 = scmp.ge.s32.totalorder %s22, 1
    %s24 = scalar_select %p23, 0, %s22
    %s25 = sadd.s32 1, %s16
    %s26 = scalar_select %p23, %s25, %s16
    %p27 = scmp.ge.s32.totalorder %s26, 2
    %s28 = scalar_select %p27, 0, %s26
    %s29 = ssub.s32 %s16, %s28
    %s30 = ssub.s32 %s17, %s24
    %s31 = sor.u32 %s29, %s30
    %p32 = scmp.eq.s32.totalorder %s31, 0
    %s34 = sadd.s32 %s33, 1
    %s35 = scalar_select %p32, %s33, %s34
    %p38 = pneg %p32
    %p39 = scmp.eq.s32.totalorder %s9, 1
    %p40 = por %p38, %p39
    %p41 = scmp.ne.s32.totalorder %s33, %s36
    %p42 = scmp.eq.s32.totalorder %s9, 0
    %p43 = por %p41, %p42
    %p44 = scmp.ne.s32.totalorder %s33, %s36
    %p45 = scmp.eq.s32.totalorder %s14, 1
    %p46 = por %p44, %p45
    %p47 = scmp.ne.s32.totalorder %s36, %s37
    %p48 = scmp.eq.s32.totalorder %s14, 0
    %p49 = por %p47, %p48
    %p50 = scmp.ne.s32.totalorder %s36, %s37
    %p51 = scmp.eq.s32.totalorder %s15, 1
    %p52 = por %p50, %p51
    %p54 = scmp.ne.s32.totalorder %s37, %s53
    %p55 = scmp.eq.s32.totalorder %s15, 0
    %p56 = por %p54, %p55
    %s57 = ssub.s32 %s17, %s24
    %p58 = scmp.eq.s32.totalorder %s57, 0
    %s60 = sadd.s32 %s59, 1
    %s61 = scalar_select %p58, %s59, %s60
    %p64 = pneg %p58
    %p65 = scmp.eq.s32.totalorder %s9, 1
    %p66 = por %p64, %p65
    %p67 = scmp.ne.s32.totalorder %s59, %s62
    %p68 = scmp.eq.s32.totalorder %s9, 0
    %p69 = por %p67, %p68
    %p70 = scmp.ne.s32.totalorder %s59, %s62
    %p71 = scmp.eq.s32.totalorder %s14, 1
    %p72 = por %p70, %p71
    %p73 = scmp.ne.s32.totalorder %s62, %s63
    %p74 = scmp.eq.s32.totalorder %s14, 0
    %p75 = por %p73, %p74
    %p76 = scmp.ne.s32.totalorder %s62, %s63
    %p77 = scmp.eq.s32.totalorder %s15, 1
    %p78 = por %p76, %p77
    %p80 = scmp.ne.s32.totalorder %s63, %s79
    %p81 = scmp.eq.s32.totalorder %s15, 0
    %p82 = por %p80, %p81
    %s84 = sadd.s32 %s83, 1
    %p87 = scmp.eq.s32.totalorder %s9, 1
    %p88 = scmp.ne.s32.totalorder %s83, %s85
    %p89 = scmp.eq.s32.totalorder %s9, 0
    %p90 = por %p88, %p89
    %p91 = scmp.ne.s32.totalorder %s83, %s85
    %p92 = scmp.eq.s32.totalorder %s14, 1
    %p93 = por %p91, %p92
    %p94 = scmp.ne.s32.totalorder %s85, %s86
    %p95 = scmp.eq.s32.totalorder %s14, 0
    %p96 = por %p94, %p95
    %p97 = scmp.ne.s32.totalorder %s85, %s86
    %p98 = scmp.eq.s32.totalorder %s15, 1
    %p99 = por %p97, %p98
    %p101 = scmp.ne.s32.totalorder %s86, %s100
    %p102 = scmp.eq.s32.totalorder %s15, 0
    %p103 = por %p101, %p102
    %s104 = ssub.s32 %s16, %s28
    %p105 = scmp.eq.s32.totalorder %s104, 0
    %s107 = sadd.s32 %s106, 1
    %s108 = scalar_select %p105, %s106, %s107
    %p111 = pneg %p105
    %p112 = scmp.eq.s32.totalorder %s9, 1
    %p113 = por %p111, %p112
    %p114 = scmp.ne.s32.totalorder %s106, %s109
    %p115 = scmp.eq.s32.totalorder %s9, 0
    %p116 = por %p114, %p115
    %p117 = scmp.ne.s32.totalorder %s106, %s109
    %p118 = scmp.eq.s32.totalorder %s14, 1
    %p119 = por %p117, %p118
    %p120 = scmp.ne.s32.totalorder %s109, %s110
    %p121 = scmp.eq.s32.totalorder %s14, 0
    %p122 = por %p120, %p121
    %p123 = scmp.ne.s32.totalorder %s109, %s110
    %p124 = scmp.eq.s32.totalorder %s15, 1
    %p125 = por %p123, %p124
    %p127 = scmp.ne.s32.totalorder %s110, %s126
    %p128 = scmp.eq.s32.totalorder %s15, 0
    %p129 = por %p127, %p128
    %p130 = scmp.le.s32.totalorder 1, %s9
    %p131 = scmp.lt.s32.totalorder %s9, 3
    %p132 = pnand %p130, %p131
    %p133 = pneg %p132
    // Predicated region
    $region9: #{generator_forward.27} parent=5 // pred_check
      _
    $region10: #{generator_forward.27} parent=5 // pred_check_branch
      %135 = sbr.rel (%p132) target = $region12
    $region11: #{generator_forward.27} parent=5 // pred_region
      %s136 = ssub.s32 %s9, 1
      // Predicated region
      $region13: #{generator_forward.27} parent=11 // pred_check
        %p137 = pneg %p75
      $region14: #{generator_forward.27} parent=11 // pred_check_branch
        %139 = sbr.rel (%p137) target = $region16
      $region15: #{generator_forward.27} parent=11 // pred_region
        %s140 = smul.u32 49, %s19
        %p141 = scmp.lt.s32.totalorder %s140, 48
        %s142 = scalar_select %p141, %s140, 48
        %s143 = smul.addr %s142, 4
        %s144 = scalar_lea.vmem %s1, %s143
        %s145 = smul.u32 49, %s19
      $region16: #{generator_forward.27} parent=11 // pred_fallthru
        _
      // Predicated region
      $region17: #{generator_forward.27} parent=11 // pred_check
        %p146 = pneg %p96
      $region18: #{generator_forward.27} parent=11 // pred_check_branch
        %148 = sbr.rel (%p146) target = $region20
      $region19: #{generator_forward.27} parent=11 // pred_region
        _
      $region20: #{generator_forward.27} parent=11 // pred_fallthru
        _
    $region12: #{generator_forward.27} parent=5 // pred_fallthru
      _
    %p149 = scmp.lt.s32.totalorder %s9, 2
    // Predicated region
    $region21: #{generator_forward.27} parent=5 // pred_check
      %p150 = pneg %p149
    $region22: #{generator_forward.27} parent=5 // pred_check_branch
      %152 = sbr.rel (%p150) target = $region24
    $region23: #{generator_forward.27} parent=5 // pred_region
      // Predicated region
      $region25: #{generator_forward.27} parent=23 // pred_check
        %p153 = pneg %p43
      $region26: #{generator_forward.27} parent=23 // pred_check_branch
        %155 = sbr.rel (%p153) target = $region28
      $region27: #{generator_forward.27} parent=23 // pred_region
        %s156 = smul.u32 4, %s17
        %p157 = scmp.lt.s32.totalorder %s16, 1
        %s158 = scalar_select %p157, %s16, 1
        %p159 = scmp.lt.s32.totalorder %s156, 3
        %s160 = scalar_select %p159, %s156, 3
        %s161 = smul.addr %s158, 128
        %s162 = sadd.s32 %s160, %s161
        %s163 = smul.addr %s162, 4
        %s164 = scalar_lea.vmem %s0, %s163
        %s165 = smul.u32 4, %s17
      $region28: #{generator_forward.27} parent=23 // pred_fallthru
        _
    $region24: #{generator_forward.27} parent=5 // pred_fallthru
      _
    %p166 = scmp.le.s32.totalorder 1, %s9
    %p167 = scmp.lt.s32.totalorder %s9, 3
    %p168 = pnand %p166, %p167
    %p169 = pneg %p168
    // Predicated region
    $region29: #{generator_forward.27} parent=5 // pred_check
      _
    $region30: #{generator_forward.27} parent=5 // pred_check_branch
      %171 = sbr.rel (%p168) target = $region32
    $region31: #{generator_forward.27} parent=5 // pred_region
      %s172 = ssub.s32 %s9, 1
      %s173 = smul.u32 4, %s19
      %p174 = scmp.lt.s32.totalorder %s18, 1
      %s175 = scalar_select %p174, %s18, 1
      %p176 = scmp.lt.s32.totalorder %s173, 3
      %s177 = scalar_select %p176, %s173, 3
      %s178 = smul.addr %s175, 128
      %s179 = sadd.s32 %s177, %s178
      %s180 = smul.addr %s179, 4
      %s181 = scalar_lea.vmem %s0, %s180
      %p182 = pneg %p49
      %p183 = pneg %p46
      %s184 = smul.u32 49, %s19
      %p185 = scmp.lt.s32.totalorder %s184, 48
      %s186 = scalar_select %p185, %s184, 48
      %s187 = smul.addr %s186, 4
      %s188 = scalar_lea.vmem %s1, %s187
      %p189 = pneg %p75
      %p190 = pneg %p72
      %p191 = pneg %p96
      %p192 = pneg %p93
      %p193 = pneg %p122
      %p194 = pneg %p119
      %p195 = scmp.lt.s32.totalorder %s18, 1
      %s196 = scalar_select %p195, %s18, 1
      %s197 = smul.addr %s196, 32
      %s198 = smul.addr %s197, 8
      %s199 = scalar_lea.vmem %s3, %s198
      %s200 = smul.u32 4, %s19
      %p201 = scmp.lt.s32.totalorder %s18, 1
      %s202 = scalar_select %p201, %s18, 1
      %p203 = scmp.lt.s32.totalorder %s200, 3
      %s204 = scalar_select %p203, %s200, 3
      %s205 = smul.addr %s202, 128
      %s206 = sadd.s32 %s204, %s205
      %s207 = smul.addr %s206, 4
      %s208 = scalar_lea.vmem %s0, %s207
      %s209 = smul.u32 4, %s19
      %s210 = smul.u32 49, %s19
      %p211 = scmp.lt.s32.totalorder %s210, 48
      %s212 = scalar_select %p211, %s210, 48
      %s213 = smul.addr %s212, 4
      %s214 = scalar_lea.vmem %s1, %s213
      %s215 = smul.u32 49, %s19
      %p216 = scmp.lt.s32.totalorder %s18, 1
      %s217 = scalar_select %p216, %s18, 1
      %s218 = smul.addr %s217, 32
      %s219 = smul.addr %s218, 8
      %s220 = scalar_lea.vmem %s3, %s219
      %p222 = scmp.eq.s32.totalorder %s19, 0
      // Predicated region
      $region33: #{generator_forward.27} parent=31 // pred_check
        %p223 = pneg %p222
      $region34: #{generator_forward.27} parent=31 // pred_check_branch
        %225 = sbr.rel (%p223) target = $region36
      $region35: #{generator_forward.27} parent=31 // pred_region
        %226 = vst [vmem:[#allocation2] sm:$0xff] 0.0
        %227 = vst [vmem:[#allocation2 + $0x8] sm:$0xff] 0.0
        %228 = vst [vmem:[#allocation2 + $0x10] sm:$0xff] 0.0
        %229 = vst [vmem:[#allocation2 + $0x18] sm:$0xff] 0.0
        %230 = vst [vmem:[#allocation2 + $0x20] sm:$0xff] 0.0
        %231 = vst [vmem:[#allocation2 + $0x28] sm:$0xff] 0.0
        %232 = vst [vmem:[#allocation2 + $0x30] sm:$0xff] 0.0
        %233 = vst [vmem:[#allocation2 + $0x38] sm:$0xff] 0.0
        %234 = vst [vmem:[#allocation2 + $0x40] sm:$0xff] 0.0
        %235 = vst [vmem:[#allocation2 + $0x48] sm:$0xff] 0.0
        %236 = vst [vmem:[#allocation2 + $0x50] sm:$0xff] 0.0
        %237 = vst [vmem:[#allocation2 + $0x58] sm:$0xff] 0.0
        %238 = vst [vmem:[#allocation2 + $0x60] sm:$0xff] 0.0
        %239 = vst [vmem:[#allocation2 + $0x68] sm:$0xff] 0.0
        %240 = vst [vmem:[#allocation2 + $0x70] sm:$0xff] 0.0
        %241 = vst [vmem:[#allocation2 + $0x78] sm:$0xff] 0.0
        %242 = vst [vmem:[#allocation2 + $0x80] sm:$0xff] 0.0
        %243 = vst [vmem:[#allocation2 + $0x88] sm:$0xff] 0.0
        %244 = vst [vmem:[#allocation2 + $0x90] sm:$0xff] 0.0
        %245 = vst [vmem:[#allocation2 + $0x98] sm:$0xff] 0.0
        %246 = vst [vmem:[#allocation2 + $0xa0] sm:$0xff] 0.0
        %247 = vst [vmem:[#allocation2 + $0xa8] sm:$0xff] 0.0
        %248 = vst [vmem:[#allocation2 + $0xb0] sm:$0xff] 0.0
        %249 = vst [vmem:[#allocation2 + $0xb8] sm:$0xff] 0.0
        %250 = vst [vmem:[#allocation2 + $0xc0] sm:$0xff] 0.0
        %251 = vst [vmem:[#allocation2 + $0xc8] sm:$0xff] 0.0
        %252 = vst [vmem:[#allocation2 + $0xd0] sm:$0xff] 0.0
        %253 = vst [vmem:[#allocation2 + $0xd8] sm:$0xff] 0.0
        %254 = vst [vmem:[#allocation2 + $0xe0] sm:$0xff] 0.0
        %255 = vst [vmem:[#allocation2 + $0xe8] sm:$0xff] 0.0
        %256 = vst [vmem:[#allocation2 + $0xf0] sm:$0xff] 0.0
        %257 = vst [vmem:[#allocation2 + $0xf8] sm:$0xff] 0.0
      $region36: #{generator_forward.27} parent=31 // pred_fallthru
        _
      %v258 = vld [vmem:[#allocation2] sm:$0xff]
      %v259 = vld [vmem:[#allocation2 + $0x8] sm:$0xff]
      %v260 = vld [vmem:[#allocation2 + $0x10] sm:$0xff]
      %v261 = vld [vmem:[#allocation2 + $0x18] sm:$0xff]
      %v262 = vld [vmem:[#allocation2 + $0x20] sm:$0xff]
      %v263 = vld [vmem:[#allocation2 + $0x28] sm:$0xff]
      %v264 = vld [vmem:[#allocation2 + $0x30] sm:$0xff]
      %v265 = vld [vmem:[#allocation2 + $0x38] sm:$0xff]
      %v266 = vld [vmem:[#allocation2 + $0x40] sm:$0xff]
      %v267 = vld [vmem:[#allocation2 + $0x48] sm:$0xff]
      %v268 = vld [vmem:[#allocation2 + $0x50] sm:$0xff]
      %v269 = vld [vmem:[#allocation2 + $0x58] sm:$0xff]
      %v270 = vld [vmem:[#allocation2 + $0x60] sm:$0xff]
      %v271 = vld [vmem:[#allocation2 + $0x68] sm:$0xff]
      %v272 = vld [vmem:[#allocation2 + $0x70] sm:$0xff]
      %v273 = vld [vmem:[#allocation2 + $0x78] sm:$0xff]
      %v274 = vld [vmem:[#allocation2 + $0x80] sm:$0xff]
      %v275 = vld [vmem:[#allocation2 + $0x88] sm:$0xff]
      %v276 = vld [vmem:[#allocation2 + $0x90] sm:$0xff]
      %v277 = vld [vmem:[#allocation2 + $0x98] sm:$0xff]
      %v278 = vld [vmem:[#allocation2 + $0xa0] sm:$0xff]
      %v279 = vld [vmem:[#allocation2 + $0xa8] sm:$0xff]
      %v280 = vld [vmem:[#allocation2 + $0xb0] sm:$0xff]
      %v281 = vld [vmem:[#allocation2 + $0xb8] sm:$0xff]
      %v282 = vld [vmem:[#allocation2 + $0xc0] sm:$0xff]
      %v283 = vld [vmem:[#allocation2 + $0xc8] sm:$0xff]
      %v284 = vld [vmem:[#allocation2 + $0xd0] sm:$0xff]
      %v285 = vld [vmem:[#allocation2 + $0xd8] sm:$0xff]
      %v286 = vld [vmem:[#allocation2 + $0xe0] sm:$0xff]
      %v287 = vld [vmem:[#allocation2 + $0xe8] sm:$0xff]
      %v288 = vld [vmem:[#allocation2 + $0xf0] sm:$0xff]
      %v289 = vld [vmem:[#allocation2 + $0xf8] sm:$0xff]
      %v290 = vld [vmem:[%s208] sm:$0xff]
      %v291 = vld [vmem:[%s208 + $0x8] sm:$0xff]
      %v292 = vld [vmem:[%s208 + $0x10] sm:$0xff]
      %v293 = vld [vmem:[%s208 + $0x18] sm:$0xff]
      %v294 = vld [vmem:[%s208 + $0x20] sm:$0xff]
      %v295 = vld [vmem:[%s208 + $0x28] sm:$0xff]
      %v296 = vld [vmem:[%s208 + $0x30] sm:$0xff]
      %v297 = vld [vmem:[%s208 + $0x38] sm:$0xff]
      %v298 = vld [vmem:[%s208 + $0x40] sm:$0xff]
      %v299 = vld [vmem:[%s208 + $0x48] sm:$0xff]
      %v300 = vld [vmem:[%s208 + $0x50] sm:$0xff]
      %v301 = vld [vmem:[%s208 + $0x58] sm:$0xff]
      %v302 = vld [vmem:[%s208 + $0x60] sm:$0xff]
      %v303 = vld [vmem:[%s208 + $0x68] sm:$0xff]
      %v304 = vld [vmem:[%s208 + $0x70] sm:$0xff]
      %v305 = vld [vmem:[%s208 + $0x78] sm:$0xff]
      %v306 = vld [vmem:[%s208 + $0x80] sm:$0xff]
      %v307 = vld [vmem:[%s208 + $0x88] sm:$0xff]
      %v308 = vld [vmem:[%s208 + $0x90] sm:$0xff]
      %v309 = vld [vmem:[%s208 + $0x98] sm:$0xff]
      %v310 = vld [vmem:[%s208 + $0xa0] sm:$0xff]
      %v311 = vld [vmem:[%s208 + $0xa8] sm:$0xff]
      %v312 = vld [vmem:[%s208 + $0xb0] sm:$0xff]
      %v313 = vld [vmem:[%s208 + $0xb8] sm:$0xff]
      %v314 = vld [vmem:[%s208 + $0xc0] sm:$0xff]
      %v315 = vld [vmem:[%s208 + $0xc8] sm:$0xff]
      %v316 = vld [vmem:[%s208 + $0xd0] sm:$0xff]
      %v317 = vld [vmem:[%s208 + $0xd8] sm:$0xff]
      %v318 = vld [vmem:[%s208 + $0xe0] sm:$0xff]
      %v319 = vld [vmem:[%s208 + $0xe8] sm:$0xff]
      %v320 = vld [vmem:[%s208 + $0xf0] sm:$0xff]
      %v321 = vld [vmem:[%s208 + $0xf8] sm:$0xff]
      %v322 = vld [vmem:[%s208 + $0x100] sm:$0xff]
      %v323 = vld [vmem:[%s208 + $0x108] sm:$0xff]
      %v324 = vld [vmem:[%s208 + $0x110] sm:$0xff]
      %v325 = vld [vmem:[%s208 + $0x118] sm:$0xff]
      %v326 = vld [vmem:[%s208 + $0x120] sm:$0xff]
      %v327 = vld [vmem:[%s208 + $0x128] sm:$0xff]
      %v328 = vld [vmem:[%s208 + $0x130] sm:$0xff]
      %v329 = vld [vmem:[%s208 + $0x138] sm:$0xff]
      %v330 = vld [vmem:[%s208 + $0x140] sm:$0xff]
      %v331 = vld [vmem:[%s208 + $0x148] sm:$0xff]
      %v332 = vld [vmem:[%s208 + $0x150] sm:$0xff]
      %v333 = vld [vmem:[%s208 + $0x158] sm:$0xff]
      %v334 = vld [vmem:[%s208 + $0x160] sm:$0xff]
      %v335 = vld [vmem:[%s208 + $0x168] sm:$0xff]
      %v336 = vld [vmem:[%s208 + $0x170] sm:$0xff]
      %v337 = vld [vmem:[%s208 + $0x178] sm:$0xff]
      %v338 = vld [vmem:[%s208 + $0x180] sm:$0xff]
      %v339 = vld [vmem:[%s208 + $0x188] sm:$0xff]
      %v340 = vld [vmem:[%s208 + $0x190] sm:$0xff]
      %v341 = vld [vmem:[%s208 + $0x198] sm:$0xff]
      %v342 = vld [vmem:[%s208 + $0x1a0] sm:$0xff]
      %v343 = vld [vmem:[%s208 + $0x1a8] sm:$0xff]
      %v344 = vld [vmem:[%s208 + $0x1b0] sm:$0xff]
      %v345 = vld [vmem:[%s208 + $0x1b8] sm:$0xff]
      %v346 = vld [vmem:[%s208 + $0x1c0] sm:$0xff]
      %v347 = vld [vmem:[%s208 + $0x1c8] sm:$0xff]
      %v348 = vld [vmem:[%s208 + $0x1d0] sm:$0xff]
      %v349 = vld [vmem:[%s208 + $0x1d8] sm:$0xff]
      %v350 = vld [vmem:[%s208 + $0x1e0] sm:$0xff]
      %v351 = vld [vmem:[%s208 + $0x1e8] sm:$0xff]
      %v352 = vld [vmem:[%s208 + $0x1f0] sm:$0xff]
      %v353 = vld [vmem:[%s208 + $0x1f8] sm:$0xff]
      %v354 = vld [vmem:[%s214] sm:$0xf]
      %v355 = vld [vmem:[%s214 + $0x4] sm:$0xf]
      %v356 = vld [vmem:[%s214 + $0x8] sm:$0xf]
      %v357 = vld [vmem:[%s214 + $0xc] sm:$0xf]
      %v358 = vld [vmem:[%s214 + $0x10] sm:$0xf]
      %v359 = vld [vmem:[%s214 + $0x14] sm:$0xf]
      %v360 = vld [vmem:[%s214 + $0x18] sm:$0xf]
      %v361 = vld [vmem:[%s214 + $0x1c] sm:$0xf]
      %v362 = vld [vmem:[%s214 + $0x20] sm:$0xf]
      %v363 = vld [vmem:[%s214 + $0x24] sm:$0xf]
      %v364 = vld [vmem:[%s214 + $0x28] sm:$0xf]
      %v365 = vld [vmem:[%s214 + $0x2c] sm:$0xf]
      %v366 = vld [vmem:[%s214 + $0x30] sm:$0xf]
      %v367 = vld [vmem:[%s214 + $0x34] sm:$0xf]
      %v368 = vld [vmem:[%s214 + $0x38] sm:$0xf]
      %v369 = vld [vmem:[%s214 + $0x3c] sm:$0xf]
      %v370 = vld [vmem:[%s214 + $0x40] sm:$0xf]
      %v371 = vld [vmem:[%s214 + $0x44] sm:$0xf]
      %v372 = vld [vmem:[%s214 + $0x48] sm:$0xf]
      %v373 = vld [vmem:[%s214 + $0x4c] sm:$0xf]
      %v374 = vld [vmem:[%s214 + $0x50] sm:$0xf]
      %v375 = vld [vmem:[%s214 + $0x54] sm:$0xf]
      %v376 = vld [vmem:[%s214 + $0x58] sm:$0xf]
      %v377 = vld [vmem:[%s214 + $0x5c] sm:$0xf]
      %v378 = vld [vmem:[%s214 + $0x60] sm:$0xf]
      %v379 = vld [vmem:[%s214 + $0x64] sm:$0xf]
      %v380 = vld [vmem:[%s214 + $0x68] sm:$0xf]
      %v381 = vld [vmem:[%s214 + $0x6c] sm:$0xf]
      %v382 = vld [vmem:[%s214 + $0x70] sm:$0xf]
      %v383 = vld [vmem:[%s214 + $0x74] sm:$0xf]
      %v384 = vld [vmem:[%s214 + $0x78] sm:$0xf]
      %v385 = vld [vmem:[%s214 + $0x7c] sm:$0xf]
      %v386 = vld [vmem:[%s214 + $0x80] sm:$0xf]
      %v387 = vld [vmem:[%s214 + $0x84] sm:$0xf]
      %v388 = vld [vmem:[%s214 + $0x88] sm:$0xf]
      %v389 = vld [vmem:[%s214 + $0x8c] sm:$0xf]
      %v390 = vld [vmem:[%s214 + $0x90] sm:$0xf]
      %v391 = vld [vmem:[%s214 + $0x94] sm:$0xf]
      %v392 = vld [vmem:[%s214 + $0x98] sm:$0xf]
      %v393 = vld [vmem:[%s214 + $0x9c] sm:$0xf]
      %v394 = vld [vmem:[%s214 + $0xa0] sm:$0xf]
      %v395 = vld [vmem:[%s214 + $0xa4] sm:$0xf]
      %v396 = vld [vmem:[%s214 + $0xa8] sm:$0xf]
      %v397 = vld [vmem:[%s214 + $0xac] sm:$0xf]
      %v398 = vld [vmem:[%s214 + $0xb0] sm:$0xf]
      %v399 = vld [vmem:[%s214 + $0xb4] sm:$0xf]
      %v400 = vld [vmem:[%s214 + $0xb8] sm:$0xf]
      %v401 = vld [vmem:[%s214 + $0xbc] sm:$0xf]
      %v402 = vld [vmem:[%s214 + $0xc0] sm:$0xf]
      %v467 = vunpack.c.l.b16 %v290
      %v468 = vunpack.c.h.b16 %v290
      %v469 = vunpack.c.l.b16 %v291
      %v470 = vunpack.c.h.b16 %v291
      %v471 = vunpack.c.l.b16 %v292
      %v472 = vunpack.c.h.b16 %v292
      %v473 = vunpack.c.l.b16 %v293
      %v474 = vunpack.c.h.b16 %v293
      %v475 = vunpack.c.l.b16 %v294
      %v476 = vunpack.c.h.b16 %v294
      %v477 = vunpack.c.l.b16 %v295
      %v478 = vunpack.c.h.b16 %v295
      %v479 = vunpack.c.l.b16 %v296
      %v480 = vunpack.c.h.b16 %v296
      %v481 = vunpack.c.l.b16 %v297
      %v482 = vunpack.c.h.b16 %v297
      %v483 = vunpack.c.l.b16 %v298
      %v484 = vunpack.c.h.b16 %v298
      %v485 = vunpack.c.l.b16 %v299
      %v486 = vunpack.c.h.b16 %v299
      %v487 = vunpack.c.l.b16 %v300
      %v488 = vunpack.c.h.b16 %v300
      %v489 = vunpack.c.l.b16 %v301
      %v490 = vunpack.c.h.b16 %v301
      %v491 = vunpack.c.l.b16 %v302
      %v492 = vunpack.c.h.b16 %v302
      %v493 = vunpack.c.l.b16 %v303
      %v494 = vunpack.c.h.b16 %v303
      %v495 = vunpack.c.l.b16 %v304
      %v496 = vunpack.c.h.b16 %v304
      %v497 = vunpack.c.l.b16 %v305
      %v498 = vunpack.c.h.b16 %v305
      %v499 = vunpack.c.l.b16 %v306
      %v500 = vunpack.c.h.b16 %v306
      %v501 = vunpack.c.l.b16 %v307
      %v502 = vunpack.c.h.b16 %v307
      %v503 = vunpack.c.l.b16 %v308
      %v504 = vunpack.c.h.b16 %v308
      %v505 = vunpack.c.l.b16 %v309
      %v506 = vunpack.c.h.b16 %v309
      %v507 = vunpack.c.l.b16 %v310
      %v508 = vunpack.c.h.b16 %v310
      %v509 = vunpack.c.l.b16 %v311
      %v510 = vunpack.c.h.b16 %v311
      %v511 = vunpack.c.l.b16 %v312
      %v512 = vunpack.c.h.b16 %v312
      %v513 = vunpack.c.l.b16 %v313
      %v514 = vunpack.c.h.b16 %v313
      %v515 = vunpack.c.l.b16 %v314
      %v516 = vunpack.c.h.b16 %v314
      %v517 = vunpack.c.l.b16 %v315
      %v518 = vunpack.c.h.b16 %v315
      %v519 = vunpack.c.l.b16 %v316
      %v520 = vunpack.c.h.b16 %v316
      %v521 = vunpack.c.l.b16 %v317
      %v522 = vunpack.c.h.b16 %v317
      %v523 = vunpack.c.l.b16 %v318
      %v524 = vunpack.c.h.b16 %v318
      %v525 = vunpack.c.l.b16 %v319
      %v526 = vunpack.c.h.b16 %v319
      %v527 = vunpack.c.l.b16 %v320
      %v528 = vunpack.c.h.b16 %v320
      %v529 = vunpack.c.l.b16 %v321
      %v530 = vunpack.c.h.b16 %v321
      %v531 = vunpack.c.l.b16 %v322
      %v532 = vunpack.c.h.b16 %v322
      %v533 = vunpack.c.l.b16 %v323
      %v534 = vunpack.c.h.b16 %v323
      %v535 = vunpack.c.l.b16 %v324
      %v536 = vunpack.c.h.b16 %v324
      %v537 = vunpack.c.l.b16 %v325
      %v538 = vunpack.c.h.b16 %v325
      %v539 = vunpack.c.l.b16 %v326
      %v540 = vunpack.c.h.b16 %v326
      %v541 = vunpack.c.l.b16 %v327
      %v542 = vunpack.c.h.b16 %v327
      %v543 = vunpack.c.l.b16 %v328
      %v544 = vunpack.c.h.b16 %v328
      %v545 = vunpack.c.l.b16 %v329
      %v546 = vunpack.c.h.b16 %v329
      %v547 = vunpack.c.l.b16 %v330
      %v548 = vunpack.c.h.b16 %v330
      %v549 = vunpack.c.l.b16 %v331
      %v550 = vunpack.c.h.b16 %v331
      %v551 = vunpack.c.l.b16 %v332
      %v552 = vunpack.c.h.b16 %v332
      %v553 = vunpack.c.l.b16 %v333
      %v554 = vunpack.c.h.b16 %v333
      %v555 = vunpack.c.l.b16 %v334
      %v556 = vunpack.c.h.b16 %v334
      %v557 = vunpack.c.l.b16 %v335
      %v558 = vunpack.c.h.b16 %v335
      %v559 = vunpack.c.l.b16 %v336
      %v560 = vunpack.c.h.b16 %v336
      %v561 = vunpack.c.l.b16 %v337
      %v562 = vunpack.c.h.b16 %v337
      %v563 = vunpack.c.l.b16 %v338
      %v564 = vunpack.c.h.b16 %v338
      %v565 = vunpack.c.l.b16 %v339
      %v566 = vunpack.c.h.b16 %v339
      %v567 = vunpack.c.l.b16 %v340
      %v568 = vunpack.c.h.b16 %v340
      %v569 = vunpack.c.l.b16 %v341
      %v570 = vunpack.c.h.b16 %v341
      %v571 = vunpack.c.l.b16 %v342
      %v572 = vunpack.c.h.b16 %v342
      %v573 = vunpack.c.l.b16 %v343
      %v574 = vunpack.c.h.b16 %v343
      %v575 = vunpack.c.l.b16 %v344
      %v576 = vunpack.c.h.b16 %v344
      %v577 = vunpack.c.l.b16 %v345
      %v578 = vunpack.c.h.b16 %v345
      %v579 = vunpack.c.l.b16 %v346
      %v580 = vunpack.c.h.b16 %v346
      %v581 = vunpack.c.l.b16 %v347
      %v582 = vunpack.c.h.b16 %v347
      %v583 = vunpack.c.l.b16 %v348
      %v584 = vunpack.c.h.b16 %v348
      %v585 = vunpack.c.l.b16 %v349
      %v586 = vunpack.c.h.b16 %v349
      %v587 = vunpack.c.l.b16 %v350
      %v588 = vunpack.c.h.b16 %v350
      %v589 = vunpack.c.l.b16 %v351
      %v590 = vunpack.c.h.b16 %v351
      %v591 = vunpack.c.l.b16 %v352
      %v592 = vunpack.c.h.b16 %v352
      %v593 = vunpack.c.l.b16 %v353
      %v594 = vunpack.c.h.b16 %v353
      %v595 = vpack.c.b16 %v471, %v467
      %v596 = vpack.c.b16 %v472, %v468
      %v597 = vpack.c.b16 %v473, %v469
      %v598 = vpack.c.b16 %v474, %v470
      %v599 = vpack.c.b16 %v479, %v475
      %v600 = vpack.c.b16 %v480, %v476
      %v601 = vpack.c.b16 %v481, %v477
      %v602 = vpack.c.b16 %v482, %v478
      %v603 = vpack.c.b16 %v487, %v483
      %v604 = vpack.c.b16 %v488, %v484
      %v605 = vpack.c.b16 %v489, %v485
      %v606 = vpack.c.b16 %v490, %v486
      %v607 = vpack.c.b16 %v495, %v491
      %v608 = vpack.c.b16 %v496, %v492
      %v609 = vpack.c.b16 %v497, %v493
      %v610 = vpack.c.b16 %v498, %v494
      %v611 = vpack.c.b16 %v503, %v499
      %v612 = vpack.c.b16 %v504, %v500
      %v613 = vpack.c.b16 %v505, %v501
      %v614 = vpack.c.b16 %v506, %v502
      %v615 = vpack.c.b16 %v511, %v507
      %v616 = vpack.c.b16 %v512, %v508
      %v617 = vpack.c.b16 %v513, %v509
      %v618 = vpack.c.b16 %v514, %v510
      %v619 = vpack.c.b16 %v519, %v515
      %v620 = vpack.c.b16 %v520, %v516
      %v621 = vpack.c.b16 %v521, %v517
      %v622 = vpack.c.b16 %v522, %v518
      %v623 = vpack.c.b16 %v527, %v523
      %v624 = vpack.c.b16 %v528, %v524
      %v625 = vpack.c.b16 %v529, %v525
      %v626 = vpack.c.b16 %v530, %v526
      %v627 = vpack.c.b16 %v535, %v531
      %v628 = vpack.c.b16 %v536, %v532
      %v629 = vpack.c.b16 %v537, %v533
      %v630 = vpack.c.b16 %v538, %v534
      %v631 = vpack.c.b16 %v543, %v539
      %v632 = vpack.c.b16 %v544, %v540
      %v633 = vpack.c.b16 %v545, %v541
      %v634 = vpack.c.b16 %v546, %v542
      %v635 = vpack.c.b16 %v551, %v547
      %v636 = vpack.c.b16 %v552, %v548
      %v637 = vpack.c.b16 %v553, %v549
      %v638 = vpack.c.b16 %v554, %v550
      %v639 = vpack.c.b16 %v559, %v555
      %v640 = vpack.c.b16 %v560, %v556
      %v641 = vpack.c.b16 %v561, %v557
      %v642 = vpack.c.b16 %v562, %v558
      %v643 = vpack.c.b16 %v567, %v563
      %v644 = vpack.c.b16 %v568, %v564
      %v645 = vpack.c.b16 %v569, %v565
      %v646 = vpack.c.b16 %v570, %v566
      %v647 = vpack.c.b16 %v575, %v571
      %v648 = vpack.c.b16 %v576, %v572
      %v649 = vpack.c.b16 %v577, %v573
      %v650 = vpack.c.b16 %v578, %v574
      %v651 = vpack.c.b16 %v583, %v579
      %v652 = vpack.c.b16 %v584, %v580
      %v653 = vpack.c.b16 %v585, %v581
      %v654 = vpack.c.b16 %v586, %v582
      %v655 = vpack.c.b16 %v591, %v587
      %v656 = vpack.c.b16 %v592, %v588
      %v657 = vpack.c.b16 %v593, %v589
      %v658 = vpack.c.b16 %v594, %v590
      %v756 = vunpack.c.l.b16 %v354
      %v757 = vunpack.c.l.b16 %v355
      %v758 = vunpack.c.l.b16 %v356
      %v759 = vunpack.c.l.b16 %v357
      %v760 = vunpack.c.l.b16 %v358
      %v761 = vunpack.c.l.b16 %v359
      %v762 = vunpack.c.l.b16 %v360
      %v763 = vunpack.c.l.b16 %v361
      %v764 = vunpack.c.l.b16 %v362
      %v765 = vunpack.c.l.b16 %v363
      %v766 = vunpack.c.l.b16 %v364
      %v767 = vunpack.c.l.b16 %v365
      %v768 = vunpack.c.l.b16 %v366
      %v769 = vunpack.c.l.b16 %v367
      %v770 = vunpack.c.l.b16 %v368
      %v771 = vunpack.c.l.b16 %v369
      %v772 = vunpack.c.l.b16 %v370
      %v773 = vunpack.c.l.b16 %v371
      %v774 = vunpack.c.l.b16 %v372
      %v775 = vunpack.c.l.b16 %v373
      %v776 = vunpack.c.l.b16 %v374
      %v777 = vunpack.c.l.b16 %v375
      %v778 = vunpack.c.l.b16 %v376
      %v779 = vunpack.c.l.b16 %v377
      %v780 = vunpack.c.l.b16 %v378
      %v781 = vunpack.c.l.b16 %v379
      %v782 = vunpack.c.l.b16 %v380
      %v783 = vunpack.c.l.b16 %v381
      %v784 = vunpack.c.l.b16 %v382
      %v785 = vunpack.c.l.b16 %v383
      %v786 = vunpack.c.l.b16 %v384
      %v787 = vunpack.c.l.b16 %v385
      %v788 = vunpack.c.l.b16 %v386
      %v789 = vunpack.c.l.b16 %v387
      %v790 = vunpack.c.l.b16 %v388
      %v791 = vunpack.c.l.b16 %v389
      %v792 = vunpack.c.l.b16 %v390
      %v793 = vunpack.c.l.b16 %v391
      %v794 = vunpack.c.l.b16 %v392
      %v795 = vunpack.c.l.b16 %v393
      %v796 = vunpack.c.l.b16 %v394
      %v797 = vunpack.c.l.b16 %v395
      %v798 = vunpack.c.l.b16 %v396
      %v799 = vunpack.c.l.b16 %v397
      %v800 = vunpack.c.l.b16 %v398
      %v801 = vunpack.c.l.b16 %v399
      %v802 = vunpack.c.l.b16 %v400
      %v803 = vunpack.c.l.b16 %v401
      %v804 = vunpack.c.l.b16 %v402
      %v805 = vpack.c.b16 %v757, %v756
      %v806 = vpack.c.b16 %v759, %v758
      %v807 = vpack.c.b16 %v761, %v760
      %v808 = vpack.c.b16 %v763, %v762
      %v809 = vpack.c.b16 %v765, %v764
      %v810 = vpack.c.b16 %v767, %v766
      %v811 = vpack.c.b16 %v769, %v768
      %v812 = vpack.c.b16 %v771, %v770
      %v813 = vpack.c.b16 %v773, %v772
      %v814 = vpack.c.b16 %v775, %v774
      %v815 = vpack.c.b16 %v777, %v776
      %v816 = vpack.c.b16 %v779, %v778
      %v817 = vpack.c.b16 %v781, %v780
      %v818 = vpack.c.b16 %v783, %v782
      %v819 = vpack.c.b16 %v785, %v784
      %v820 = vpack.c.b16 %v787, %v786
      %v821 = vpack.c.b16 %v789, %v788
      %v822 = vpack.c.b16 %v791, %v790
      %v823 = vpack.c.b16 %v793, %v792
      %v824 = vpack.c.b16 %v795, %v794
      %v825 = vpack.c.b16 %v797, %v796
      %v826 = vpack.c.b16 %v799, %v798
      %v827 = vpack.c.b16 %v801, %v800
      %v828 = vpack.c.b16 %v803, %v802
      %v829 = vpack.c.b16 %v804, %v804
      %vm854 = vcmask 64512
      %v856 = vsel %vm854, %v598, 0
      %v859 = vsel %vm854, %v602, 0
      %v862 = vsel %vm854, %v606, 0
      %v865 = vsel %vm854, %v610, 0
      %v868 = vsel %vm854, %v614, 0
      %v871 = vsel %vm854, %v618, 0
      %v874 = vsel %vm854, %v622, 0
      %v877 = vsel %vm854, %v626, 0
      %v880 = vsel %vm854, %v630, 0
      %v883 = vsel %vm854, %v634, 0
      %v886 = vsel %vm854, %v638, 0
      %v889 = vsel %vm854, %v642, 0
      %v892 = vsel %vm854, %v646, 0
      %v895 = vsel %vm854, %v650, 0
      %v898 = vsel %vm854, %v654, 0
      %v901 = vsel %vm854, %v658, 0
      %vm903 = vcmask 1043456
      %v905 = vsel %vm903, %v829, 0
      %907 = vmatprep.subr.bf16.mxu0 0
      %908 = vmatpush1.bf16.msra.mxu0 %v805
      %909 = vmatprep.subr.bf16.mxu0 0
      %910 = vmatpush1.bf16.msra.mxu0 %v806
      %911 = vmatprep.subr.bf16.mxu0 0
      %912 = vmatpush1.bf16.msra.mxu0 %v807
      %913 = vmatprep.subr.bf16.mxu0 0
      %914 = vmatpush1.bf16.msra.mxu0 %v808
      %915 = vmatprep.subr.bf16.mxu0 0
      %916 = vmatpush1.bf16.msra.mxu0 %v809
      %917 = vmatprep.subr.bf16.mxu0 0
      %918 = vmatpush1.bf16.msra.mxu0 %v810
      %919 = vmatprep.subr.bf16.mxu0 0
      %920 = vmatpush1.bf16.msra.mxu0 %v811
      %921 = vmatprep.subr.bf16.mxu0 0
      %922 = vmatpush1.bf16.msra.mxu0 %v812
      %923 = vmatprep.subr.bf16.mxu0 0
      %924 = vmatpush1.bf16.msra.mxu0 %v813
      %925 = vmatprep.subr.bf16.mxu0 0
      %926 = vmatpush1.bf16.msra.mxu0 %v814
      %927 = vmatprep.subr.bf16.mxu0 0
      %928 = vmatpush1.bf16.msra.mxu0 %v815
      %929 = vmatprep.subr.bf16.mxu0 0
      %930 = vmatpush1.bf16.msra.mxu0 %v816
      %931 = vmatprep.subr.bf16.mxu0 0
      %932 = vmatpush1.bf16.msra.mxu0 %v817
      %933 = vmatprep.subr.bf16.mxu0 0
      %934 = vmatpush1.bf16.msra.mxu0 %v818
      %935 = vmatprep.subr.bf16.mxu0 0
      %936 = vmatpush1.bf16.msra.mxu0 %v819
      %937 = vmatprep.subr.bf16.mxu0 0
      %938 = vmatpush1.bf16.msra.mxu0 %v820
      %939 = vmatprep.mubr.bf16.mxu0 %v596
      %940 = vmatmul.mubr.bf16.gmra.mrb[0].mxu0 %v595
      %v941 = vpop.f32.mrb[0].mxu0
      %v942 = vadd.f32 0.0, %v941
      %v943 = vpop.f32.mrb[0].mxu0
      %v944 = vpop.f32.mrb[0].mxu0
      %v945 = vadd.f32 0.0, %v944
      %v946 = vpop.f32.mrb[0].mxu0
      %947 = vmatprep.mubr.bf16.mxu0 %v600
      %948 = vmatmul.mubr.bf16.gmra.mrb[0].mxu0 %v599
      %v949 = vpop.f32.mrb[0].mxu0
      %v950 = vadd.f32 0.0, %v949
      %v951 = vpop.f32.mrb[0].mxu0
      %v952 = vpop.f32.mrb[0].mxu0
      %v953 = vadd.f32 0.0, %v952
      %v954 = vpop.f32.mrb[0].mxu0
      %955 = vmatprep.mubr.bf16.mxu0 %v604
      %956 = vmatmul.mubr.bf16.gmra.mrb[0].mxu0 %v603
      %v957 = vpop.f32.mrb[0].mxu0
      %v958 = vadd.f32 0.0, %v957
      %v959 = vpop.f32.mrb[0].mxu0
      %v960 = vpop.f32.mrb[0].mxu0
      %v961 = vadd.f32 0.0, %v960
      %v962 = vpop.f32.mrb[0].mxu0
      %963 = vmatprep.mubr.bf16.mxu0 %v608
      %964 = vmatmul.mubr.bf16.gmra.mrb[0].mxu0 %v607
      %v965 = vpop.f32.mrb[0].mxu0
      %v966 = vadd.f32 0.0, %v965
      %v967 = vpop.f32.mrb[0].mxu0
      %v968 = vpop.f32.mrb[0].mxu0
      %v969 = vadd.f32 0.0, %v968
      %v970 = vpop.f32.mrb[0].mxu0
      %971 = vmatprep.mubr.bf16.mxu0 %v612
      %972 = vmatmul.mubr.bf16.gmra.mrb[0].mxu0 %v611
      %v973 = vpop.f32.mrb[0].mxu0
      %v974 = vadd.f32 0.0, %v973
      %v975 = vpop.f32.mrb[0].mxu0
      %v976 = vpop.f32.mrb[0].mxu0
      %v977 = vadd.f32 0.0, %v976
      %v978 = vpop.f32.mrb[0].mxu0
      %979 = vmatprep.mubr.bf16.mxu0 %v616
      %980 = vmatmul.mubr.bf16.gmra.mrb[0].mxu0 %v615
      %v981 = vpop.f32.mrb[0].mxu0
      %v982 = vadd.f32 0.0, %v981
      %v983 = vpop.f32.mrb[0].mxu0
      %v984 = vpop.f32.mrb[0].mxu0
      %v985 = vadd.f32 0.0, %v984
      %v986 = vpop.f32.mrb[0].mxu0
      %987 = vmatprep.mubr.bf16.mxu0 %v620
      %988 = vmatmul.mubr.bf16.gmra.mrb[0].mxu0 %v619
      %v989 = vpop.f32.mrb[0].mxu0
      %v990 = vadd.f32 0.0, %v989
      %v991 = vpop.f32.mrb[0].mxu0
      %v992 = vpop.f32.mrb[0].mxu0
      %v993 = vadd.f32 0.0, %v992
      %v994 = vpop.f32.mrb[0].mxu0
      %995 = vmatprep.mubr.bf16.mxu0 %v624
      %996 = vmatmul.mubr.bf16.gmra.mrb[0].mxu0 %v623
      %v997 = vpop.f32.mrb[0].mxu0
      %v998 = vadd.f32 0.0, %v997
      %v999 = vpop.f32.mrb[0].mxu0
      %v1000 = vpop.f32.mrb[0].mxu0
      %v1001 = vadd.f32 0.0, %v1000
      %v1002 = vpop.f32.mrb[0].mxu0
      %1003 = vmatprep.mubr.bf16.mxu0 %v628
      %1004 = vmatmul.mubr.bf16.gmra.mrb[0].mxu0 %v627
      %v1005 = vpop.f32.mrb[0].mxu0
      %v1006 = vadd.f32 0.0, %v1005
      %v1007 = vpop.f32.mrb[0].mxu0
      %v1008 = vpop.f32.mrb[0].mxu0
      %v1009 = vadd.f32 0.0, %v1008
      %v1010 = vpop.f32.mrb[0].mxu0
      %1011 = vmatprep.mubr.bf16.mxu0 %v632
      %1012 = vmatmul.mubr.bf16.gmra.mrb[0].mxu0 %v631
      %v1013 = vpop.f32.mrb[0].mxu0
      %v1014 = vadd.f32 0.0, %v1013
      %v1015 = vpop.f32.mrb[0].mxu0
      %v1016 = vpop.f32.mrb[0].mxu0
      %v1017 = vadd.f32 0.0, %v1016
      %v1018 = vpop.f32.mrb[0].mxu0
      %1019 = vmatprep.mubr.bf16.mxu0 %v636
      %1020 = vmatmul.mubr.bf16.gmra.mrb[0].mxu0 %v635
      %v1021 = vpop.f32.mrb[0].mxu0
      %v1022 = vadd.f32 0.0, %v1021
      %v1023 = vpop.f32.mrb[0].mxu0
      %v1024 = vpop.f32.mrb[0].mxu0
      %v1025 = vadd.f32 0.0, %v1024
      %v1026 = vpop.f32.mrb[0].mxu0
      %1027 = vmatprep.mubr.bf16.mxu0 %v640
      %1028 = vmatmul.mubr.bf16.gmra.mrb[0].mxu0 %v639
      %v1029 = vpop.f32.mrb[0].mxu0
      %v1030 = vadd.f32 0.0, %v1029
      %v1031 = vpop.f32.mrb[0].mxu0
      %v1032 = vpop.f32.mrb[0].mxu0
      %v1033 = vadd.f32 0.0, %v1032
      %v1034 = vpop.f32.mrb[0].mxu0
      %1035 = vmatprep.mubr.bf16.mxu0 %v644
      %1036 = vmatmul.mubr.bf16.gmra.mrb[0].mxu0 %v643
      %v1037 = vpop.f32.mrb[0].mxu0
      %v1038 = vadd.f32 0.0, %v1037
      %v1039 = vpop.f32.mrb[0].mxu0
      %v1040 = vpop.f32.mrb[0].mxu0
      %v1041 = vadd.f32 0.0, %v1040
      %v1042 = vpop.f32.mrb[0].mxu0
      %1043 = vmatprep.mubr.bf16.mxu0 %v648
      %1044 = vmatmul.mubr.bf16.gmra.mrb[0].mxu0 %v647
      %v1045 = vpop.f32.mrb[0].mxu0
      %v1046 = vadd.f32 0.0, %v1045
      %v1047 = vpop.f32.mrb[0].mxu0
      %v1048 = vpop.f32.mrb[0].mxu0
      %v1049 = vadd.f32 0.0, %v1048
      %v1050 = vpop.f32.mrb[0].mxu0
      %1051 = vmatprep.mubr.bf16.mxu0 %v652
      %1052 = vmatmul.mubr.bf16.gmra.mrb[0].mxu0 %v651
      %v1053 = vpop.f32.mrb[0].mxu0
      %v1054 = vadd.f32 0.0, %v1053
      %v1055 = vpop.f32.mrb[0].mxu0
      %v1056 = vpop.f32.mrb[0].mxu0
      %v1057 = vadd.f32 0.0, %v1056
      %v1058 = vpop.f32.mrb[0].mxu0
      %1059 = vmatprep.mubr.bf16.mxu0 %v656
      %1060 = vmatmul.mubr.bf16.gmra.mrb[0].mxu0 %v655
      %v1061 = vpop.f32.mrb[0].mxu0
      %v1062 = vadd.f32 0.0, %v1061
      %v1063 = vpop.f32.mrb[0].mxu0
      %v1064 = vpop.f32.mrb[0].mxu0
      %v1065 = vadd.f32 0.0, %v1064
      %v1066 = vpop.f32.mrb[0].mxu0
      %1067 = vdwg.mxu0
      %1068 = vmatprep.subr.bf16.mxu0 0
      %1069 = vmatpush1.bf16.msra.mxu0 %v821
      %1070 = vmatprep.subr.bf16.mxu0 0
      %1071 = vmatpush1.bf16.msra.mxu0 %v822
      %1072 = vmatprep.subr.bf16.mxu0 0
      %1073 = vmatpush1.bf16.msra.mxu0 %v823
      %1074 = vmatprep.subr.bf16.mxu0 0
      %1075 = vmatpush1.bf16.msra.mxu0 %v824
      %1076 = vmatprep.subr.bf16.mxu0 0
      %1077 = vmatpush1.bf16.msra.mxu0 %v825
      %1078 = vmatprep.subr.bf16.mxu0 0
      %1079 = vmatpush1.bf16.msra.mxu0 %v826
      %1080 = vmatprep.subr.bf16.mxu0 0
      %1081 = vmatpush1.bf16.msra.mxu0 %v827
      %1082 = vmatprep.subr.bf16.mxu0 0
      %1083 = vmatpush1.bf16.msra.mxu0 %v828
      %1084 = vmatprep.subr.bf16.mxu0 0
      %1085 = vmatpush1.bf16.msra.mxu0 %v905
      %1086 = vmatprep.subr.bf16.mxu0 0
      %1087 = vmatpush1.bf16.msra.mxu0 0
      %1088 = vmatprep.subr.bf16.mxu0 0
      %1089 = vmatpush1.bf16.msra.mxu0 0
      %1090 = vmatprep.subr.bf16.mxu0 0
      %1091 = vmatpush1.bf16.msra.mxu0 0
      %1092 = vmatprep.subr.bf16.mxu0 0
      %1093 = vmatpush1.bf16.msra.mxu0 0
      %1094 = vmatprep.subr.bf16.mxu0 0
      %1095 = vmatpush1.bf16.msra.mxu0 0
      %1096 = vmatprep.subr.bf16.mxu0 0
      %1097 = vmatpush1.bf16.msra.mxu0 0
      %1098 = vmatprep.subr.bf16.mxu0 0
      %1099 = vmatpush1.bf16.msra.mxu0 0
      %1100 = vmatprep.mubr.bf16.mxu0 %v856
      %1101 = vmatmul.mubr.bf16.gmra.mrb[0].mxu0 %v597
      %v1102 = vpop.f32.mrb[0].mxu0
      %v1103 = vadd.f32 %v942, %v1102
      %v1104 = vpop.f32.mrb[0].mxu0
      %v1105 = vpop.f32.mrb[0].mxu0
      %v1106 = vadd.f32 %v945, %v1105
      %v1107 = vpop.f32.mrb[0].mxu0
      %1108 = vmatprep.mubr.bf16.mxu0 %v859
      %1109 = vmatmul.mubr.bf16.gmra.mrb[0].mxu0 %v601
      %v1110 = vpop.f32.mrb[0].mxu0
      %v1111 = vadd.f32 %v950, %v1110
      %v1112 = vpop.f32.mrb[0].mxu0
      %v1113 = vpop.f32.mrb[0].mxu0
      %v1114 = vadd.f32 %v953, %v1113
      %v1115 = vpop.f32.mrb[0].mxu0
      %1116 = vmatprep.mubr.bf16.mxu0 %v862
      %1117 = vmatmul.mubr.bf16.gmra.mrb[0].mxu0 %v605
      %v1118 = vpop.f32.mrb[0].mxu0
      %v1119 = vadd.f32 %v958, %v1118
      %v1120 = vpop.f32.mrb[0].mxu0
      %v1121 = vpop.f32.mrb[0].mxu0
      %v1122 = vadd.f32 %v961, %v1121
      %v1123 = vpop.f32.mrb[0].mxu0
      %1124 = vmatprep.mubr.bf16.mxu0 %v865
      %1125 = vmatmul.mubr.bf16.gmra.mrb[0].mxu0 %v609
      %v1126 = vpop.f32.mrb[0].mxu0
      %v1127 = vadd.f32 %v966, %v1126
      %v1128 = vpop.f32.mrb[0].mxu0
      %v1129 = vpop.f32.mrb[0].mxu0
      %v1130 = vadd.f32 %v969, %v1129
      %v1131 = vpop.f32.mrb[0].mxu0
      %1132 = vmatprep.mubr.bf16.mxu0 %v868
      %1133 = vmatmul.mubr.bf16.gmra.mrb[0].mxu0 %v613
      %v1134 = vpop.f32.mrb[0].mxu0
      %v1135 = vadd.f32 %v974, %v1134
      %v1136 = vpop.f32.mrb[0].mxu0
      %v1137 = vpop.f32.mrb[0].mxu0
      %v1138 = vadd.f32 %v977, %v1137
      %v1139 = vpop.f32.mrb[0].mxu0
      %1140 = vmatprep.mubr.bf16.mxu0 %v871
      %1141 = vmatmul.mubr.bf16.gmra.mrb[0].mxu0 %v617
      %v1142 = vpop.f32.mrb[0].mxu0
      %v1143 = vadd.f32 %v982, %v1142
      %v1144 = vpop.f32.mrb[0].mxu0
      %v1145 = vpop.f32.mrb[0].mxu0
      %v1146 = vadd.f32 %v985, %v1145
      %v1147 = vpop.f32.mrb[0].mxu0
      %1148 = vmatprep.mubr.bf16.mxu0 %v874
      %1149 = vmatmul.mubr.bf16.gmra.mrb[0].mxu0 %v621
      %v1150 = vpop.f32.mrb[0].mxu0
      %v1151 = vadd.f32 %v990, %v1150
      %v1152 = vpop.f32.mrb[0].mxu0
      %v1153 = vpop.f32.mrb[0].mxu0
      %v1154 = vadd.f32 %v993, %v1153
      %v1155 = vpop.f32.mrb[0].mxu0
      %1156 = vmatprep.mubr.bf16.mxu0 %v877
      %1157 = vmatmul.mubr.bf16.gmra.mrb[0].mxu0 %v625
      %v1158 = vpop.f32.mrb[0].mxu0
      %v1159 = vadd.f32 %v998, %v1158
      %v1160 = vpop.f32.mrb[0].mxu0
      %v1161 = vpop.f32.mrb[0].mxu0
      %v1162 = vadd.f32 %v1001, %v1161
      %v1163 = vpop.f32.mrb[0].mxu0
      %1164 = vmatprep.mubr.bf16.mxu0 %v880
      %1165 = vmatmul.mubr.bf16.gmra.mrb[0].mxu0 %v629
      %v1166 = vpop.f32.mrb[0].mxu0
      %v1167 = vadd.f32 %v1006, %v1166
      %v1168 = vpop.f32.mrb[0].mxu0
      %v1169 = vpop.f32.mrb[0].mxu0
      %v1170 = vadd.f32 %v1009, %v1169
      %v1171 = vpop.f32.mrb[0].mxu0
      %1172 = vmatprep.mubr.bf16.mxu0 %v883
      %1173 = vmatmul.mubr.bf16.gmra.mrb[0].mxu0 %v633
      %v1174 = vpop.f32.mrb[0].mxu0
      %v1175 = vadd.f32 %v1014, %v1174
      %v1176 = vpop.f32.mrb[0].mxu0
      %v1177 = vpop.f32.mrb[0].mxu0
      %v1178 = vadd.f32 %v1017, %v1177
      %v1179 = vpop.f32.mrb[0].mxu0
      %1180 = vmatprep.mubr.bf16.mxu0 %v886
      %1181 = vmatmul.mubr.bf16.gmra.mrb[0].mxu0 %v637
      %v1182 = vpop.f32.mrb[0].mxu0
      %v1183 = vadd.f32 %v1022, %v1182
      %v1184 = vpop.f32.mrb[0].mxu0
      %v1185 = vpop.f32.mrb[0].mxu0
      %v1186 = vadd.f32 %v1025, %v1185
      %v1187 = vpop.f32.mrb[0].mxu0
      %1188 = vmatprep.mubr.bf16.mxu0 %v889
      %1189 = vmatmul.mubr.bf16.gmra.mrb[0].mxu0 %v641
      %v1190 = vpop.f32.mrb[0].mxu0
      %v1191 = vadd.f32 %v1030, %v1190
      %v1192 = vpop.f32.mrb[0].mxu0
      %v1193 = vpop.f32.mrb[0].mxu0
      %v1194 = vadd.f32 %v1033, %v1193
      %v1195 = vpop.f32.mrb[0].mxu0
      %1196 = vmatprep.mubr.bf16.mxu0 %v892
      %1197 = vmatmul.mubr.bf16.gmra.mrb[0].mxu0 %v645
      %v1198 = vpop.f32.mrb[0].mxu0
      %v1199 = vadd.f32 %v1038, %v1198
      %v1200 = vpop.f32.mrb[0].mxu0
      %v1201 = vpop.f32.mrb[0].mxu0
      %v1202 = vadd.f32 %v1041, %v1201
      %v1203 = vpop.f32.mrb[0].mxu0
      %1204 = vmatprep.mubr.bf16.mxu0 %v895
      %1205 = vmatmul.mubr.bf16.gmra.mrb[0].mxu0 %v649
      %v1206 = vpop.f32.mrb[0].mxu0
      %v1207 = vadd.f32 %v1046, %v1206
      %v1208 = vpop.f32.mrb[0].mxu0
      %v1209 = vpop.f32.mrb[0].mxu0
      %v1210 = vadd.f32 %v1049, %v1209
      %v1211 = vpop.f32.mrb[0].mxu0
      %1212 = vmatprep.mubr.bf16.mxu0 %v898
      %1213 = vmatmul.mubr.bf16.gmra.mrb[0].mxu0 %v653
      %v1214 = vpop.f32.mrb[0].mxu0
      %v1215 = vadd.f32 %v1054, %v1214
      %v1216 = vpop.f32.mrb[0].mxu0
      %v1217 = vpop.f32.mrb[0].mxu0
      %v1218 = vadd.f32 %v1057, %v1217
      %v1219 = vpop.f32.mrb[0].mxu0
      %1220 = vmatprep.mubr.bf16.mxu0 %v901
      %1221 = vmatmul.mubr.bf16.gmra.mrb[0].mxu0 %v657
      %v1222 = vpop.f32.mrb[0].mxu0
      %v1223 = vadd.f32 %v1062, %v1222
      %v1224 = vpop.f32.mrb[0].mxu0
      %v1225 = vpop.f32.mrb[0].mxu0
      %v1226 = vadd.f32 %v1065, %v1225
      %v1227 = vpop.f32.mrb[0].mxu0
      %1228 = vdwg.mxu0
      %v1229 = vadd.f32 %v258, %v1103
      %v1230 = vadd.f32 %v259, %v1106
      %v1231 = vadd.f32 %v260, %v1111
      %v1232 = vadd.f32 %v261, %v1114
      %v1233 = vadd.f32 %v262, %v1119
      %v1234 = vadd.f32 %v263, %v1122
      %v1235 = vadd.f32 %v264, %v1127
      %v1236 = vadd.f32 %v265, %v1130
      %v1237 = vadd.f32 %v266, %v1135
      %v1238 = vadd.f32 %v267, %v1138
      %v1239 = vadd.f32 %v268, %v1143
      %v1240 = vadd.f32 %v269, %v1146
      %v1241 = vadd.f32 %v270, %v1151
      %v1242 = vadd.f32 %v271, %v1154
      %v1243 = vadd.f32 %v272, %v1159
      %v1244 = vadd.f32 %v273, %v1162
      %v1245 = vadd.f32 %v274, %v1167
      %v1246 = vadd.f32 %v275, %v1170
      %v1247 = vadd.f32 %v276, %v1175
      %v1248 = vadd.f32 %v277, %v1178
      %v1249 = vadd.f32 %v278, %v1183
      %v1250 = vadd.f32 %v279, %v1186
      %v1251 = vadd.f32 %v280, %v1191
      %v1252 = vadd.f32 %v281, %v1194
      %v1253 = vadd.f32 %v282, %v1199
      %v1254 = vadd.f32 %v283, %v1202
      %v1255 = vadd.f32 %v284, %v1207
      %v1256 = vadd.f32 %v285, %v1210
      %v1257 = vadd.f32 %v286, %v1215
      %v1258 = vadd.f32 %v287, %v1218
      %v1259 = vadd.f32 %v288, %v1223
      %v1260 = vadd.f32 %v289, %v1226
      %1261 = vst [vmem:[#allocation2] sm:$0xff] %v1229
      %1262 = vst [vmem:[#allocation2 + $0x8] sm:$0xff] %v1230
      %1263 = vst [vmem:[#allocation2 + $0x10] sm:$0xff] %v1231
      %1264 = vst [vmem:[#allocation2 + $0x18] sm:$0xff] %v1232
      %1265 = vst [vmem:[#allocation2 + $0x20] sm:$0xff] %v1233
      %1266 = vst [vmem:[#allocation2 + $0x28] sm:$0xff] %v1234
      %1267 = vst [vmem:[#allocation2 + $0x30] sm:$0xff] %v1235
      %1268 = vst [vmem:[#allocation2 + $0x38] sm:$0xff] %v1236
      %1269 = vst [vmem:[#allocation2 + $0x40] sm:$0xff] %v1237
      %1270 = vst [vmem:[#allocation2 + $0x48] sm:$0xff] %v1238
      %1271 = vst [vmem:[#allocation2 + $0x50] sm:$0xff] %v1239
      %1272 = vst [vmem:[#allocation2 + $0x58] sm:$0xff] %v1240
      %1273 = vst [vmem:[#allocation2 + $0x60] sm:$0xff] %v1241
      %1274 = vst [vmem:[#allocation2 + $0x68] sm:$0xff] %v1242
      %1275 = vst [vmem:[#allocation2 + $0x70] sm:$0xff] %v1243
      %1276 = vst [vmem:[#allocation2 + $0x78] sm:$0xff] %v1244
      %1277 = vst [vmem:[#allocation2 + $0x80] sm:$0xff] %v1245
      %1278 = vst [vmem:[#allocation2 + $0x88] sm:$0xff] %v1246
      %1279 = vst [vmem:[#allocation2 + $0x90] sm:$0xff] %v1247
      %1280 = vst [vmem:[#allocation2 + $0x98] sm:$0xff] %v1248
      %1281 = vst [vmem:[#allocation2 + $0xa0] sm:$0xff] %v1249
      %1282 = vst [vmem:[#allocation2 + $0xa8] sm:$0xff] %v1250
      %1283 = vst [vmem:[#allocation2 + $0xb0] sm:$0xff] %v1251
      %1284 = vst [vmem:[#allocation2 + $0xb8] sm:$0xff] %v1252
      %1285 = vst [vmem:[#allocation2 + $0xc0] sm:$0xff] %v1253
      %1286 = vst [vmem:[#allocation2 + $0xc8] sm:$0xff] %v1254
      %1287 = vst [vmem:[#allocation2 + $0xd0] sm:$0xff] %v1255
      %1288 = vst [vmem:[#allocation2 + $0xd8] sm:$0xff] %v1256
      %1289 = vst [vmem:[#allocation2 + $0xe0] sm:$0xff] %v1257
      %1290 = vst [vmem:[#allocation2 + $0xe8] sm:$0xff] %v1258
      %1291 = vst [vmem:[#allocation2 + $0xf0] sm:$0xff] %v1259
      %1292 = vst [vmem:[#allocation2 + $0xf8] sm:$0xff] %v1260
      // Predicated region
      $region37: #{generator_forward.27} parent=31 // pred_check
        %p1293 = pneg %p222
      $region38: #{generator_forward.27} parent=31 // pred_check_branch
        %1295 = sbr.rel (%p1293) target = $region40
      $region39: #{generator_forward.27} parent=31 // pred_region
        %v1296 = vld [vmem:[#allocation2] sm:$0xff]
        %v1297 = vld [vmem:[#allocation2 + $0x8] sm:$0xff]
        %v1298 = vld [vmem:[#allocation2 + $0x10] sm:$0xff]
        %v1299 = vld [vmem:[#allocation2 + $0x18] sm:$0xff]
        %v1300 = vld [vmem:[#allocation2 + $0x20] sm:$0xff]
        %v1301 = vld [vmem:[#allocation2 + $0x28] sm:$0xff]
        %v1302 = vld [vmem:[#allocation2 + $0x30] sm:$0xff]
        %v1303 = vld [vmem:[#allocation2 + $0x38] sm:$0xff]
        %v1304 = vld [vmem:[#allocation2 + $0x40] sm:$0xff]
        %v1305 = vld [vmem:[#allocation2 + $0x48] sm:$0xff]
        %v1306 = vld [vmem:[#allocation2 + $0x50] sm:$0xff]
        %v1307 = vld [vmem:[#allocation2 + $0x58] sm:$0xff]
        %v1308 = vld [vmem:[#allocation2 + $0x60] sm:$0xff]
        %v1309 = vld [vmem:[#allocation2 + $0x68] sm:$0xff]
        %v1310 = vld [vmem:[#allocation2 + $0x70] sm:$0xff]
        %v1311 = vld [vmem:[#allocation2 + $0x78] sm:$0xff]
        %v1312 = vld [vmem:[#allocation2 + $0x80] sm:$0xff]
        %v1313 = vld [vmem:[#allocation2 + $0x88] sm:$0xff]
        %v1314 = vld [vmem:[#allocation2 + $0x90] sm:$0xff]
        %v1315 = vld [vmem:[#allocation2 + $0x98] sm:$0xff]
        %v1316 = vld [vmem:[#allocation2 + $0xa0] sm:$0xff]
        %v1317 = vld [vmem:[#allocation2 + $0xa8] sm:$0xff]
        %v1318 = vld [vmem:[#allocation2 + $0xb0] sm:$0xff]
        %v1319 = vld [vmem:[#allocation2 + $0xb8] sm:$0xff]
        %v1320 = vld [vmem:[#allocation2 + $0xc0] sm:$0xff]
        %v1321 = vld [vmem:[#allocation2 + $0xc8] sm:$0xff]
        %v1322 = vld [vmem:[#allocation2 + $0xd0] sm:$0xff]
        %v1323 = vld [vmem:[#allocation2 + $0xd8] sm:$0xff]
        %v1324 = vld [vmem:[#allocation2 + $0xe0] sm:$0xff]
        %v1325 = vld [vmem:[#allocation2 + $0xe8] sm:$0xff]
        %v1326 = vld [vmem:[#allocation2 + $0xf0] sm:$0xff]
        %v1327 = vld [vmem:[#allocation2 + $0xf8] sm:$0xff]
        %v1328 = vld [vmem:[%s2] sm:$0x1]
        %v1330 = vlaneseq
        %v1331 = vshrl.u32 %v1330, 7
        %v1332 = vsub.s32 0, %v1331
        %v1333 = vrot.slane %v1328, %v1332
        %v1335 = vadd.f32 %v1296, %v1333
        %v1336 = vadd.f32 %v1297, %v1333
        %v1337 = vadd.f32 %v1298, %v1333
        %v1338 = vadd.f32 %v1299, %v1333
        %v1339 = vadd.f32 %v1300, %v1333
        %v1340 = vadd.f32 %v1301, %v1333
        %v1341 = vadd.f32 %v1302, %v1333
        %v1342 = vadd.f32 %v1303, %v1333
        %v1343 = vadd.f32 %v1304, %v1333
        %v1344 = vadd.f32 %v1305, %v1333
        %v1345 = vadd.f32 %v1306, %v1333
        %v1346 = vadd.f32 %v1307, %v1333
        %v1347 = vadd.f32 %v1308, %v1333
        %v1348 = vadd.f32 %v1309, %v1333
        %v1349 = vadd.f32 %v1310, %v1333
        %v1350 = vadd.f32 %v1311, %v1333
        %v1351 = vadd.f32 %v1312, %v1333
        %v1352 = vadd.f32 %v1313, %v1333
        %v1353 = vadd.f32 %v1314, %v1333
        %v1354 = vadd.f32 %v1315, %v1333
        %v1355 = vadd.f32 %v1316, %v1333
        %v1356 = vadd.f32 %v1317, %v1333
        %v1357 = vadd.f32 %v1318, %v1333
        %v1358 = vadd.f32 %v1319, %v1333
        %v1359 = vadd.f32 %v1320, %v1333
        %v1360 = vadd.f32 %v1321, %v1333
        %v1361 = vadd.f32 %v1322, %v1333
        %v1362 = vadd.f32 %v1323, %v1333
        %v1363 = vadd.f32 %v1324, %v1333
        %v1364 = vadd.f32 %v1325, %v1333
        %v1365 = vadd.f32 %v1326, %v1333
        %v1366 = vadd.f32 %v1327, %v1333
        %1367 = vst [vmem:[%s220] sm:$0xff] %v1335
        %1368 = vst [vmem:[%s220 + $0x8] sm:$0xff] %v1336
        %1369 = vst [vmem:[%s220 + $0x10] sm:$0xff] %v1337
        %1370 = vst [vmem:[%s220 + $0x18] sm:$0xff] %v1338
        %1371 = vst [vmem:[%s220 + $0x20] sm:$0xff] %v1339
        %1372 = vst [vmem:[%s220 + $0x28] sm:$0xff] %v1340
        %1373 = vst [vmem:[%s220 + $0x30] sm:$0xff] %v1341
        %1374 = vst [vmem:[%s220 + $0x38] sm:$0xff] %v1342
        %1375 = vst [vmem:[%s220 + $0x40] sm:$0xff] %v1343
        %1376 = vst [vmem:[%s220 + $0x48] sm:$0xff] %v1344
        %1377 = vst [vmem:[%s220 + $0x50] sm:$0xff] %v1345
        %1378 = vst [vmem:[%s220 + $0x58] sm:$0xff] %v1346
        %1379 = vst [vmem:[%s220 + $0x60] sm:$0xff] %v1347
        %1380 = vst [vmem:[%s220 + $0x68] sm:$0xff] %v1348
        %1381 = vst [vmem:[%s220 + $0x70] sm:$0xff] %v1349
        %1382 = vst [vmem:[%s220 + $0x78] sm:$0xff] %v1350
        %1383 = vst [vmem:[%s220 + $0x80] sm:$0xff] %v1351
        %1384 = vst [vmem:[%s220 + $0x88] sm:$0xff] %v1352
        %1385 = vst [vmem:[%s220 + $0x90] sm:$0xff] %v1353
        %1386 = vst [vmem:[%s220 + $0x98] sm:$0xff] %v1354
        %1387 = vst [vmem:[%s220 + $0xa0] sm:$0xff] %v1355
        %1388 = vst [vmem:[%s220 + $0xa8] sm:$0xff] %v1356
        %1389 = vst [vmem:[%s220 + $0xb0] sm:$0xff] %v1357
        %1390 = vst [vmem:[%s220 + $0xb8] sm:$0xff] %v1358
        %1391 = vst [vmem:[%s220 + $0xc0] sm:$0xff] %v1359
        %1392 = vst [vmem:[%s220 + $0xc8] sm:$0xff] %v1360
        %1393 = vst [vmem:[%s220 + $0xd0] sm:$0xff] %v1361
        %1394 = vst [vmem:[%s220 + $0xd8] sm:$0xff] %v1362
        %1395 = vst [vmem:[%s220 + $0xe0] sm:$0xff] %v1363
        %1396 = vst [vmem:[%s220 + $0xe8] sm:$0xff] %v1364
        %1397 = vst [vmem:[%s220 + $0xf0] sm:$0xff] %v1365
        %1398 = vst [vmem:[%s220 + $0xf8] sm:$0xff] %v1366
      $region40: #{generator_forward.27} parent=31 // pred_fallthru
        _
      %p1399 = scmp.lt.s32.totalorder %s18, 1
      %s1400 = scalar_select %p1399, %s18, 1
      %s1401 = smul.addr %s1400, 32
      %s1402 = smul.addr %s1401, 8
      %s1403 = scalar_lea.vmem %s3, %s1402
      // Predicated region
      $region41: #{generator_forward.27} parent=31 // pred_check
        %p1404 = pneg %p119
      $region42: #{generator_forward.27} parent=31 // pred_check_branch
        %1406 = sbr.rel (%p1404) target = $region44
      $region43: #{generator_forward.27} parent=31 // pred_region
        _
      $region44: #{generator_forward.27} parent=31 // pred_fallthru
        _
    $region32: #{generator_forward.27} parent=5 // pred_fallthru
      _
    %p1407 = scmp.le.s32.totalorder 2, %s9
    // Predicated region
    $region45: #{generator_forward.27} parent=5 // pred_check
      %p1408 = pneg %p1407
    $region46: #{generator_forward.27} parent=5 // pred_check_branch
      %1410 = sbr.rel (%p1408) target = $region48
    $region47: #{generator_forward.27} parent=5 // pred_region
      %s1411 = ssub.s32 %s9, 2
      // Predicated region
      $region49: #{generator_forward.27} parent=47 // pred_check
        %p1412 = pneg %p125
      $region50: #{generator_forward.27} parent=47 // pred_check_branch
        %1414 = sbr.rel (%p1412) target = $region52
      $region51: #{generator_forward.27} parent=47 // pred_region
        %p1415 = scmp.lt.s32.totalorder %s20, 1
        %s1416 = scalar_select %p1415, %s20, 1
        %s1417 = smul.addr %s1416, 32
        %s1418 = smul.addr %s1417, 8
        %s1419 = scalar_lea.vmem %s3, %s1418
      $region52: #{generator_forward.27} parent=47 // pred_fallthru
        _
    $region48: #{generator_forward.27} parent=5 // pred_fallthru
      _
  $region6: #{generator_forward.27} parent=0 // loop_footer
    %s13 = sadd.s32 1, %s9
  $region7: #{generator_forward.27} parent=0 // loop_footer_branch
    %8 = sbr.rel target = $region3
  $region8: #{generator_forward.27} parent=0 // loop_exit
    _

</llo_original>
